<compile_context>
chip_gen: v6e
topology: v6e:2x2x1
jax: 0.10.0
libtpu: 0.0.40
codegen_flags: <defaults>
</compile_context>

<pallas_src>
import math
from functools import partial

import jax
import jax.numpy as jnp
from jax import lax
from jax.experimental import pallas as pl
from jax.experimental.pallas import tpu as pltpu


# ----------------------------- fused Pallas kernel --------------------------

def _tcm_fused_kernel(
        x_ref, pe_ref, emb_w_ref, emb_b_ref,
        q_w_ref, q_b_ref, k_w_ref, k_b_ref, v_w_ref, v_b_ref,
        outp_w_ref, outp_b_ref,
        ff1_w_ref, ff1_b_ref, ff2_w_ref, ff2_b_ref,
        ln1_g_ref, ln1_b_ref, ln2_g_ref, ln2_b_ref,
        head_w_ref, head_b_ref,
        out_ref,
        *, T, D, nhead, num_layers, head_slices, eps):
    """Per-batch forward (grid axis = batch, everything VMEM-resident)."""
    hd = D // nhead
    scale = 1.0 / math.sqrt(hd)

    def mm(a, w):
        # bf16 operands on the MXU, f32 accumulation.
        return jnp.dot(a.astype(jnp.bfloat16), w, preferred_element_type=jnp.float32)

    def layer_norm(h, g, b):
        mu = jnp.mean(h, axis=-1, keepdims=True)
        var = jnp.mean(jnp.square(h - mu), axis=-1, keepdims=True)
        return (h - mu) * lax.rsqrt(var + eps) * g + b

    # Per-head lane masks, hoisted out of the layer loop (VPU select only;
    # no lane slicing / XLU relayout anywhere in the attention path).
    lane = lax.broadcasted_iota(jnp.int32, (T, D), 1)
    head_masks = [(lane >= h * hd) & (lane < (h + 1) * hd) for h in range(nhead)]

    # ---- embedding + sinusoidal positional encoding (dropout == identity) ----
    h = mm(x_ref[...], emb_w_ref[...]) + emb_b_ref[...] + pe_ref[...]   # (T, D) f32

    # ---- transformer encoder stack (post-norm, ReLU FFN) ----
    # TODO(synk): no src_key_padding_mask / attention-mask support (the
    # reference forward never passes one to the encoder either).
    for l in range(num_layers):
        q = mm(h, q_w_ref[l]) + q_b_ref[l]                               # (T, D)
        k = mm(h, k_w_ref[l]) + k_b_ref[l]
        v = mm(h, v_w_ref[l]) + v_b_ref[l]
        k_bf = k.astype(jnp.bfloat16)

        attn = jnp.zeros((T, D), jnp.float32)
        for hh in range(nhead):                   # nhead=4: tiny static unroll
            m_h = head_masks[hh]
            # Masked q contracts against full-width k: lanes outside head hh
            # contribute exact zeros, so this equals q_h @ k_h^T.
            q_h = jnp.where(m_h, q, 0.0).astype(jnp.bfloat16)
            s = lax.dot_general(q_h, k_bf, (((1,), (1,)), ((), ())),
                                preferred_element_type=jnp.float32) * scale
            mx = jnp.max(s, axis=-1, keepdims=True)
            e = jnp.exp(s - mx)
            p = e * pl.reciprocal(jnp.sum(e, axis=-1, keepdims=True), approx=True)
            # p @ (v masked to head hh): result is zero outside head hh's lanes,
            # so accumulating over heads merges the heads lane-densely in vregs
            # (no scratch store / reload, no masked partial stores).
            v_h = jnp.where(m_h, v, 0.0).astype(jnp.bfloat16)
            attn = attn + jnp.dot(p.astype(jnp.bfloat16), v_h,
                                  preferred_element_type=jnp.float32)

        attn = mm(attn, outp_w_ref[l]) + outp_b_ref[l]
        h1 = layer_norm(h + attn, ln1_g_ref[l], ln1_b_ref[l])            # norm1(x+attn)

        # feed-forward: (T, ffn_dim) intermediate stays in VMEM, emitted in bf16
        ff = jnp.maximum(mm(h1, ff1_w_ref[l]) + ff1_b_ref[l], 0.0).astype(jnp.bfloat16)
        ff = jnp.dot(ff, ff2_w_ref[l], preferred_element_type=jnp.float32) + ff2_b_ref[l]
        h = layer_norm(h1 + ff, ln2_g_ref[l], ln2_b_ref[l])              # norm2(h1+ff)

    # ---- classification heads: one lane-dense padded projection ----
    # TODO(synk): exact head_helper.ClassificationBasicHead may add pooling;
    # implemented as per-frame projection + activation (as in the reference
    # per-frame usage of the TCM output).
    logits = mm(h, head_w_ref[...]) + head_b_ref[...]                    # (T, NC_pad)
    ncp = logits.shape[-1]
    col = lax.broadcasted_iota(jnp.int32, (T, ncp), 1)                   # hoisted once
    sig = jax.nn.sigmoid(logits)                                         # evaluated once
    out = jnp.zeros((T, ncp), jnp.float32)
    for c0, c1, act in head_slices:                                      # static metadata
        in_rng = (col >= c0) & (col < c1)
        if act == "softmax":
            masked = jnp.where(in_rng, logits, -jnp.inf)
            mx = jnp.max(masked, axis=-1, keepdims=True)
            e = jnp.exp(masked - mx)
            vals = e / jnp.sum(e, axis=-1, keepdims=True)   # exact divide (fidelity)
        elif act == "sigmoid":
            vals = sig
        else:
            vals = logits
        out = jnp.where(in_rng, vals, out)
    out_ref[...] = out                                                   # full 128-lane store


# ----------------------------- model wrapper --------------------------------

def build_tcm(input_dim, d_model, nhead, num_layers, ffn_dim,
              tasks, num_classes, head_acts):
    """Returns a jitted forward(x, params) -> dict(task -> (B, T, num_classes))."""
    assert d_model % nhead == 0
    nc_total = sum(num_classes)
    nc_pad = max(128, ((nc_total + 127) // 128) * 128)   # lane-dense head output
    offs, c = [], 0
    for nc, act in zip(num_classes, head_acts):
        offs.append((c, c + nc, act))
        c += nc
    head_slices = tuple(offs)

    def forward(x, p):
        B, T, _ = x.shape
        x2d = x.reshape(B * T, input_dim)
        pe = p["pe"][:T]                                  # (T, D), added in-kernel

        kernel = partial(_tcm_fused_kernel, T=T, D=d_model, nhead=nhead,
                         num_layers=num_layers, head_slices=head_slices, eps=1e-5)

        def whole(arr):   # whole-array VMEM block, constant index -> single DMA
            return pl.BlockSpec(arr.shape, lambda b, z=(0,) * arr.ndim: z)

        weight_args = (p["emb_w"], p["emb_b"],
                       p["q_w"], p["q_b"], p["k_w"], p["k_b"], p["v_w"], p["v_b"],
                       p["out_w"], p["out_b"],
                       p["ff1_w"], p["ff1_b"], p["ff2_w"], p["ff2_b"],
                       p["ln1_g"], p["ln1_b"], p["ln2_g"], p["ln2_b"],
                       p["head_w"], p["head_b"])

        in_specs = ([pl.BlockSpec((T, input_dim), lambda b: (b, 0)),
                     pl.BlockSpec((T, d_model), lambda b: (0, 0))]
                    + [whole(a) for a in weight_args])

        # Grid over batch marked "parallel": uses both TensorCores on v7x,
        # cheap 2-step loop on v5e/v6e (weights keep block index -> one DMA).
        # TODO(synk): for larger num_layers/ffn_dim, pipeline per-layer weight
        # slabs (layer grid axis, "arbitrary") and raise vmem_limit_bytes.
        out_pad = pl.pallas_call(
            kernel,
            out_shape=jax.ShapeDtypeStruct((B * T, nc_pad), jnp.float32),
            grid=(B,),
            in_specs=in_specs,
            out_specs=pl.BlockSpec((T, nc_pad), lambda b: (b, 0)),
            compiler_params=pltpu.CompilerParams(
                dimension_semantics=("parallel",)),
        )(x2d, pe, *weight_args)

        out = {}
        for task, (c0, c1, _) in zip(tasks, head_slices):
            out[task] = out_pad[:, c0:c1].reshape(B, T, c1 - c0)
        return out

    return jax.jit(forward)


# ----------------------------- parameter init -------------------------------

def init_params(key, input_dim, d_model, nhead, num_layers, ffn_dim,
                tasks, num_classes, head_acts, max_len=1000):
    keys = iter(jax.random.split(key, 256))

    def dense(fan_in, fan_out):
        w = jax.random.normal(next(keys), (fan_in, fan_out), jnp.float32)
        w = w * (1.0 / math.sqrt(fan_in))
        b = jax.random.normal(next(keys), (1, fan_out), jnp.float32) * 0.01
        return w, b

    p = {}
    emb_w, emb_b = dense(input_dim, d_model)
    p["emb_w"] = emb_w.astype(jnp.bfloat16)       # bf16 weights on the MXU path
    p["emb_b"] = emb_b

    # sinusoidal positional encoding table (f32)
    position = jnp.arange(max_len, dtype=jnp.float32)[:, None]
    div_term = jnp.exp(jnp.arange(0, d_model, 2, dtype=jnp.float32)
                       * (-math.log(10000.0) / d_model))
    pe = jnp.zeros((max_len, d_model), jnp.float32)
    pe = pe.at[:, 0::2].set(jnp.sin(position * div_term))
    pe = pe.at[:, 1::2].set(jnp.cos(position * div_term))
    p["pe"] = pe

    # stacked per-layer parameters (leading axis = layer), indexed statically
    # inside the fused kernel.  in_proj is split into separate Q/K/V weights
    # (host-side) so the kernel never lane-slices a (BT, 3D) tensor.
    names = ("q_w", "q_b", "k_w", "k_b", "v_w", "v_b",
             "out_w", "out_b", "ff1_w", "ff1_b", "ff2_w", "ff2_b",
             "ln1_g", "ln1_b", "ln2_g", "ln2_b")
    stacks = {n: [] for n in names}
    for _ in range(num_layers):
        for nm in ("q", "k", "v"):
            w, b = dense(d_model, d_model)
            stacks[nm + "_w"].append(w); stacks[nm + "_b"].append(b)
        w, b = dense(d_model, d_model)
        stacks["out_w"].append(w); stacks["out_b"].append(b)
        w, b = dense(d_model, ffn_dim)
        stacks["ff1_w"].append(w); stacks["ff1_b"].append(b)
        w, b = dense(ffn_dim, d_model)
        stacks["ff2_w"].append(w); stacks["ff2_b"].append(b)
        stacks["ln1_g"].append(jnp.ones((1, d_model), jnp.float32))
        stacks["ln1_b"].append(jnp.zeros((1, d_model), jnp.float32))
        stacks["ln2_g"].append(jnp.ones((1, d_model), jnp.float32))
        stacks["ln2_b"].append(jnp.zeros((1, d_model), jnp.float32))
    for n, arrs in stacks.items():
        arr = jnp.stack(arrs)
        if n.endswith("_w"):
            arr = arr.astype(jnp.bfloat16)        # weights bf16, biases/LN f32
        p[n] = arr

    # concatenated, lane-dense (>=128-wide) classification head projection
    hw, hb = [], []
    for nc in num_classes:
        w, b = dense(d_model, nc)
        hw.append(w); hb.append(b)
    head_w = jnp.concatenate(hw, axis=1)
    head_b = jnp.concatenate(hb, axis=1)
    nc_total = sum(num_classes)
    nc_pad = max(128, ((nc_total + 127) // 128) * 128)
    head_w = jnp.pad(head_w, ((0, 0), (0, nc_pad - nc_total)))
    head_b = jnp.pad(head_b, ((0, 0), (0, nc_pad - nc_total)))
    p["head_w"] = head_w.astype(jnp.bfloat16)
    p["head_b"] = head_b
    return p


# ----------------------------- main ------------------------------------------

if __name__ == "__main__":
    B, T = 2, 8                       # batch, NUM_FRAMES
    INPUT_DIM = 16                    # TCM_INPUT_DIM
    D_MODEL = 32                      # TCM_D_MODEL
    NHEAD = 4                         # TCM_NUM_HEADS
    NUM_LAYERS = 2                    # TCM_NUM_LAYERS
    FFN_DIM = 2048                    # nn.TransformerEncoderLayer default
    TASKS = ("phase", "tool")
    NUM_CLASSES = (7, 5)
    HEAD_ACT = ("softmax", "sigmoid")

    key = jax.random.PRNGKey(0)
    k_par, k_x = jax.random.split(key)
    params = init_params(k_par, INPUT_DIM, D_MODEL, NHEAD, NUM_LAYERS, FFN_DIM,
                         TASKS, NUM_CLASSES, HEAD_ACT)
    forward = build_tcm(INPUT_DIM, D_MODEL, NHEAD, NUM_LAYERS, FFN_DIM,
                        TASKS, NUM_CLASSES, HEAD_ACT)
    x = jax.random.normal(k_x, (B, T, INPUT_DIM), jnp.float32)

    out = forward(x, params)
    jax.block_until_ready(out)

    expected = dict(zip(TASKS, NUM_CLASSES))
    for task in TASKS:
        assert out[task].shape == (B, T, expected[task])
        assert bool(jnp.all(jnp.isfinite(out[task])))
    # softmax head rows should be (approximately) probability distributions
    assert bool(jnp.all(jnp.abs(jnp.sum(out["phase"], axis=-1) - 1.0) < 1e-3))
    print("KERNEL_OK")
</pallas_src>

<mosaic_0001>
module attributes {stable_mosaic.version = 11 : i64} {
  func.func @_tcm_fused_kernel(%arg0: i32, %arg1: memref<8x16xf32, #tpu.memory_space<vmem>>, %arg2: memref<8x32xf32, #tpu.memory_space<vmem>>, %arg3: memref<16x32xbf16, #tpu.memory_space<vmem>>, %arg4: memref<1x32xf32, #tpu.memory_space<vmem>>, %arg5: memref<2x32x32xbf16, #tpu.memory_space<vmem>>, %arg6: memref<2x1x32xf32, #tpu.memory_space<vmem>>, %arg7: memref<2x32x32xbf16, #tpu.memory_space<vmem>>, %arg8: memref<2x1x32xf32, #tpu.memory_space<vmem>>, %arg9: memref<2x32x32xbf16, #tpu.memory_space<vmem>>, %arg10: memref<2x1x32xf32, #tpu.memory_space<vmem>>, %arg11: memref<2x32x32xbf16, #tpu.memory_space<vmem>>, %arg12: memref<2x1x32xf32, #tpu.memory_space<vmem>>, %arg13: memref<2x32x2048xbf16, #tpu.memory_space<vmem>>, %arg14: memref<2x1x2048xf32, #tpu.memory_space<vmem>>, %arg15: memref<2x2048x32xbf16, #tpu.memory_space<vmem>>, %arg16: memref<2x1x32xf32, #tpu.memory_space<vmem>>, %arg17: memref<2x1x32xf32, #tpu.memory_space<vmem>>, %arg18: memref<2x1x32xf32, #tpu.memory_space<vmem>>, %arg19: memref<2x1x32xf32, #tpu.memory_space<vmem>>, %arg20: memref<2x1x32xf32, #tpu.memory_space<vmem>>, %arg21: memref<32x128xbf16, #tpu.memory_space<vmem>>, %arg22: memref<1x128xf32, #tpu.memory_space<vmem>>, %arg23: memref<8x128xf32, #tpu.memory_space<vmem>>) attributes {dimension_semantics = [#tpu.dimension_semantics<parallel>], iteration_bounds = array<i64: 2>, scalar_prefetch = 0 : i64, scratch_operands = 0 : i64, tpu.core_type = #tpu.core_type<tc>, window_params = [{transform_indices = @transform_0, window_bounds = array<i64: 8, 16>}, {pipeline_mode = #tpu.pipeline_mode<synchronous>, transform_indices = @transform_1, window_bounds = array<i64: 8, 32>}, {pipeline_mode = #tpu.pipeline_mode<synchronous>, transform_indices = @transform_2, window_bounds = array<i64: 16, 32>}, {pipeline_mode = #tpu.pipeline_mode<synchronous>, transform_indices = @transform_3, window_bounds = array<i64: 1, 32>}, {pipeline_mode = #tpu.pipeline_mode<synchronous>, transform_indices = @transform_4, window_bounds = array<i64: 2, 32, 32>}, {pipeline_mode = #tpu.pipeline_mode<synchronous>, transform_indices = @transform_5, window_bounds = array<i64: 2, 1, 32>}, {pipeline_mode = #tpu.pipeline_mode<synchronous>, transform_indices = @transform_6, window_bounds = array<i64: 2, 32, 32>}, {pipeline_mode = #tpu.pipeline_mode<synchronous>, transform_indices = @transform_7, window_bounds = array<i64: 2, 1, 32>}, {pipeline_mode = #tpu.pipeline_mode<synchronous>, transform_indices = @transform_8, window_bounds = array<i64: 2, 32, 32>}, {pipeline_mode = #tpu.pipeline_mode<synchronous>, transform_indices = @transform_9, window_bounds = array<i64: 2, 1, 32>}, {pipeline_mode = #tpu.pipeline_mode<synchronous>, transform_indices = @transform_10, window_bounds = array<i64: 2, 32, 32>}, {pipeline_mode = #tpu.pipeline_mode<synchronous>, transform_indices = @transform_11, window_bounds = array<i64: 2, 1, 32>}, {pipeline_mode = #tpu.pipeline_mode<synchronous>, transform_indices = @transform_12, window_bounds = array<i64: 2, 32, 2048>}, {pipeline_mode = #tpu.pipeline_mode<synchronous>, transform_indices = @transform_13, window_bounds = array<i64: 2, 1, 2048>}, {pipeline_mode = #tpu.pipeline_mode<synchronous>, transform_indices = @transform_14, window_bounds = array<i64: 2, 2048, 32>}, {pipeline_mode = #tpu.pipeline_mode<synchronous>, transform_indices = @transform_15, window_bounds = array<i64: 2, 1, 32>}, {pipeline_mode = #tpu.pipeline_mode<synchronous>, transform_indices = @transform_16, window_bounds = array<i64: 2, 1, 32>}, {pipeline_mode = #tpu.pipeline_mode<synchronous>, transform_indices = @transform_17, window_bounds = array<i64: 2, 1, 32>}, {pipeline_mode = #tpu.pipeline_mode<synchronous>, transform_indices = @transform_18, window_bounds = array<i64: 2, 1, 32>}, {pipeline_mode = #tpu.pipeline_mode<synchronous>, transform_indices = @transform_19, window_bounds = array<i64: 2, 1, 32>}, {pipeline_mode = #tpu.pipeline_mode<synchronous>, transform_indices = @transform_20, window_bounds = array<i64: 32, 128>}, {pipeline_mode = #tpu.pipeline_mode<synchronous>, transform_indices = @transform_21, window_bounds = array<i64: 1, 128>}, {transform_indices = @transform_22, window_bounds = array<i64: 8, 128>}]} {
    %0 = tpu.iota {dimensions = array<i32: 1>} : vector<8x32xi32>
    %c0_i32 = arith.constant 0 : i32
    %1 = vector.broadcast %c0_i32 : i32 to vector<8x32xi32>
    %2 = arith.cmpi sge, %0, %1 : vector<8x32xi32>
    %c8_i32 = arith.constant 8 : i32
    %3 = vector.broadcast %c8_i32 : i32 to vector<8x32xi32>
    %4 = arith.cmpi slt, %0, %3 : vector<8x32xi32>
    %5 = arith.andi %2, %4 : vector<8x32xi1>
    %c8_i32_0 = arith.constant 8 : i32
    %6 = vector.broadcast %c8_i32_0 : i32 to vector<8x32xi32>
    %7 = arith.cmpi sge, %0, %6 : vector<8x32xi32>
    %c16_i32 = arith.constant 16 : i32
    %8 = vector.broadcast %c16_i32 : i32 to vector<8x32xi32>
    %9 = arith.cmpi slt, %0, %8 : vector<8x32xi32>
    %10 = arith.andi %7, %9 : vector<8x32xi1>
    %c16_i32_1 = arith.constant 16 : i32
    %11 = vector.broadcast %c16_i32_1 : i32 to vector<8x32xi32>
    %12 = arith.cmpi sge, %0, %11 : vector<8x32xi32>
    %c24_i32 = arith.constant 24 : i32
    %13 = vector.broadcast %c24_i32 : i32 to vector<8x32xi32>
    %14 = arith.cmpi slt, %0, %13 : vector<8x32xi32>
    %15 = arith.andi %12, %14 : vector<8x32xi1>
    %c24_i32_2 = arith.constant 24 : i32
    %16 = vector.broadcast %c24_i32_2 : i32 to vector<8x32xi32>
    %17 = arith.cmpi sge, %0, %16 : vector<8x32xi32>
    %c32_i32 = arith.constant 32 : i32
    %18 = vector.broadcast %c32_i32 : i32 to vector<8x32xi32>
    %19 = arith.cmpi slt, %0, %18 : vector<8x32xi32>
    %20 = arith.andi %17, %19 : vector<8x32xi1>
    %c0 = arith.constant 0 : index
    %c0_3 = arith.constant 0 : index
    %21 = vector.load %arg1[%c0, %c0_3] : memref<8x16xf32, #tpu.memory_space<vmem>>, vector<8x16xf32>
    %c0_4 = arith.constant 0 : index
    %c0_5 = arith.constant 0 : index
    %22 = vector.load %arg3[%c0_4, %c0_5] : memref<16x32xbf16, #tpu.memory_space<vmem>>, vector<16x32xbf16>
    %23 = arith.truncf %21 : vector<8x16xf32> to vector<8x16xbf16>
    %cst = arith.constant dense<0.000000e+00> : vector<8x32xf32>
    %24 = tpu.matmul %23, %22, %cst {dimension_numbers = #tpu.dot_dimension_numbers<[1], [0], [0], [1], [0, 0, 1, 1], [], []>} : vector<8x16xbf16>, vector<16x32xbf16>, vector<8x32xf32> -> vector<8x32xf32>
    %c0_6 = arith.constant 0 : index
    %c0_7 = arith.constant 0 : index
    %25 = vector.load %arg4[%c0_6, %c0_7] : memref<1x32xf32, #tpu.memory_space<vmem>>, vector<1x32xf32>
    %26 = vector.broadcast %25 : vector<1x32xf32> to vector<8x32xf32>
    %27 = arith.addf %24, %26 : vector<8x32xf32>
    %c0_8 = arith.constant 0 : index
    %c0_9 = arith.constant 0 : index
    %28 = vector.load %arg2[%c0_8, %c0_9] : memref<8x32xf32, #tpu.memory_space<vmem>>, vector<8x32xf32>
    %29 = arith.addf %27, %28 : vector<8x32xf32>
    %c0_10 = arith.constant 0 : index
    %c0_11 = arith.constant 0 : index
    %c0_12 = arith.constant 0 : index
    %30 = vector.load %arg5[%c0_10, %c0_11, %c0_12] : memref<2x32x32xbf16, #tpu.memory_space<vmem>>, vector<1x32x32xbf16>
    %31 = vector.shape_cast %30 : vector<1x32x32xbf16> to vector<32x32xbf16>
    %32 = arith.truncf %29 : vector<8x32xf32> to vector<8x32xbf16>
    %cst_13 = arith.constant dense<0.000000e+00> : vector<8x32xf32>
    %33 = tpu.matmul %32, %31, %cst_13 {dimension_numbers = #tpu.dot_dimension_numbers<[1], [0], [0], [1], [0, 0, 1, 1], [], []>} : vector<8x32xbf16>, vector<32x32xbf16>, vector<8x32xf32> -> vector<8x32xf32>
    %c0_14 = arith.constant 0 : index
    %c0_15 = arith.constant 0 : index
    %c0_16 = arith.constant 0 : index
    %34 = vector.load %arg6[%c0_14, %c0_15, %c0_16] : memref<2x1x32xf32, #tpu.memory_space<vmem>>, vector<1x1x32xf32>
    %35 = vector.shape_cast %34 : vector<1x1x32xf32> to vector<1x32xf32>
    %36 = vector.broadcast %35 : vector<1x32xf32> to vector<8x32xf32>
    %37 = arith.addf %33, %36 : vector<8x32xf32>
    %c0_17 = arith.constant 0 : index
    %c0_18 = arith.constant 0 : index
    %c0_19 = arith.constant 0 : index
    %38 = vector.load %arg7[%c0_17, %c0_18, %c0_19] : memref<2x32x32xbf16, #tpu.memory_space<vmem>>, vector<1x32x32xbf16>
    %39 = vector.shape_cast %38 : vector<1x32x32xbf16> to vector<32x32xbf16>
    %40 = arith.truncf %29 : vector<8x32xf32> to vector<8x32xbf16>
    %cst_20 = arith.constant dense<0.000000e+00> : vector<8x32xf32>
    %41 = tpu.matmul %40, %39, %cst_20 {dimension_numbers = #tpu.dot_dimension_numbers<[1], [0], [0], [1], [0, 0, 1, 1], [], []>} : vector<8x32xbf16>, vector<32x32xbf16>, vector<8x32xf32> -> vector<8x32xf32>
    %c0_21 = arith.constant 0 : index
    %c0_22 = arith.constant 0 : index
    %c0_23 = arith.constant 0 : index
    %42 = vector.load %arg8[%c0_21, %c0_22, %c0_23] : memref<2x1x32xf32, #tpu.memory_space<vmem>>, vector<1x1x32xf32>
    %43 = vector.shape_cast %42 : vector<1x1x32xf32> to vector<1x32xf32>
    %44 = vector.broadcast %43 : vector<1x32xf32> to vector<8x32xf32>
    %45 = arith.addf %41, %44 : vector<8x32xf32>
    %c0_24 = arith.constant 0 : index
    %c0_25 = arith.constant 0 : index
    %c0_26 = arith.constant 0 : index
    %46 = vector.load %arg9[%c0_24, %c0_25, %c0_26] : memref<2x32x32xbf16, #tpu.memory_space<vmem>>, vector<1x32x32xbf16>
    %47 = vector.shape_cast %46 : vector<1x32x32xbf16> to vector<32x32xbf16>
    %48 = arith.truncf %29 : vector<8x32xf32> to vector<8x32xbf16>
    %cst_27 = arith.constant dense<0.000000e+00> : vector<8x32xf32>
    %49 = tpu.matmul %48, %47, %cst_27 {dimension_numbers = #tpu.dot_dimension_numbers<[1], [0], [0], [1], [0, 0, 1, 1], [], []>} : vector<8x32xbf16>, vector<32x32xbf16>, vector<8x32xf32> -> vector<8x32xf32>
    %c0_28 = arith.constant 0 : index
    %c0_29 = arith.constant 0 : index
    %c0_30 = arith.constant 0 : index
    %50 = vector.load %arg10[%c0_28, %c0_29, %c0_30] : memref<2x1x32xf32, #tpu.memory_space<vmem>>, vector<1x1x32xf32>
    %51 = vector.shape_cast %50 : vector<1x1x32xf32> to vector<1x32xf32>
    %52 = vector.broadcast %51 : vector<1x32xf32> to vector<8x32xf32>
    %53 = arith.addf %49, %52 : vector<8x32xf32>
    %54 = arith.truncf %45 : vector<8x32xf32> to vector<8x32xbf16>
    %cst_31 = arith.constant 0.000000e+00 : f32
    %55 = vector.broadcast %cst_31 : f32 to vector<8x32xf32>
    %cst_32 = arith.constant 0.000000e+00 : f32
    %56 = vector.broadcast %cst_32 : f32 to vector<8x32xf32>
    %57 = arith.select %5, %37, %56 : vector<8x32xi1>, vector<8x32xf32>
    %58 = arith.truncf %57 : vector<8x32xf32> to vector<8x32xbf16>
    %cst_33 = arith.constant dense<0.000000e+00> : vector<8x8xf32>
    %59 = tpu.matmul %58, %54, %cst_33 {dimension_numbers = #tpu.dot_dimension_numbers<[1], [1], [0], [0], [0, 0, 1, 0], [], []>} : vector<8x32xbf16>, vector<8x32xbf16>, vector<8x8xf32> -> vector<8x8xf32>
    %cst_34 = arith.constant 0.353553385 : f32
    %60 = vector.broadcast %cst_34 : f32 to vector<8x8xf32>
    %61 = arith.mulf %59, %60 : vector<8x8xf32>
    %cst_35 = arith.constant dense<0xFF800000> : vector<8xf32>
    %62 = vector.multi_reduction <maximumf>, %61, %cst_35 [1] : vector<8x8xf32> to vector<8xf32>
    %63 = vector.shape_cast %62 : vector<8xf32> to vector<8x1xf32>
    %64 = vector.broadcast %63 : vector<8x1xf32> to vector<8x8xf32>
    %65 = arith.subf %61, %64 : vector<8x8xf32>
    %66 = math.exp %65 : vector<8x8xf32>
    %cst_36 = arith.constant dense<0.000000e+00> : vector<8xf32>
    %67 = vector.multi_reduction <add>, %66, %cst_36 [1] : vector<8x8xf32> to vector<8xf32>
    %68 = vector.shape_cast %67 : vector<8xf32> to vector<8x1xf32>
    %69 = tpu.reciprocal %68 {approx = true} : vector<8x1xf32> -> vector<8x1xf32>
    %70 = vector.broadcast %69 : vector<8x1xf32> to vector<8x8xf32>
    %71 = arith.mulf %66, %70 : vector<8x8xf32>
    %cst_37 = arith.constant 0.000000e+00 : f32
    %72 = vector.broadcast %cst_37 : f32 to vector<8x32xf32>
    %73 = arith.select %5, %53, %72 : vector<8x32xi1>, vector<8x32xf32>
    %74 = arith.truncf %73 : vector<8x32xf32> to vector<8x32xbf16>
    %75 = arith.truncf %71 : vector<8x8xf32> to vector<8x8xbf16>
    %cst_38 = arith.constant dense<0.000000e+00> : vector<8x32xf32>
    %76 = tpu.matmul %75, %74, %cst_38 {dimension_numbers = #tpu.dot_dimension_numbers<[1], [0], [0], [1], [0, 0, 1, 1], [], []>} : vector<8x8xbf16>, vector<8x32xbf16>, vector<8x32xf32> -> vector<8x32xf32>
    %77 = arith.addf %55, %76 : vector<8x32xf32>
    %cst_39 = arith.constant 0.000000e+00 : f32
    %78 = vector.broadcast %cst_39 : f32 to vector<8x32xf32>
    %79 = arith.select %10, %37, %78 : vector<8x32xi1>, vector<8x32xf32>
    %80 = arith.truncf %79 : vector<8x32xf32> to vector<8x32xbf16>
    %cst_40 = arith.constant dense<0.000000e+00> : vector<8x8xf32>
    %81 = tpu.matmul %80, %54, %cst_40 {dimension_numbers = #tpu.dot_dimension_numbers<[1], [1], [0], [0], [0, 0, 1, 0], [], []>} : vector<8x32xbf16>, vector<8x32xbf16>, vector<8x8xf32> -> vector<8x8xf32>
    %cst_41 = arith.constant 0.353553385 : f32
    %82 = vector.broadcast %cst_41 : f32 to vector<8x8xf32>
    %83 = arith.mulf %81, %82 : vector<8x8xf32>
    %cst_42 = arith.constant dense<0xFF800000> : vector<8xf32>
    %84 = vector.multi_reduction <maximumf>, %83, %cst_42 [1] : vector<8x8xf32> to vector<8xf32>
    %85 = vector.shape_cast %84 : vector<8xf32> to vector<8x1xf32>
    %86 = vector.broadcast %85 : vector<8x1xf32> to vector<8x8xf32>
    %87 = arith.subf %83, %86 : vector<8x8xf32>
    %88 = math.exp %87 : vector<8x8xf32>
    %cst_43 = arith.constant dense<0.000000e+00> : vector<8xf32>
    %89 = vector.multi_reduction <add>, %88, %cst_43 [1] : vector<8x8xf32> to vector<8xf32>
    %90 = vector.shape_cast %89 : vector<8xf32> to vector<8x1xf32>
    %91 = tpu.reciprocal %90 {approx = true} : vector<8x1xf32> -> vector<8x1xf32>
    %92 = vector.broadcast %91 : vector<8x1xf32> to vector<8x8xf32>
    %93 = arith.mulf %88, %92 : vector<8x8xf32>
    %cst_44 = arith.constant 0.000000e+00 : f32
    %94 = vector.broadcast %cst_44 : f32 to vector<8x32xf32>
    %95 = arith.select %10, %53, %94 : vector<8x32xi1>, vector<8x32xf32>
    %96 = arith.truncf %95 : vector<8x32xf32> to vector<8x32xbf16>
    %97 = arith.truncf %93 : vector<8x8xf32> to vector<8x8xbf16>
    %cst_45 = arith.constant dense<0.000000e+00> : vector<8x32xf32>
    %98 = tpu.matmul %97, %96, %cst_45 {dimension_numbers = #tpu.dot_dimension_numbers<[1], [0], [0], [1], [0, 0, 1, 1], [], []>} : vector<8x8xbf16>, vector<8x32xbf16>, vector<8x32xf32> -> vector<8x32xf32>
    %99 = arith.addf %77, %98 : vector<8x32xf32>
    %cst_46 = arith.constant 0.000000e+00 : f32
    %100 = vector.broadcast %cst_46 : f32 to vector<8x32xf32>
    %101 = arith.select %15, %37, %100 : vector<8x32xi1>, vector<8x32xf32>
    %102 = arith.truncf %101 : vector<8x32xf32> to vector<8x32xbf16>
    %cst_47 = arith.constant dense<0.000000e+00> : vector<8x8xf32>
    %103 = tpu.matmul %102, %54, %cst_47 {dimension_numbers = #tpu.dot_dimension_numbers<[1], [1], [0], [0], [0, 0, 1, 0], [], []>} : vector<8x32xbf16>, vector<8x32xbf16>, vector<8x8xf32> -> vector<8x8xf32>
    %cst_48 = arith.constant 0.353553385 : f32
    %104 = vector.broadcast %cst_48 : f32 to vector<8x8xf32>
    %105 = arith.mulf %103, %104 : vector<8x8xf32>
    %cst_49 = arith.constant dense<0xFF800000> : vector<8xf32>
    %106 = vector.multi_reduction <maximumf>, %105, %cst_49 [1] : vector<8x8xf32> to vector<8xf32>
    %107 = vector.shape_cast %106 : vector<8xf32> to vector<8x1xf32>
    %108 = vector.broadcast %107 : vector<8x1xf32> to vector<8x8xf32>
    %109 = arith.subf %105, %108 : vector<8x8xf32>
    %110 = math.exp %109 : vector<8x8xf32>
    %cst_50 = arith.constant dense<0.000000e+00> : vector<8xf32>
    %111 = vector.multi_reduction <add>, %110, %cst_50 [1] : vector<8x8xf32> to vector<8xf32>
    %112 = vector.shape_cast %111 : vector<8xf32> to vector<8x1xf32>
    %113 = tpu.reciprocal %112 {approx = true} : vector<8x1xf32> -> vector<8x1xf32>
    %114 = vector.broadcast %113 : vector<8x1xf32> to vector<8x8xf32>
    %115 = arith.mulf %110, %114 : vector<8x8xf32>
    %cst_51 = arith.constant 0.000000e+00 : f32
    %116 = vector.broadcast %cst_51 : f32 to vector<8x32xf32>
    %117 = arith.select %15, %53, %116 : vector<8x32xi1>, vector<8x32xf32>
    %118 = arith.truncf %117 : vector<8x32xf32> to vector<8x32xbf16>
    %119 = arith.truncf %115 : vector<8x8xf32> to vector<8x8xbf16>
    %cst_52 = arith.constant dense<0.000000e+00> : vector<8x32xf32>
    %120 = tpu.matmul %119, %118, %cst_52 {dimension_numbers = #tpu.dot_dimension_numbers<[1], [0], [0], [1], [0, 0, 1, 1], [], []>} : vector<8x8xbf16>, vector<8x32xbf16>, vector<8x32xf32> -> vector<8x32xf32>
    %121 = arith.addf %99, %120 : vector<8x32xf32>
    %cst_53 = arith.constant 0.000000e+00 : f32
    %122 = vector.broadcast %cst_53 : f32 to vector<8x32xf32>
    %123 = arith.select %20, %37, %122 : vector<8x32xi1>, vector<8x32xf32>
    %124 = arith.truncf %123 : vector<8x32xf32> to vector<8x32xbf16>
    %cst_54 = arith.constant dense<0.000000e+00> : vector<8x8xf32>
    %125 = tpu.matmul %124, %54, %cst_54 {dimension_numbers = #tpu.dot_dimension_numbers<[1], [1], [0], [0], [0, 0, 1, 0], [], []>} : vector<8x32xbf16>, vector<8x32xbf16>, vector<8x8xf32> -> vector<8x8xf32>
    %cst_55 = arith.constant 0.353553385 : f32
    %126 = vector.broadcast %cst_55 : f32 to vector<8x8xf32>
    %127 = arith.mulf %125, %126 : vector<8x8xf32>
    %cst_56 = arith.constant dense<0xFF800000> : vector<8xf32>
    %128 = vector.multi_reduction <maximumf>, %127, %cst_56 [1] : vector<8x8xf32> to vector<8xf32>
    %129 = vector.shape_cast %128 : vector<8xf32> to vector<8x1xf32>
    %130 = vector.broadcast %129 : vector<8x1xf32> to vector<8x8xf32>
    %131 = arith.subf %127, %130 : vector<8x8xf32>
    %132 = math.exp %131 : vector<8x8xf32>
    %cst_57 = arith.constant dense<0.000000e+00> : vector<8xf32>
    %133 = vector.multi_reduction <add>, %132, %cst_57 [1] : vector<8x8xf32> to vector<8xf32>
    %134 = vector.shape_cast %133 : vector<8xf32> to vector<8x1xf32>
    %135 = tpu.reciprocal %134 {approx = true} : vector<8x1xf32> -> vector<8x1xf32>
    %136 = vector.broadcast %135 : vector<8x1xf32> to vector<8x8xf32>
    %137 = arith.mulf %132, %136 : vector<8x8xf32>
    %cst_58 = arith.constant 0.000000e+00 : f32
    %138 = vector.broadcast %cst_58 : f32 to vector<8x32xf32>
    %139 = arith.select %20, %53, %138 : vector<8x32xi1>, vector<8x32xf32>
    %140 = arith.truncf %139 : vector<8x32xf32> to vector<8x32xbf16>
    %141 = arith.truncf %137 : vector<8x8xf32> to vector<8x8xbf16>
    %cst_59 = arith.constant dense<0.000000e+00> : vector<8x32xf32>
    %142 = tpu.matmul %141, %140, %cst_59 {dimension_numbers = #tpu.dot_dimension_numbers<[1], [0], [0], [1], [0, 0, 1, 1], [], []>} : vector<8x8xbf16>, vector<8x32xbf16>, vector<8x32xf32> -> vector<8x32xf32>
    %143 = arith.addf %121, %142 : vector<8x32xf32>
    %c0_60 = arith.constant 0 : index
    %c0_61 = arith.constant 0 : index
    %c0_62 = arith.constant 0 : index
    %144 = vector.load %arg11[%c0_60, %c0_61, %c0_62] : memref<2x32x32xbf16, #tpu.memory_space<vmem>>, vector<1x32x32xbf16>
    %145 = vector.shape_cast %144 : vector<1x32x32xbf16> to vector<32x32xbf16>
    %146 = arith.truncf %143 : vector<8x32xf32> to vector<8x32xbf16>
    %cst_63 = arith.constant dense<0.000000e+00> : vector<8x32xf32>
    %147 = tpu.matmul %146, %145, %cst_63 {dimension_numbers = #tpu.dot_dimension_numbers<[1], [0], [0], [1], [0, 0, 1, 1], [], []>} : vector<8x32xbf16>, vector<32x32xbf16>, vector<8x32xf32> -> vector<8x32xf32>
    %c0_64 = arith.constant 0 : index
    %c0_65 = arith.constant 0 : index
    %c0_66 = arith.constant 0 : index
    %148 = vector.load %arg12[%c0_64, %c0_65, %c0_66] : memref<2x1x32xf32, #tpu.memory_space<vmem>>, vector<1x1x32xf32>
    %149 = vector.shape_cast %148 : vector<1x1x32xf32> to vector<1x32xf32>
    %150 = vector.broadcast %149 : vector<1x32xf32> to vector<8x32xf32>
    %151 = arith.addf %147, %150 : vector<8x32xf32>
    %152 = arith.addf %29, %151 : vector<8x32xf32>
    %c0_67 = arith.constant 0 : index
    %c0_68 = arith.constant 0 : index
    %c0_69 = arith.constant 0 : index
    %153 = vector.load %arg17[%c0_67, %c0_68, %c0_69] : memref<2x1x32xf32, #tpu.memory_space<vmem>>, vector<1x1x32xf32>
    %154 = vector.shape_cast %153 : vector<1x1x32xf32> to vector<1x32xf32>
    %c0_70 = arith.constant 0 : index
    %c0_71 = arith.constant 0 : index
    %c0_72 = arith.constant 0 : index
    %155 = vector.load %arg18[%c0_70, %c0_71, %c0_72] : memref<2x1x32xf32, #tpu.memory_space<vmem>>, vector<1x1x32xf32>
    %156 = vector.shape_cast %155 : vector<1x1x32xf32> to vector<1x32xf32>
    %cst_73 = arith.constant dense<0.000000e+00> : vector<8xf32>
    %157 = vector.multi_reduction <add>, %152, %cst_73 [1] : vector<8x32xf32> to vector<8xf32>
    %158 = vector.shape_cast %157 : vector<8xf32> to vector<8x1xf32>
    %cst_74 = arith.constant 3.200000e+01 : f32
    %159 = vector.broadcast %cst_74 : f32 to vector<8x1xf32>
    %160 = arith.divf %158, %159 : vector<8x1xf32>
    %161 = vector.broadcast %160 : vector<8x1xf32> to vector<8x32xf32>
    %162 = arith.subf %152, %161 : vector<8x32xf32>
    %163 = arith.mulf %162, %162 : vector<8x32xf32>
    %cst_75 = arith.constant dense<0.000000e+00> : vector<8xf32>
    %164 = vector.multi_reduction <add>, %163, %cst_75 [1] : vector<8x32xf32> to vector<8xf32>
    %165 = vector.shape_cast %164 : vector<8xf32> to vector<8x1xf32>
    %cst_76 = arith.constant 3.200000e+01 : f32
    %166 = vector.broadcast %cst_76 : f32 to vector<8x1xf32>
    %167 = arith.divf %165, %166 : vector<8x1xf32>
    %168 = vector.broadcast %160 : vector<8x1xf32> to vector<8x32xf32>
    %169 = arith.subf %152, %168 : vector<8x32xf32>
    %cst_77 = arith.constant 9.99999974E-6 : f32
    %170 = vector.broadcast %cst_77 : f32 to vector<8x1xf32>
    %171 = arith.addf %167, %170 : vector<8x1xf32>
    %172 = math.rsqrt %171 : vector<8x1xf32>
    %173 = vector.broadcast %172 : vector<8x1xf32> to vector<8x32xf32>
    %174 = arith.mulf %169, %173 : vector<8x32xf32>
    %175 = vector.broadcast %154 : vector<1x32xf32> to vector<8x32xf32>
    %176 = arith.mulf %174, %175 : vector<8x32xf32>
    %177 = vector.broadcast %156 : vector<1x32xf32> to vector<8x32xf32>
    %178 = arith.addf %176, %177 : vector<8x32xf32>
    %c0_78 = arith.constant 0 : index
    %c0_79 = arith.constant 0 : index
    %c0_80 = arith.constant 0 : index
    %179 = vector.load %arg13[%c0_78, %c0_79, %c0_80] : memref<2x32x2048xbf16, #tpu.memory_space<vmem>>, vector<1x32x2048xbf16>
    %180 = vector.shape_cast %179 : vector<1x32x2048xbf16> to vector<32x2048xbf16>
    %181 = arith.truncf %178 : vector<8x32xf32> to vector<8x32xbf16>
    %cst_81 = arith.constant dense<0.000000e+00> : vector<8x2048xf32>
    %182 = tpu.matmul %181, %180, %cst_81 {dimension_numbers = #tpu.dot_dimension_numbers<[1], [0], [0], [1], [0, 0, 1, 1], [], []>} : vector<8x32xbf16>, vector<32x2048xbf16>, vector<8x2048xf32> -> vector<8x2048xf32>
    %c0_82 = arith.constant 0 : index
    %c0_83 = arith.constant 0 : index
    %c0_84 = arith.constant 0 : index
    %183 = vector.load %arg14[%c0_82, %c0_83, %c0_84] : memref<2x1x2048xf32, #tpu.memory_space<vmem>>, vector<1x1x2048xf32>
    %184 = vector.shape_cast %183 : vector<1x1x2048xf32> to vector<1x2048xf32>
    %185 = vector.broadcast %184 : vector<1x2048xf32> to vector<8x2048xf32>
    %186 = arith.addf %182, %185 : vector<8x2048xf32>
    %cst_85 = arith.constant 0.000000e+00 : f32
    %187 = vector.broadcast %cst_85 : f32 to vector<8x2048xf32>
    %188 = arith.maximumf %186, %187 : vector<8x2048xf32>
    %189 = arith.truncf %188 : vector<8x2048xf32> to vector<8x2048xbf16>
    %c0_86 = arith.constant 0 : index
    %c0_87 = arith.constant 0 : index
    %c0_88 = arith.constant 0 : index
    %190 = vector.load %arg15[%c0_86, %c0_87, %c0_88] : memref<2x2048x32xbf16, #tpu.memory_space<vmem>>, vector<1x2048x32xbf16>
    %191 = vector.shape_cast %190 : vector<1x2048x32xbf16> to vector<2048x32xbf16>
    %cst_89 = arith.constant dense<0.000000e+00> : vector<8x32xf32>
    %192 = tpu.matmul %189, %191, %cst_89 {dimension_numbers = #tpu.dot_dimension_numbers<[1], [0], [0], [1], [0, 0, 1, 1], [], []>} : vector<8x2048xbf16>, vector<2048x32xbf16>, vector<8x32xf32> -> vector<8x32xf32>
    %c0_90 = arith.constant 0 : index
    %c0_91 = arith.constant 0 : index
    %c0_92 = arith.constant 0 : index
    %193 = vector.load %arg16[%c0_90, %c0_91, %c0_92] : memref<2x1x32xf32, #tpu.memory_space<vmem>>, vector<1x1x32xf32>
    %194 = vector.shape_cast %193 : vector<1x1x32xf32> to vector<1x32xf32>
    %195 = vector.broadcast %194 : vector<1x32xf32> to vector<8x32xf32>
    %196 = arith.addf %192, %195 : vector<8x32xf32>
    %197 = arith.addf %178, %196 : vector<8x32xf32>
    %c0_93 = arith.constant 0 : index
    %c0_94 = arith.constant 0 : index
    %c0_95 = arith.constant 0 : index
    %198 = vector.load %arg19[%c0_93, %c0_94, %c0_95] : memref<2x1x32xf32, #tpu.memory_space<vmem>>, vector<1x1x32xf32>
    %199 = vector.shape_cast %198 : vector<1x1x32xf32> to vector<1x32xf32>
    %c0_96 = arith.constant 0 : index
    %c0_97 = arith.constant 0 : index
    %c0_98 = arith.constant 0 : index
    %200 = vector.load %arg20[%c0_96, %c0_97, %c0_98] : memref<2x1x32xf32, #tpu.memory_space<vmem>>, vector<1x1x32xf32>
    %201 = vector.shape_cast %200 : vector<1x1x32xf32> to vector<1x32xf32>
    %cst_99 = arith.constant dense<0.000000e+00> : vector<8xf32>
    %202 = vector.multi_reduction <add>, %197, %cst_99 [1] : vector<8x32xf32> to vector<8xf32>
    %203 = vector.shape_cast %202 : vector<8xf32> to vector<8x1xf32>
    %cst_100 = arith.constant 3.200000e+01 : f32
    %204 = vector.broadcast %cst_100 : f32 to vector<8x1xf32>
    %205 = arith.divf %203, %204 : vector<8x1xf32>
    %206 = vector.broadcast %205 : vector<8x1xf32> to vector<8x32xf32>
    %207 = arith.subf %197, %206 : vector<8x32xf32>
    %208 = arith.mulf %207, %207 : vector<8x32xf32>
    %cst_101 = arith.constant dense<0.000000e+00> : vector<8xf32>
    %209 = vector.multi_reduction <add>, %208, %cst_101 [1] : vector<8x32xf32> to vector<8xf32>
    %210 = vector.shape_cast %209 : vector<8xf32> to vector<8x1xf32>
    %cst_102 = arith.constant 3.200000e+01 : f32
    %211 = vector.broadcast %cst_102 : f32 to vector<8x1xf32>
    %212 = arith.divf %210, %211 : vector<8x1xf32>
    %213 = vector.broadcast %205 : vector<8x1xf32> to vector<8x32xf32>
    %214 = arith.subf %197, %213 : vector<8x32xf32>
    %cst_103 = arith.constant 9.99999974E-6 : f32
    %215 = vector.broadcast %cst_103 : f32 to vector<8x1xf32>
    %216 = arith.addf %212, %215 : vector<8x1xf32>
    %217 = math.rsqrt %216 : vector<8x1xf32>
    %218 = vector.broadcast %217 : vector<8x1xf32> to vector<8x32xf32>
    %219 = arith.mulf %214, %218 : vector<8x32xf32>
    %220 = vector.broadcast %199 : vector<1x32xf32> to vector<8x32xf32>
    %221 = arith.mulf %219, %220 : vector<8x32xf32>
    %222 = vector.broadcast %201 : vector<1x32xf32> to vector<8x32xf32>
    %223 = arith.addf %221, %222 : vector<8x32xf32>
    %c1 = arith.constant 1 : index
    %c0_104 = arith.constant 0 : index
    %c0_105 = arith.constant 0 : index
    %224 = vector.load %arg5[%c1, %c0_104, %c0_105] : memref<2x32x32xbf16, #tpu.memory_space<vmem>>, vector<1x32x32xbf16>
    %225 = vector.shape_cast %224 : vector<1x32x32xbf16> to vector<32x32xbf16>
    %226 = arith.truncf %223 : vector<8x32xf32> to vector<8x32xbf16>
    %cst_106 = arith.constant dense<0.000000e+00> : vector<8x32xf32>
    %227 = tpu.matmul %226, %225, %cst_106 {dimension_numbers = #tpu.dot_dimension_numbers<[1], [0], [0], [1], [0, 0, 1, 1], [], []>} : vector<8x32xbf16>, vector<32x32xbf16>, vector<8x32xf32> -> vector<8x32xf32>
    %c1_107 = arith.constant 1 : index
    %c0_108 = arith.constant 0 : index
    %c0_109 = arith.constant 0 : index
    %228 = vector.load %arg6[%c1_107, %c0_108, %c0_109] : memref<2x1x32xf32, #tpu.memory_space<vmem>>, vector<1x1x32xf32>
    %229 = vector.shape_cast %228 : vector<1x1x32xf32> to vector<1x32xf32>
    %230 = vector.broadcast %229 : vector<1x32xf32> to vector<8x32xf32>
    %231 = arith.addf %227, %230 : vector<8x32xf32>
    %c1_110 = arith.constant 1 : index
    %c0_111 = arith.constant 0 : index
    %c0_112 = arith.constant 0 : index
    %232 = vector.load %arg7[%c1_110, %c0_111, %c0_112] : memref<2x32x32xbf16, #tpu.memory_space<vmem>>, vector<1x32x32xbf16>
    %233 = vector.shape_cast %232 : vector<1x32x32xbf16> to vector<32x32xbf16>
    %234 = arith.truncf %223 : vector<8x32xf32> to vector<8x32xbf16>
    %cst_113 = arith.constant dense<0.000000e+00> : vector<8x32xf32>
    %235 = tpu.matmul %234, %233, %cst_113 {dimension_numbers = #tpu.dot_dimension_numbers<[1], [0], [0], [1], [0, 0, 1, 1], [], []>} : vector<8x32xbf16>, vector<32x32xbf16>, vector<8x32xf32> -> vector<8x32xf32>
    %c1_114 = arith.constant 1 : index
    %c0_115 = arith.constant 0 : index
    %c0_116 = arith.constant 0 : index
    %236 = vector.load %arg8[%c1_114, %c0_115, %c0_116] : memref<2x1x32xf32, #tpu.memory_space<vmem>>, vector<1x1x32xf32>
    %237 = vector.shape_cast %236 : vector<1x1x32xf32> to vector<1x32xf32>
    %238 = vector.broadcast %237 : vector<1x32xf32> to vector<8x32xf32>
    %239 = arith.addf %235, %238 : vector<8x32xf32>
    %c1_117 = arith.constant 1 : index
    %c0_118 = arith.constant 0 : index
    %c0_119 = arith.constant 0 : index
    %240 = vector.load %arg9[%c1_117, %c0_118, %c0_119] : memref<2x32x32xbf16, #tpu.memory_space<vmem>>, vector<1x32x32xbf16>
    %241 = vector.shape_cast %240 : vector<1x32x32xbf16> to vector<32x32xbf16>
    %242 = arith.truncf %223 : vector<8x32xf32> to vector<8x32xbf16>
    %cst_120 = arith.constant dense<0.000000e+00> : vector<8x32xf32>
    %243 = tpu.matmul %242, %241, %cst_120 {dimension_numbers = #tpu.dot_dimension_numbers<[1], [0], [0], [1], [0, 0, 1, 1], [], []>} : vector<8x32xbf16>, vector<32x32xbf16>, vector<8x32xf32> -> vector<8x32xf32>
    %c1_121 = arith.constant 1 : index
    %c0_122 = arith.constant 0 : index
    %c0_123 = arith.constant 0 : index
    %244 = vector.load %arg10[%c1_121, %c0_122, %c0_123] : memref<2x1x32xf32, #tpu.memory_space<vmem>>, vector<1x1x32xf32>
    %245 = vector.shape_cast %244 : vector<1x1x32xf32> to vector<1x32xf32>
    %246 = vector.broadcast %245 : vector<1x32xf32> to vector<8x32xf32>
    %247 = arith.addf %243, %246 : vector<8x32xf32>
    %248 = arith.truncf %239 : vector<8x32xf32> to vector<8x32xbf16>
    %cst_124 = arith.constant 0.000000e+00 : f32
    %249 = vector.broadcast %cst_124 : f32 to vector<8x32xf32>
    %cst_125 = arith.constant 0.000000e+00 : f32
    %250 = vector.broadcast %cst_125 : f32 to vector<8x32xf32>
    %251 = arith.select %5, %231, %250 : vector<8x32xi1>, vector<8x32xf32>
    %252 = arith.truncf %251 : vector<8x32xf32> to vector<8x32xbf16>
    %cst_126 = arith.constant dense<0.000000e+00> : vector<8x8xf32>
    %253 = tpu.matmul %252, %248, %cst_126 {dimension_numbers = #tpu.dot_dimension_numbers<[1], [1], [0], [0], [0, 0, 1, 0], [], []>} : vector<8x32xbf16>, vector<8x32xbf16>, vector<8x8xf32> -> vector<8x8xf32>
    %cst_127 = arith.constant 0.353553385 : f32
    %254 = vector.broadcast %cst_127 : f32 to vector<8x8xf32>
    %255 = arith.mulf %253, %254 : vector<8x8xf32>
    %cst_128 = arith.constant dense<0xFF800000> : vector<8xf32>
    %256 = vector.multi_reduction <maximumf>, %255, %cst_128 [1] : vector<8x8xf32> to vector<8xf32>
    %257 = vector.shape_cast %256 : vector<8xf32> to vector<8x1xf32>
    %258 = vector.broadcast %257 : vector<8x1xf32> to vector<8x8xf32>
    %259 = arith.subf %255, %258 : vector<8x8xf32>
    %260 = math.exp %259 : vector<8x8xf32>
    %cst_129 = arith.constant dense<0.000000e+00> : vector<8xf32>
    %261 = vector.multi_reduction <add>, %260, %cst_129 [1] : vector<8x8xf32> to vector<8xf32>
    %262 = vector.shape_cast %261 : vector<8xf32> to vector<8x1xf32>
    %263 = tpu.reciprocal %262 {approx = true} : vector<8x1xf32> -> vector<8x1xf32>
    %264 = vector.broadcast %263 : vector<8x1xf32> to vector<8x8xf32>
    %265 = arith.mulf %260, %264 : vector<8x8xf32>
    %cst_130 = arith.constant 0.000000e+00 : f32
    %266 = vector.broadcast %cst_130 : f32 to vector<8x32xf32>
    %267 = arith.select %5, %247, %266 : vector<8x32xi1>, vector<8x32xf32>
    %268 = arith.truncf %267 : vector<8x32xf32> to vector<8x32xbf16>
    %269 = arith.truncf %265 : vector<8x8xf32> to vector<8x8xbf16>
    %cst_131 = arith.constant dense<0.000000e+00> : vector<8x32xf32>
    %270 = tpu.matmul %269, %268, %cst_131 {dimension_numbers = #tpu.dot_dimension_numbers<[1], [0], [0], [1], [0, 0, 1, 1], [], []>} : vector<8x8xbf16>, vector<8x32xbf16>, vector<8x32xf32> -> vector<8x32xf32>
    %271 = arith.addf %249, %270 : vector<8x32xf32>
    %cst_132 = arith.constant 0.000000e+00 : f32
    %272 = vector.broadcast %cst_132 : f32 to vector<8x32xf32>
    %273 = arith.select %10, %231, %272 : vector<8x32xi1>, vector<8x32xf32>
    %274 = arith.truncf %273 : vector<8x32xf32> to vector<8x32xbf16>
    %cst_133 = arith.constant dense<0.000000e+00> : vector<8x8xf32>
    %275 = tpu.matmul %274, %248, %cst_133 {dimension_numbers = #tpu.dot_dimension_numbers<[1], [1], [0], [0], [0, 0, 1, 0], [], []>} : vector<8x32xbf16>, vector<8x32xbf16>, vector<8x8xf32> -> vector<8x8xf32>
    %cst_134 = arith.constant 0.353553385 : f32
    %276 = vector.broadcast %cst_134 : f32 to vector<8x8xf32>
    %277 = arith.mulf %275, %276 : vector<8x8xf32>
    %cst_135 = arith.constant dense<0xFF800000> : vector<8xf32>
    %278 = vector.multi_reduction <maximumf>, %277, %cst_135 [1] : vector<8x8xf32> to vector<8xf32>
    %279 = vector.shape_cast %278 : vector<8xf32> to vector<8x1xf32>
    %280 = vector.broadcast %279 : vector<8x1xf32> to vector<8x8xf32>
    %281 = arith.subf %277, %280 : vector<8x8xf32>
    %282 = math.exp %281 : vector<8x8xf32>
    %cst_136 = arith.constant dense<0.000000e+00> : vector<8xf32>
    %283 = vector.multi_reduction <add>, %282, %cst_136 [1] : vector<8x8xf32> to vector<8xf32>
    %284 = vector.shape_cast %283 : vector<8xf32> to vector<8x1xf32>
    %285 = tpu.reciprocal %284 {approx = true} : vector<8x1xf32> -> vector<8x1xf32>
    %286 = vector.broadcast %285 : vector<8x1xf32> to vector<8x8xf32>
    %287 = arith.mulf %282, %286 : vector<8x8xf32>
    %cst_137 = arith.constant 0.000000e+00 : f32
    %288 = vector.broadcast %cst_137 : f32 to vector<8x32xf32>
    %289 = arith.select %10, %247, %288 : vector<8x32xi1>, vector<8x32xf32>
    %290 = arith.truncf %289 : vector<8x32xf32> to vector<8x32xbf16>
    %291 = arith.truncf %287 : vector<8x8xf32> to vector<8x8xbf16>
    %cst_138 = arith.constant dense<0.000000e+00> : vector<8x32xf32>
    %292 = tpu.matmul %291, %290, %cst_138 {dimension_numbers = #tpu.dot_dimension_numbers<[1], [0], [0], [1], [0, 0, 1, 1], [], []>} : vector<8x8xbf16>, vector<8x32xbf16>, vector<8x32xf32> -> vector<8x32xf32>
    %293 = arith.addf %271, %292 : vector<8x32xf32>
    %cst_139 = arith.constant 0.000000e+00 : f32
    %294 = vector.broadcast %cst_139 : f32 to vector<8x32xf32>
    %295 = arith.select %15, %231, %294 : vector<8x32xi1>, vector<8x32xf32>
    %296 = arith.truncf %295 : vector<8x32xf32> to vector<8x32xbf16>
    %cst_140 = arith.constant dense<0.000000e+00> : vector<8x8xf32>
    %297 = tpu.matmul %296, %248, %cst_140 {dimension_numbers = #tpu.dot_dimension_numbers<[1], [1], [0], [0], [0, 0, 1, 0], [], []>} : vector<8x32xbf16>, vector<8x32xbf16>, vector<8x8xf32> -> vector<8x8xf32>
    %cst_141 = arith.constant 0.353553385 : f32
    %298 = vector.broadcast %cst_141 : f32 to vector<8x8xf32>
    %299 = arith.mulf %297, %298 : vector<8x8xf32>
    %cst_142 = arith.constant dense<0xFF800000> : vector<8xf32>
    %300 = vector.multi_reduction <maximumf>, %299, %cst_142 [1] : vector<8x8xf32> to vector<8xf32>
    %301 = vector.shape_cast %300 : vector<8xf32> to vector<8x1xf32>
    %302 = vector.broadcast %301 : vector<8x1xf32> to vector<8x8xf32>
    %303 = arith.subf %299, %302 : vector<8x8xf32>
    %304 = math.exp %303 : vector<8x8xf32>
    %cst_143 = arith.constant dense<0.000000e+00> : vector<8xf32>
    %305 = vector.multi_reduction <add>, %304, %cst_143 [1] : vector<8x8xf32> to vector<8xf32>
    %306 = vector.shape_cast %305 : vector<8xf32> to vector<8x1xf32>
    %307 = tpu.reciprocal %306 {approx = true} : vector<8x1xf32> -> vector<8x1xf32>
    %308 = vector.broadcast %307 : vector<8x1xf32> to vector<8x8xf32>
    %309 = arith.mulf %304, %308 : vector<8x8xf32>
    %cst_144 = arith.constant 0.000000e+00 : f32
    %310 = vector.broadcast %cst_144 : f32 to vector<8x32xf32>
    %311 = arith.select %15, %247, %310 : vector<8x32xi1>, vector<8x32xf32>
    %312 = arith.truncf %311 : vector<8x32xf32> to vector<8x32xbf16>
    %313 = arith.truncf %309 : vector<8x8xf32> to vector<8x8xbf16>
    %cst_145 = arith.constant dense<0.000000e+00> : vector<8x32xf32>
    %314 = tpu.matmul %313, %312, %cst_145 {dimension_numbers = #tpu.dot_dimension_numbers<[1], [0], [0], [1], [0, 0, 1, 1], [], []>} : vector<8x8xbf16>, vector<8x32xbf16>, vector<8x32xf32> -> vector<8x32xf32>
    %315 = arith.addf %293, %314 : vector<8x32xf32>
    %cst_146 = arith.constant 0.000000e+00 : f32
    %316 = vector.broadcast %cst_146 : f32 to vector<8x32xf32>
    %317 = arith.select %20, %231, %316 : vector<8x32xi1>, vector<8x32xf32>
    %318 = arith.truncf %317 : vector<8x32xf32> to vector<8x32xbf16>
    %cst_147 = arith.constant dense<0.000000e+00> : vector<8x8xf32>
    %319 = tpu.matmul %318, %248, %cst_147 {dimension_numbers = #tpu.dot_dimension_numbers<[1], [1], [0], [0], [0, 0, 1, 0], [], []>} : vector<8x32xbf16>, vector<8x32xbf16>, vector<8x8xf32> -> vector<8x8xf32>
    %cst_148 = arith.constant 0.353553385 : f32
    %320 = vector.broadcast %cst_148 : f32 to vector<8x8xf32>
    %321 = arith.mulf %319, %320 : vector<8x8xf32>
    %cst_149 = arith.constant dense<0xFF800000> : vector<8xf32>
    %322 = vector.multi_reduction <maximumf>, %321, %cst_149 [1] : vector<8x8xf32> to vector<8xf32>
    %323 = vector.shape_cast %322 : vector<8xf32> to vector<8x1xf32>
    %324 = vector.broadcast %323 : vector<8x1xf32> to vector<8x8xf32>
    %325 = arith.subf %321, %324 : vector<8x8xf32>
    %326 = math.exp %325 : vector<8x8xf32>
    %cst_150 = arith.constant dense<0.000000e+00> : vector<8xf32>
    %327 = vector.multi_reduction <add>, %326, %cst_150 [1] : vector<8x8xf32> to vector<8xf32>
    %328 = vector.shape_cast %327 : vector<8xf32> to vector<8x1xf32>
    %329 = tpu.reciprocal %328 {approx = true} : vector<8x1xf32> -> vector<8x1xf32>
    %330 = vector.broadcast %329 : vector<8x1xf32> to vector<8x8xf32>
    %331 = arith.mulf %326, %330 : vector<8x8xf32>
    %cst_151 = arith.constant 0.000000e+00 : f32
    %332 = vector.broadcast %cst_151 : f32 to vector<8x32xf32>
    %333 = arith.select %20, %247, %332 : vector<8x32xi1>, vector<8x32xf32>
    %334 = arith.truncf %333 : vector<8x32xf32> to vector<8x32xbf16>
    %335 = arith.truncf %331 : vector<8x8xf32> to vector<8x8xbf16>
    %cst_152 = arith.constant dense<0.000000e+00> : vector<8x32xf32>
    %336 = tpu.matmul %335, %334, %cst_152 {dimension_numbers = #tpu.dot_dimension_numbers<[1], [0], [0], [1], [0, 0, 1, 1], [], []>} : vector<8x8xbf16>, vector<8x32xbf16>, vector<8x32xf32> -> vector<8x32xf32>
    %337 = arith.addf %315, %336 : vector<8x32xf32>
    %c1_153 = arith.constant 1 : index
    %c0_154 = arith.constant 0 : index
    %c0_155 = arith.constant 0 : index
    %338 = vector.load %arg11[%c1_153, %c0_154, %c0_155] : memref<2x32x32xbf16, #tpu.memory_space<vmem>>, vector<1x32x32xbf16>
    %339 = vector.shape_cast %338 : vector<1x32x32xbf16> to vector<32x32xbf16>
    %340 = arith.truncf %337 : vector<8x32xf32> to vector<8x32xbf16>
    %cst_156 = arith.constant dense<0.000000e+00> : vector<8x32xf32>
    %341 = tpu.matmul %340, %339, %cst_156 {dimension_numbers = #tpu.dot_dimension_numbers<[1], [0], [0], [1], [0, 0, 1, 1], [], []>} : vector<8x32xbf16>, vector<32x32xbf16>, vector<8x32xf32> -> vector<8x32xf32>
    %c1_157 = arith.constant 1 : index
    %c0_158 = arith.constant 0 : index
    %c0_159 = arith.constant 0 : index
    %342 = vector.load %arg12[%c1_157, %c0_158, %c0_159] : memref<2x1x32xf32, #tpu.memory_space<vmem>>, vector<1x1x32xf32>
    %343 = vector.shape_cast %342 : vector<1x1x32xf32> to vector<1x32xf32>
    %344 = vector.broadcast %343 : vector<1x32xf32> to vector<8x32xf32>
    %345 = arith.addf %341, %344 : vector<8x32xf32>
    %346 = arith.addf %223, %345 : vector<8x32xf32>
    %c1_160 = arith.constant 1 : index
    %c0_161 = arith.constant 0 : index
    %c0_162 = arith.constant 0 : index
    %347 = vector.load %arg17[%c1_160, %c0_161, %c0_162] : memref<2x1x32xf32, #tpu.memory_space<vmem>>, vector<1x1x32xf32>
    %348 = vector.shape_cast %347 : vector<1x1x32xf32> to vector<1x32xf32>
    %c1_163 = arith.constant 1 : index
    %c0_164 = arith.constant 0 : index
    %c0_165 = arith.constant 0 : index
    %349 = vector.load %arg18[%c1_163, %c0_164, %c0_165] : memref<2x1x32xf32, #tpu.memory_space<vmem>>, vector<1x1x32xf32>
    %350 = vector.shape_cast %349 : vector<1x1x32xf32> to vector<1x32xf32>
    %cst_166 = arith.constant dense<0.000000e+00> : vector<8xf32>
    %351 = vector.multi_reduction <add>, %346, %cst_166 [1] : vector<8x32xf32> to vector<8xf32>
    %352 = vector.shape_cast %351 : vector<8xf32> to vector<8x1xf32>
    %cst_167 = arith.constant 3.200000e+01 : f32
    %353 = vector.broadcast %cst_167 : f32 to vector<8x1xf32>
    %354 = arith.divf %352, %353 : vector<8x1xf32>
    %355 = vector.broadcast %354 : vector<8x1xf32> to vector<8x32xf32>
    %356 = arith.subf %346, %355 : vector<8x32xf32>
    %357 = arith.mulf %356, %356 : vector<8x32xf32>
    %cst_168 = arith.constant dense<0.000000e+00> : vector<8xf32>
    %358 = vector.multi_reduction <add>, %357, %cst_168 [1] : vector<8x32xf32> to vector<8xf32>
    %359 = vector.shape_cast %358 : vector<8xf32> to vector<8x1xf32>
    %cst_169 = arith.constant 3.200000e+01 : f32
    %360 = vector.broadcast %cst_169 : f32 to vector<8x1xf32>
    %361 = arith.divf %359, %360 : vector<8x1xf32>
    %362 = vector.broadcast %354 : vector<8x1xf32> to vector<8x32xf32>
    %363 = arith.subf %346, %362 : vector<8x32xf32>
    %cst_170 = arith.constant 9.99999974E-6 : f32
    %364 = vector.broadcast %cst_170 : f32 to vector<8x1xf32>
    %365 = arith.addf %361, %364 : vector<8x1xf32>
    %366 = math.rsqrt %365 : vector<8x1xf32>
    %367 = vector.broadcast %366 : vector<8x1xf32> to vector<8x32xf32>
    %368 = arith.mulf %363, %367 : vector<8x32xf32>
    %369 = vector.broadcast %348 : vector<1x32xf32> to vector<8x32xf32>
    %370 = arith.mulf %368, %369 : vector<8x32xf32>
    %371 = vector.broadcast %350 : vector<1x32xf32> to vector<8x32xf32>
    %372 = arith.addf %370, %371 : vector<8x32xf32>
    %c1_171 = arith.constant 1 : index
    %c0_172 = arith.constant 0 : index
    %c0_173 = arith.constant 0 : index
    %373 = vector.load %arg13[%c1_171, %c0_172, %c0_173] : memref<2x32x2048xbf16, #tpu.memory_space<vmem>>, vector<1x32x2048xbf16>
    %374 = vector.shape_cast %373 : vector<1x32x2048xbf16> to vector<32x2048xbf16>
    %375 = arith.truncf %372 : vector<8x32xf32> to vector<8x32xbf16>
    %cst_174 = arith.constant dense<0.000000e+00> : vector<8x2048xf32>
    %376 = tpu.matmul %375, %374, %cst_174 {dimension_numbers = #tpu.dot_dimension_numbers<[1], [0], [0], [1], [0, 0, 1, 1], [], []>} : vector<8x32xbf16>, vector<32x2048xbf16>, vector<8x2048xf32> -> vector<8x2048xf32>
    %c1_175 = arith.constant 1 : index
    %c0_176 = arith.constant 0 : index
    %c0_177 = arith.constant 0 : index
    %377 = vector.load %arg14[%c1_175, %c0_176, %c0_177] : memref<2x1x2048xf32, #tpu.memory_space<vmem>>, vector<1x1x2048xf32>
    %378 = vector.shape_cast %377 : vector<1x1x2048xf32> to vector<1x2048xf32>
    %379 = vector.broadcast %378 : vector<1x2048xf32> to vector<8x2048xf32>
    %380 = arith.addf %376, %379 : vector<8x2048xf32>
    %cst_178 = arith.constant 0.000000e+00 : f32
    %381 = vector.broadcast %cst_178 : f32 to vector<8x2048xf32>
    %382 = arith.maximumf %380, %381 : vector<8x2048xf32>
    %383 = arith.truncf %382 : vector<8x2048xf32> to vector<8x2048xbf16>
    %c1_179 = arith.constant 1 : index
    %c0_180 = arith.constant 0 : index
    %c0_181 = arith.constant 0 : index
    %384 = vector.load %arg15[%c1_179, %c0_180, %c0_181] : memref<2x2048x32xbf16, #tpu.memory_space<vmem>>, vector<1x2048x32xbf16>
    %385 = vector.shape_cast %384 : vector<1x2048x32xbf16> to vector<2048x32xbf16>
    %cst_182 = arith.constant dense<0.000000e+00> : vector<8x32xf32>
    %386 = tpu.matmul %383, %385, %cst_182 {dimension_numbers = #tpu.dot_dimension_numbers<[1], [0], [0], [1], [0, 0, 1, 1], [], []>} : vector<8x2048xbf16>, vector<2048x32xbf16>, vector<8x32xf32> -> vector<8x32xf32>
    %c1_183 = arith.constant 1 : index
    %c0_184 = arith.constant 0 : index
    %c0_185 = arith.constant 0 : index
    %387 = vector.load %arg16[%c1_183, %c0_184, %c0_185] : memref<2x1x32xf32, #tpu.memory_space<vmem>>, vector<1x1x32xf32>
    %388 = vector.shape_cast %387 : vector<1x1x32xf32> to vector<1x32xf32>
    %389 = vector.broadcast %388 : vector<1x32xf32> to vector<8x32xf32>
    %390 = arith.addf %386, %389 : vector<8x32xf32>
    %391 = arith.addf %372, %390 : vector<8x32xf32>
    %c1_186 = arith.constant 1 : index
    %c0_187 = arith.constant 0 : index
    %c0_188 = arith.constant 0 : index
    %392 = vector.load %arg19[%c1_186, %c0_187, %c0_188] : memref<2x1x32xf32, #tpu.memory_space<vmem>>, vector<1x1x32xf32>
    %393 = vector.shape_cast %392 : vector<1x1x32xf32> to vector<1x32xf32>
    %c1_189 = arith.constant 1 : index
    %c0_190 = arith.constant 0 : index
    %c0_191 = arith.constant 0 : index
    %394 = vector.load %arg20[%c1_189, %c0_190, %c0_191] : memref<2x1x32xf32, #tpu.memory_space<vmem>>, vector<1x1x32xf32>
    %395 = vector.shape_cast %394 : vector<1x1x32xf32> to vector<1x32xf32>
    %cst_192 = arith.constant dense<0.000000e+00> : vector<8xf32>
    %396 = vector.multi_reduction <add>, %391, %cst_192 [1] : vector<8x32xf32> to vector<8xf32>
    %397 = vector.shape_cast %396 : vector<8xf32> to vector<8x1xf32>
    %cst_193 = arith.constant 3.200000e+01 : f32
    %398 = vector.broadcast %cst_193 : f32 to vector<8x1xf32>
    %399 = arith.divf %397, %398 : vector<8x1xf32>
    %400 = vector.broadcast %399 : vector<8x1xf32> to vector<8x32xf32>
    %401 = arith.subf %391, %400 : vector<8x32xf32>
    %402 = arith.mulf %401, %401 : vector<8x32xf32>
    %cst_194 = arith.constant dense<0.000000e+00> : vector<8xf32>
    %403 = vector.multi_reduction <add>, %402, %cst_194 [1] : vector<8x32xf32> to vector<8xf32>
    %404 = vector.shape_cast %403 : vector<8xf32> to vector<8x1xf32>
    %cst_195 = arith.constant 3.200000e+01 : f32
    %405 = vector.broadcast %cst_195 : f32 to vector<8x1xf32>
    %406 = arith.divf %404, %405 : vector<8x1xf32>
    %407 = vector.broadcast %399 : vector<8x1xf32> to vector<8x32xf32>
    %408 = arith.subf %391, %407 : vector<8x32xf32>
    %cst_196 = arith.constant 9.99999974E-6 : f32
    %409 = vector.broadcast %cst_196 : f32 to vector<8x1xf32>
    %410 = arith.addf %406, %409 : vector<8x1xf32>
    %411 = math.rsqrt %410 : vector<8x1xf32>
    %412 = vector.broadcast %411 : vector<8x1xf32> to vector<8x32xf32>
    %413 = arith.mulf %408, %412 : vector<8x32xf32>
    %414 = vector.broadcast %393 : vector<1x32xf32> to vector<8x32xf32>
    %415 = arith.mulf %413, %414 : vector<8x32xf32>
    %416 = vector.broadcast %395 : vector<1x32xf32> to vector<8x32xf32>
    %417 = arith.addf %415, %416 : vector<8x32xf32>
    %c0_197 = arith.constant 0 : index
    %c0_198 = arith.constant 0 : index
    %418 = vector.load %arg21[%c0_197, %c0_198] : memref<32x128xbf16, #tpu.memory_space<vmem>>, vector<32x128xbf16>
    %419 = arith.truncf %417 : vector<8x32xf32> to vector<8x32xbf16>
    %cst_199 = arith.constant dense<0.000000e+00> : vector<8x128xf32>
    %420 = tpu.matmul %419, %418, %cst_199 {dimension_numbers = #tpu.dot_dimension_numbers<[1], [0], [0], [1], [0, 0, 1, 1], [], []>} : vector<8x32xbf16>, vector<32x128xbf16>, vector<8x128xf32> -> vector<8x128xf32>
    %c0_200 = arith.constant 0 : index
    %c0_201 = arith.constant 0 : index
    %421 = vector.load %arg22[%c0_200, %c0_201] : memref<1x128xf32, #tpu.memory_space<vmem>>, vector<1x128xf32>
    %422 = vector.broadcast %421 : vector<1x128xf32> to vector<8x128xf32>
    %423 = arith.addf %420, %422 : vector<8x128xf32>
    %424 = tpu.iota {dimensions = array<i32: 1>} : vector<8x128xi32>
    %425 = arith.negf %423 : vector<8x128xf32>
    %426 = math.exp %425 : vector<8x128xf32>
    %cst_202 = arith.constant 1.000000e+00 : f32
    %427 = vector.broadcast %cst_202 : f32 to vector<8x128xf32>
    %428 = arith.addf %427, %426 : vector<8x128xf32>
    %429 = arith.divf %427, %428 : vector<8x128xf32>
    %cst_203 = arith.constant 0.000000e+00 : f32
    %430 = vector.broadcast %cst_203 : f32 to vector<8x128xf32>
    %c0_i32_204 = arith.constant 0 : i32
    %431 = vector.broadcast %c0_i32_204 : i32 to vector<8x128xi32>
    %432 = arith.cmpi sge, %424, %431 : vector<8x128xi32>
    %c7_i32 = arith.constant 7 : i32
    %433 = vector.broadcast %c7_i32 : i32 to vector<8x128xi32>
    %434 = arith.cmpi slt, %424, %433 : vector<8x128xi32>
    %435 = arith.andi %432, %434 : vector<8x128xi1>
    %cst_205 = arith.constant 0xFF800000 : f32
    %436 = vector.broadcast %cst_205 : f32 to vector<8x128xf32>
    %437 = arith.select %435, %423, %436 : vector<8x128xi1>, vector<8x128xf32>
    %cst_206 = arith.constant dense<0xFF800000> : vector<8xf32>
    %438 = vector.multi_reduction <maximumf>, %437, %cst_206 [1] : vector<8x128xf32> to vector<8xf32>
    %439 = vector.shape_cast %438 : vector<8xf32> to vector<8x1xf32>
    %440 = vector.broadcast %439 : vector<8x1xf32> to vector<8x128xf32>
    %441 = arith.subf %437, %440 : vector<8x128xf32>
    %442 = math.exp %441 : vector<8x128xf32>
    %cst_207 = arith.constant dense<0.000000e+00> : vector<8xf32>
    %443 = vector.multi_reduction <add>, %442, %cst_207 [1] : vector<8x128xf32> to vector<8xf32>
    %444 = vector.shape_cast %443 : vector<8xf32> to vector<8x1xf32>
    %445 = vector.broadcast %444 : vector<8x1xf32> to vector<8x128xf32>
    %446 = arith.divf %442, %445 : vector<8x128xf32>
    %447 = arith.select %435, %446, %430 : vector<8x128xi1>, vector<8x128xf32>
    %c7_i32_208 = arith.constant 7 : i32
    %448 = vector.broadcast %c7_i32_208 : i32 to vector<8x128xi32>
    %449 = arith.cmpi sge, %424, %448 : vector<8x128xi32>
    %c12_i32 = arith.constant 12 : i32
    %450 = vector.broadcast %c12_i32 : i32 to vector<8x128xi32>
    %451 = arith.cmpi slt, %424, %450 : vector<8x128xi32>
    %452 = arith.andi %449, %451 : vector<8x128xi1>
    %453 = arith.select %452, %429, %447 : vector<8x128xi1>, vector<8x128xf32>
    %c0_209 = arith.constant 0 : index
    %c0_210 = arith.constant 0 : index
    %454 = vector.load %arg23[%c0_209, %c0_210] : memref<8x128xf32, #tpu.memory_space<vmem>>, vector<8x128xf32>
    tpu.vector_store %arg23[%c0_209, %c0_210], %453 {strides = array<i32>} : memref<8x128xf32, #tpu.memory_space<vmem>>, vector<8x128xf32>,
    return
  }
  func.func @transform_0(%arg0: i32) -> (i32, i32) {
    %c0_i32 = arith.constant 0 : i32
    %c0_i32_0 = arith.constant 0 : i32
    return %arg0, %c0_i32 : i32, i32
  }
  func.func @transform_1(%arg0: i32) -> (i32, i32) {
    %c0_i32 = arith.constant 0 : i32
    %c0_i32_0 = arith.constant 0 : i32
    %c0_i32_1 = arith.constant 0 : i32
    return %c0_i32, %c0_i32_0 : i32, i32
  }
  func.func @transform_2(%arg0: i32) -> (i32, i32) {
    %c0_i32 = arith.constant 0 : i32
    %c0_i32_0 = arith.constant 0 : i32
    %c0_i32_1 = arith.constant 0 : i32
    return %c0_i32, %c0_i32_0 : i32, i32
  }
  func.func @transform_3(%arg0: i32) -> (i32, i32) {
    %c0_i32 = arith.constant 0 : i32
    %c0_i32_0 = arith.constant 0 : i32
    %c0_i32_1 = arith.constant 0 : i32
    return %c0_i32, %c0_i32_0 : i32, i32
  }
  func.func @transform_4(%arg0: i32) -> (i32, i32, i32) {
    %c0_i32 = arith.constant 0 : i32
    %c0_i32_0 = arith.constant 0 : i32
    %c0_i32_1 = arith.constant 0 : i32
    %c0_i32_2 = arith.constant 0 : i32
    return %c0_i32, %c0_i32_0, %c0_i32_1 : i32, i32, i32
  }
  func.func @transform_5(%arg0: i32) -> (i32, i32, i32) {
    %c0_i32 = arith.constant 0 : i32
    %c0_i32_0 = arith.constant 0 : i32
    %c0_i32_1 = arith.constant 0 : i32
    %c0_i32_2 = arith.constant 0 : i32
    return %c0_i32, %c0_i32_0, %c0_i32_1 : i32, i32, i32
  }
  func.func @transform_6(%arg0: i32) -> (i32, i32, i32) {
    %c0_i32 = arith.constant 0 : i32
    %c0_i32_0 = arith.constant 0 : i32
    %c0_i32_1 = arith.constant 0 : i32
    %c0_i32_2 = arith.constant 0 : i32
    return %c0_i32, %c0_i32_0, %c0_i32_1 : i32, i32, i32
  }
  func.func @transform_7(%arg0: i32) -> (i32, i32, i32) {
    %c0_i32 = arith.constant 0 : i32
    %c0_i32_0 = arith.constant 0 : i32
    %c0_i32_1 = arith.constant 0 : i32
    %c0_i32_2 = arith.constant 0 : i32
    return %c0_i32, %c0_i32_0, %c0_i32_1 : i32, i32, i32
  }
  func.func @transform_8(%arg0: i32) -> (i32, i32, i32) {
    %c0_i32 = arith.constant 0 : i32
    %c0_i32_0 = arith.constant 0 : i32
    %c0_i32_1 = arith.constant 0 : i32
    %c0_i32_2 = arith.constant 0 : i32
    return %c0_i32, %c0_i32_0, %c0_i32_1 : i32, i32, i32
  }
  func.func @transform_9(%arg0: i32) -> (i32, i32, i32) {
    %c0_i32 = arith.constant 0 : i32
    %c0_i32_0 = arith.constant 0 : i32
    %c0_i32_1 = arith.constant 0 : i32
    %c0_i32_2 = arith.constant 0 : i32
    return %c0_i32, %c0_i32_0, %c0_i32_1 : i32, i32, i32
  }
  func.func @transform_10(%arg0: i32) -> (i32, i32, i32) {
    %c0_i32 = arith.constant 0 : i32
    %c0_i32_0 = arith.constant 0 : i32
    %c0_i32_1 = arith.constant 0 : i32
    %c0_i32_2 = arith.constant 0 : i32
    return %c0_i32, %c0_i32_0, %c0_i32_1 : i32, i32, i32
  }
  func.func @transform_11(%arg0: i32) -> (i32, i32, i32) {
    %c0_i32 = arith.constant 0 : i32
    %c0_i32_0 = arith.constant 0 : i32
    %c0_i32_1 = arith.constant 0 : i32
    %c0_i32_2 = arith.constant 0 : i32
    return %c0_i32, %c0_i32_0, %c0_i32_1 : i32, i32, i32
  }
  func.func @transform_12(%arg0: i32) -> (i32, i32, i32) {
    %c0_i32 = arith.constant 0 : i32
    %c0_i32_0 = arith.constant 0 : i32
    %c0_i32_1 = arith.constant 0 : i32
    %c0_i32_2 = arith.constant 0 : i32
    return %c0_i32, %c0_i32_0, %c0_i32_1 : i32, i32, i32
  }
  func.func @transform_13(%arg0: i32) -> (i32, i32, i32) {
    %c0_i32 = arith.constant 0 : i32
    %c0_i32_0 = arith.constant 0 : i32
    %c0_i32_1 = arith.constant 0 : i32
    %c0_i32_2 = arith.constant 0 : i32
    return %c0_i32, %c0_i32_0, %c0_i32_1 : i32, i32, i32
  }
  func.func @transform_14(%arg0: i32) -> (i32, i32, i32) {
    %c0_i32 = arith.constant 0 : i32
    %c0_i32_0 = arith.constant 0 : i32
    %c0_i32_1 = arith.constant 0 : i32
    %c0_i32_2 = arith.constant 0 : i32
    return %c0_i32, %c0_i32_0, %c0_i32_1 : i32, i32, i32
  }
  func.func @transform_15(%arg0: i32) -> (i32, i32, i32) {
    %c0_i32 = arith.constant 0 : i32
    %c0_i32_0 = arith.constant 0 : i32
    %c0_i32_1 = arith.constant 0 : i32
    %c0_i32_2 = arith.constant 0 : i32
    return %c0_i32, %c0_i32_0, %c0_i32_1 : i32, i32, i32
  }
  func.func @transform_16(%arg0: i32) -> (i32, i32, i32) {
    %c0_i32 = arith.constant 0 : i32
    %c0_i32_0 = arith.constant 0 : i32
    %c0_i32_1 = arith.constant 0 : i32
    %c0_i32_2 = arith.constant 0 : i32
    return %c0_i32, %c0_i32_0, %c0_i32_1 : i32, i32, i32
  }
  func.func @transform_17(%arg0: i32) -> (i32, i32, i32) {
    %c0_i32 = arith.constant 0 : i32
    %c0_i32_0 = arith.constant 0 : i32
    %c0_i32_1 = arith.constant 0 : i32
    %c0_i32_2 = arith.constant 0 : i32
    return %c0_i32, %c0_i32_0, %c0_i32_1 : i32, i32, i32
  }
  func.func @transform_18(%arg0: i32) -> (i32, i32, i32) {
    %c0_i32 = arith.constant 0 : i32
    %c0_i32_0 = arith.constant 0 : i32
    %c0_i32_1 = arith.constant 0 : i32
    %c0_i32_2 = arith.constant 0 : i32
    return %c0_i32, %c0_i32_0, %c0_i32_1 : i32, i32, i32
  }
  func.func @transform_19(%arg0: i32) -> (i32, i32, i32) {
    %c0_i32 = arith.constant 0 : i32
    %c0_i32_0 = arith.constant 0 : i32
    %c0_i32_1 = arith.constant 0 : i32
    %c0_i32_2 = arith.constant 0 : i32
    return %c0_i32, %c0_i32_0, %c0_i32_1 : i32, i32, i32
  }
  func.func @transform_20(%arg0: i32) -> (i32, i32) {
    %c0_i32 = arith.constant 0 : i32
    %c0_i32_0 = arith.constant 0 : i32
    %c0_i32_1 = arith.constant 0 : i32
    return %c0_i32, %c0_i32_0 : i32, i32
  }
  func.func @transform_21(%arg0: i32) -> (i32, i32) {
    %c0_i32 = arith.constant 0 : i32
    %c0_i32_0 = arith.constant 0 : i32
    %c0_i32_1 = arith.constant 0 : i32
    return %c0_i32, %c0_i32_0 : i32, i32
  }
  func.func @transform_22(%arg0: i32) -> (i32, i32) {
    %c0_i32 = arith.constant 0 : i32
    %c0_i32_0 = arith.constant 0 : i32
    return %arg0, %c0_i32 : i32, i32
  }
}

</mosaic_0001>

<llo_original>
// kernel: forward.1
$region0: #{forward.1}
  #allocation0 [shape = 'u32[]', space=smem, size = 0x4, offset = 0x4, fixed_abs, tag = 'smem constant byte address 0x4 - core index']
  #allocation1 [shape = 'u32[144,128]{1,0:T(1,128)}', space=vmem, size = 0x12000, scoped, tag = 'internal scratch']
  %s0 = inlined_call_operand.vmem [shape: f32[16,16], index: 0, kind: input, shape index: {}]
  %s1 = inlined_call_operand.vmem [shape: f32[8,32], index: 1, kind: input, shape index: {}]
  %s2 = inlined_call_operand.vmem [shape: bf16[16,32], index: 2, kind: input, shape index: {}]
  %s3 = inlined_call_operand.vmem [shape: f32[1,32], index: 3, kind: input, shape index: {}]
  %s4 = inlined_call_operand.vmem [shape: bf16[2,32,32], index: 4, kind: input, shape index: {}]
  %s5 = inlined_call_operand.vmem [shape: f32[2,1,32], index: 5, kind: input, shape index: {}]
  %s6 = inlined_call_operand.vmem [shape: bf16[2,32,32], index: 6, kind: input, shape index: {}]
  %s7 = inlined_call_operand.vmem [shape: f32[2,1,32], index: 7, kind: input, shape index: {}]
  %s8 = inlined_call_operand.vmem [shape: bf16[2,32,32], index: 8, kind: input, shape index: {}]
  %s9 = inlined_call_operand.vmem [shape: f32[2,1,32], index: 9, kind: input, shape index: {}]
  %s10 = inlined_call_operand.vmem [shape: bf16[2,32,32], index: 10, kind: input, shape index: {}]
  %s11 = inlined_call_operand.vmem [shape: f32[2,1,32], index: 11, kind: input, shape index: {}]
  %s12 = inlined_call_operand.vmem [shape: bf16[2,32,2048], index: 12, kind: input, shape index: {}]
  %s13 = inlined_call_operand.vmem [shape: f32[2,1,2048], index: 13, kind: input, shape index: {}]
  %s14 = inlined_call_operand.vmem [shape: bf16[2,2048,32], index: 14, kind: input, shape index: {}]
  %s15 = inlined_call_operand.vmem [shape: f32[2,1,32], index: 15, kind: input, shape index: {}]
  %s16 = inlined_call_operand.vmem [shape: f32[2,1,32], index: 16, kind: input, shape index: {}]
  %s17 = inlined_call_operand.vmem [shape: f32[2,1,32], index: 17, kind: input, shape index: {}]
  %s18 = inlined_call_operand.vmem [shape: f32[2,1,32], index: 18, kind: input, shape index: {}]
  %s19 = inlined_call_operand.vmem [shape: f32[2,1,32], index: 19, kind: input, shape index: {}]
  %s20 = inlined_call_operand.vmem [shape: bf16[32,128], index: 20, kind: input, shape index: {}]
  %s21 = inlined_call_operand.vmem [shape: f32[1,128], index: 21, kind: input, shape index: {}]
  %s22 = inlined_call_operand.vmem [shape: f32[16,128], index: 22, kind: output, shape index: {}]
  %s23 = sld [smem:[#allocation0]]
  $region121: #{forward.1} parent=0
    _
  %s25 = ssub.s32 1, %s23
  %s26 = scalar_select 0, %s25, %s23
  loop: start=0, step=1, limit=4
  $region2: #{forward.1} parent=0 // loop_pre_header
    _
  $region3: #{forward.1} parent=0 // loop_header
    %s28 = sphi 0, %s32
    %p29 = scmp.ge.s32.totalorder %s28, 4
    %s38 = sphi 0, %s40
    %s41 = sphi 0, %s38
    %s42 = sphi 0, %s41
    %s58 = sphi 0, %s42
    %s62 = sphi 0, %s62
    %s64 = sphi 0, %s62
    %s65 = sphi 0, %s64
    %s79 = sphi 0, %s65
    %s83 = sphi 0, %s83
    %s85 = sphi 0, %s83
    %s86 = sphi 0, %s85
    %s100 = sphi 0, %s86
    %s104 = sphi 0, %s104
    %s106 = sphi 0, %s104
    %s107 = sphi 0, %s106
    %s121 = sphi 0, %s107
    %s125 = sphi 0, %s125
    %s127 = sphi 0, %s125
    %s128 = sphi 0, %s127
    %s142 = sphi 0, %s128
    %s146 = sphi 0, %s146
    %s148 = sphi 0, %s146
    %s149 = sphi 0, %s148
    %s163 = sphi 0, %s149
    %s167 = sphi 0, %s167
    %s169 = sphi 0, %s167
    %s170 = sphi 0, %s169
    %s184 = sphi 0, %s170
    %s188 = sphi 0, %s188
    %s190 = sphi 0, %s188
    %s191 = sphi 0, %s190
    %s205 = sphi 0, %s191
    %s209 = sphi 0, %s209
    %s211 = sphi 0, %s209
    %s212 = sphi 0, %s211
    %s226 = sphi 0, %s212
    %s230 = sphi 0, %s230
    %s232 = sphi 0, %s230
    %s233 = sphi 0, %s232
    %s247 = sphi 0, %s233
    %s251 = sphi 0, %s251
    %s253 = sphi 0, %s251
    %s254 = sphi 0, %s253
    %s268 = sphi 0, %s254
    %s272 = sphi 0, %s272
    %s274 = sphi 0, %s272
    %s275 = sphi 0, %s274
    %s289 = sphi 0, %s275
    %s293 = sphi 0, %s293
    %s295 = sphi 0, %s293
    %s296 = sphi 0, %s295
    %s310 = sphi 0, %s296
    %s314 = sphi 0, %s314
    %s316 = sphi 0, %s314
    %s317 = sphi 0, %s316
    %s331 = sphi 0, %s317
    %s335 = sphi 0, %s335
    %s337 = sphi 0, %s335
    %s338 = sphi 0, %s337
    %s352 = sphi 0, %s338
    %s356 = sphi 0, %s356
    %s358 = sphi 0, %s356
    %s359 = sphi 0, %s358
    %s373 = sphi 0, %s359
    %s377 = sphi 0, %s377
    %s379 = sphi 0, %s377
    %s380 = sphi 0, %s379
    %s394 = sphi 0, %s380
    %s398 = sphi 0, %s398
    %s400 = sphi 0, %s398
    %s401 = sphi 0, %s400
    %s415 = sphi 0, %s401
    %s419 = sphi 0, %s419
    %s421 = sphi 0, %s419
    %s422 = sphi 0, %s421
    %s436 = sphi 0, %s422
    %s440 = sphi 0, %s440
    %s442 = sphi 0, %s440
    %s443 = sphi 0, %s442
    %s457 = sphi 0, %s443
    %s461 = sphi 0, %s461
    %s463 = sphi 0, %s461
    %s464 = sphi 0, %s463
    %s478 = sphi 0, %s464
    %s482 = sphi 0, %s482
    %s484 = sphi 0, %s482
    %s485 = sphi 0, %s484
    %s499 = sphi 0, %s485
    %s505 = sphi 0, %s507
    %s508 = sphi 0, %s505
    %s509 = sphi 0, %s508
    %s525 = sphi 0, %s509
  $region4: #{forward.1} parent=0 // loop_header_branch
    %31 = sbr.rel (%p29) target = $region8
  $region5: #{forward.1} parent=0 // loop_body
    %s33 = ssub.s32 %s28, 1
    %s34 = ssub.s32 %s28, 2
    %s35 = sadd.s32 %s28, 1
    %s36 = ssub.s32 %s28, %s35
    %p37 = scmp.eq.s32.totalorder %s36, 0
    %s39 = sadd.s32 %s38, 1
    %s40 = scalar_select %p37, %s38, %s39
    %p43 = pneg %p37
    %p44 = scmp.eq.s32.totalorder %s28, 1
    %p45 = por %p43, %p44
    %p46 = scmp.ne.s32.totalorder %s38, %s41
    %p47 = scmp.eq.s32.totalorder %s28, 0
    %p48 = por %p46, %p47
    %p49 = scmp.ne.s32.totalorder %s38, %s41
    %p50 = scmp.eq.s32.totalorder %s33, 1
    %p51 = por %p49, %p50
    %p52 = scmp.ne.s32.totalorder %s41, %s42
    %p53 = scmp.eq.s32.totalorder %s33, 0
    %p54 = por %p52, %p53
    %p55 = scmp.ne.s32.totalorder %s41, %s42
    %p56 = scmp.eq.s32.totalorder %s34, 1
    %p57 = por %p55, %p56
    %p59 = scmp.ne.s32.totalorder %s42, %s58
    %p60 = scmp.eq.s32.totalorder %s34, 0
    %p61 = por %p59, %p60
    %s63 = sadd.s32 %s62, 1
    %p66 = scmp.eq.s32.totalorder %s28, 1
    %p67 = scmp.ne.s32.totalorder %s62, %s64
    %p68 = scmp.eq.s32.totalorder %s28, 0
    %p69 = por %p67, %p68
    %p70 = scmp.ne.s32.totalorder %s62, %s64
    %p71 = scmp.eq.s32.totalorder %s33, 1
    %p72 = por %p70, %p71
    %p73 = scmp.ne.s32.totalorder %s64, %s65
    %p74 = scmp.eq.s32.totalorder %s33, 0
    %p75 = por %p73, %p74
    %p76 = scmp.ne.s32.totalorder %s64, %s65
    %p77 = scmp.eq.s32.totalorder %s34, 1
    %p78 = por %p76, %p77
    %p80 = scmp.ne.s32.totalorder %s65, %s79
    %p81 = scmp.eq.s32.totalorder %s34, 0
    %p82 = por %p80, %p81
    %s84 = sadd.s32 %s83, 1
    %p87 = scmp.eq.s32.totalorder %s28, 1
    %p88 = scmp.ne.s32.totalorder %s83, %s85
    %p89 = scmp.eq.s32.totalorder %s28, 0
    %p90 = por %p88, %p89
    %p91 = scmp.ne.s32.totalorder %s83, %s85
    %p92 = scmp.eq.s32.totalorder %s33, 1
    %p93 = por %p91, %p92
    %p94 = scmp.ne.s32.totalorder %s85, %s86
    %p95 = scmp.eq.s32.totalorder %s33, 0
    %p96 = por %p94, %p95
    %p97 = scmp.ne.s32.totalorder %s85, %s86
    %p98 = scmp.eq.s32.totalorder %s34, 1
    %p99 = por %p97, %p98
    %p101 = scmp.ne.s32.totalorder %s86, %s100
    %p102 = scmp.eq.s32.totalorder %s34, 0
    %p103 = por %p101, %p102
    %s105 = sadd.s32 %s104, 1
    %p108 = scmp.eq.s32.totalorder %s28, 1
    %p109 = scmp.ne.s32.totalorder %s104, %s106
    %p110 = scmp.eq.s32.totalorder %s28, 0
    %p111 = por %p109, %p110
    %p112 = scmp.ne.s32.totalorder %s104, %s106
    %p113 = scmp.eq.s32.totalorder %s33, 1
    %p114 = por %p112, %p113
    %p115 = scmp.ne.s32.totalorder %s106, %s107
    %p116 = scmp.eq.s32.totalorder %s33, 0
    %p117 = por %p115, %p116
    %p118 = scmp.ne.s32.totalorder %s106, %s107
    %p119 = scmp.eq.s32.totalorder %s34, 1
    %p120 = por %p118, %p119
    %p122 = scmp.ne.s32.totalorder %s107, %s121
    %p123 = scmp.eq.s32.totalorder %s34, 0
    %p124 = por %p122, %p123
    %s126 = sadd.s32 %s125, 1
    %p129 = scmp.eq.s32.totalorder %s28, 1
    %p130 = scmp.ne.s32.totalorder %s125, %s127
    %p131 = scmp.eq.s32.totalorder %s28, 0
    %p132 = por %p130, %p131
    %p133 = scmp.ne.s32.totalorder %s125, %s127
    %p134 = scmp.eq.s32.totalorder %s33, 1
    %p135 = por %p133, %p134
    %p136 = scmp.ne.s32.totalorder %s127, %s128
    %p137 = scmp.eq.s32.totalorder %s33, 0
    %p138 = por %p136, %p137
    %p139 = scmp.ne.s32.totalorder %s127, %s128
    %p140 = scmp.eq.s32.totalorder %s34, 1
    %p141 = por %p139, %p140
    %p143 = scmp.ne.s32.totalorder %s128, %s142
    %p144 = scmp.eq.s32.totalorder %s34, 0
    %p145 = por %p143, %p144
    %s147 = sadd.s32 %s146, 1
    %p150 = scmp.eq.s32.totalorder %s28, 1
    %p151 = scmp.ne.s32.totalorder %s146, %s148
    %p152 = scmp.eq.s32.totalorder %s28, 0
    %p153 = por %p151, %p152
    %p154 = scmp.ne.s32.totalorder %s146, %s148
    %p155 = scmp.eq.s32.totalorder %s33, 1
    %p156 = por %p154, %p155
    %p157 = scmp.ne.s32.totalorder %s148, %s149
    %p158 = scmp.eq.s32.totalorder %s33, 0
    %p159 = por %p157, %p158
    %p160 = scmp.ne.s32.totalorder %s148, %s149
    %p161 = scmp.eq.s32.totalorder %s34, 1
    %p162 = por %p160, %p161
    %p164 = scmp.ne.s32.totalorder %s149, %s163
    %p165 = scmp.eq.s32.totalorder %s34, 0
    %p166 = por %p164, %p165
    %s168 = sadd.s32 %s167, 1
    %p171 = scmp.eq.s32.totalorder %s28, 1
    %p172 = scmp.ne.s32.totalorder %s167, %s169
    %p173 = scmp.eq.s32.totalorder %s28, 0
    %p174 = por %p172, %p173
    %p175 = scmp.ne.s32.totalorder %s167, %s169
    %p176 = scmp.eq.s32.totalorder %s33, 1
    %p177 = por %p175, %p176
    %p178 = scmp.ne.s32.totalorder %s169, %s170
    %p179 = scmp.eq.s32.totalorder %s33, 0
    %p180 = por %p178, %p179
    %p181 = scmp.ne.s32.totalorder %s169, %s170
    %p182 = scmp.eq.s32.totalorder %s34, 1
    %p183 = por %p181, %p182
    %p185 = scmp.ne.s32.totalorder %s170, %s184
    %p186 = scmp.eq.s32.totalorder %s34, 0
    %p187 = por %p185, %p186
    %s189 = sadd.s32 %s188, 1
    %p192 = scmp.eq.s32.totalorder %s28, 1
    %p193 = scmp.ne.s32.totalorder %s188, %s190
    %p194 = scmp.eq.s32.totalorder %s28, 0
    %p195 = por %p193, %p194
    %p196 = scmp.ne.s32.totalorder %s188, %s190
    %p197 = scmp.eq.s32.totalorder %s33, 1
    %p198 = por %p196, %p197
    %p199 = scmp.ne.s32.totalorder %s190, %s191
    %p200 = scmp.eq.s32.totalorder %s33, 0
    %p201 = por %p199, %p200
    %p202 = scmp.ne.s32.totalorder %s190, %s191
    %p203 = scmp.eq.s32.totalorder %s34, 1
    %p204 = por %p202, %p203
    %p206 = scmp.ne.s32.totalorder %s191, %s205
    %p207 = scmp.eq.s32.totalorder %s34, 0
    %p208 = por %p206, %p207
    %s210 = sadd.s32 %s209, 1
    %p213 = scmp.eq.s32.totalorder %s28, 1
    %p214 = scmp.ne.s32.totalorder %s209, %s211
    %p215 = scmp.eq.s32.totalorder %s28, 0
    %p216 = por %p214, %p215
    %p217 = scmp.ne.s32.totalorder %s209, %s211
    %p218 = scmp.eq.s32.totalorder %s33, 1
    %p219 = por %p217, %p218
    %p220 = scmp.ne.s32.totalorder %s211, %s212
    %p221 = scmp.eq.s32.totalorder %s33, 0
    %p222 = por %p220, %p221
    %p223 = scmp.ne.s32.totalorder %s211, %s212
    %p224 = scmp.eq.s32.totalorder %s34, 1
    %p225 = por %p223, %p224
    %p227 = scmp.ne.s32.totalorder %s212, %s226
    %p228 = scmp.eq.s32.totalorder %s34, 0
    %p229 = por %p227, %p228
    %s231 = sadd.s32 %s230, 1
    %p234 = scmp.eq.s32.totalorder %s28, 1
    %p235 = scmp.ne.s32.totalorder %s230, %s232
    %p236 = scmp.eq.s32.totalorder %s28, 0
    %p237 = por %p235, %p236
    %p238 = scmp.ne.s32.totalorder %s230, %s232
    %p239 = scmp.eq.s32.totalorder %s33, 1
    %p240 = por %p238, %p239
    %p241 = scmp.ne.s32.totalorder %s232, %s233
    %p242 = scmp.eq.s32.totalorder %s33, 0
    %p243 = por %p241, %p242
    %p244 = scmp.ne.s32.totalorder %s232, %s233
    %p245 = scmp.eq.s32.totalorder %s34, 1
    %p246 = por %p244, %p245
    %p248 = scmp.ne.s32.totalorder %s233, %s247
    %p249 = scmp.eq.s32.totalorder %s34, 0
    %p250 = por %p248, %p249
    %s252 = sadd.s32 %s251, 1
    %p255 = scmp.eq.s32.totalorder %s28, 1
    %p256 = scmp.ne.s32.totalorder %s251, %s253
    %p257 = scmp.eq.s32.totalorder %s28, 0
    %p258 = por %p256, %p257
    %p259 = scmp.ne.s32.totalorder %s251, %s253
    %p260 = scmp.eq.s32.totalorder %s33, 1
    %p261 = por %p259, %p260
    %p262 = scmp.ne.s32.totalorder %s253, %s254
    %p263 = scmp.eq.s32.totalorder %s33, 0
    %p264 = por %p262, %p263
    %p265 = scmp.ne.s32.totalorder %s253, %s254
    %p266 = scmp.eq.s32.totalorder %s34, 1
    %p267 = por %p265, %p266
    %p269 = scmp.ne.s32.totalorder %s254, %s268
    %p270 = scmp.eq.s32.totalorder %s34, 0
    %p271 = por %p269, %p270
    %s273 = sadd.s32 %s272, 1
    %p276 = scmp.eq.s32.totalorder %s28, 1
    %p277 = scmp.ne.s32.totalorder %s272, %s274
    %p278 = scmp.eq.s32.totalorder %s28, 0
    %p279 = por %p277, %p278
    %p280 = scmp.ne.s32.totalorder %s272, %s274
    %p281 = scmp.eq.s32.totalorder %s33, 1
    %p282 = por %p280, %p281
    %p283 = scmp.ne.s32.totalorder %s274, %s275
    %p284 = scmp.eq.s32.totalorder %s33, 0
    %p285 = por %p283, %p284
    %p286 = scmp.ne.s32.totalorder %s274, %s275
    %p287 = scmp.eq.s32.totalorder %s34, 1
    %p288 = por %p286, %p287
    %p290 = scmp.ne.s32.totalorder %s275, %s289
    %p291 = scmp.eq.s32.totalorder %s34, 0
    %p292 = por %p290, %p291
    %s294 = sadd.s32 %s293, 1
    %p297 = scmp.eq.s32.totalorder %s28, 1
    %p298 = scmp.ne.s32.totalorder %s293, %s295
    %p299 = scmp.eq.s32.totalorder %s28, 0
    %p300 = por %p298, %p299
    %p301 = scmp.ne.s32.totalorder %s293, %s295
    %p302 = scmp.eq.s32.totalorder %s33, 1
    %p303 = por %p301, %p302
    %p304 = scmp.ne.s32.totalorder %s295, %s296
    %p305 = scmp.eq.s32.totalorder %s33, 0
    %p306 = por %p304, %p305
    %p307 = scmp.ne.s32.totalorder %s295, %s296
    %p308 = scmp.eq.s32.totalorder %s34, 1
    %p309 = por %p307, %p308
    %p311 = scmp.ne.s32.totalorder %s296, %s310
    %p312 = scmp.eq.s32.totalorder %s34, 0
    %p313 = por %p311, %p312
    %s315 = sadd.s32 %s314, 1
    %p318 = scmp.eq.s32.totalorder %s28, 1
    %p319 = scmp.ne.s32.totalorder %s314, %s316
    %p320 = scmp.eq.s32.totalorder %s28, 0
    %p321 = por %p319, %p320
    %p322 = scmp.ne.s32.totalorder %s314, %s316
    %p323 = scmp.eq.s32.totalorder %s33, 1
    %p324 = por %p322, %p323
    %p325 = scmp.ne.s32.totalorder %s316, %s317
    %p326 = scmp.eq.s32.totalorder %s33, 0
    %p327 = por %p325, %p326
    %p328 = scmp.ne.s32.totalorder %s316, %s317
    %p329 = scmp.eq.s32.totalorder %s34, 1
    %p330 = por %p328, %p329
    %p332 = scmp.ne.s32.totalorder %s317, %s331
    %p333 = scmp.eq.s32.totalorder %s34, 0
    %p334 = por %p332, %p333
    %s336 = sadd.s32 %s335, 1
    %p339 = scmp.eq.s32.totalorder %s28, 1
    %p340 = scmp.ne.s32.totalorder %s335, %s337
    %p341 = scmp.eq.s32.totalorder %s28, 0
    %p342 = por %p340, %p341
    %p343 = scmp.ne.s32.totalorder %s335, %s337
    %p344 = scmp.eq.s32.totalorder %s33, 1
    %p345 = por %p343, %p344
    %p346 = scmp.ne.s32.totalorder %s337, %s338
    %p347 = scmp.eq.s32.totalorder %s33, 0
    %p348 = por %p346, %p347
    %p349 = scmp.ne.s32.totalorder %s337, %s338
    %p350 = scmp.eq.s32.totalorder %s34, 1
    %p351 = por %p349, %p350
    %p353 = scmp.ne.s32.totalorder %s338, %s352
    %p354 = scmp.eq.s32.totalorder %s34, 0
    %p355 = por %p353, %p354
    %s357 = sadd.s32 %s356, 1
    %p360 = scmp.eq.s32.totalorder %s28, 1
    %p361 = scmp.ne.s32.totalorder %s356, %s358
    %p362 = scmp.eq.s32.totalorder %s28, 0
    %p363 = por %p361, %p362
    %p364 = scmp.ne.s32.totalorder %s356, %s358
    %p365 = scmp.eq.s32.totalorder %s33, 1
    %p366 = por %p364, %p365
    %p367 = scmp.ne.s32.totalorder %s358, %s359
    %p368 = scmp.eq.s32.totalorder %s33, 0
    %p369 = por %p367, %p368
    %p370 = scmp.ne.s32.totalorder %s358, %s359
    %p371 = scmp.eq.s32.totalorder %s34, 1
    %p372 = por %p370, %p371
    %p374 = scmp.ne.s32.totalorder %s359, %s373
    %p375 = scmp.eq.s32.totalorder %s34, 0
    %p376 = por %p374, %p375
    %s378 = sadd.s32 %s377, 1
    %p381 = scmp.eq.s32.totalorder %s28, 1
    %p382 = scmp.ne.s32.totalorder %s377, %s379
    %p383 = scmp.eq.s32.totalorder %s28, 0
    %p384 = por %p382, %p383
    %p385 = scmp.ne.s32.totalorder %s377, %s379
    %p386 = scmp.eq.s32.totalorder %s33, 1
    %p387 = por %p385, %p386
    %p388 = scmp.ne.s32.totalorder %s379, %s380
    %p389 = scmp.eq.s32.totalorder %s33, 0
    %p390 = por %p388, %p389
    %p391 = scmp.ne.s32.totalorder %s379, %s380
    %p392 = scmp.eq.s32.totalorder %s34, 1
    %p393 = por %p391, %p392
    %p395 = scmp.ne.s32.totalorder %s380, %s394
    %p396 = scmp.eq.s32.totalorder %s34, 0
    %p397 = por %p395, %p396
    %s399 = sadd.s32 %s398, 1
    %p402 = scmp.eq.s32.totalorder %s28, 1
    %p403 = scmp.ne.s32.totalorder %s398, %s400
    %p404 = scmp.eq.s32.totalorder %s28, 0
    %p405 = por %p403, %p404
    %p406 = scmp.ne.s32.totalorder %s398, %s400
    %p407 = scmp.eq.s32.totalorder %s33, 1
    %p408 = por %p406, %p407
    %p409 = scmp.ne.s32.totalorder %s400, %s401
    %p410 = scmp.eq.s32.totalorder %s33, 0
    %p411 = por %p409, %p410
    %p412 = scmp.ne.s32.totalorder %s400, %s401
    %p413 = scmp.eq.s32.totalorder %s34, 1
    %p414 = por %p412, %p413
    %p416 = scmp.ne.s32.totalorder %s401, %s415
    %p417 = scmp.eq.s32.totalorder %s34, 0
    %p418 = por %p416, %p417
    %s420 = sadd.s32 %s419, 1
    %p423 = scmp.eq.s32.totalorder %s28, 1
    %p424 = scmp.ne.s32.totalorder %s419, %s421
    %p425 = scmp.eq.s32.totalorder %s28, 0
    %p426 = por %p424, %p425
    %p427 = scmp.ne.s32.totalorder %s419, %s421
    %p428 = scmp.eq.s32.totalorder %s33, 1
    %p429 = por %p427, %p428
    %p430 = scmp.ne.s32.totalorder %s421, %s422
    %p431 = scmp.eq.s32.totalorder %s33, 0
    %p432 = por %p430, %p431
    %p433 = scmp.ne.s32.totalorder %s421, %s422
    %p434 = scmp.eq.s32.totalorder %s34, 1
    %p435 = por %p433, %p434
    %p437 = scmp.ne.s32.totalorder %s422, %s436
    %p438 = scmp.eq.s32.totalorder %s34, 0
    %p439 = por %p437, %p438
    %s441 = sadd.s32 %s440, 1
    %p444 = scmp.eq.s32.totalorder %s28, 1
    %p445 = scmp.ne.s32.totalorder %s440, %s442
    %p446 = scmp.eq.s32.totalorder %s28, 0
    %p447 = por %p445, %p446
    %p448 = scmp.ne.s32.totalorder %s440, %s442
    %p449 = scmp.eq.s32.totalorder %s33, 1
    %p450 = por %p448, %p449
    %p451 = scmp.ne.s32.totalorder %s442, %s443
    %p452 = scmp.eq.s32.totalorder %s33, 0
    %p453 = por %p451, %p452
    %p454 = scmp.ne.s32.totalorder %s442, %s443
    %p455 = scmp.eq.s32.totalorder %s34, 1
    %p456 = por %p454, %p455
    %p458 = scmp.ne.s32.totalorder %s443, %s457
    %p459 = scmp.eq.s32.totalorder %s34, 0
    %p460 = por %p458, %p459
    %s462 = sadd.s32 %s461, 1
    %p465 = scmp.eq.s32.totalorder %s28, 1
    %p466 = scmp.ne.s32.totalorder %s461, %s463
    %p467 = scmp.eq.s32.totalorder %s28, 0
    %p468 = por %p466, %p467
    %p469 = scmp.ne.s32.totalorder %s461, %s463
    %p470 = scmp.eq.s32.totalorder %s33, 1
    %p471 = por %p469, %p470
    %p472 = scmp.ne.s32.totalorder %s463, %s464
    %p473 = scmp.eq.s32.totalorder %s33, 0
    %p474 = por %p472, %p473
    %p475 = scmp.ne.s32.totalorder %s463, %s464
    %p476 = scmp.eq.s32.totalorder %s34, 1
    %p477 = por %p475, %p476
    %p479 = scmp.ne.s32.totalorder %s464, %s478
    %p480 = scmp.eq.s32.totalorder %s34, 0
    %p481 = por %p479, %p480
    %s483 = sadd.s32 %s482, 1
    %p486 = scmp.eq.s32.totalorder %s28, 1
    %p487 = scmp.ne.s32.totalorder %s482, %s484
    %p488 = scmp.eq.s32.totalorder %s28, 0
    %p489 = por %p487, %p488
    %p490 = scmp.ne.s32.totalorder %s482, %s484
    %p491 = scmp.eq.s32.totalorder %s33, 1
    %p492 = por %p490, %p491
    %p493 = scmp.ne.s32.totalorder %s484, %s485
    %p494 = scmp.eq.s32.totalorder %s33, 0
    %p495 = por %p493, %p494
    %p496 = scmp.ne.s32.totalorder %s484, %s485
    %p497 = scmp.eq.s32.totalorder %s34, 1
    %p498 = por %p496, %p497
    %p500 = scmp.ne.s32.totalorder %s485, %s499
    %p501 = scmp.eq.s32.totalorder %s34, 0
    %p502 = por %p500, %p501
    %s503 = ssub.s32 %s28, %s35
    %p504 = scmp.eq.s32.totalorder %s503, 0
    %s506 = sadd.s32 %s505, 1
    %s507 = scalar_select %p504, %s505, %s506
    %p510 = pneg %p504
    %p511 = scmp.eq.s32.totalorder %s28, 1
    %p512 = por %p510, %p511
    %p513 = scmp.ne.s32.totalorder %s505, %s508
    %p514 = scmp.eq.s32.totalorder %s28, 0
    %p515 = por %p513, %p514
    %p516 = scmp.ne.s32.totalorder %s505, %s508
    %p517 = scmp.eq.s32.totalorder %s33, 1
    %p518 = por %p516, %p517
    %p519 = scmp.ne.s32.totalorder %s508, %s509
    %p520 = scmp.eq.s32.totalorder %s33, 0
    %p521 = por %p519, %p520
    %p522 = scmp.ne.s32.totalorder %s508, %s509
    %p523 = scmp.eq.s32.totalorder %s34, 1
    %p524 = por %p522, %p523
    %p526 = scmp.ne.s32.totalorder %s509, %s525
    %p527 = scmp.eq.s32.totalorder %s34, 0
    %p528 = por %p526, %p527
    %p529 = scmp.le.s32.totalorder 1, %s28
    %p530 = scmp.lt.s32.totalorder %s28, 3
    %p531 = pnand %p529, %p530
    %p532 = pneg %p531
    // Predicated region
    $region9: #{forward.1} parent=5 // pred_check
      _
    $region10: #{forward.1} parent=5 // pred_check_branch
      %534 = sbr.rel (%p531) target = $region12
    $region11: #{forward.1} parent=5 // pred_region
      %s535 = ssub.s32 %s28, 1
      // Predicated region
      $region13: #{forward.1} parent=11 // pred_check
        %p536 = pneg %p75
      $region14: #{forward.1} parent=11 // pred_check_branch
        %538 = sbr.rel (%p536) target = $region16
      $region15: #{forward.1} parent=11 // pred_region
        _
      $region16: #{forward.1} parent=11 // pred_fallthru
        _
      // Predicated region
      $region17: #{forward.1} parent=11 // pred_check
        %p539 = pneg %p96
      $region18: #{forward.1} parent=11 // pred_check_branch
        %541 = sbr.rel (%p539) target = $region20
      $region19: #{forward.1} parent=11 // pred_region
        _
      $region20: #{forward.1} parent=11 // pred_fallthru
        _
      // Predicated region
      $region21: #{forward.1} parent=11 // pred_check
        %p542 = pneg %p117
      $region22: #{forward.1} parent=11 // pred_check_branch
        %544 = sbr.rel (%p542) target = $region24
      $region23: #{forward.1} parent=11 // pred_region
        _
      $region24: #{forward.1} parent=11 // pred_fallthru
        _
      // Predicated region
      $region25: #{forward.1} parent=11 // pred_check
        %p545 = pneg %p138
      $region26: #{forward.1} parent=11 // pred_check_branch
        %547 = sbr.rel (%p545) target = $region28
      $region27: #{forward.1} parent=11 // pred_region
        _
      $region28: #{forward.1} parent=11 // pred_fallthru
        _
      // Predicated region
      $region29: #{forward.1} parent=11 // pred_check
        %p548 = pneg %p159
      $region30: #{forward.1} parent=11 // pred_check_branch
        %550 = sbr.rel (%p548) target = $region32
      $region31: #{forward.1} parent=11 // pred_region
        _
      $region32: #{forward.1} parent=11 // pred_fallthru
        _
      // Predicated region
      $region33: #{forward.1} parent=11 // pred_check
        %p551 = pneg %p180
      $region34: #{forward.1} parent=11 // pred_check_branch
        %553 = sbr.rel (%p551) target = $region36
      $region35: #{forward.1} parent=11 // pred_region
        _
      $region36: #{forward.1} parent=11 // pred_fallthru
        _
      // Predicated region
      $region37: #{forward.1} parent=11 // pred_check
        %p554 = pneg %p201
      $region38: #{forward.1} parent=11 // pred_check_branch
        %556 = sbr.rel (%p554) target = $region40
      $region39: #{forward.1} parent=11 // pred_region
        _
      $region40: #{forward.1} parent=11 // pred_fallthru
        _
      // Predicated region
      $region41: #{forward.1} parent=11 // pred_check
        %p557 = pneg %p222
      $region42: #{forward.1} parent=11 // pred_check_branch
        %559 = sbr.rel (%p557) target = $region44
      $region43: #{forward.1} parent=11 // pred_region
        _
      $region44: #{forward.1} parent=11 // pred_fallthru
        _
      // Predicated region
      $region45: #{forward.1} parent=11 // pred_check
        %p560 = pneg %p243
      $region46: #{forward.1} parent=11 // pred_check_branch
        %562 = sbr.rel (%p560) target = $region48
      $region47: #{forward.1} parent=11 // pred_region
        _
      $region48: #{forward.1} parent=11 // pred_fallthru
        _
      // Predicated region
      $region49: #{forward.1} parent=11 // pred_check
        %p563 = pneg %p264
      $region50: #{forward.1} parent=11 // pred_check_branch
        %565 = sbr.rel (%p563) target = $region52
      $region51: #{forward.1} parent=11 // pred_region
        _
      $region52: #{forward.1} parent=11 // pred_fallthru
        _
      // Predicated region
      $region53: #{forward.1} parent=11 // pred_check
        %p566 = pneg %p285
      $region54: #{forward.1} parent=11 // pred_check_branch
        %568 = sbr.rel (%p566) target = $region56
      $region55: #{forward.1} parent=11 // pred_region
        _
      $region56: #{forward.1} parent=11 // pred_fallthru
        _
      // Predicated region
      $region57: #{forward.1} parent=11 // pred_check
        %p569 = pneg %p306
      $region58: #{forward.1} parent=11 // pred_check_branch
        %571 = sbr.rel (%p569) target = $region60
      $region59: #{forward.1} parent=11 // pred_region
        _
      $region60: #{forward.1} parent=11 // pred_fallthru
        _
      // Predicated region
      $region61: #{forward.1} parent=11 // pred_check
        %p572 = pneg %p327
      $region62: #{forward.1} parent=11 // pred_check_branch
        %574 = sbr.rel (%p572) target = $region64
      $region63: #{forward.1} parent=11 // pred_region
        _
      $region64: #{forward.1} parent=11 // pred_fallthru
        _
      // Predicated region
      $region65: #{forward.1} parent=11 // pred_check
        %p575 = pneg %p348
      $region66: #{forward.1} parent=11 // pred_check_branch
        %577 = sbr.rel (%p575) target = $region68
      $region67: #{forward.1} parent=11 // pred_region
        _
      $region68: #{forward.1} parent=11 // pred_fallthru
        _
      // Predicated region
      $region69: #{forward.1} parent=11 // pred_check
        %p578 = pneg %p369
      $region70: #{forward.1} parent=11 // pred_check_branch
        %580 = sbr.rel (%p578) target = $region72
      $region71: #{forward.1} parent=11 // pred_region
        _
      $region72: #{forward.1} parent=11 // pred_fallthru
        _
      // Predicated region
      $region73: #{forward.1} parent=11 // pred_check
        %p581 = pneg %p390
      $region74: #{forward.1} parent=11 // pred_check_branch
        %583 = sbr.rel (%p581) target = $region76
      $region75: #{forward.1} parent=11 // pred_region
        _
      $region76: #{forward.1} parent=11 // pred_fallthru
        _
      // Predicated region
      $region77: #{forward.1} parent=11 // pred_check
        %p584 = pneg %p411
      $region78: #{forward.1} parent=11 // pred_check_branch
        %586 = sbr.rel (%p584) target = $region80
      $region79: #{forward.1} parent=11 // pred_region
        _
      $region80: #{forward.1} parent=11 // pred_fallthru
        _
      // Predicated region
      $region81: #{forward.1} parent=11 // pred_check
        %p587 = pneg %p432
      $region82: #{forward.1} parent=11 // pred_check_branch
        %589 = sbr.rel (%p587) target = $region84
      $region83: #{forward.1} parent=11 // pred_region
        _
      $region84: #{forward.1} parent=11 // pred_fallthru
        _
      // Predicated region
      $region85: #{forward.1} parent=11 // pred_check
        %p590 = pneg %p453
      $region86: #{forward.1} parent=11 // pred_check_branch
        %592 = sbr.rel (%p590) target = $region88
      $region87: #{forward.1} parent=11 // pred_region
        _
      $region88: #{forward.1} parent=11 // pred_fallthru
        _
      // Predicated region
      $region89: #{forward.1} parent=11 // pred_check
        %p593 = pneg %p474
      $region90: #{forward.1} parent=11 // pred_check_branch
        %595 = sbr.rel (%p593) target = $region92
      $region91: #{forward.1} parent=11 // pred_region
        _
      $region92: #{forward.1} parent=11 // pred_fallthru
        _
      // Predicated region
      $region93: #{forward.1} parent=11 // pred_check
        %p596 = pneg %p495
      $region94: #{forward.1} parent=11 // pred_check_branch
        %598 = sbr.rel (%p596) target = $region96
      $region95: #{forward.1} parent=11 // pred_region
        _
      $region96: #{forward.1} parent=11 // pred_fallthru
        _
    $region12: #{forward.1} parent=5 // pred_fallthru
      _
    %p599 = scmp.lt.s32.totalorder %s28, 2
    // Predicated region
    $region97: #{forward.1} parent=5 // pred_check
      %p600 = pneg %p599
    $region98: #{forward.1} parent=5 // pred_check_branch
      %602 = sbr.rel (%p600) target = $region100
    $region99: #{forward.1} parent=5 // pred_region
      // Predicated region
      $region101: #{forward.1} parent=99 // pred_check
        %p603 = pneg %p48
      $region102: #{forward.1} parent=99 // pred_check_branch
        %605 = sbr.rel (%p603) target = $region104
      $region103: #{forward.1} parent=99 // pred_region
        %p606 = scmp.lt.s32.totalorder %s28, 1
        %s607 = scalar_select %p606, %s28, 1
        %s608 = smul.addr %s607, 8
        %s609 = scalar_lea.vmem %s0, %s608
      $region104: #{forward.1} parent=99 // pred_fallthru
        _
    $region100: #{forward.1} parent=5 // pred_fallthru
      _
    %p610 = scmp.le.s32.totalorder 1, %s28
    %p611 = scmp.lt.s32.totalorder %s28, 3
    %p612 = pnand %p610, %p611
    %p613 = pneg %p612
    // Predicated region
    $region105: #{forward.1} parent=5 // pred_check
      _
    $region106: #{forward.1} parent=5 // pred_check_branch
      %615 = sbr.rel (%p612) target = $region108
    $region107: #{forward.1} parent=5 // pred_region
      %s616 = ssub.s32 %s28, 1
      %p617 = scmp.lt.s32.totalorder %s33, 1
      %s618 = scalar_select %p617, %s33, 1
      %s619 = smul.addr %s618, 8
      %s620 = scalar_lea.vmem %s0, %s619
      %p621 = pneg %p54
      %p622 = pneg %p51
      %p623 = pneg %p75
      %p624 = pneg %p72
      %p625 = pneg %p96
      %p626 = pneg %p93
      %p627 = pneg %p117
      %p628 = pneg %p114
      %p629 = pneg %p138
      %p630 = pneg %p135
      %p631 = pneg %p159
      %p632 = pneg %p156
      %p633 = pneg %p180
      %p634 = pneg %p177
      %p635 = pneg %p201
      %p636 = pneg %p198
      %p637 = pneg %p222
      %p638 = pneg %p219
      %p639 = pneg %p243
      %p640 = pneg %p240
      %p641 = pneg %p264
      %p642 = pneg %p261
      %p643 = pneg %p285
      %p644 = pneg %p282
      %p645 = pneg %p306
      %p646 = pneg %p303
      %p647 = pneg %p327
      %p648 = pneg %p324
      %p649 = pneg %p348
      %p650 = pneg %p345
      %p651 = pneg %p369
      %p652 = pneg %p366
      %p653 = pneg %p390
      %p654 = pneg %p387
      %p655 = pneg %p411
      %p656 = pneg %p408
      %p657 = pneg %p432
      %p658 = pneg %p429
      %p659 = pneg %p453
      %p660 = pneg %p450
      %p661 = pneg %p474
      %p662 = pneg %p471
      %p663 = pneg %p495
      %p664 = pneg %p492
      %p665 = pneg %p521
      %p666 = pneg %p518
      %p667 = scmp.lt.s32.totalorder %s33, 1
      %s668 = scalar_select %p667, %s33, 1
      %s669 = smul.addr %s668, 8
      %s670 = scalar_lea.vmem %s22, %s669
      %p671 = scmp.lt.s32.totalorder %s33, 1
      %s672 = scalar_select %p671, %s33, 1
      %s673 = smul.addr %s672, 8
      %s674 = scalar_lea.vmem %s0, %s673
      %p675 = scmp.lt.s32.totalorder %s33, 1
      %s676 = scalar_select %p675, %s33, 1
      %s677 = smul.addr %s676, 8
      %s678 = scalar_lea.vmem %s22, %s677
      %v680 = vlaneseq
      %v681 = vand.u32 %v680, 127
      %vm682 = vcmp.ge.s32.totalorder %v681, 0
      %vm683 = vcmp.lt.s32.totalorder %v681, 8
      %vm684 = vmand %vm682, %vm683
      %vm685 = vcmp.ge.s32.totalorder %v681, 8
      %vm686 = vcmp.lt.s32.totalorder %v681, 16
      %vm687 = vmand %vm685, %vm686
      %vm688 = vcmp.ge.s32.totalorder %v681, 16
      %vm689 = vcmp.lt.s32.totalorder %v681, 24
      %vm690 = vmand %vm688, %vm689
      %vm691 = vcmp.ge.s32.totalorder %v681, 24
      %vm692 = vcmp.lt.s32.totalorder %v681, 32
      %vm693 = vmand %vm691, %vm692
      %v694 = vld [vmem:[%s674] sm:$0xff]
      %v695 = vld [vmem:[%s2] sm:$0xf]
      %v696 = vld [vmem:[%s2 + $0x4] sm:$0xf]
      %v697 = vpack.c.bf16 %v694, %v694
      %v698 = vld [vmem:[%s3] sm:$0x1]
      %v700 = vlaneseq
      %v701 = vshrl.u32 %v700, 7
      %v702 = vsub.s32 0, %v701
      %v703 = vrot.slane %v698, %v702
      %v707 = vunpack.c.l.b16 %v695
      %v708 = vunpack.c.l.b16 %v696
      %v709 = vpack.c.b16 %v708, %v707
      %vm711 = vcmask 130048
      %v713 = vsel %vm711, %v697, 0
      %715 = vmatprep.subr.bf16.mxu0 0
      %716 = vmatpush1.bf16.msra.mxu0 0
      %717 = vmatprep.subr.bf16.mxu0 0
      %718 = vmatpush1.bf16.msra.mxu0 0
      %719 = vmatprep.subr.bf16.mxu0 0
      %720 = vmatpush1.bf16.msra.mxu0 0
      %721 = vmatprep.subr.bf16.mxu0 0
      %722 = vmatpush1.bf16.msra.mxu0 0
      %723 = vmatprep.subr.bf16.mxu0 0
      %724 = vmatpush1.bf16.msra.mxu0 0
      %725 = vmatprep.subr.bf16.mxu0 0
      %726 = vmatpush1.bf16.msra.mxu0 0
      %727 = vmatprep.subr.bf16.mxu0 0
      %728 = vmatpush1.bf16.msra.mxu0 0
      %729 = vmatprep.subr.bf16.mxu0 0
      %730 = vmatpush1.bf16.msra.mxu0 %v709
      %731 = vmatprep.subr.bf16.mxu0 0
      %732 = vmatpush2.bf16.msra.mxu0 0
      %733 = vmatprep.subr.bf16.mxu0 0
      %734 = vmatpush2.bf16.msra.mxu0 0
      %735 = vmatprep.subr.bf16.mxu0 0
      %736 = vmatpush2.bf16.msra.mxu0 0
      %737 = vmatprep.subr.bf16.mxu0 0
      %738 = vmatpush2.bf16.msra.mxu0 0
      %739 = vmatprep.subr.bf16.mxu0 0
      %740 = vmatpush2.bf16.msra.mxu0 0
      %741 = vmatprep.subr.bf16.mxu0 0
      %742 = vmatpush2.bf16.msra.mxu0 0
      %743 = vmatprep.subr.bf16.mxu0 0
      %744 = vmatpush2.bf16.msra.mxu0 0
      %745 = vmatprep.subr.bf16.mxu0 0
      %746 = vmatpush2.bf16.msra.mxu0 0
      %747 = vmatprep.mubr.bf16.mxu0 0
      %748 = vmatmul.mubr.bf16.gmra.mxu0 %v713
      %v749 = vpop.f32.mrf.mxu0
      %v750 = vadd.f32 %v703, %v749
      %v751 = vpop.f32.mrf.mxu0
      %v752 = vpop.f32.mrf.mxu0
      %v753 = vpop.f32.mrf.mxu0
      %754 = vdwg.mxu0
      %v755 = vld [vmem:[%s1] sm:$0xff]
      %v756 = vadd.f32 %v750, %v755
      %v757 = vld [vmem:[%s4] sm:$0xf]
      %v758 = vld [vmem:[%s4 + $0x4] sm:$0xf]
      %v759 = vld [vmem:[%s4 + $0x8] sm:$0xf]
      %v760 = vld [vmem:[%s4 + $0xc] sm:$0xf]
      %v761 = vpack.c.bf16 %v756, %v756
      %v762 = vld [vmem:[%s5] sm:$0x1]
      %v764 = vlaneseq
      %v765 = vshrl.u32 %v764, 7
      %v766 = vsub.s32 0, %v765
      %v767 = vrot.slane %v762, %v766
      %v773 = vunpack.c.l.b16 %v757
      %v774 = vunpack.c.l.b16 %v758
      %v775 = vunpack.c.l.b16 %v759
      %v776 = vunpack.c.l.b16 %v760
      %v777 = vpack.c.b16 %v774, %v773
      %v778 = vpack.c.b16 %v776, %v775
      %vm781 = vcmask 261120
      %v783 = vsel %vm781, %v761, 0
      %785 = vmatprep.subr.bf16.mxu0 0
      %786 = vmatpush1.bf16.msra.mxu0 0
      %787 = vmatprep.subr.bf16.mxu0 0
      %788 = vmatpush1.bf16.msra.mxu0 0
      %789 = vmatprep.subr.bf16.mxu0 0
      %790 = vmatpush1.bf16.msra.mxu0 0
      %791 = vmatprep.subr.bf16.mxu0 0
      %792 = vmatpush1.bf16.msra.mxu0 0
      %793 = vmatprep.subr.bf16.mxu0 0
      %794 = vmatpush1.bf16.msra.mxu0 0
      %795 = vmatprep.subr.bf16.mxu0 0
      %796 = vmatpush1.bf16.msra.mxu0 0
      %797 = vmatprep.subr.bf16.mxu0 0
      %798 = vmatpush1.bf16.msra.mxu0 %v778
      %799 = vmatprep.subr.bf16.mxu0 0
      %800 = vmatpush1.bf16.msra.mxu0 %v777
      %801 = vmatprep.subr.bf16.mxu0 0
      %802 = vmatpush2.bf16.msra.mxu0 0
      %803 = vmatprep.subr.bf16.mxu0 0
      %804 = vmatpush2.bf16.msra.mxu0 0
      %805 = vmatprep.subr.bf16.mxu0 0
      %806 = vmatpush2.bf16.msra.mxu0 0
      %807 = vmatprep.subr.bf16.mxu0 0
      %808 = vmatpush2.bf16.msra.mxu0 0
      %809 = vmatprep.subr.bf16.mxu0 0
      %810 = vmatpush2.bf16.msra.mxu0 0
      %811 = vmatprep.subr.bf16.mxu0 0
      %812 = vmatpush2.bf16.msra.mxu0 0
      %813 = vmatprep.subr.bf16.mxu0 0
      %814 = vmatpush2.bf16.msra.mxu0 0
      %815 = vmatprep.subr.bf16.mxu0 0
      %816 = vmatpush2.bf16.msra.mxu0 0
      %817 = vmatprep.mubr.bf16.mxu0 0
      %818 = vmatmul.mubr.bf16.gmra.mxu0 %v783
      %v819 = vpop.f32.mrf.mxu0
      %v820 = vadd.f32 %v767, %v819
      %v821 = vpop.f32.mrf.mxu0
      %v822 = vpop.f32.mrf.mxu0
      %v823 = vpop.f32.mrf.mxu0
      %824 = vdwg.mxu0
      %v825 = vld [vmem:[%s6] sm:$0xf]
      %v826 = vld [vmem:[%s6 + $0x4] sm:$0xf]
      %v827 = vld [vmem:[%s6 + $0x8] sm:$0xf]
      %v828 = vld [vmem:[%s6 + $0xc] sm:$0xf]
      %v829 = vld [vmem:[%s7] sm:$0x1]
      %v831 = vlaneseq
      %v832 = vshrl.u32 %v831, 7
      %v833 = vsub.s32 0, %v832
      %v834 = vrot.slane %v829, %v833
      %v840 = vunpack.c.l.b16 %v825
      %v841 = vunpack.c.l.b16 %v826
      %v842 = vunpack.c.l.b16 %v827
      %v843 = vunpack.c.l.b16 %v828
      %v844 = vpack.c.b16 %v841, %v840
      %v845 = vpack.c.b16 %v843, %v842
      %848 = vmatprep.subr.bf16.mxu0 0
      %849 = vmatpush1.bf16.msra.mxu0 0
      %850 = vmatprep.subr.bf16.mxu0 0
      %851 = vmatpush1.bf16.msra.mxu0 0
      %852 = vmatprep.subr.bf16.mxu0 0
      %853 = vmatpush1.bf16.msra.mxu0 0
      %854 = vmatprep.subr.bf16.mxu0 0
      %855 = vmatpush1.bf16.msra.mxu0 0
      %856 = vmatprep.subr.bf16.mxu0 0
      %857 = vmatpush1.bf16.msra.mxu0 0
      %858 = vmatprep.subr.bf16.mxu0 0
      %859 = vmatpush1.bf16.msra.mxu0 0
      %860 = vmatprep.subr.bf16.mxu0 0
      %861 = vmatpush1.bf16.msra.mxu0 %v845
      %862 = vmatprep.subr.bf16.mxu0 0
      %863 = vmatpush1.bf16.msra.mxu0 %v844
      %864 = vmatprep.subr.bf16.mxu0 0
      %865 = vmatpush2.bf16.msra.mxu0 0
      %866 = vmatprep.subr.bf16.mxu0 0
      %867 = vmatpush2.bf16.msra.mxu0 0
      %868 = vmatprep.subr.bf16.mxu0 0
      %869 = vmatpush2.bf16.msra.mxu0 0
      %870 = vmatprep.subr.bf16.mxu0 0
      %871 = vmatpush2.bf16.msra.mxu0 0
      %872 = vmatprep.subr.bf16.mxu0 0
      %873 = vmatpush2.bf16.msra.mxu0 0
      %874 = vmatprep.subr.bf16.mxu0 0
      %875 = vmatpush2.bf16.msra.mxu0 0
      %876 = vmatprep.subr.bf16.mxu0 0
      %877 = vmatpush2.bf16.msra.mxu0 0
      %878 = vmatprep.subr.bf16.mxu0 0
      %879 = vmatpush2.bf16.msra.mxu0 0
      %880 = vmatprep.mubr.bf16.mxu0 0
      %881 = vmatmul.mubr.bf16.gmra.mxu0 %v783
      %v882 = vpop.f32.mrf.mxu0
      %v883 = vadd.f32 %v834, %v882
      %v884 = vpop.f32.mrf.mxu0
      %v885 = vpop.f32.mrf.mxu0
      %v886 = vpop.f32.mrf.mxu0
      %887 = vdwg.mxu0
      %v888 = vld [vmem:[%s8] sm:$0xf]
      %v889 = vld [vmem:[%s8 + $0x4] sm:$0xf]
      %v890 = vld [vmem:[%s8 + $0x8] sm:$0xf]
      %v891 = vld [vmem:[%s8 + $0xc] sm:$0xf]
      %v892 = vld [vmem:[%s9] sm:$0x1]
      %v894 = vlaneseq
      %v895 = vshrl.u32 %v894, 7
      %v896 = vsub.s32 0, %v895
      %v897 = vrot.slane %v892, %v896
      %v903 = vunpack.c.l.b16 %v888
      %v904 = vunpack.c.l.b16 %v889
      %v905 = vunpack.c.l.b16 %v890
      %v906 = vunpack.c.l.b16 %v891
      %v907 = vpack.c.b16 %v904, %v903
      %v908 = vpack.c.b16 %v906, %v905
      %911 = vmatprep.subr.bf16.mxu0 0
      %912 = vmatpush1.bf16.msra.mxu0 0
      %913 = vmatprep.subr.bf16.mxu0 0
      %914 = vmatpush1.bf16.msra.mxu0 0
      %915 = vmatprep.subr.bf16.mxu0 0
      %916 = vmatpush1.bf16.msra.mxu0 0
      %917 = vmatprep.subr.bf16.mxu0 0
      %918 = vmatpush1.bf16.msra.mxu0 0
      %919 = vmatprep.subr.bf16.mxu0 0
      %920 = vmatpush1.bf16.msra.mxu0 0
      %921 = vmatprep.subr.bf16.mxu0 0
      %922 = vmatpush1.bf16.msra.mxu0 0
      %923 = vmatprep.subr.bf16.mxu0 0
      %924 = vmatpush1.bf16.msra.mxu0 %v908
      %925 = vmatprep.subr.bf16.mxu0 0
      %926 = vmatpush1.bf16.msra.mxu0 %v907
      %927 = vmatprep.subr.bf16.mxu0 0
      %928 = vmatpush2.bf16.msra.mxu0 0
      %929 = vmatprep.subr.bf16.mxu0 0
      %930 = vmatpush2.bf16.msra.mxu0 0
      %931 = vmatprep.subr.bf16.mxu0 0
      %932 = vmatpush2.bf16.msra.mxu0 0
      %933 = vmatprep.subr.bf16.mxu0 0
      %934 = vmatpush2.bf16.msra.mxu0 0
      %935 = vmatprep.subr.bf16.mxu0 0
      %936 = vmatpush2.bf16.msra.mxu0 0
      %937 = vmatprep.subr.bf16.mxu0 0
      %938 = vmatpush2.bf16.msra.mxu0 0
      %939 = vmatprep.subr.bf16.mxu0 0
      %940 = vmatpush2.bf16.msra.mxu0 0
      %941 = vmatprep.subr.bf16.mxu0 0
      %942 = vmatpush2.bf16.msra.mxu0 0
      %943 = vmatprep.mubr.bf16.mxu0 0
      %944 = vmatmul.mubr.bf16.gmra.mxu0 %v783
      %v945 = vpop.f32.mrf.mxu0
      %v946 = vadd.f32 %v897, %v945
      %v947 = vpop.f32.mrf.mxu0
      %v948 = vpop.f32.mrf.mxu0
      %v949 = vpop.f32.mrf.mxu0
      %950 = vdwg.mxu0
      %v951 = vpack.c.bf16 %v883, %v883
      %v952 = vsel %vm684, %v820, 0.0
      %v953 = vpack.c.bf16 %v952, %v952
      %v955 = vsel %vm781, %v953, 0
      %v958 = vsel %vm781, %v951, 0
      %960 = vmatprep.subr.bf16.mxu0 0
      %961 = vmatpush1.bf16.xpose.msra.mxu0 0
      %962 = vmatprep.subr.bf16.mxu0 0
      %963 = vmatpush1.bf16.xpose.msra.mxu0 0
      %964 = vmatprep.subr.bf16.mxu0 0
      %965 = vmatpush1.bf16.xpose.msra.mxu0 0
      %966 = vmatprep.subr.bf16.mxu0 0
      %967 = vmatpush1.bf16.xpose.msra.mxu0 0
      %968 = vmatprep.subr.bf16.mxu0 0
      %969 = vmatpush1.bf16.xpose.msra.mxu0 0
      %970 = vmatprep.subr.bf16.mxu0 0
      %971 = vmatpush1.bf16.xpose.msra.mxu0 0
      %972 = vmatprep.subr.bf16.mxu0 0
      %973 = vmatpush1.bf16.xpose.msra.mxu0 0
      %974 = vmatprep.subr.bf16.mxu0 0
      %975 = vmatpush1.bf16.xpose.msra.mxu0 %v958
      %976 = vmatprep.subr.bf16.mxu0 0
      %977 = vmatpush2.bf16.xpose.msra.mxu0 0
      %978 = vmatprep.subr.bf16.mxu0 0
      %979 = vmatpush2.bf16.xpose.msra.mxu0 0
      %980 = vmatprep.subr.bf16.mxu0 0
      %981 = vmatpush2.bf16.xpose.msra.mxu0 0
      %982 = vmatprep.subr.bf16.mxu0 0
      %983 = vmatpush2.bf16.xpose.msra.mxu0 0
      %984 = vmatprep.subr.bf16.mxu0 0
      %985 = vmatpush2.bf16.xpose.msra.mxu0 0
      %986 = vmatprep.subr.bf16.mxu0 0
      %987 = vmatpush2.bf16.xpose.msra.mxu0 0
      %988 = vmatprep.subr.bf16.mxu0 0
      %989 = vmatpush2.bf16.xpose.msra.mxu0 0
      %990 = vmatprep.subr.bf16.mxu0 0
      %991 = vmatpush2.bf16.xpose.msra.mxu0 0
      %992 = vmatprep.mubr.bf16.mxu0 0
      %993 = vmatmul.mubr.bf16.gmra.mxu0 %v955
      %v994 = vpop.f32.mrf.mxu0
      %v995 = vadd.f32 0.0, %v994
      %v996 = vpop.f32.mrf.mxu0
      %v997 = vpop.f32.mrf.mxu0
      %v998 = vpop.f32.mrf.mxu0
      %999 = vdwg.mxu0
      %v1000 = vmul.f32 %v995, 0.35355338
      %vm1001 = vcmask 64512
      %v1002 = vsel %vm1001, %v1000, -inf
      %1003 = vmax.xlane.f32.xlu0 %v1002
      %v1004 = vpop.xlane.xlu0 %1003
      %v1005 = vsub.f32 %v1000, %v1004
      %v1006 = vmul.f32 %v1005, 1.442695
      %v1007 = vpow.pop %v1006
      %v1008 = vsel %vm1001, %v1007, 0.0
      %1009 = vadd.xlane.f32.xlu0 %v1008
      %v1010 = vpop.xlane.xlu0 %1009
      %v1011 = vrcp.pop %v1010
      %v1012 = vmul.f32 %v1007, %v1011
      %v1013 = vsel %vm684, %v946, 0.0
      %v1014 = vpack.c.bf16 %v1013, %v1013
      %v1015 = vpack.c.bf16 %v1012, %v1012
      %v1016 = vsel %vm687, %v820, 0.0
      %v1017 = vpack.c.bf16 %v1016, %v1016
      %v1019 = vsel %vm781, %v1017, 0
      %1021 = vmatprep.subr.bf16.mxu0 0
      %1022 = vmatpush1.bf16.xpose.msra.mxu0 0
      %1023 = vmatprep.subr.bf16.mxu0 0
      %1024 = vmatpush1.bf16.xpose.msra.mxu0 0
      %1025 = vmatprep.subr.bf16.mxu0 0
      %1026 = vmatpush1.bf16.xpose.msra.mxu0 0
      %1027 = vmatprep.subr.bf16.mxu0 0
      %1028 = vmatpush1.bf16.xpose.msra.mxu0 0
      %1029 = vmatprep.subr.bf16.mxu0 0
      %1030 = vmatpush1.bf16.xpose.msra.mxu0 0
      %1031 = vmatprep.subr.bf16.mxu0 0
      %1032 = vmatpush1.bf16.xpose.msra.mxu0 0
      %1033 = vmatprep.subr.bf16.mxu0 0
      %1034 = vmatpush1.bf16.xpose.msra.mxu0 0
      %1035 = vmatprep.subr.bf16.mxu0 0
      %1036 = vmatpush1.bf16.xpose.msra.mxu0 %v958
      %1037 = vmatprep.subr.bf16.mxu0 0
      %1038 = vmatpush2.bf16.xpose.msra.mxu0 0
      %1039 = vmatprep.subr.bf16.mxu0 0
      %1040 = vmatpush2.bf16.xpose.msra.mxu0 0
      %1041 = vmatprep.subr.bf16.mxu0 0
      %1042 = vmatpush2.bf16.xpose.msra.mxu0 0
      %1043 = vmatprep.subr.bf16.mxu0 0
      %1044 = vmatpush2.bf16.xpose.msra.mxu0 0
      %1045 = vmatprep.subr.bf16.mxu0 0
      %1046 = vmatpush2.bf16.xpose.msra.mxu0 0
      %1047 = vmatprep.subr.bf16.mxu0 0
      %1048 = vmatpush2.bf16.xpose.msra.mxu0 0
      %1049 = vmatprep.subr.bf16.mxu0 0
      %1050 = vmatpush2.bf16.xpose.msra.mxu0 0
      %1051 = vmatprep.subr.bf16.mxu0 0
      %1052 = vmatpush2.bf16.xpose.msra.mxu0 0
      %1053 = vmatprep.mubr.bf16.mxu0 0
      %1054 = vmatmul.mubr.bf16.gmra.mxu0 %v1019
      %v1055 = vpop.f32.mrf.mxu0
      %v1056 = vadd.f32 0.0, %v1055
      %v1057 = vpop.f32.mrf.mxu0
      %v1058 = vpop.f32.mrf.mxu0
      %v1059 = vpop.f32.mrf.mxu0
      %1060 = vdwg.mxu0
      %v1061 = vmul.f32 %v1056, 0.35355338
      %v1062 = vsel %vm1001, %v1061, -inf
      %1063 = vmax.xlane.f32.xlu0 %v1062
      %v1064 = vpop.xlane.xlu0 %1063
      %v1065 = vsub.f32 %v1061, %v1064
      %v1066 = vmul.f32 %v1065, 1.442695
      %v1067 = vpow.pop %v1066
      %v1068 = vsel %vm1001, %v1067, 0.0
      %1069 = vadd.xlane.f32.xlu0 %v1068
      %v1070 = vpop.xlane.xlu0 %1069
      %v1071 = vrcp.pop %v1070
      %v1072 = vmul.f32 %v1067, %v1071
      %v1073 = vsel %vm687, %v946, 0.0
      %v1074 = vpack.c.bf16 %v1073, %v1073
      %v1075 = vpack.c.bf16 %v1072, %v1072
      %v1077 = vsel %vm1001, %v1075, 0
      %vm1079 = vcmask 1043456
      %v1081 = vsel %vm1079, %v1074, 0
      %1083 = vmatprep.subr.bf16.mxu0 0
      %1084 = vmatpush1.bf16.msra.mxu0 0
      %1085 = vmatprep.subr.bf16.mxu0 0
      %1086 = vmatpush1.bf16.msra.mxu0 0
      %1087 = vmatprep.subr.bf16.mxu0 0
      %1088 = vmatpush1.bf16.msra.mxu0 0
      %1089 = vmatprep.subr.bf16.mxu0 0
      %1090 = vmatpush1.bf16.msra.mxu0 0
      %1091 = vmatprep.subr.bf16.mxu0 0
      %1092 = vmatpush1.bf16.msra.mxu0 0
      %1093 = vmatprep.subr.bf16.mxu0 0
      %1094 = vmatpush1.bf16.msra.mxu0 0
      %1095 = vmatprep.subr.bf16.mxu0 0
      %1096 = vmatpush1.bf16.msra.mxu0 0
      %1097 = vmatprep.subr.bf16.mxu0 0
      %1098 = vmatpush1.bf16.msra.mxu0 %v1081
      %1099 = vmatprep.subr.bf16.mxu0 0
      %1100 = vmatpush2.bf16.msra.mxu0 0
      %1101 = vmatprep.subr.bf16.mxu0 0
      %1102 = vmatpush2.bf16.msra.mxu0 0
      %1103 = vmatprep.subr.bf16.mxu0 0
      %1104 = vmatpush2.bf16.msra.mxu0 0
      %1105 = vmatprep.subr.bf16.mxu0 0
      %1106 = vmatpush2.bf16.msra.mxu0 0
      %1107 = vmatprep.subr.bf16.mxu0 0
      %1108 = vmatpush2.bf16.msra.mxu0 0
      %1109 = vmatprep.subr.bf16.mxu0 0
      %1110 = vmatpush2.bf16.msra.mxu0 0
      %1111 = vmatprep.subr.bf16.mxu0 0
      %1112 = vmatpush2.bf16.msra.mxu0 0
      %1113 = vmatprep.subr.bf16.mxu0 0
      %1114 = vmatpush2.bf16.msra.mxu0 0
      %1115 = vmatprep.mubr.bf16.mxu0 0
      %1116 = vmatmul.mubr.bf16.gmra.mxu0 %v1077
      %v1117 = vpop.f32.mrf.mxu0
      %v1118 = vadd.f32 0.0, %v1117
      %v1119 = vpop.f32.mrf.mxu0
      %v1120 = vpop.f32.mrf.mxu0
      %v1121 = vpop.f32.mrf.mxu0
      %1122 = vdwg.mxu0
      %v1124 = vsel %vm1001, %v1015, 0
      %v1127 = vsel %vm1079, %v1014, 0
      %1129 = vmatprep.subr.bf16.mxu0 0
      %1130 = vmatpush1.bf16.msra.mxu0 0
      %1131 = vmatprep.subr.bf16.mxu0 0
      %1132 = vmatpush1.bf16.msra.mxu0 0
      %1133 = vmatprep.subr.bf16.mxu0 0
      %1134 = vmatpush1.bf16.msra.mxu0 0
      %1135 = vmatprep.subr.bf16.mxu0 0
      %1136 = vmatpush1.bf16.msra.mxu0 0
      %1137 = vmatprep.subr.bf16.mxu0 0
      %1138 = vmatpush1.bf16.msra.mxu0 0
      %1139 = vmatprep.subr.bf16.mxu0 0
      %1140 = vmatpush1.bf16.msra.mxu0 0
      %1141 = vmatprep.subr.bf16.mxu0 0
      %1142 = vmatpush1.bf16.msra.mxu0 0
      %1143 = vmatprep.subr.bf16.mxu0 0
      %1144 = vmatpush1.bf16.msra.mxu0 %v1127
      %1145 = vmatprep.subr.bf16.mxu0 0
      %1146 = vmatpush2.bf16.msra.mxu0 0
      %1147 = vmatprep.subr.bf16.mxu0 0
      %1148 = vmatpush2.bf16.msra.mxu0 0
      %1149 = vmatprep.subr.bf16.mxu0 0
      %1150 = vmatpush2.bf16.msra.mxu0 0
      %1151 = vmatprep.subr.bf16.mxu0 0
      %1152 = vmatpush2.bf16.msra.mxu0 0
      %1153 = vmatprep.subr.bf16.mxu0 0
      %1154 = vmatpush2.bf16.msra.mxu0 0
      %1155 = vmatprep.subr.bf16.mxu0 0
      %1156 = vmatpush2.bf16.msra.mxu0 0
      %1157 = vmatprep.subr.bf16.mxu0 0
      %1158 = vmatpush2.bf16.msra.mxu0 0
      %1159 = vmatprep.subr.bf16.mxu0 0
      %1160 = vmatpush2.bf16.msra.mxu0 0
      %1161 = vmatprep.mubr.bf16.mxu0 0
      %1162 = vmatmul.mubr.bf16.gmra.mxu0 %v1124
      %v1163 = vpop.f32.mrf.mxu0
      %v1164 = vadd.f32 %v1118, %v1163
      %v1165 = vpop.f32.mrf.mxu0
      %v1166 = vpop.f32.mrf.mxu0
      %v1167 = vpop.f32.mrf.mxu0
      %1168 = vdwg.mxu0
      %v1169 = vsel %vm690, %v820, 0.0
      %v1170 = vpack.c.bf16 %v1169, %v1169
      %v1172 = vsel %vm781, %v1170, 0
      %1174 = vmatprep.subr.bf16.mxu0 0
      %1175 = vmatpush1.bf16.xpose.msra.mxu0 0
      %1176 = vmatprep.subr.bf16.mxu0 0
      %1177 = vmatpush1.bf16.xpose.msra.mxu0 0
      %1178 = vmatprep.subr.bf16.mxu0 0
      %1179 = vmatpush1.bf16.xpose.msra.mxu0 0
      %1180 = vmatprep.subr.bf16.mxu0 0
      %1181 = vmatpush1.bf16.xpose.msra.mxu0 0
      %1182 = vmatprep.subr.bf16.mxu0 0
      %1183 = vmatpush1.bf16.xpose.msra.mxu0 0
      %1184 = vmatprep.subr.bf16.mxu0 0
      %1185 = vmatpush1.bf16.xpose.msra.mxu0 0
      %1186 = vmatprep.subr.bf16.mxu0 0
      %1187 = vmatpush1.bf16.xpose.msra.mxu0 0
      %1188 = vmatprep.subr.bf16.mxu0 0
      %1189 = vmatpush1.bf16.xpose.msra.mxu0 %v958
      %1190 = vmatprep.subr.bf16.mxu0 0
      %1191 = vmatpush2.bf16.xpose.msra.mxu0 0
      %1192 = vmatprep.subr.bf16.mxu0 0
      %1193 = vmatpush2.bf16.xpose.msra.mxu0 0
      %1194 = vmatprep.subr.bf16.mxu0 0
      %1195 = vmatpush2.bf16.xpose.msra.mxu0 0
      %1196 = vmatprep.subr.bf16.mxu0 0
      %1197 = vmatpush2.bf16.xpose.msra.mxu0 0
      %1198 = vmatprep.subr.bf16.mxu0 0
      %1199 = vmatpush2.bf16.xpose.msra.mxu0 0
      %1200 = vmatprep.subr.bf16.mxu0 0
      %1201 = vmatpush2.bf16.xpose.msra.mxu0 0
      %1202 = vmatprep.subr.bf16.mxu0 0
      %1203 = vmatpush2.bf16.xpose.msra.mxu0 0
      %1204 = vmatprep.subr.bf16.mxu0 0
      %1205 = vmatpush2.bf16.xpose.msra.mxu0 0
      %1206 = vmatprep.mubr.bf16.mxu0 0
      %1207 = vmatmul.mubr.bf16.gmra.mxu0 %v1172
      %v1208 = vpop.f32.mrf.mxu0
      %v1209 = vadd.f32 0.0, %v1208
      %v1210 = vpop.f32.mrf.mxu0
      %v1211 = vpop.f32.mrf.mxu0
      %v1212 = vpop.f32.mrf.mxu0
      %1213 = vdwg.mxu0
      %v1214 = vmul.f32 %v1209, 0.35355338
      %v1215 = vsel %vm1001, %v1214, -inf
      %1216 = vmax.xlane.f32.xlu0 %v1215
      %v1217 = vpop.xlane.xlu0 %1216
      %v1218 = vsub.f32 %v1214, %v1217
      %v1219 = vmul.f32 %v1218, 1.442695
      %v1220 = vpow.pop %v1219
      %v1221 = vsel %vm1001, %v1220, 0.0
      %1222 = vadd.xlane.f32.xlu0 %v1221
      %v1223 = vpop.xlane.xlu0 %1222
      %v1224 = vrcp.pop %v1223
      %v1225 = vmul.f32 %v1220, %v1224
      %v1226 = vsel %vm690, %v946, 0.0
      %v1227 = vpack.c.bf16 %v1226, %v1226
      %v1228 = vpack.c.bf16 %v1225, %v1225
      %v1230 = vsel %vm1001, %v1228, 0
      %v1233 = vsel %vm1079, %v1227, 0
      %1235 = vmatprep.subr.bf16.mxu0 0
      %1236 = vmatpush1.bf16.msra.mxu0 0
      %1237 = vmatprep.subr.bf16.mxu0 0
      %1238 = vmatpush1.bf16.msra.mxu0 0
      %1239 = vmatprep.subr.bf16.mxu0 0
      %1240 = vmatpush1.bf16.msra.mxu0 0
      %1241 = vmatprep.subr.bf16.mxu0 0
      %1242 = vmatpush1.bf16.msra.mxu0 0
      %1243 = vmatprep.subr.bf16.mxu0 0
      %1244 = vmatpush1.bf16.msra.mxu0 0
      %1245 = vmatprep.subr.bf16.mxu0 0
      %1246 = vmatpush1.bf16.msra.mxu0 0
      %1247 = vmatprep.subr.bf16.mxu0 0
      %1248 = vmatpush1.bf16.msra.mxu0 0
      %1249 = vmatprep.subr.bf16.mxu0 0
      %1250 = vmatpush1.bf16.msra.mxu0 %v1233
      %1251 = vmatprep.subr.bf16.mxu0 0
      %1252 = vmatpush2.bf16.msra.mxu0 0
      %1253 = vmatprep.subr.bf16.mxu0 0
      %1254 = vmatpush2.bf16.msra.mxu0 0
      %1255 = vmatprep.subr.bf16.mxu0 0
      %1256 = vmatpush2.bf16.msra.mxu0 0
      %1257 = vmatprep.subr.bf16.mxu0 0
      %1258 = vmatpush2.bf16.msra.mxu0 0
      %1259 = vmatprep.subr.bf16.mxu0 0
      %1260 = vmatpush2.bf16.msra.mxu0 0
      %1261 = vmatprep.subr.bf16.mxu0 0
      %1262 = vmatpush2.bf16.msra.mxu0 0
      %1263 = vmatprep.subr.bf16.mxu0 0
      %1264 = vmatpush2.bf16.msra.mxu0 0
      %1265 = vmatprep.subr.bf16.mxu0 0
      %1266 = vmatpush2.bf16.msra.mxu0 0
      %1267 = vmatprep.mubr.bf16.mxu0 0
      %1268 = vmatmul.mubr.bf16.gmra.mxu0 %v1230
      %v1269 = vpop.f32.mrf.mxu0
      %v1270 = vadd.f32 0.0, %v1269
      %v1271 = vpop.f32.mrf.mxu0
      %v1272 = vpop.f32.mrf.mxu0
      %v1273 = vpop.f32.mrf.mxu0
      %1274 = vdwg.mxu0
      %v1275 = vadd.f32 %v1164, %v1270
      %v1276 = vsel %vm693, %v820, 0.0
      %v1277 = vpack.c.bf16 %v1276, %v1276
      %v1279 = vsel %vm781, %v1277, 0
      %1281 = vmatprep.subr.bf16.mxu0 0
      %1282 = vmatpush1.bf16.xpose.msra.mxu0 0
      %1283 = vmatprep.subr.bf16.mxu0 0
      %1284 = vmatpush1.bf16.xpose.msra.mxu0 0
      %1285 = vmatprep.subr.bf16.mxu0 0
      %1286 = vmatpush1.bf16.xpose.msra.mxu0 0
      %1287 = vmatprep.subr.bf16.mxu0 0
      %1288 = vmatpush1.bf16.xpose.msra.mxu0 0
      %1289 = vmatprep.subr.bf16.mxu0 0
      %1290 = vmatpush1.bf16.xpose.msra.mxu0 0
      %1291 = vmatprep.subr.bf16.mxu0 0
      %1292 = vmatpush1.bf16.xpose.msra.mxu0 0
      %1293 = vmatprep.subr.bf16.mxu0 0
      %1294 = vmatpush1.bf16.xpose.msra.mxu0 0
      %1295 = vmatprep.subr.bf16.mxu0 0
      %1296 = vmatpush1.bf16.xpose.msra.mxu0 %v958
      %1297 = vmatprep.subr.bf16.mxu0 0
      %1298 = vmatpush2.bf16.xpose.msra.mxu0 0
      %1299 = vmatprep.subr.bf16.mxu0 0
      %1300 = vmatpush2.bf16.xpose.msra.mxu0 0
      %1301 = vmatprep.subr.bf16.mxu0 0
      %1302 = vmatpush2.bf16.xpose.msra.mxu0 0
      %1303 = vmatprep.subr.bf16.mxu0 0
      %1304 = vmatpush2.bf16.xpose.msra.mxu0 0
      %1305 = vmatprep.subr.bf16.mxu0 0
      %1306 = vmatpush2.bf16.xpose.msra.mxu0 0
      %1307 = vmatprep.subr.bf16.mxu0 0
      %1308 = vmatpush2.bf16.xpose.msra.mxu0 0
      %1309 = vmatprep.subr.bf16.mxu0 0
      %1310 = vmatpush2.bf16.xpose.msra.mxu0 0
      %1311 = vmatprep.subr.bf16.mxu0 0
      %1312 = vmatpush2.bf16.xpose.msra.mxu0 0
      %1313 = vmatprep.mubr.bf16.mxu0 0
      %1314 = vmatmul.mubr.bf16.gmra.mxu0 %v1279
      %v1315 = vpop.f32.mrf.mxu0
      %v1316 = vadd.f32 0.0, %v1315
      %v1317 = vpop.f32.mrf.mxu0
      %v1318 = vpop.f32.mrf.mxu0
      %v1319 = vpop.f32.mrf.mxu0
      %1320 = vdwg.mxu0
      %v1321 = vmul.f32 %v1316, 0.35355338
      %v1322 = vsel %vm1001, %v1321, -inf
      %1323 = vmax.xlane.f32.xlu0 %v1322
      %v1324 = vpop.xlane.xlu0 %1323
      %v1325 = vsub.f32 %v1321, %v1324
      %v1326 = vmul.f32 %v1325, 1.442695
      %v1327 = vpow.pop %v1326
      %v1328 = vsel %vm1001, %v1327, 0.0
      %1329 = vadd.xlane.f32.xlu0 %v1328
      %v1330 = vpop.xlane.xlu0 %1329
      %v1331 = vrcp.pop %v1330
      %v1332 = vmul.f32 %v1327, %v1331
      %v1333 = vsel %vm693, %v946, 0.0
      %v1334 = vpack.c.bf16 %v1333, %v1333
      %v1335 = vpack.c.bf16 %v1332, %v1332
      %v1337 = vsel %vm1001, %v1335, 0
      %v1340 = vsel %vm1079, %v1334, 0
      %1342 = vmatprep.subr.bf16.mxu0 0
      %1343 = vmatpush1.bf16.msra.mxu0 0
      %1344 = vmatprep.subr.bf16.mxu0 0
      %1345 = vmatpush1.bf16.msra.mxu0 0
      %1346 = vmatprep.subr.bf16.mxu0 0
      %1347 = vmatpush1.bf16.msra.mxu0 0
      %1348 = vmatprep.subr.bf16.mxu0 0
      %1349 = vmatpush1.bf16.msra.mxu0 0
      %1350 = vmatprep.subr.bf16.mxu0 0
      %1351 = vmatpush1.bf16.msra.mxu0 0
      %1352 = vmatprep.subr.bf16.mxu0 0
      %1353 = vmatpush1.bf16.msra.mxu0 0
      %1354 = vmatprep.subr.bf16.mxu0 0
      %1355 = vmatpush1.bf16.msra.mxu0 0
      %1356 = vmatprep.subr.bf16.mxu0 0
      %1357 = vmatpush1.bf16.msra.mxu0 %v1340
      %1358 = vmatprep.subr.bf16.mxu0 0
      %1359 = vmatpush2.bf16.msra.mxu0 0
      %1360 = vmatprep.subr.bf16.mxu0 0
      %1361 = vmatpush2.bf16.msra.mxu0 0
      %1362 = vmatprep.subr.bf16.mxu0 0
      %1363 = vmatpush2.bf16.msra.mxu0 0
      %1364 = vmatprep.subr.bf16.mxu0 0
      %1365 = vmatpush2.bf16.msra.mxu0 0
      %1366 = vmatprep.subr.bf16.mxu0 0
      %1367 = vmatpush2.bf16.msra.mxu0 0
      %1368 = vmatprep.subr.bf16.mxu0 0
      %1369 = vmatpush2.bf16.msra.mxu0 0
      %1370 = vmatprep.subr.bf16.mxu0 0
      %1371 = vmatpush2.bf16.msra.mxu0 0
      %1372 = vmatprep.subr.bf16.mxu0 0
      %1373 = vmatpush2.bf16.msra.mxu0 0
      %1374 = vmatprep.mubr.bf16.mxu0 0
      %1375 = vmatmul.mubr.bf16.gmra.mxu0 %v1337
      %v1376 = vpop.f32.mrf.mxu0
      %v1377 = vadd.f32 0.0, %v1376
      %v1378 = vpop.f32.mrf.mxu0
      %v1379 = vpop.f32.mrf.mxu0
      %v1380 = vpop.f32.mrf.mxu0
      %1381 = vdwg.mxu0
      %v1382 = vadd.f32 %v1275, %v1377
      %v1383 = vld [vmem:[%s10] sm:$0xf]
      %v1384 = vld [vmem:[%s10 + $0x4] sm:$0xf]
      %v1385 = vld [vmem:[%s10 + $0x8] sm:$0xf]
      %v1386 = vld [vmem:[%s10 + $0xc] sm:$0xf]
      %v1387 = vpack.c.bf16 %v1382, %v1382
      %v1388 = vld [vmem:[%s11] sm:$0x1]
      %v1390 = vlaneseq
      %v1391 = vshrl.u32 %v1390, 7
      %v1392 = vsub.s32 0, %v1391
      %v1393 = vrot.slane %v1388, %v1392
      %v1399 = vunpack.c.l.b16 %v1383
      %v1400 = vunpack.c.l.b16 %v1384
      %v1401 = vunpack.c.l.b16 %v1385
      %v1402 = vunpack.c.l.b16 %v1386
      %v1403 = vpack.c.b16 %v1400, %v1399
      %v1404 = vpack.c.b16 %v1402, %v1401
      %v1408 = vsel %vm781, %v1387, 0
      %1410 = vmatprep.subr.bf16.mxu0 0
      %1411 = vmatpush1.bf16.msra.mxu0 0
      %1412 = vmatprep.subr.bf16.mxu0 0
      %1413 = vmatpush1.bf16.msra.mxu0 0
      %1414 = vmatprep.subr.bf16.mxu0 0
      %1415 = vmatpush1.bf16.msra.mxu0 0
      %1416 = vmatprep.subr.bf16.mxu0 0
      %1417 = vmatpush1.bf16.msra.mxu0 0
      %1418 = vmatprep.subr.bf16.mxu0 0
      %1419 = vmatpush1.bf16.msra.mxu0 0
      %1420 = vmatprep.subr.bf16.mxu0 0
      %1421 = vmatpush1.bf16.msra.mxu0 0
      %1422 = vmatprep.subr.bf16.mxu0 0
      %1423 = vmatpush1.bf16.msra.mxu0 %v1404
      %1424 = vmatprep.subr.bf16.mxu0 0
      %1425 = vmatpush1.bf16.msra.mxu0 %v1403
      %1426 = vmatprep.subr.bf16.mxu0 0
      %1427 = vmatpush2.bf16.msra.mxu0 0
      %1428 = vmatprep.subr.bf16.mxu0 0
      %1429 = vmatpush2.bf16.msra.mxu0 0
      %1430 = vmatprep.subr.bf16.mxu0 0
      %1431 = vmatpush2.bf16.msra.mxu0 0
      %1432 = vmatprep.subr.bf16.mxu0 0
      %1433 = vmatpush2.bf16.msra.mxu0 0
      %1434 = vmatprep.subr.bf16.mxu0 0
      %1435 = vmatpush2.bf16.msra.mxu0 0
      %1436 = vmatprep.subr.bf16.mxu0 0
      %1437 = vmatpush2.bf16.msra.mxu0 0
      %1438 = vmatprep.subr.bf16.mxu0 0
      %1439 = vmatpush2.bf16.msra.mxu0 0
      %1440 = vmatprep.subr.bf16.mxu0 0
      %1441 = vmatpush2.bf16.msra.mxu0 0
      %1442 = vmatprep.mubr.bf16.mxu0 0
      %1443 = vmatmul.mubr.bf16.gmra.mxu0 %v1408
      %v1444 = vpop.f32.mrf.mxu0
      %v1445 = vadd.f32 %v1393, %v1444
      %v1446 = vpop.f32.mrf.mxu0
      %v1447 = vpop.f32.mrf.mxu0
      %v1448 = vpop.f32.mrf.mxu0
      %1449 = vdwg.mxu0
      %v1450 = vadd.f32 %v756, %v1445
      %v1451 = vld [vmem:[%s16] sm:$0x1]
      %v1452 = vld [vmem:[%s17] sm:$0x1]
      %v1453 = vsel %vm781, %v1450, 0.0
      %1454 = vadd.xlane.f32.xlu0 %v1453
      %v1455 = vpop.xlane.xlu0 %1454
      %v1456 = vrcp.pop 32.0
      %v1457 = vmul.f32 %v1455, %v1456
      %v1458 = vsub.f32 %v1450, %v1457
      %v1459 = vmul.f32 %v1458, %v1458
      %v1460 = vsel %vm781, %v1459, 0.0
      %1461 = vadd.xlane.f32.xlu0 %v1460
      %v1462 = vpop.xlane.xlu0 %1461
      %v1463 = vmul.f32 %v1462, %v1456
      %v1464 = vadd.f32 %v1463, 1e-05
      %v1465 = vrsqrt.pop %v1464
      %v1466 = vmul.f32 %v1458, %v1465
      %v1468 = vlaneseq
      %v1469 = vshrl.u32 %v1468, 7
      %v1470 = vsub.s32 0, %v1469
      %v1471 = vrot.slane %v1451, %v1470
      %v1473 = vmul.f32 %v1466, %v1471
      %v1475 = vlaneseq
      %v1476 = vshrl.u32 %v1475, 7
      %v1477 = vsub.s32 0, %v1476
      %v1478 = vrot.slane %v1452, %v1477
      %v1480 = vadd.f32 %v1473, %v1478
      %v1481 = vld [vmem:[%s12] sm:$0xff]
      %v1482 = vld [vmem:[%s12 + $0x8] sm:$0xff]
      %v1483 = vld [vmem:[%s12 + $0x10] sm:$0xff]
      %v1484 = vld [vmem:[%s12 + $0x18] sm:$0xff]
      %v1485 = vld [vmem:[%s12 + $0x20] sm:$0xff]
      %v1486 = vld [vmem:[%s12 + $0x28] sm:$0xff]
      %v1487 = vld [vmem:[%s12 + $0x30] sm:$0xff]
      %v1488 = vld [vmem:[%s12 + $0x38] sm:$0xff]
      %v1489 = vld [vmem:[%s12 + $0x40] sm:$0xff]
      %v1490 = vld [vmem:[%s12 + $0x48] sm:$0xff]
      %v1491 = vld [vmem:[%s12 + $0x50] sm:$0xff]
      %v1492 = vld [vmem:[%s12 + $0x58] sm:$0xff]
      %v1493 = vld [vmem:[%s12 + $0x60] sm:$0xff]
      %v1494 = vld [vmem:[%s12 + $0x68] sm:$0xff]
      %v1495 = vld [vmem:[%s12 + $0x70] sm:$0xff]
      %v1496 = vld [vmem:[%s12 + $0x78] sm:$0xff]
      %v1497 = vld [vmem:[%s12 + $0x80] sm:$0xff]
      %v1498 = vld [vmem:[%s12 + $0x88] sm:$0xff]
      %v1499 = vld [vmem:[%s12 + $0x90] sm:$0xff]
      %v1500 = vld [vmem:[%s12 + $0x98] sm:$0xff]
      %v1501 = vld [vmem:[%s12 + $0xa0] sm:$0xff]
      %v1502 = vld [vmem:[%s12 + $0xa8] sm:$0xff]
      %v1503 = vld [vmem:[%s12 + $0xb0] sm:$0xff]
      %v1504 = vld [vmem:[%s12 + $0xb8] sm:$0xff]
      %v1505 = vld [vmem:[%s12 + $0xc0] sm:$0xff]
      %v1506 = vld [vmem:[%s12 + $0xc8] sm:$0xff]
      %v1507 = vld [vmem:[%s12 + $0xd0] sm:$0xff]
      %v1508 = vld [vmem:[%s12 + $0xd8] sm:$0xff]
      %v1509 = vld [vmem:[%s12 + $0xe0] sm:$0xff]
      %v1510 = vld [vmem:[%s12 + $0xe8] sm:$0xff]
      %v1511 = vld [vmem:[%s12 + $0xf0] sm:$0xff]
      %v1512 = vld [vmem:[%s12 + $0xf8] sm:$0xff]
      %v1513 = vpack.c.bf16 %v1480, %v1480
      %v1514 = vld [vmem:[%s13] sm:$0xff]
      %v1515 = vld [vmem:[%s13 + $0x8] sm:$0xff]
      %v1518 = vlaneseq
      %v1519 = vshrl.u32 %v1518, 7
      %v1520 = vsub.s32 0, %v1519
      %v1521 = vrot.slane %v1514, %v1520
      %v1522 = vlaneseq
      %v1523 = vshrl.u32 %v1522, 7
      %v1524 = vsub.s32 1, %v1523
      %v1525 = vrot.slane %v1514, %v1524
      %v1526 = vlaneseq
      %v1527 = vshrl.u32 %v1526, 7
      %v1528 = vsub.s32 2, %v1527
      %v1529 = vrot.slane %v1514, %v1528
      %v1530 = vlaneseq
      %v1531 = vshrl.u32 %v1530, 7
      %v1532 = vsub.s32 3, %v1531
      %v1533 = vrot.slane %v1514, %v1532
      %v1534 = vlaneseq
      %v1535 = vshrl.u32 %v1534, 7
      %v1536 = vsub.s32 4, %v1535
      %v1537 = vrot.slane %v1514, %v1536
      %v1538 = vlaneseq
      %v1539 = vshrl.u32 %v1538, 7
      %v1540 = vsub.s32 5, %v1539
      %v1541 = vrot.slane %v1514, %v1540
      %v1542 = vlaneseq
      %v1543 = vshrl.u32 %v1542, 7
      %v1544 = vsub.s32 6, %v1543
      %v1545 = vrot.slane %v1514, %v1544
      %v1546 = vlaneseq
      %v1547 = vshrl.u32 %v1546, 7
      %v1548 = vsub.s32 7, %v1547
      %v1549 = vrot.slane %v1514, %v1548
      %v1550 = vlaneseq
      %v1551 = vshrl.u32 %v1550, 7
      %v1552 = vsub.s32 0, %v1551
      %v1553 = vrot.slane %v1515, %v1552
      %v1554 = vlaneseq
      %v1555 = vshrl.u32 %v1554, 7
      %v1556 = vsub.s32 1, %v1555
      %v1557 = vrot.slane %v1515, %v1556
      %v1558 = vlaneseq
      %v1559 = vshrl.u32 %v1558, 7
      %v1560 = vsub.s32 2, %v1559
      %v1561 = vrot.slane %v1515, %v1560
      %v1562 = vlaneseq
      %v1563 = vshrl.u32 %v1562, 7
      %v1564 = vsub.s32 3, %v1563
      %v1565 = vrot.slane %v1515, %v1564
      %v1566 = vlaneseq
      %v1567 = vshrl.u32 %v1566, 7
      %v1568 = vsub.s32 4, %v1567
      %v1569 = vrot.slane %v1515, %v1568
      %v1570 = vlaneseq
      %v1571 = vshrl.u32 %v1570, 7
      %v1572 = vsub.s32 5, %v1571
      %v1573 = vrot.slane %v1515, %v1572
      %v1574 = vlaneseq
      %v1575 = vshrl.u32 %v1574, 7
      %v1576 = vsub.s32 6, %v1575
      %v1577 = vrot.slane %v1515, %v1576
      %v1578 = vlaneseq
      %v1579 = vshrl.u32 %v1578, 7
      %v1580 = vsub.s32 7, %v1579
      %v1581 = vrot.slane %v1515, %v1580
      %v1630 = vunpack.c.l.b16 %v1481
      %v1631 = vunpack.c.h.b16 %v1481
      %v1632 = vunpack.c.l.b16 %v1482
      %v1633 = vunpack.c.h.b16 %v1482
      %v1634 = vunpack.c.l.b16 %v1483
      %v1635 = vunpack.c.h.b16 %v1483
      %v1636 = vunpack.c.l.b16 %v1484
      %v1637 = vunpack.c.h.b16 %v1484
      %v1638 = vunpack.c.l.b16 %v1485
      %v1639 = vunpack.c.h.b16 %v1485
      %v1640 = vunpack.c.l.b16 %v1486
      %v1641 = vunpack.c.h.b16 %v1486
      %v1642 = vunpack.c.l.b16 %v1487
      %v1643 = vunpack.c.h.b16 %v1487
      %v1644 = vunpack.c.l.b16 %v1488
      %v1645 = vunpack.c.h.b16 %v1488
      %v1646 = vunpack.c.l.b16 %v1489
      %v1647 = vunpack.c.h.b16 %v1489
      %v1648 = vunpack.c.l.b16 %v1490
      %v1649 = vunpack.c.h.b16 %v1490
      %v1650 = vunpack.c.l.b16 %v1491
      %v1651 = vunpack.c.h.b16 %v1491
      %v1652 = vunpack.c.l.b16 %v1492
      %v1653 = vunpack.c.h.b16 %v1492
      %v1654 = vunpack.c.l.b16 %v1493
      %v1655 = vunpack.c.h.b16 %v1493
      %v1656 = vunpack.c.l.b16 %v1494
      %v1657 = vunpack.c.h.b16 %v1494
      %v1658 = vunpack.c.l.b16 %v1495
      %v1659 = vunpack.c.h.b16 %v1495
      %v1660 = vunpack.c.l.b16 %v1496
      %v1661 = vunpack.c.h.b16 %v1496
      %v1662 = vunpack.c.l.b16 %v1497
      %v1663 = vunpack.c.h.b16 %v1497
      %v1664 = vunpack.c.l.b16 %v1498
      %v1665 = vunpack.c.h.b16 %v1498
      %v1666 = vunpack.c.l.b16 %v1499
      %v1667 = vunpack.c.h.b16 %v1499
      %v1668 = vunpack.c.l.b16 %v1500
      %v1669 = vunpack.c.h.b16 %v1500
      %v1670 = vunpack.c.l.b16 %v1501
      %v1671 = vunpack.c.h.b16 %v1501
      %v1672 = vunpack.c.l.b16 %v1502
      %v1673 = vunpack.c.h.b16 %v1502
      %v1674 = vunpack.c.l.b16 %v1503
      %v1675 = vunpack.c.h.b16 %v1503
      %v1676 = vunpack.c.l.b16 %v1504
      %v1677 = vunpack.c.h.b16 %v1504
      %v1678 = vunpack.c.l.b16 %v1505
      %v1679 = vunpack.c.h.b16 %v1505
      %v1680 = vunpack.c.l.b16 %v1506
      %v1681 = vunpack.c.h.b16 %v1506
      %v1682 = vunpack.c.l.b16 %v1507
      %v1683 = vunpack.c.h.b16 %v1507
      %v1684 = vunpack.c.l.b16 %v1508
      %v1685 = vunpack.c.h.b16 %v1508
      %v1686 = vunpack.c.l.b16 %v1509
      %v1687 = vunpack.c.h.b16 %v1509
      %v1688 = vunpack.c.l.b16 %v1510
      %v1689 = vunpack.c.h.b16 %v1510
      %v1690 = vunpack.c.l.b16 %v1511
      %v1691 = vunpack.c.h.b16 %v1511
      %v1692 = vunpack.c.l.b16 %v1512
      %v1693 = vunpack.c.h.b16 %v1512
      %v1694 = vpack.c.b16 %v1646, %v1630
      %v1695 = vpack.c.b16 %v1647, %v1631
      %v1696 = vpack.c.b16 %v1648, %v1632
      %v1697 = vpack.c.b16 %v1649, %v1633
      %v1698 = vpack.c.b16 %v1650, %v1634
      %v1699 = vpack.c.b16 %v1651, %v1635
      %v1700 = vpack.c.b16 %v1652, %v1636
      %v1701 = vpack.c.b16 %v1653, %v1637
      %v1702 = vpack.c.b16 %v1654, %v1638
      %v1703 = vpack.c.b16 %v1655, %v1639
      %v1704 = vpack.c.b16 %v1656, %v1640
      %v1705 = vpack.c.b16 %v1657, %v1641
      %v1706 = vpack.c.b16 %v1658, %v1642
      %v1707 = vpack.c.b16 %v1659, %v1643
      %v1708 = vpack.c.b16 %v1660, %v1644
      %v1709 = vpack.c.b16 %v1661, %v1645
      %v1710 = vpack.c.b16 %v1678, %v1662
      %v1711 = vpack.c.b16 %v1679, %v1663
      %v1712 = vpack.c.b16 %v1680, %v1664
      %v1713 = vpack.c.b16 %v1681, %v1665
      %v1714 = vpack.c.b16 %v1682, %v1666
      %v1715 = vpack.c.b16 %v1683, %v1667
      %v1716 = vpack.c.b16 %v1684, %v1668
      %v1717 = vpack.c.b16 %v1685, %v1669
      %v1718 = vpack.c.b16 %v1686, %v1670
      %v1719 = vpack.c.b16 %v1687, %v1671
      %v1720 = vpack.c.b16 %v1688, %v1672
      %v1721 = vpack.c.b16 %v1689, %v1673
      %v1722 = vpack.c.b16 %v1690, %v1674
      %v1723 = vpack.c.b16 %v1691, %v1675
      %v1724 = vpack.c.b16 %v1692, %v1676
      %v1725 = vpack.c.b16 %v1693, %v1677
      %v1759 = vsel %vm781, %v1513, 0
      %1761 = vmatprep.subr.bf16.mxu0 0
      %1762 = vmatpush1.bf16.msra.mxu0 0
      %1763 = vmatprep.subr.bf16.mxu0 0
      %1764 = vmatpush1.bf16.msra.mxu0 0
      %1765 = vmatprep.subr.bf16.mxu0 0
      %1766 = vmatpush1.bf16.msra.mxu0 0
      %1767 = vmatprep.subr.bf16.mxu0 0
      %1768 = vmatpush1.bf16.msra.mxu0 0
      %1769 = vmatprep.subr.bf16.mxu0 0
      %1770 = vmatpush1.bf16.msra.mxu0 0
      %1771 = vmatprep.subr.bf16.mxu0 0
      %1772 = vmatpush1.bf16.msra.mxu0 0
      %1773 = vmatprep.subr.bf16.mxu0 %v1711
      %1774 = vmatpush1.bf16.msra.mxu0 %v1710
      %1775 = vmatprep.subr.bf16.mxu0 %v1695
      %1776 = vmatpush1.bf16.msra.mxu0 %v1694
      %1777 = vmatprep.subr.bf16.mxu0 0
      %1778 = vmatpush2.bf16.msra.mxu0 0
      %1779 = vmatprep.subr.bf16.mxu0 0
      %1780 = vmatpush2.bf16.msra.mxu0 0
      %1781 = vmatprep.subr.bf16.mxu0 0
      %1782 = vmatpush2.bf16.msra.mxu0 0
      %1783 = vmatprep.subr.bf16.mxu0 0
      %1784 = vmatpush2.bf16.msra.mxu0 0
      %1785 = vmatprep.subr.bf16.mxu0 0
      %1786 = vmatpush2.bf16.msra.mxu0 0
      %1787 = vmatprep.subr.bf16.mxu0 0
      %1788 = vmatpush2.bf16.msra.mxu0 0
      %1789 = vmatprep.subr.bf16.mxu0 0
      %1790 = vmatpush2.bf16.msra.mxu0 0
      %1791 = vmatprep.subr.bf16.mxu0 0
      %1792 = vmatpush2.bf16.msra.mxu0 0
      %1793 = vmatprep.mubr.bf16.mxu0 0
      %1794 = vmatmul.mubr.bf16.gmra.mxu0 %v1759
      %v1795 = vpop.f32.mrf.mxu0
      %v1796 = vadd.f32 %v1521, %v1795
      %v1797 = vpop.f32.mrf.mxu0
      %v1798 = vadd.f32 %v1525, %v1797
      %v1799 = vpop.f32.mrf.mxu0
      %v1800 = vpop.f32.mrf.mxu0
      %1801 = vdwg.mxu0
      %1802 = vmatprep.subr.bf16.mxu0 0
      %1803 = vmatpush1.bf16.msra.mxu0 0
      %1804 = vmatprep.subr.bf16.mxu0 0
      %1805 = vmatpush1.bf16.msra.mxu0 0
      %1806 = vmatprep.subr.bf16.mxu0 0
      %1807 = vmatpush1.bf16.msra.mxu0 0
      %1808 = vmatprep.subr.bf16.mxu0 0
      %1809 = vmatpush1.bf16.msra.mxu0 0
      %1810 = vmatprep.subr.bf16.mxu0 0
      %1811 = vmatpush1.bf16.msra.mxu0 0
      %1812 = vmatprep.subr.bf16.mxu0 0
      %1813 = vmatpush1.bf16.msra.mxu0 0
      %1814 = vmatprep.subr.bf16.mxu0 %v1713
      %1815 = vmatpush1.bf16.msra.mxu0 %v1712
      %1816 = vmatprep.subr.bf16.mxu0 %v1697
      %1817 = vmatpush1.bf16.msra.mxu0 %v1696
      %1818 = vmatprep.subr.bf16.mxu0 0
      %1819 = vmatpush2.bf16.msra.mxu0 0
      %1820 = vmatprep.subr.bf16.mxu0 0
      %1821 = vmatpush2.bf16.msra.mxu0 0
      %1822 = vmatprep.subr.bf16.mxu0 0
      %1823 = vmatpush2.bf16.msra.mxu0 0
      %1824 = vmatprep.subr.bf16.mxu0 0
      %1825 = vmatpush2.bf16.msra.mxu0 0
      %1826 = vmatprep.subr.bf16.mxu0 0
      %1827 = vmatpush2.bf16.msra.mxu0 0
      %1828 = vmatprep.subr.bf16.mxu0 0
      %1829 = vmatpush2.bf16.msra.mxu0 0
      %1830 = vmatprep.subr.bf16.mxu0 0
      %1831 = vmatpush2.bf16.msra.mxu0 0
      %1832 = vmatprep.subr.bf16.mxu0 0
      %1833 = vmatpush2.bf16.msra.mxu0 0
      %1834 = vmatprep.mubr.bf16.mxu0 0
      %1835 = vmatmul.mubr.bf16.gmra.mxu0 %v1759
      %v1836 = vpop.f32.mrf.mxu0
      %v1837 = vadd.f32 %v1529, %v1836
      %v1838 = vpop.f32.mrf.mxu0
      %v1839 = vadd.f32 %v1533, %v1838
      %v1840 = vpop.f32.mrf.mxu0
      %v1841 = vpop.f32.mrf.mxu0
      %1842 = vdwg.mxu0
      %1843 = vmatprep.subr.bf16.mxu0 0
      %1844 = vmatpush1.bf16.msra.mxu0 0
      %1845 = vmatprep.subr.bf16.mxu0 0
      %1846 = vmatpush1.bf16.msra.mxu0 0
      %1847 = vmatprep.subr.bf16.mxu0 0
      %1848 = vmatpush1.bf16.msra.mxu0 0
      %1849 = vmatprep.subr.bf16.mxu0 0
      %1850 = vmatpush1.bf16.msra.mxu0 0
      %1851 = vmatprep.subr.bf16.mxu0 0
      %1852 = vmatpush1.bf16.msra.mxu0 0
      %1853 = vmatprep.subr.bf16.mxu0 0
      %1854 = vmatpush1.bf16.msra.mxu0 0
      %1855 = vmatprep.subr.bf16.mxu0 %v1715
      %1856 = vmatpush1.bf16.msra.mxu0 %v1714
      %1857 = vmatprep.subr.bf16.mxu0 %v1699
      %1858 = vmatpush1.bf16.msra.mxu0 %v1698
      %1859 = vmatprep.subr.bf16.mxu0 0
      %1860 = vmatpush2.bf16.msra.mxu0 0
      %1861 = vmatprep.subr.bf16.mxu0 0
      %1862 = vmatpush2.bf16.msra.mxu0 0
      %1863 = vmatprep.subr.bf16.mxu0 0
      %1864 = vmatpush2.bf16.msra.mxu0 0
      %1865 = vmatprep.subr.bf16.mxu0 0
      %1866 = vmatpush2.bf16.msra.mxu0 0
      %1867 = vmatprep.subr.bf16.mxu0 0
      %1868 = vmatpush2.bf16.msra.mxu0 0
      %1869 = vmatprep.subr.bf16.mxu0 0
      %1870 = vmatpush2.bf16.msra.mxu0 0
      %1871 = vmatprep.subr.bf16.mxu0 0
      %1872 = vmatpush2.bf16.msra.mxu0 0
      %1873 = vmatprep.subr.bf16.mxu0 0
      %1874 = vmatpush2.bf16.msra.mxu0 0
      %1875 = vmatprep.mubr.bf16.mxu0 0
      %1876 = vmatmul.mubr.bf16.gmra.mxu0 %v1759
      %v1877 = vpop.f32.mrf.mxu0
      %v1878 = vadd.f32 %v1537, %v1877
      %v1879 = vpop.f32.mrf.mxu0
      %v1880 = vadd.f32 %v1541, %v1879
      %v1881 = vpop.f32.mrf.mxu0
      %v1882 = vpop.f32.mrf.mxu0
      %1883 = vdwg.mxu0
      %1884 = vmatprep.subr.bf16.mxu0 0
      %1885 = vmatpush1.bf16.msra.mxu0 0
      %1886 = vmatprep.subr.bf16.mxu0 0
      %1887 = vmatpush1.bf16.msra.mxu0 0
      %1888 = vmatprep.subr.bf16.mxu0 0
      %1889 = vmatpush1.bf16.msra.mxu0 0
      %1890 = vmatprep.subr.bf16.mxu0 0
      %1891 = vmatpush1.bf16.msra.mxu0 0
      %1892 = vmatprep.subr.bf16.mxu0 0
      %1893 = vmatpush1.bf16.msra.mxu0 0
      %1894 = vmatprep.subr.bf16.mxu0 0
      %1895 = vmatpush1.bf16.msra.mxu0 0
      %1896 = vmatprep.subr.bf16.mxu0 %v1717
      %1897 = vmatpush1.bf16.msra.mxu0 %v1716
      %1898 = vmatprep.subr.bf16.mxu0 %v1701
      %1899 = vmatpush1.bf16.msra.mxu0 %v1700
      %1900 = vmatprep.subr.bf16.mxu0 0
      %1901 = vmatpush2.bf16.msra.mxu0 0
      %1902 = vmatprep.subr.bf16.mxu0 0
      %1903 = vmatpush2.bf16.msra.mxu0 0
      %1904 = vmatprep.subr.bf16.mxu0 0
      %1905 = vmatpush2.bf16.msra.mxu0 0
      %1906 = vmatprep.subr.bf16.mxu0 0
      %1907 = vmatpush2.bf16.msra.mxu0 0
      %1908 = vmatprep.subr.bf16.mxu0 0
      %1909 = vmatpush2.bf16.msra.mxu0 0
      %1910 = vmatprep.subr.bf16.mxu0 0
      %1911 = vmatpush2.bf16.msra.mxu0 0
      %1912 = vmatprep.subr.bf16.mxu0 0
      %1913 = vmatpush2.bf16.msra.mxu0 0
      %1914 = vmatprep.subr.bf16.mxu0 0
      %1915 = vmatpush2.bf16.msra.mxu0 0
      %1916 = vmatprep.mubr.bf16.mxu0 0
      %1917 = vmatmul.mubr.bf16.gmra.mxu0 %v1759
      %v1918 = vpop.f32.mrf.mxu0
      %v1919 = vadd.f32 %v1545, %v1918
      %v1920 = vpop.f32.mrf.mxu0
      %v1921 = vadd.f32 %v1549, %v1920
      %v1922 = vpop.f32.mrf.mxu0
      %v1923 = vpop.f32.mrf.mxu0
      %1924 = vdwg.mxu0
      %1925 = vmatprep.subr.bf16.mxu0 0
      %1926 = vmatpush1.bf16.msra.mxu0 0
      %1927 = vmatprep.subr.bf16.mxu0 0
      %1928 = vmatpush1.bf16.msra.mxu0 0
      %1929 = vmatprep.subr.bf16.mxu0 0
      %1930 = vmatpush1.bf16.msra.mxu0 0
      %1931 = vmatprep.subr.bf16.mxu0 0
      %1932 = vmatpush1.bf16.msra.mxu0 0
      %1933 = vmatprep.subr.bf16.mxu0 0
      %1934 = vmatpush1.bf16.msra.mxu0 0
      %1935 = vmatprep.subr.bf16.mxu0 0
      %1936 = vmatpush1.bf16.msra.mxu0 0
      %1937 = vmatprep.subr.bf16.mxu0 %v1719
      %1938 = vmatpush1.bf16.msra.mxu0 %v1718
      %1939 = vmatprep.subr.bf16.mxu0 %v1703
      %1940 = vmatpush1.bf16.msra.mxu0 %v1702
      %1941 = vmatprep.subr.bf16.mxu0 0
      %1942 = vmatpush2.bf16.msra.mxu0 0
      %1943 = vmatprep.subr.bf16.mxu0 0
      %1944 = vmatpush2.bf16.msra.mxu0 0
      %1945 = vmatprep.subr.bf16.mxu0 0
      %1946 = vmatpush2.bf16.msra.mxu0 0
      %1947 = vmatprep.subr.bf16.mxu0 0
      %1948 = vmatpush2.bf16.msra.mxu0 0
      %1949 = vmatprep.subr.bf16.mxu0 0
      %1950 = vmatpush2.bf16.msra.mxu0 0
      %1951 = vmatprep.subr.bf16.mxu0 0
      %1952 = vmatpush2.bf16.msra.mxu0 0
      %1953 = vmatprep.subr.bf16.mxu0 0
      %1954 = vmatpush2.bf16.msra.mxu0 0
      %1955 = vmatprep.subr.bf16.mxu0 0
      %1956 = vmatpush2.bf16.msra.mxu0 0
      %1957 = vmatprep.mubr.bf16.mxu0 0
      %1958 = vmatmul.mubr.bf16.gmra.mxu0 %v1759
      %v1959 = vpop.f32.mrf.mxu0
      %v1960 = vadd.f32 %v1553, %v1959
      %v1961 = vpop.f32.mrf.mxu0
      %v1962 = vadd.f32 %v1557, %v1961
      %v1963 = vpop.f32.mrf.mxu0
      %v1964 = vpop.f32.mrf.mxu0
      %1965 = vdwg.mxu0
      %1966 = vmatprep.subr.bf16.mxu0 0
      %1967 = vmatpush1.bf16.msra.mxu0 0
      %1968 = vmatprep.subr.bf16.mxu0 0
      %1969 = vmatpush1.bf16.msra.mxu0 0
      %1970 = vmatprep.subr.bf16.mxu0 0
      %1971 = vmatpush1.bf16.msra.mxu0 0
      %1972 = vmatprep.subr.bf16.mxu0 0
      %1973 = vmatpush1.bf16.msra.mxu0 0
      %1974 = vmatprep.subr.bf16.mxu0 0
      %1975 = vmatpush1.bf16.msra.mxu0 0
      %1976 = vmatprep.subr.bf16.mxu0 0
      %1977 = vmatpush1.bf16.msra.mxu0 0
      %1978 = vmatprep.subr.bf16.mxu0 %v1721
      %1979 = vmatpush1.bf16.msra.mxu0 %v1720
      %1980 = vmatprep.subr.bf16.mxu0 %v1705
      %1981 = vmatpush1.bf16.msra.mxu0 %v1704
      %1982 = vmatprep.subr.bf16.mxu0 0
      %1983 = vmatpush2.bf16.msra.mxu0 0
      %1984 = vmatprep.subr.bf16.mxu0 0
      %1985 = vmatpush2.bf16.msra.mxu0 0
      %1986 = vmatprep.subr.bf16.mxu0 0
      %1987 = vmatpush2.bf16.msra.mxu0 0
      %1988 = vmatprep.subr.bf16.mxu0 0
      %1989 = vmatpush2.bf16.msra.mxu0 0
      %1990 = vmatprep.subr.bf16.mxu0 0
      %1991 = vmatpush2.bf16.msra.mxu0 0
      %1992 = vmatprep.subr.bf16.mxu0 0
      %1993 = vmatpush2.bf16.msra.mxu0 0
      %1994 = vmatprep.subr.bf16.mxu0 0
      %1995 = vmatpush2.bf16.msra.mxu0 0
      %1996 = vmatprep.subr.bf16.mxu0 0
      %1997 = vmatpush2.bf16.msra.mxu0 0
      %1998 = vmatprep.mubr.bf16.mxu0 0
      %1999 = vmatmul.mubr.bf16.gmra.mxu0 %v1759
      %v2000 = vpop.f32.mrf.mxu0
      %v2001 = vadd.f32 %v1561, %v2000
      %v2002 = vpop.f32.mrf.mxu0
      %v2003 = vadd.f32 %v1565, %v2002
      %v2004 = vpop.f32.mrf.mxu0
      %v2005 = vpop.f32.mrf.mxu0
      %2006 = vdwg.mxu0
      %2007 = vmatprep.subr.bf16.mxu0 0
      %2008 = vmatpush1.bf16.msra.mxu0 0
      %2009 = vmatprep.subr.bf16.mxu0 0
      %2010 = vmatpush1.bf16.msra.mxu0 0
      %2011 = vmatprep.subr.bf16.mxu0 0
      %2012 = vmatpush1.bf16.msra.mxu0 0
      %2013 = vmatprep.subr.bf16.mxu0 0
      %2014 = vmatpush1.bf16.msra.mxu0 0
      %2015 = vmatprep.subr.bf16.mxu0 0
      %2016 = vmatpush1.bf16.msra.mxu0 0
      %2017 = vmatprep.subr.bf16.mxu0 0
      %2018 = vmatpush1.bf16.msra.mxu0 0
      %2019 = vmatprep.subr.bf16.mxu0 %v1723
      %2020 = vmatpush1.bf16.msra.mxu0 %v1722
      %2021 = vmatprep.subr.bf16.mxu0 %v1707
      %2022 = vmatpush1.bf16.msra.mxu0 %v1706
      %2023 = vmatprep.subr.bf16.mxu0 0
      %2024 = vmatpush2.bf16.msra.mxu0 0
      %2025 = vmatprep.subr.bf16.mxu0 0
      %2026 = vmatpush2.bf16.msra.mxu0 0
      %2027 = vmatprep.subr.bf16.mxu0 0
      %2028 = vmatpush2.bf16.msra.mxu0 0
      %2029 = vmatprep.subr.bf16.mxu0 0
      %2030 = vmatpush2.bf16.msra.mxu0 0
      %2031 = vmatprep.subr.bf16.mxu0 0
      %2032 = vmatpush2.bf16.msra.mxu0 0
      %2033 = vmatprep.subr.bf16.mxu0 0
      %2034 = vmatpush2.bf16.msra.mxu0 0
      %2035 = vmatprep.subr.bf16.mxu0 0
      %2036 = vmatpush2.bf16.msra.mxu0 0
      %2037 = vmatprep.subr.bf16.mxu0 0
      %2038 = vmatpush2.bf16.msra.mxu0 0
      %2039 = vmatprep.mubr.bf16.mxu0 0
      %2040 = vmatmul.mubr.bf16.gmra.mxu0 %v1759
      %v2041 = vpop.f32.mrf.mxu0
      %v2042 = vadd.f32 %v1569, %v2041
      %v2043 = vpop.f32.mrf.mxu0
      %v2044 = vadd.f32 %v1573, %v2043
      %v2045 = vpop.f32.mrf.mxu0
      %v2046 = vpop.f32.mrf.mxu0
      %2047 = vdwg.mxu0
      %2048 = vmatprep.subr.bf16.mxu0 0
      %2049 = vmatpush1.bf16.msra.mxu0 0
      %2050 = vmatprep.subr.bf16.mxu0 0
      %2051 = vmatpush1.bf16.msra.mxu0 0
      %2052 = vmatprep.subr.bf16.mxu0 0
      %2053 = vmatpush1.bf16.msra.mxu0 0
      %2054 = vmatprep.subr.bf16.mxu0 0
      %2055 = vmatpush1.bf16.msra.mxu0 0
      %2056 = vmatprep.subr.bf16.mxu0 0
      %2057 = vmatpush1.bf16.msra.mxu0 0
      %2058 = vmatprep.subr.bf16.mxu0 0
      %2059 = vmatpush1.bf16.msra.mxu0 0
      %2060 = vmatprep.subr.bf16.mxu0 %v1725
      %2061 = vmatpush1.bf16.msra.mxu0 %v1724
      %2062 = vmatprep.subr.bf16.mxu0 %v1709
      %2063 = vmatpush1.bf16.msra.mxu0 %v1708
      %2064 = vmatprep.subr.bf16.mxu0 0
      %2065 = vmatpush2.bf16.msra.mxu0 0
      %2066 = vmatprep.subr.bf16.mxu0 0
      %2067 = vmatpush2.bf16.msra.mxu0 0
      %2068 = vmatprep.subr.bf16.mxu0 0
      %2069 = vmatpush2.bf16.msra.mxu0 0
      %2070 = vmatprep.subr.bf16.mxu0 0
      %2071 = vmatpush2.bf16.msra.mxu0 0
      %2072 = vmatprep.subr.bf16.mxu0 0
      %2073 = vmatpush2.bf16.msra.mxu0 0
      %2074 = vmatprep.subr.bf16.mxu0 0
      %2075 = vmatpush2.bf16.msra.mxu0 0
      %2076 = vmatprep.subr.bf16.mxu0 0
      %2077 = vmatpush2.bf16.msra.mxu0 0
      %2078 = vmatprep.subr.bf16.mxu0 0
      %2079 = vmatpush2.bf16.msra.mxu0 0
      %2080 = vmatprep.mubr.bf16.mxu0 0
      %2081 = vmatmul.mubr.bf16.gmra.mxu0 %v1759
      %v2082 = vpop.f32.mrf.mxu0
      %v2083 = vadd.f32 %v1577, %v2082
      %v2084 = vpop.f32.mrf.mxu0
      %v2085 = vadd.f32 %v1581, %v2084
      %v2086 = vpop.f32.mrf.mxu0
      %v2087 = vpop.f32.mrf.mxu0
      %2088 = vdwg.mxu0
      %v2089 = vmax.f32 %v1796, 0.0
      %v2090 = vmax.f32 %v1798, 0.0
      %v2091 = vmax.f32 %v1837, 0.0
      %v2092 = vmax.f32 %v1839, 0.0
      %v2093 = vmax.f32 %v1878, 0.0
      %v2094 = vmax.f32 %v1880, 0.0
      %v2095 = vmax.f32 %v1919, 0.0
      %v2096 = vmax.f32 %v1921, 0.0
      %v2097 = vmax.f32 %v1960, 0.0
      %v2098 = vmax.f32 %v1962, 0.0
      %v2099 = vmax.f32 %v2001, 0.0
      %v2100 = vmax.f32 %v2003, 0.0
      %v2101 = vmax.f32 %v2042, 0.0
      %v2102 = vmax.f32 %v2044, 0.0
      %v2103 = vmax.f32 %v2083, 0.0
      %v2104 = vmax.f32 %v2085, 0.0
      %v2105 = vpack.c.bf16 %v2089, %v2089
      %v2106 = vpack.c.bf16 %v2090, %v2090
      %v2107 = vpack.c.bf16 %v2091, %v2091
      %v2108 = vpack.c.bf16 %v2092, %v2092
      %v2109 = vpack.c.bf16 %v2093, %v2093
      %v2110 = vpack.c.bf16 %v2094, %v2094
      %v2111 = vpack.c.bf16 %v2095, %v2095
      %v2112 = vpack.c.bf16 %v2096, %v2096
      %v2113 = vpack.c.bf16 %v2097, %v2097
      %v2114 = vpack.c.bf16 %v2098, %v2098
      %v2115 = vpack.c.bf16 %v2099, %v2099
      %v2116 = vpack.c.bf16 %v2100, %v2100
      %v2117 = vpack.c.bf16 %v2101, %v2101
      %v2118 = vpack.c.bf16 %v2102, %v2102
      %v2119 = vpack.c.bf16 %v2103, %v2103
      %v2120 = vpack.c.bf16 %v2104, %v2104
      %v2121 = vld [vmem:[%s14] sm:$0xf]
      %v2122 = vld [vmem:[%s14 + $0x4] sm:$0xf]
      %v2123 = vld [vmem:[%s14 + $0x8] sm:$0xf]
      %v2124 = vld [vmem:[%s14 + $0xc] sm:$0xf]
      %v2125 = vld [vmem:[%s14 + $0x10] sm:$0xf]
      %v2126 = vld [vmem:[%s14 + $0x14] sm:$0xf]
      %v2127 = vld [vmem:[%s14 + $0x18] sm:$0xf]
      %v2128 = vld [vmem:[%s14 + $0x1c] sm:$0xf]
      %v2129 = vld [vmem:[%s14 + $0x20] sm:$0xf]
      %v2130 = vld [vmem:[%s14 + $0x24] sm:$0xf]
      %v2131 = vld [vmem:[%s14 + $0x28] sm:$0xf]
      %v2132 = vld [vmem:[%s14 + $0x2c] sm:$0xf]
      %v2133 = vld [vmem:[%s14 + $0x30] sm:$0xf]
      %v2134 = vld [vmem:[%s14 + $0x34] sm:$0xf]
      %v2135 = vld [vmem:[%s14 + $0x38] sm:$0xf]
      %v2136 = vld [vmem:[%s14 + $0x3c] sm:$0xf]
      %v2137 = vld [vmem:[%s14 + $0x40] sm:$0xf]
      %v2138 = vld [vmem:[%s14 + $0x44] sm:$0xf]
      %v2139 = vld [vmem:[%s14 + $0x48] sm:$0xf]
      %v2140 = vld [vmem:[%s14 + $0x4c] sm:$0xf]
      %v2141 = vld [vmem:[%s14 + $0x50] sm:$0xf]
      %v2142 = vld [vmem:[%s14 + $0x54] sm:$0xf]
      %v2143 = vld [vmem:[%s14 + $0x58] sm:$0xf]
      %v2144 = vld [vmem:[%s14 + $0x5c] sm:$0xf]
      %v2145 = vld [vmem:[%s14 + $0x60] sm:$0xf]
      %v2146 = vld [vmem:[%s14 + $0x64] sm:$0xf]
      %v2147 = vld [vmem:[%s14 + $0x68] sm:$0xf]
      %v2148 = vld [vmem:[%s14 + $0x6c] sm:$0xf]
      %v2149 = vld [vmem:[%s14 + $0x70] sm:$0xf]
      %v2150 = vld [vmem:[%s14 + $0x74] sm:$0xf]
      %v2151 = vld [vmem:[%s14 + $0x78] sm:$0xf]
      %v2152 = vld [vmem:[%s14 + $0x7c] sm:$0xf]
      %v2153 = vld [vmem:[%s14 + $0x80] sm:$0xf]
      %v2154 = vld [vmem:[%s14 + $0x84] sm:$0xf]
      %v2155 = vld [vmem:[%s14 + $0x88] sm:$0xf]
      %v2156 = vld [vmem:[%s14 + $0x8c] sm:$0xf]
      %v2157 = vld [vmem:[%s14 + $0x90] sm:$0xf]
      %v2158 = vld [vmem:[%s14 + $0x94] sm:$0xf]
      %v2159 = vld [vmem:[%s14 + $0x98] sm:$0xf]
      %v2160 = vld [vmem:[%s14 + $0x9c] sm:$0xf]
      %v2161 = vld [vmem:[%s14 + $0xa0] sm:$0xf]
      %v2162 = vld [vmem:[%s14 + $0xa4] sm:$0xf]
      %v2163 = vld [vmem:[%s14 + $0xa8] sm:$0xf]
      %v2164 = vld [vmem:[%s14 + $0xac] sm:$0xf]
      %v2165 = vld [vmem:[%s14 + $0xb0] sm:$0xf]
      %v2166 = vld [vmem:[%s14 + $0xb4] sm:$0xf]
      %v2167 = vld [vmem:[%s14 + $0xb8] sm:$0xf]
      %v2168 = vld [vmem:[%s14 + $0xbc] sm:$0xf]
      %v2169 = vld [vmem:[%s14 + $0xc0] sm:$0xf]
      %v2170 = vld [vmem:[%s14 + $0xc4] sm:$0xf]
      %v2171 = vld [vmem:[%s14 + $0xc8] sm:$0xf]
      %v2172 = vld [vmem:[%s14 + $0xcc] sm:$0xf]
      %v2173 = vld [vmem:[%s14 + $0xd0] sm:$0xf]
      %v2174 = vld [vmem:[%s14 + $0xd4] sm:$0xf]
      %v2175 = vld [vmem:[%s14 + $0xd8] sm:$0xf]
      %v2176 = vld [vmem:[%s14 + $0xdc] sm:$0xf]
      %v2177 = vld [vmem:[%s14 + $0xe0] sm:$0xf]
      %v2178 = vld [vmem:[%s14 + $0xe4] sm:$0xf]
      %v2179 = vld [vmem:[%s14 + $0xe8] sm:$0xf]
      %v2180 = vld [vmem:[%s14 + $0xec] sm:$0xf]
      %v2181 = vld [vmem:[%s14 + $0xf0] sm:$0xf]
      %v2182 = vld [vmem:[%s14 + $0xf4] sm:$0xf]
      %v2183 = vld [vmem:[%s14 + $0xf8] sm:$0xf]
      %v2184 = vld [vmem:[%s14 + $0xfc] sm:$0xf]
      %v2185 = vld [vmem:[%s14 + $0x100] sm:$0xf]
      %v2186 = vld [vmem:[%s14 + $0x104] sm:$0xf]
      %v2187 = vld [vmem:[%s14 + $0x108] sm:$0xf]
      %v2188 = vld [vmem:[%s14 + $0x10c] sm:$0xf]
      %v2189 = vld [vmem:[%s14 + $0x110] sm:$0xf]
      %v2190 = vld [vmem:[%s14 + $0x114] sm:$0xf]
      %v2191 = vld [vmem:[%s14 + $0x118] sm:$0xf]
      %v2192 = vld [vmem:[%s14 + $0x11c] sm:$0xf]
      %v2193 = vld [vmem:[%s14 + $0x120] sm:$0xf]
      %v2194 = vld [vmem:[%s14 + $0x124] sm:$0xf]
      %v2195 = vld [vmem:[%s14 + $0x128] sm:$0xf]
      %v2196 = vld [vmem:[%s14 + $0x12c] sm:$0xf]
      %v2197 = vld [vmem:[%s14 + $0x130] sm:$0xf]
      %v2198 = vld [vmem:[%s14 + $0x134] sm:$0xf]
      %v2199 = vld [vmem:[%s14 + $0x138] sm:$0xf]
      %v2200 = vld [vmem:[%s14 + $0x13c] sm:$0xf]
      %v2201 = vld [vmem:[%s14 + $0x140] sm:$0xf]
      %v2202 = vld [vmem:[%s14 + $0x144] sm:$0xf]
      %v2203 = vld [vmem:[%s14 + $0x148] sm:$0xf]
      %v2204 = vld [vmem:[%s14 + $0x14c] sm:$0xf]
      %v2205 = vld [vmem:[%s14 + $0x150] sm:$0xf]
      %v2206 = vld [vmem:[%s14 + $0x154] sm:$0xf]
      %v2207 = vld [vmem:[%s14 + $0x158] sm:$0xf]
      %v2208 = vld [vmem:[%s14 + $0x15c] sm:$0xf]
      %v2209 = vld [vmem:[%s14 + $0x160] sm:$0xf]
      %v2210 = vld [vmem:[%s14 + $0x164] sm:$0xf]
      %v2211 = vld [vmem:[%s14 + $0x168] sm:$0xf]
      %v2212 = vld [vmem:[%s14 + $0x16c] sm:$0xf]
      %v2213 = vld [vmem:[%s14 + $0x170] sm:$0xf]
      %v2214 = vld [vmem:[%s14 + $0x174] sm:$0xf]
      %v2215 = vld [vmem:[%s14 + $0x178] sm:$0xf]
      %v2216 = vld [vmem:[%s14 + $0x17c] sm:$0xf]
      %v2217 = vld [vmem:[%s14 + $0x180] sm:$0xf]
      %v2218 = vld [vmem:[%s14 + $0x184] sm:$0xf]
      %v2219 = vld [vmem:[%s14 + $0x188] sm:$0xf]
      %v2220 = vld [vmem:[%s14 + $0x18c] sm:$0xf]
      %v2221 = vld [vmem:[%s14 + $0x190] sm:$0xf]
      %v2222 = vld [vmem:[%s14 + $0x194] sm:$0xf]
      %v2223 = vld [vmem:[%s14 + $0x198] sm:$0xf]
      %v2224 = vld [vmem:[%s14 + $0x19c] sm:$0xf]
      %v2225 = vld [vmem:[%s14 + $0x1a0] sm:$0xf]
      %v2226 = vld [vmem:[%s14 + $0x1a4] sm:$0xf]
      %v2227 = vld [vmem:[%s14 + $0x1a8] sm:$0xf]
      %v2228 = vld [vmem:[%s14 + $0x1ac] sm:$0xf]
      %v2229 = vld [vmem:[%s14 + $0x1b0] sm:$0xf]
      %v2230 = vld [vmem:[%s14 + $0x1b4] sm:$0xf]
      %v2231 = vld [vmem:[%s14 + $0x1b8] sm:$0xf]
      %v2232 = vld [vmem:[%s14 + $0x1bc] sm:$0xf]
      %v2233 = vld [vmem:[%s14 + $0x1c0] sm:$0xf]
      %v2234 = vld [vmem:[%s14 + $0x1c4] sm:$0xf]
      %v2235 = vld [vmem:[%s14 + $0x1c8] sm:$0xf]
      %v2236 = vld [vmem:[%s14 + $0x1cc] sm:$0xf]
      %v2237 = vld [vmem:[%s14 + $0x1d0] sm:$0xf]
      %v2238 = vld [vmem:[%s14 + $0x1d4] sm:$0xf]
      %v2239 = vld [vmem:[%s14 + $0x1d8] sm:$0xf]
      %v2240 = vld [vmem:[%s14 + $0x1dc] sm:$0xf]
      %v2241 = vld [vmem:[%s14 + $0x1e0] sm:$0xf]
      %v2242 = vld [vmem:[%s14 + $0x1e4] sm:$0xf]
      %v2243 = vld [vmem:[%s14 + $0x1e8] sm:$0xf]
      %v2244 = vld [vmem:[%s14 + $0x1ec] sm:$0xf]
      %v2245 = vld [vmem:[%s14 + $0x1f0] sm:$0xf]
      %v2246 = vld [vmem:[%s14 + $0x1f4] sm:$0xf]
      %v2247 = vld [vmem:[%s14 + $0x1f8] sm:$0xf]
      %v2248 = vld [vmem:[%s14 + $0x1fc] sm:$0xf]
      %v2249 = vld [vmem:[%s14 + $0x200] sm:$0xf]
      %v2250 = vld [vmem:[%s14 + $0x204] sm:$0xf]
      %v2251 = vld [vmem:[%s14 + $0x208] sm:$0xf]
      %v2252 = vld [vmem:[%s14 + $0x20c] sm:$0xf]
      %v2253 = vld [vmem:[%s14 + $0x210] sm:$0xf]
      %v2254 = vld [vmem:[%s14 + $0x214] sm:$0xf]
      %v2255 = vld [vmem:[%s14 + $0x218] sm:$0xf]
      %v2256 = vld [vmem:[%s14 + $0x21c] sm:$0xf]
      %v2257 = vld [vmem:[%s14 + $0x220] sm:$0xf]
      %v2258 = vld [vmem:[%s14 + $0x224] sm:$0xf]
      %v2259 = vld [vmem:[%s14 + $0x228] sm:$0xf]
      %v2260 = vld [vmem:[%s14 + $0x22c] sm:$0xf]
      %v2261 = vld [vmem:[%s14 + $0x230] sm:$0xf]
      %v2262 = vld [vmem:[%s14 + $0x234] sm:$0xf]
      %v2263 = vld [vmem:[%s14 + $0x238] sm:$0xf]
      %v2264 = vld [vmem:[%s14 + $0x23c] sm:$0xf]
      %v2265 = vld [vmem:[%s14 + $0x240] sm:$0xf]
      %v2266 = vld [vmem:[%s14 + $0x244] sm:$0xf]
      %v2267 = vld [vmem:[%s14 + $0x248] sm:$0xf]
      %v2268 = vld [vmem:[%s14 + $0x24c] sm:$0xf]
      %v2269 = vld [vmem:[%s14 + $0x250] sm:$0xf]
      %v2270 = vld [vmem:[%s14 + $0x254] sm:$0xf]
      %v2271 = vld [vmem:[%s14 + $0x258] sm:$0xf]
      %v2272 = vld [vmem:[%s14 + $0x25c] sm:$0xf]
      %v2273 = vld [vmem:[%s14 + $0x260] sm:$0xf]
      %v2274 = vld [vmem:[%s14 + $0x264] sm:$0xf]
      %v2275 = vld [vmem:[%s14 + $0x268] sm:$0xf]
      %v2276 = vld [vmem:[%s14 + $0x26c] sm:$0xf]
      %v2277 = vld [vmem:[%s14 + $0x270] sm:$0xf]
      %v2278 = vld [vmem:[%s14 + $0x274] sm:$0xf]
      %v2279 = vld [vmem:[%s14 + $0x278] sm:$0xf]
      %v2280 = vld [vmem:[%s14 + $0x27c] sm:$0xf]
      %v2281 = vld [vmem:[%s14 + $0x280] sm:$0xf]
      %v2282 = vld [vmem:[%s14 + $0x284] sm:$0xf]
      %v2283 = vld [vmem:[%s14 + $0x288] sm:$0xf]
      %v2284 = vld [vmem:[%s14 + $0x28c] sm:$0xf]
      %v2285 = vld [vmem:[%s14 + $0x290] sm:$0xf]
      %v2286 = vld [vmem:[%s14 + $0x294] sm:$0xf]
      %v2287 = vld [vmem:[%s14 + $0x298] sm:$0xf]
      %v2288 = vld [vmem:[%s14 + $0x29c] sm:$0xf]
      %v2289 = vld [vmem:[%s14 + $0x2a0] sm:$0xf]
      %v2290 = vld [vmem:[%s14 + $0x2a4] sm:$0xf]
      %v2291 = vld [vmem:[%s14 + $0x2a8] sm:$0xf]
      %v2292 = vld [vmem:[%s14 + $0x2ac] sm:$0xf]
      %v2293 = vld [vmem:[%s14 + $0x2b0] sm:$0xf]
      %v2294 = vld [vmem:[%s14 + $0x2b4] sm:$0xf]
      %v2295 = vld [vmem:[%s14 + $0x2b8] sm:$0xf]
      %v2296 = vld [vmem:[%s14 + $0x2bc] sm:$0xf]
      %v2297 = vld [vmem:[%s14 + $0x2c0] sm:$0xf]
      %v2298 = vld [vmem:[%s14 + $0x2c4] sm:$0xf]
      %v2299 = vld [vmem:[%s14 + $0x2c8] sm:$0xf]
      %v2300 = vld [vmem:[%s14 + $0x2cc] sm:$0xf]
      %v2301 = vld [vmem:[%s14 + $0x2d0] sm:$0xf]
      %v2302 = vld [vmem:[%s14 + $0x2d4] sm:$0xf]
      %v2303 = vld [vmem:[%s14 + $0x2d8] sm:$0xf]
      %v2304 = vld [vmem:[%s14 + $0x2dc] sm:$0xf]
      %v2305 = vld [vmem:[%s14 + $0x2e0] sm:$0xf]
      %v2306 = vld [vmem:[%s14 + $0x2e4] sm:$0xf]
      %v2307 = vld [vmem:[%s14 + $0x2e8] sm:$0xf]
      %v2308 = vld [vmem:[%s14 + $0x2ec] sm:$0xf]
      %v2309 = vld [vmem:[%s14 + $0x2f0] sm:$0xf]
      %v2310 = vld [vmem:[%s14 + $0x2f4] sm:$0xf]
      %v2311 = vld [vmem:[%s14 + $0x2f8] sm:$0xf]
      %v2312 = vld [vmem:[%s14 + $0x2fc] sm:$0xf]
      %v2313 = vld [vmem:[%s14 + $0x300] sm:$0xf]
      %v2314 = vld [vmem:[%s14 + $0x304] sm:$0xf]
      %v2315 = vld [vmem:[%s14 + $0x308] sm:$0xf]
      %v2316 = vld [vmem:[%s14 + $0x30c] sm:$0xf]
      %v2317 = vld [vmem:[%s14 + $0x310] sm:$0xf]
      %v2318 = vld [vmem:[%s14 + $0x314] sm:$0xf]
      %v2319 = vld [vmem:[%s14 + $0x318] sm:$0xf]
      %v2320 = vld [vmem:[%s14 + $0x31c] sm:$0xf]
      %v2321 = vld [vmem:[%s14 + $0x320] sm:$0xf]
      %v2322 = vld [vmem:[%s14 + $0x324] sm:$0xf]
      %v2323 = vld [vmem:[%s14 + $0x328] sm:$0xf]
      %v2324 = vld [vmem:[%s14 + $0x32c] sm:$0xf]
      %v2325 = vld [vmem:[%s14 + $0x330] sm:$0xf]
      %v2326 = vld [vmem:[%s14 + $0x334] sm:$0xf]
      %v2327 = vld [vmem:[%s14 + $0x338] sm:$0xf]
      %v2328 = vld [vmem:[%s14 + $0x33c] sm:$0xf]
      %v2329 = vld [vmem:[%s14 + $0x340] sm:$0xf]
      %v2330 = vld [vmem:[%s14 + $0x344] sm:$0xf]
      %v2331 = vld [vmem:[%s14 + $0x348] sm:$0xf]
      %v2332 = vld [vmem:[%s14 + $0x34c] sm:$0xf]
      %v2333 = vld [vmem:[%s14 + $0x350] sm:$0xf]
      %v2334 = vld [vmem:[%s14 + $0x354] sm:$0xf]
      %v2335 = vld [vmem:[%s14 + $0x358] sm:$0xf]
      %v2336 = vld [vmem:[%s14 + $0x35c] sm:$0xf]
      %v2337 = vld [vmem:[%s14 + $0x360] sm:$0xf]
      %v2338 = vld [vmem:[%s14 + $0x364] sm:$0xf]
      %v2339 = vld [vmem:[%s14 + $0x368] sm:$0xf]
      %v2340 = vld [vmem:[%s14 + $0x36c] sm:$0xf]
      %v2341 = vld [vmem:[%s14 + $0x370] sm:$0xf]
      %v2342 = vld [vmem:[%s14 + $0x374] sm:$0xf]
      %v2343 = vld [vmem:[%s14 + $0x378] sm:$0xf]
      %v2344 = vld [vmem:[%s14 + $0x37c] sm:$0xf]
      %v2345 = vld [vmem:[%s14 + $0x380] sm:$0xf]
      %v2346 = vld [vmem:[%s14 + $0x384] sm:$0xf]
      %v2347 = vld [vmem:[%s14 + $0x388] sm:$0xf]
      %v2348 = vld [vmem:[%s14 + $0x38c] sm:$0xf]
      %v2349 = vld [vmem:[%s14 + $0x390] sm:$0xf]
      %v2350 = vld [vmem:[%s14 + $0x394] sm:$0xf]
      %v2351 = vld [vmem:[%s14 + $0x398] sm:$0xf]
      %v2352 = vld [vmem:[%s14 + $0x39c] sm:$0xf]
      %v2353 = vld [vmem:[%s14 + $0x3a0] sm:$0xf]
      %v2354 = vld [vmem:[%s14 + $0x3a4] sm:$0xf]
      %v2355 = vld [vmem:[%s14 + $0x3a8] sm:$0xf]
      %v2356 = vld [vmem:[%s14 + $0x3ac] sm:$0xf]
      %v2357 = vld [vmem:[%s14 + $0x3b0] sm:$0xf]
      %v2358 = vld [vmem:[%s14 + $0x3b4] sm:$0xf]
      %v2359 = vld [vmem:[%s14 + $0x3b8] sm:$0xf]
      %v2360 = vld [vmem:[%s14 + $0x3bc] sm:$0xf]
      %v2361 = vld [vmem:[%s14 + $0x3c0] sm:$0xf]
      %v2362 = vld [vmem:[%s14 + $0x3c4] sm:$0xf]
      %v2363 = vld [vmem:[%s14 + $0x3c8] sm:$0xf]
      %v2364 = vld [vmem:[%s14 + $0x3cc] sm:$0xf]
      %v2365 = vld [vmem:[%s14 + $0x3d0] sm:$0xf]
      %v2366 = vld [vmem:[%s14 + $0x3d4] sm:$0xf]
      %v2367 = vld [vmem:[%s14 + $0x3d8] sm:$0xf]
      %v2368 = vld [vmem:[%s14 + $0x3dc] sm:$0xf]
      %v2369 = vld [vmem:[%s14 + $0x3e0] sm:$0xf]
      %v2370 = vld [vmem:[%s14 + $0x3e4] sm:$0xf]
      %v2371 = vld [vmem:[%s14 + $0x3e8] sm:$0xf]
      %v2372 = vld [vmem:[%s14 + $0x3ec] sm:$0xf]
      %v2373 = vld [vmem:[%s14 + $0x3f0] sm:$0xf]
      %v2374 = vld [vmem:[%s14 + $0x3f4] sm:$0xf]
      %v2375 = vld [vmem:[%s14 + $0x3f8] sm:$0xf]
      %v2376 = vld [vmem:[%s14 + $0x3fc] sm:$0xf]
      %v2377 = vld [vmem:[%s15] sm:$0x1]
      %v2379 = vlaneseq
      %v2380 = vshrl.u32 %v2379, 7
      %v2381 = vsub.s32 0, %v2380
      %v2382 = vrot.slane %v2377, %v2381
      %v2640 = vunpack.c.l.b16 %v2121
      %v2641 = vunpack.c.l.b16 %v2122
      %v2642 = vunpack.c.l.b16 %v2123
      %v2643 = vunpack.c.l.b16 %v2124
      %v2644 = vunpack.c.l.b16 %v2125
      %v2645 = vunpack.c.l.b16 %v2126
      %v2646 = vunpack.c.l.b16 %v2127
      %v2647 = vunpack.c.l.b16 %v2128
      %v2648 = vunpack.c.l.b16 %v2129
      %v2649 = vunpack.c.l.b16 %v2130
      %v2650 = vunpack.c.l.b16 %v2131
      %v2651 = vunpack.c.l.b16 %v2132
      %v2652 = vunpack.c.l.b16 %v2133
      %v2653 = vunpack.c.l.b16 %v2134
      %v2654 = vunpack.c.l.b16 %v2135
      %v2655 = vunpack.c.l.b16 %v2136
      %v2656 = vunpack.c.l.b16 %v2137
      %v2657 = vunpack.c.l.b16 %v2138
      %v2658 = vunpack.c.l.b16 %v2139
      %v2659 = vunpack.c.l.b16 %v2140
      %v2660 = vunpack.c.l.b16 %v2141
      %v2661 = vunpack.c.l.b16 %v2142
      %v2662 = vunpack.c.l.b16 %v2143
      %v2663 = vunpack.c.l.b16 %v2144
      %v2664 = vunpack.c.l.b16 %v2145
      %v2665 = vunpack.c.l.b16 %v2146
      %v2666 = vunpack.c.l.b16 %v2147
      %v2667 = vunpack.c.l.b16 %v2148
      %v2668 = vunpack.c.l.b16 %v2149
      %v2669 = vunpack.c.l.b16 %v2150
      %v2670 = vunpack.c.l.b16 %v2151
      %v2671 = vunpack.c.l.b16 %v2152
      %v2672 = vunpack.c.l.b16 %v2153
      %v2673 = vunpack.c.l.b16 %v2154
      %v2674 = vunpack.c.l.b16 %v2155
      %v2675 = vunpack.c.l.b16 %v2156
      %v2676 = vunpack.c.l.b16 %v2157
      %v2677 = vunpack.c.l.b16 %v2158
      %v2678 = vunpack.c.l.b16 %v2159
      %v2679 = vunpack.c.l.b16 %v2160
      %v2680 = vunpack.c.l.b16 %v2161
      %v2681 = vunpack.c.l.b16 %v2162
      %v2682 = vunpack.c.l.b16 %v2163
      %v2683 = vunpack.c.l.b16 %v2164
      %v2684 = vunpack.c.l.b16 %v2165
      %v2685 = vunpack.c.l.b16 %v2166
      %v2686 = vunpack.c.l.b16 %v2167
      %v2687 = vunpack.c.l.b16 %v2168
      %v2688 = vunpack.c.l.b16 %v2169
      %v2689 = vunpack.c.l.b16 %v2170
      %v2690 = vunpack.c.l.b16 %v2171
      %v2691 = vunpack.c.l.b16 %v2172
      %v2692 = vunpack.c.l.b16 %v2173
      %v2693 = vunpack.c.l.b16 %v2174
      %v2694 = vunpack.c.l.b16 %v2175
      %v2695 = vunpack.c.l.b16 %v2176
      %v2696 = vunpack.c.l.b16 %v2177
      %v2697 = vunpack.c.l.b16 %v2178
      %v2698 = vunpack.c.l.b16 %v2179
      %v2699 = vunpack.c.l.b16 %v2180
      %v2700 = vunpack.c.l.b16 %v2181
      %v2701 = vunpack.c.l.b16 %v2182
      %v2702 = vunpack.c.l.b16 %v2183
      %v2703 = vunpack.c.l.b16 %v2184
      %v2704 = vunpack.c.l.b16 %v2185
      %v2705 = vunpack.c.l.b16 %v2186
      %v2706 = vunpack.c.l.b16 %v2187
      %v2707 = vunpack.c.l.b16 %v2188
      %v2708 = vunpack.c.l.b16 %v2189
      %v2709 = vunpack.c.l.b16 %v2190
      %v2710 = vunpack.c.l.b16 %v2191
      %v2711 = vunpack.c.l.b16 %v2192
      %v2712 = vunpack.c.l.b16 %v2193
      %v2713 = vunpack.c.l.b16 %v2194
      %v2714 = vunpack.c.l.b16 %v2195
      %v2715 = vunpack.c.l.b16 %v2196
      %v2716 = vunpack.c.l.b16 %v2197
      %v2717 = vunpack.c.l.b16 %v2198
      %v2718 = vunpack.c.l.b16 %v2199
      %v2719 = vunpack.c.l.b16 %v2200
      %v2720 = vunpack.c.l.b16 %v2201
      %v2721 = vunpack.c.l.b16 %v2202
      %v2722 = vunpack.c.l.b16 %v2203
      %v2723 = vunpack.c.l.b16 %v2204
      %v2724 = vunpack.c.l.b16 %v2205
      %v2725 = vunpack.c.l.b16 %v2206
      %v2726 = vunpack.c.l.b16 %v2207
      %v2727 = vunpack.c.l.b16 %v2208
      %v2728 = vunpack.c.l.b16 %v2209
      %v2729 = vunpack.c.l.b16 %v2210
      %v2730 = vunpack.c.l.b16 %v2211
      %v2731 = vunpack.c.l.b16 %v2212
      %v2732 = vunpack.c.l.b16 %v2213
      %v2733 = vunpack.c.l.b16 %v2214
      %v2734 = vunpack.c.l.b16 %v2215
      %v2735 = vunpack.c.l.b16 %v2216
      %v2736 = vunpack.c.l.b16 %v2217
      %v2737 = vunpack.c.l.b16 %v2218
      %v2738 = vunpack.c.l.b16 %v2219
      %v2739 = vunpack.c.l.b16 %v2220
      %v2740 = vunpack.c.l.b16 %v2221
      %v2741 = vunpack.c.l.b16 %v2222
      %v2742 = vunpack.c.l.b16 %v2223
      %v2743 = vunpack.c.l.b16 %v2224
      %v2744 = vunpack.c.l.b16 %v2225
      %v2745 = vunpack.c.l.b16 %v2226
      %v2746 = vunpack.c.l.b16 %v2227
      %v2747 = vunpack.c.l.b16 %v2228
      %v2748 = vunpack.c.l.b16 %v2229
      %v2749 = vunpack.c.l.b16 %v2230
      %v2750 = vunpack.c.l.b16 %v2231
      %v2751 = vunpack.c.l.b16 %v2232
      %v2752 = vunpack.c.l.b16 %v2233
      %v2753 = vunpack.c.l.b16 %v2234
      %v2754 = vunpack.c.l.b16 %v2235
      %v2755 = vunpack.c.l.b16 %v2236
      %v2756 = vunpack.c.l.b16 %v2237
      %v2757 = vunpack.c.l.b16 %v2238
      %v2758 = vunpack.c.l.b16 %v2239
      %v2759 = vunpack.c.l.b16 %v2240
      %v2760 = vunpack.c.l.b16 %v2241
      %v2761 = vunpack.c.l.b16 %v2242
      %v2762 = vunpack.c.l.b16 %v2243
      %v2763 = vunpack.c.l.b16 %v2244
      %v2764 = vunpack.c.l.b16 %v2245
      %v2765 = vunpack.c.l.b16 %v2246
      %v2766 = vunpack.c.l.b16 %v2247
      %v2767 = vunpack.c.l.b16 %v2248
      %v2768 = vunpack.c.l.b16 %v2249
      %v2769 = vunpack.c.l.b16 %v2250
      %v2770 = vunpack.c.l.b16 %v2251
      %v2771 = vunpack.c.l.b16 %v2252
      %v2772 = vunpack.c.l.b16 %v2253
      %v2773 = vunpack.c.l.b16 %v2254
      %v2774 = vunpack.c.l.b16 %v2255
      %v2775 = vunpack.c.l.b16 %v2256
      %v2776 = vunpack.c.l.b16 %v2257
      %v2777 = vunpack.c.l.b16 %v2258
      %v2778 = vunpack.c.l.b16 %v2259
      %v2779 = vunpack.c.l.b16 %v2260
      %v2780 = vunpack.c.l.b16 %v2261
      %v2781 = vunpack.c.l.b16 %v2262
      %v2782 = vunpack.c.l.b16 %v2263
      %v2783 = vunpack.c.l.b16 %v2264
      %v2784 = vunpack.c.l.b16 %v2265
      %v2785 = vunpack.c.l.b16 %v2266
      %v2786 = vunpack.c.l.b16 %v2267
      %v2787 = vunpack.c.l.b16 %v2268
      %v2788 = vunpack.c.l.b16 %v2269
      %v2789 = vunpack.c.l.b16 %v2270
      %v2790 = vunpack.c.l.b16 %v2271
      %v2791 = vunpack.c.l.b16 %v2272
      %v2792 = vunpack.c.l.b16 %v2273
      %v2793 = vunpack.c.l.b16 %v2274
      %v2794 = vunpack.c.l.b16 %v2275
      %v2795 = vunpack.c.l.b16 %v2276
      %v2796 = vunpack.c.l.b16 %v2277
      %v2797 = vunpack.c.l.b16 %v2278
      %v2798 = vunpack.c.l.b16 %v2279
      %v2799 = vunpack.c.l.b16 %v2280
      %v2800 = vunpack.c.l.b16 %v2281
      %v2801 = vunpack.c.l.b16 %v2282
      %v2802 = vunpack.c.l.b16 %v2283
      %v2803 = vunpack.c.l.b16 %v2284
      %v2804 = vunpack.c.l.b16 %v2285
      %v2805 = vunpack.c.l.b16 %v2286
      %v2806 = vunpack.c.l.b16 %v2287
      %v2807 = vunpack.c.l.b16 %v2288
      %v2808 = vunpack.c.l.b16 %v2289
      %v2809 = vunpack.c.l.b16 %v2290
      %v2810 = vunpack.c.l.b16 %v2291
      %v2811 = vunpack.c.l.b16 %v2292
      %v2812 = vunpack.c.l.b16 %v2293
      %v2813 = vunpack.c.l.b16 %v2294
      %v2814 = vunpack.c.l.b16 %v2295
      %v2815 = vunpack.c.l.b16 %v2296
      %v2816 = vunpack.c.l.b16 %v2297
      %v2817 = vunpack.c.l.b16 %v2298
      %v2818 = vunpack.c.l.b16 %v2299
      %v2819 = vunpack.c.l.b16 %v2300
      %v2820 = vunpack.c.l.b16 %v2301
      %v2821 = vunpack.c.l.b16 %v2302
      %v2822 = vunpack.c.l.b16 %v2303
      %v2823 = vunpack.c.l.b16 %v2304
      %v2824 = vunpack.c.l.b16 %v2305
      %v2825 = vunpack.c.l.b16 %v2306
      %v2826 = vunpack.c.l.b16 %v2307
      %v2827 = vunpack.c.l.b16 %v2308
      %v2828 = vunpack.c.l.b16 %v2309
      %v2829 = vunpack.c.l.b16 %v2310
      %v2830 = vunpack.c.l.b16 %v2311
      %v2831 = vunpack.c.l.b16 %v2312
      %v2832 = vunpack.c.l.b16 %v2313
      %v2833 = vunpack.c.l.b16 %v2314
      %v2834 = vunpack.c.l.b16 %v2315
      %v2835 = vunpack.c.l.b16 %v2316
      %v2836 = vunpack.c.l.b16 %v2317
      %v2837 = vunpack.c.l.b16 %v2318
      %v2838 = vunpack.c.l.b16 %v2319
      %v2839 = vunpack.c.l.b16 %v2320
      %v2840 = vunpack.c.l.b16 %v2321
      %v2841 = vunpack.c.l.b16 %v2322
      %v2842 = vunpack.c.l.b16 %v2323
      %v2843 = vunpack.c.l.b16 %v2324
      %v2844 = vunpack.c.l.b16 %v2325
      %v2845 = vunpack.c.l.b16 %v2326
      %v2846 = vunpack.c.l.b16 %v2327
      %v2847 = vunpack.c.l.b16 %v2328
      %v2848 = vunpack.c.l.b16 %v2329
      %v2849 = vunpack.c.l.b16 %v2330
      %v2850 = vunpack.c.l.b16 %v2331
      %v2851 = vunpack.c.l.b16 %v2332
      %v2852 = vunpack.c.l.b16 %v2333
      %v2853 = vunpack.c.l.b16 %v2334
      %v2854 = vunpack.c.l.b16 %v2335
      %v2855 = vunpack.c.l.b16 %v2336
      %v2856 = vunpack.c.l.b16 %v2337
      %v2857 = vunpack.c.l.b16 %v2338
      %v2858 = vunpack.c.l.b16 %v2339
      %v2859 = vunpack.c.l.b16 %v2340
      %v2860 = vunpack.c.l.b16 %v2341
      %v2861 = vunpack.c.l.b16 %v2342
      %v2862 = vunpack.c.l.b16 %v2343
      %v2863 = vunpack.c.l.b16 %v2344
      %v2864 = vunpack.c.l.b16 %v2345
      %v2865 = vunpack.c.l.b16 %v2346
      %v2866 = vunpack.c.l.b16 %v2347
      %v2867 = vunpack.c.l.b16 %v2348
      %v2868 = vunpack.c.l.b16 %v2349
      %v2869 = vunpack.c.l.b16 %v2350
      %v2870 = vunpack.c.l.b16 %v2351
      %v2871 = vunpack.c.l.b16 %v2352
      %v2872 = vunpack.c.l.b16 %v2353
      %v2873 = vunpack.c.l.b16 %v2354
      %v2874 = vunpack.c.l.b16 %v2355
      %v2875 = vunpack.c.l.b16 %v2356
      %v2876 = vunpack.c.l.b16 %v2357
      %v2877 = vunpack.c.l.b16 %v2358
      %v2878 = vunpack.c.l.b16 %v2359
      %v2879 = vunpack.c.l.b16 %v2360
      %v2880 = vunpack.c.l.b16 %v2361
      %v2881 = vunpack.c.l.b16 %v2362
      %v2882 = vunpack.c.l.b16 %v2363
      %v2883 = vunpack.c.l.b16 %v2364
      %v2884 = vunpack.c.l.b16 %v2365
      %v2885 = vunpack.c.l.b16 %v2366
      %v2886 = vunpack.c.l.b16 %v2367
      %v2887 = vunpack.c.l.b16 %v2368
      %v2888 = vunpack.c.l.b16 %v2369
      %v2889 = vunpack.c.l.b16 %v2370
      %v2890 = vunpack.c.l.b16 %v2371
      %v2891 = vunpack.c.l.b16 %v2372
      %v2892 = vunpack.c.l.b16 %v2373
      %v2893 = vunpack.c.l.b16 %v2374
      %v2894 = vunpack.c.l.b16 %v2375
      %v2895 = vunpack.c.l.b16 %v2376
      %v2896 = vpack.c.b16 %v2641, %v2640
      %v2897 = vpack.c.b16 %v2643, %v2642
      %v2898 = vpack.c.b16 %v2645, %v2644
      %v2899 = vpack.c.b16 %v2647, %v2646
      %v2900 = vpack.c.b16 %v2649, %v2648
      %v2901 = vpack.c.b16 %v2651, %v2650
      %v2902 = vpack.c.b16 %v2653, %v2652
      %v2903 = vpack.c.b16 %v2655, %v2654
      %v2904 = vpack.c.b16 %v2657, %v2656
      %v2905 = vpack.c.b16 %v2659, %v2658
      %v2906 = vpack.c.b16 %v2661, %v2660
      %v2907 = vpack.c.b16 %v2663, %v2662
      %v2908 = vpack.c.b16 %v2665, %v2664
      %v2909 = vpack.c.b16 %v2667, %v2666
      %v2910 = vpack.c.b16 %v2669, %v2668
      %v2911 = vpack.c.b16 %v2671, %v2670
      %v2912 = vpack.c.b16 %v2673, %v2672
      %v2913 = vpack.c.b16 %v2675, %v2674
      %v2914 = vpack.c.b16 %v2677, %v2676
      %v2915 = vpack.c.b16 %v2679, %v2678
      %v2916 = vpack.c.b16 %v2681, %v2680
      %v2917 = vpack.c.b16 %v2683, %v2682
      %v2918 = vpack.c.b16 %v2685, %v2684
      %v2919 = vpack.c.b16 %v2687, %v2686
      %v2920 = vpack.c.b16 %v2689, %v2688
      %v2921 = vpack.c.b16 %v2691, %v2690
      %v2922 = vpack.c.b16 %v2693, %v2692
      %v2923 = vpack.c.b16 %v2695, %v2694
      %v2924 = vpack.c.b16 %v2697, %v2696
      %v2925 = vpack.c.b16 %v2699, %v2698
      %v2926 = vpack.c.b16 %v2701, %v2700
      %v2927 = vpack.c.b16 %v2703, %v2702
      %v2928 = vpack.c.b16 %v2705, %v2704
      %v2929 = vpack.c.b16 %v2707, %v2706
      %v2930 = vpack.c.b16 %v2709, %v2708
      %v2931 = vpack.c.b16 %v2711, %v2710
      %v2932 = vpack.c.b16 %v2713, %v2712
      %v2933 = vpack.c.b16 %v2715, %v2714
      %v2934 = vpack.c.b16 %v2717, %v2716
      %v2935 = vpack.c.b16 %v2719, %v2718
      %v2936 = vpack.c.b16 %v2721, %v2720
      %v2937 = vpack.c.b16 %v2723, %v2722
      %v2938 = vpack.c.b16 %v2725, %v2724
      %v2939 = vpack.c.b16 %v2727, %v2726
      %v2940 = vpack.c.b16 %v2729, %v2728
      %v2941 = vpack.c.b16 %v2731, %v2730
      %v2942 = vpack.c.b16 %v2733, %v2732
      %v2943 = vpack.c.b16 %v2735, %v2734
      %v2944 = vpack.c.b16 %v2737, %v2736
      %v2945 = vpack.c.b16 %v2739, %v2738
      %v2946 = vpack.c.b16 %v2741, %v2740
      %v2947 = vpack.c.b16 %v2743, %v2742
      %v2948 = vpack.c.b16 %v2745, %v2744
      %v2949 = vpack.c.b16 %v2747, %v2746
      %v2950 = vpack.c.b16 %v2749, %v2748
      %v2951 = vpack.c.b16 %v2751, %v2750
      %v2952 = vpack.c.b16 %v2753, %v2752
      %v2953 = vpack.c.b16 %v2755, %v2754
      %v2954 = vpack.c.b16 %v2757, %v2756
      %v2955 = vpack.c.b16 %v2759, %v2758
      %v2956 = vpack.c.b16 %v2761, %v2760
      %v2957 = vpack.c.b16 %v2763, %v2762
      %v2958 = vpack.c.b16 %v2765, %v2764
      %v2959 = vpack.c.b16 %v2767, %v2766
      %v2960 = vpack.c.b16 %v2769, %v2768
      %v2961 = vpack.c.b16 %v2771, %v2770
      %v2962 = vpack.c.b16 %v2773, %v2772
      %v2963 = vpack.c.b16 %v2775, %v2774
      %v2964 = vpack.c.b16 %v2777, %v2776
      %v2965 = vpack.c.b16 %v2779, %v2778
      %v2966 = vpack.c.b16 %v2781, %v2780
      %v2967 = vpack.c.b16 %v2783, %v2782
      %v2968 = vpack.c.b16 %v2785, %v2784
      %v2969 = vpack.c.b16 %v2787, %v2786
      %v2970 = vpack.c.b16 %v2789, %v2788
      %v2971 = vpack.c.b16 %v2791, %v2790
      %v2972 = vpack.c.b16 %v2793, %v2792
      %v2973 = vpack.c.b16 %v2795, %v2794
      %v2974 = vpack.c.b16 %v2797, %v2796
      %v2975 = vpack.c.b16 %v2799, %v2798
      %v2976 = vpack.c.b16 %v2801, %v2800
      %v2977 = vpack.c.b16 %v2803, %v2802
      %v2978 = vpack.c.b16 %v2805, %v2804
      %v2979 = vpack.c.b16 %v2807, %v2806
      %v2980 = vpack.c.b16 %v2809, %v2808
      %v2981 = vpack.c.b16 %v2811, %v2810
      %v2982 = vpack.c.b16 %v2813, %v2812
      %v2983 = vpack.c.b16 %v2815, %v2814
      %v2984 = vpack.c.b16 %v2817, %v2816
      %v2985 = vpack.c.b16 %v2819, %v2818
      %v2986 = vpack.c.b16 %v2821, %v2820
      %v2987 = vpack.c.b16 %v2823, %v2822
      %v2988 = vpack.c.b16 %v2825, %v2824
      %v2989 = vpack.c.b16 %v2827, %v2826
      %v2990 = vpack.c.b16 %v2829, %v2828
      %v2991 = vpack.c.b16 %v2831, %v2830
      %v2992 = vpack.c.b16 %v2833, %v2832
      %v2993 = vpack.c.b16 %v2835, %v2834
      %v2994 = vpack.c.b16 %v2837, %v2836
      %v2995 = vpack.c.b16 %v2839, %v2838
      %v2996 = vpack.c.b16 %v2841, %v2840
      %v2997 = vpack.c.b16 %v2843, %v2842
      %v2998 = vpack.c.b16 %v2845, %v2844
      %v2999 = vpack.c.b16 %v2847, %v2846
      %v3000 = vpack.c.b16 %v2849, %v2848
      %v3001 = vpack.c.b16 %v2851, %v2850
      %v3002 = vpack.c.b16 %v2853, %v2852
      %v3003 = vpack.c.b16 %v2855, %v2854
      %v3004 = vpack.c.b16 %v2857, %v2856
      %v3005 = vpack.c.b16 %v2859, %v2858
      %v3006 = vpack.c.b16 %v2861, %v2860
      %v3007 = vpack.c.b16 %v2863, %v2862
      %v3008 = vpack.c.b16 %v2865, %v2864
      %v3009 = vpack.c.b16 %v2867, %v2866
      %v3010 = vpack.c.b16 %v2869, %v2868
      %v3011 = vpack.c.b16 %v2871, %v2870
      %v3012 = vpack.c.b16 %v2873, %v2872
      %v3013 = vpack.c.b16 %v2875, %v2874
      %v3014 = vpack.c.b16 %v2877, %v2876
      %v3015 = vpack.c.b16 %v2879, %v2878
      %v3016 = vpack.c.b16 %v2881, %v2880
      %v3017 = vpack.c.b16 %v2883, %v2882
      %v3018 = vpack.c.b16 %v2885, %v2884
      %v3019 = vpack.c.b16 %v2887, %v2886
      %v3020 = vpack.c.b16 %v2889, %v2888
      %v3021 = vpack.c.b16 %v2891, %v2890
      %v3022 = vpack.c.b16 %v2893, %v2892
      %v3023 = vpack.c.b16 %v2895, %v2894
      %3152 = vmatprep.subr.bf16.mxu0 0
      %3153 = vmatpush1.bf16.msra.mxu0 %v2903
      %3154 = vmatprep.subr.bf16.mxu0 0
      %3155 = vmatpush1.bf16.msra.mxu0 %v2902
      %3156 = vmatprep.subr.bf16.mxu0 0
      %3157 = vmatpush1.bf16.msra.mxu0 %v2901
      %3158 = vmatprep.subr.bf16.mxu0 0
      %3159 = vmatpush1.bf16.msra.mxu0 %v2900
      %3160 = vmatprep.subr.bf16.mxu0 0
      %3161 = vmatpush1.bf16.msra.mxu0 %v2899
      %3162 = vmatprep.subr.bf16.mxu0 0
      %3163 = vmatpush1.bf16.msra.mxu0 %v2898
      %3164 = vmatprep.subr.bf16.mxu0 0
      %3165 = vmatpush1.bf16.msra.mxu0 %v2897
      %3166 = vmatprep.subr.bf16.mxu0 0
      %3167 = vmatpush1.bf16.msra.mxu0 %v2896
      %3168 = vmatprep.subr.bf16.mxu0 0
      %3169 = vmatpush2.bf16.msra.mxu0 %v2911
      %3170 = vmatprep.subr.bf16.mxu0 0
      %3171 = vmatpush2.bf16.msra.mxu0 %v2910
      %3172 = vmatprep.subr.bf16.mxu0 0
      %3173 = vmatpush2.bf16.msra.mxu0 %v2909
      %3174 = vmatprep.subr.bf16.mxu0 0
      %3175 = vmatpush2.bf16.msra.mxu0 %v2908
      %3176 = vmatprep.subr.bf16.mxu0 0
      %3177 = vmatpush2.bf16.msra.mxu0 %v2907
      %3178 = vmatprep.subr.bf16.mxu0 0
      %3179 = vmatpush2.bf16.msra.mxu0 %v2906
      %3180 = vmatprep.subr.bf16.mxu0 0
      %3181 = vmatpush2.bf16.msra.mxu0 %v2905
      %3182 = vmatprep.subr.bf16.mxu0 0
      %3183 = vmatpush2.bf16.msra.mxu0 %v2904
      %3184 = vmatprep.mubr.bf16.mxu0 %v2106
      %3185 = vmatmul.mubr.bf16.gmra.mxu0 %v2105
      %v3186 = vpop.f32.mrf.mxu0
      %v3187 = vadd.f32 %v2382, %v3186
      %v3188 = vpop.f32.mrf.mxu0
      %v3189 = vpop.f32.mrf.mxu0
      %v3190 = vpop.f32.mrf.mxu0
      %3191 = vdwg.mxu0
      %3192 = vmatprep.subr.bf16.mxu0 0
      %3193 = vmatpush1.bf16.msra.mxu0 %v2919
      %3194 = vmatprep.subr.bf16.mxu0 0
      %3195 = vmatpush1.bf16.msra.mxu0 %v2918
      %3196 = vmatprep.subr.bf16.mxu0 0
      %3197 = vmatpush1.bf16.msra.mxu0 %v2917
      %3198 = vmatprep.subr.bf16.mxu0 0
      %3199 = vmatpush1.bf16.msra.mxu0 %v2916
      %3200 = vmatprep.subr.bf16.mxu0 0
      %3201 = vmatpush1.bf16.msra.mxu0 %v2915
      %3202 = vmatprep.subr.bf16.mxu0 0
      %3203 = vmatpush1.bf16.msra.mxu0 %v2914
      %3204 = vmatprep.subr.bf16.mxu0 0
      %3205 = vmatpush1.bf16.msra.mxu0 %v2913
      %3206 = vmatprep.subr.bf16.mxu0 0
      %3207 = vmatpush1.bf16.msra.mxu0 %v2912
      %3208 = vmatprep.subr.bf16.mxu0 0
      %3209 = vmatpush2.bf16.msra.mxu0 %v2927
      %3210 = vmatprep.subr.bf16.mxu0 0
      %3211 = vmatpush2.bf16.msra.mxu0 %v2926
      %3212 = vmatprep.subr.bf16.mxu0 0
      %3213 = vmatpush2.bf16.msra.mxu0 %v2925
      %3214 = vmatprep.subr.bf16.mxu0 0
      %3215 = vmatpush2.bf16.msra.mxu0 %v2924
      %3216 = vmatprep.subr.bf16.mxu0 0
      %3217 = vmatpush2.bf16.msra.mxu0 %v2923
      %3218 = vmatprep.subr.bf16.mxu0 0
      %3219 = vmatpush2.bf16.msra.mxu0 %v2922
      %3220 = vmatprep.subr.bf16.mxu0 0
      %3221 = vmatpush2.bf16.msra.mxu0 %v2921
      %3222 = vmatprep.subr.bf16.mxu0 0
      %3223 = vmatpush2.bf16.msra.mxu0 %v2920
      %3224 = vmatprep.mubr.bf16.mxu0 %v2108
      %3225 = vmatmul.mubr.bf16.gmra.mxu0 %v2107
      %v3226 = vpop.f32.mrf.mxu0
      %v3227 = vadd.f32 %v3187, %v3226
      %v3228 = vpop.f32.mrf.mxu0
      %v3229 = vpop.f32.mrf.mxu0
      %v3230 = vpop.f32.mrf.mxu0
      %3231 = vdwg.mxu0
      %3232 = vmatprep.subr.bf16.mxu0 0
      %3233 = vmatpush1.bf16.msra.mxu0 %v2935
      %3234 = vmatprep.subr.bf16.mxu0 0
      %3235 = vmatpush1.bf16.msra.mxu0 %v2934
      %3236 = vmatprep.subr.bf16.mxu0 0
      %3237 = vmatpush1.bf16.msra.mxu0 %v2933
      %3238 = vmatprep.subr.bf16.mxu0 0
      %3239 = vmatpush1.bf16.msra.mxu0 %v2932
      %3240 = vmatprep.subr.bf16.mxu0 0
      %3241 = vmatpush1.bf16.msra.mxu0 %v2931
      %3242 = vmatprep.subr.bf16.mxu0 0
      %3243 = vmatpush1.bf16.msra.mxu0 %v2930
      %3244 = vmatprep.subr.bf16.mxu0 0
      %3245 = vmatpush1.bf16.msra.mxu0 %v2929
      %3246 = vmatprep.subr.bf16.mxu0 0
      %3247 = vmatpush1.bf16.msra.mxu0 %v2928
      %3248 = vmatprep.subr.bf16.mxu0 0
      %3249 = vmatpush2.bf16.msra.mxu0 %v2943
      %3250 = vmatprep.subr.bf16.mxu0 0
      %3251 = vmatpush2.bf16.msra.mxu0 %v2942
      %3252 = vmatprep.subr.bf16.mxu0 0
      %3253 = vmatpush2.bf16.msra.mxu0 %v2941
      %3254 = vmatprep.subr.bf16.mxu0 0
      %3255 = vmatpush2.bf16.msra.mxu0 %v2940
      %3256 = vmatprep.subr.bf16.mxu0 0
      %3257 = vmatpush2.bf16.msra.mxu0 %v2939
      %3258 = vmatprep.subr.bf16.mxu0 0
      %3259 = vmatpush2.bf16.msra.mxu0 %v2938
      %3260 = vmatprep.subr.bf16.mxu0 0
      %3261 = vmatpush2.bf16.msra.mxu0 %v2937
      %3262 = vmatprep.subr.bf16.mxu0 0
      %3263 = vmatpush2.bf16.msra.mxu0 %v2936
      %3264 = vmatprep.mubr.bf16.mxu0 %v2110
      %3265 = vmatmul.mubr.bf16.gmra.mxu0 %v2109
      %v3266 = vpop.f32.mrf.mxu0
      %v3267 = vadd.f32 %v3227, %v3266
      %v3268 = vpop.f32.mrf.mxu0
      %v3269 = vpop.f32.mrf.mxu0
      %v3270 = vpop.f32.mrf.mxu0
      %3271 = vdwg.mxu0
      %3272 = vmatprep.subr.bf16.mxu0 0
      %3273 = vmatpush1.bf16.msra.mxu0 %v2951
      %3274 = vmatprep.subr.bf16.mxu0 0
      %3275 = vmatpush1.bf16.msra.mxu0 %v2950
      %3276 = vmatprep.subr.bf16.mxu0 0
      %3277 = vmatpush1.bf16.msra.mxu0 %v2949
      %3278 = vmatprep.subr.bf16.mxu0 0
      %3279 = vmatpush1.bf16.msra.mxu0 %v2948
      %3280 = vmatprep.subr.bf16.mxu0 0
      %3281 = vmatpush1.bf16.msra.mxu0 %v2947
      %3282 = vmatprep.subr.bf16.mxu0 0
      %3283 = vmatpush1.bf16.msra.mxu0 %v2946
      %3284 = vmatprep.subr.bf16.mxu0 0
      %3285 = vmatpush1.bf16.msra.mxu0 %v2945
      %3286 = vmatprep.subr.bf16.mxu0 0
      %3287 = vmatpush1.bf16.msra.mxu0 %v2944
      %3288 = vmatprep.subr.bf16.mxu0 0
      %3289 = vmatpush2.bf16.msra.mxu0 %v2959
      %3290 = vmatprep.subr.bf16.mxu0 0
      %3291 = vmatpush2.bf16.msra.mxu0 %v2958
      %3292 = vmatprep.subr.bf16.mxu0 0
      %3293 = vmatpush2.bf16.msra.mxu0 %v2957
      %3294 = vmatprep.subr.bf16.mxu0 0
      %3295 = vmatpush2.bf16.msra.mxu0 %v2956
      %3296 = vmatprep.subr.bf16.mxu0 0
      %3297 = vmatpush2.bf16.msra.mxu0 %v2955
      %3298 = vmatprep.subr.bf16.mxu0 0
      %3299 = vmatpush2.bf16.msra.mxu0 %v2954
      %3300 = vmatprep.subr.bf16.mxu0 0
      %3301 = vmatpush2.bf16.msra.mxu0 %v2953
      %3302 = vmatprep.subr.bf16.mxu0 0
      %3303 = vmatpush2.bf16.msra.mxu0 %v2952
      %3304 = vmatprep.mubr.bf16.mxu0 %v2112
      %3305 = vmatmul.mubr.bf16.gmra.mxu0 %v2111
      %v3306 = vpop.f32.mrf.mxu0
      %v3307 = vadd.f32 %v3267, %v3306
      %v3308 = vpop.f32.mrf.mxu0
      %v3309 = vpop.f32.mrf.mxu0
      %v3310 = vpop.f32.mrf.mxu0
      %3311 = vdwg.mxu0
      %3312 = vmatprep.subr.bf16.mxu0 0
      %3313 = vmatpush1.bf16.msra.mxu0 %v2967
      %3314 = vmatprep.subr.bf16.mxu0 0
      %3315 = vmatpush1.bf16.msra.mxu0 %v2966
      %3316 = vmatprep.subr.bf16.mxu0 0
      %3317 = vmatpush1.bf16.msra.mxu0 %v2965
      %3318 = vmatprep.subr.bf16.mxu0 0
      %3319 = vmatpush1.bf16.msra.mxu0 %v2964
      %3320 = vmatprep.subr.bf16.mxu0 0
      %3321 = vmatpush1.bf16.msra.mxu0 %v2963
      %3322 = vmatprep.subr.bf16.mxu0 0
      %3323 = vmatpush1.bf16.msra.mxu0 %v2962
      %3324 = vmatprep.subr.bf16.mxu0 0
      %3325 = vmatpush1.bf16.msra.mxu0 %v2961
      %3326 = vmatprep.subr.bf16.mxu0 0
      %3327 = vmatpush1.bf16.msra.mxu0 %v2960
      %3328 = vmatprep.subr.bf16.mxu0 0
      %3329 = vmatpush2.bf16.msra.mxu0 %v2975
      %3330 = vmatprep.subr.bf16.mxu0 0
      %3331 = vmatpush2.bf16.msra.mxu0 %v2974
      %3332 = vmatprep.subr.bf16.mxu0 0
      %3333 = vmatpush2.bf16.msra.mxu0 %v2973
      %3334 = vmatprep.subr.bf16.mxu0 0
      %3335 = vmatpush2.bf16.msra.mxu0 %v2972
      %3336 = vmatprep.subr.bf16.mxu0 0
      %3337 = vmatpush2.bf16.msra.mxu0 %v2971
      %3338 = vmatprep.subr.bf16.mxu0 0
      %3339 = vmatpush2.bf16.msra.mxu0 %v2970
      %3340 = vmatprep.subr.bf16.mxu0 0
      %3341 = vmatpush2.bf16.msra.mxu0 %v2969
      %3342 = vmatprep.subr.bf16.mxu0 0
      %3343 = vmatpush2.bf16.msra.mxu0 %v2968
      %3344 = vmatprep.mubr.bf16.mxu0 %v2114
      %3345 = vmatmul.mubr.bf16.gmra.mxu0 %v2113
      %v3346 = vpop.f32.mrf.mxu0
      %v3347 = vadd.f32 %v3307, %v3346
      %v3348 = vpop.f32.mrf.mxu0
      %v3349 = vpop.f32.mrf.mxu0
      %v3350 = vpop.f32.mrf.mxu0
      %3351 = vdwg.mxu0
      %3352 = vmatprep.subr.bf16.mxu0 0
      %3353 = vmatpush1.bf16.msra.mxu0 %v2983
      %3354 = vmatprep.subr.bf16.mxu0 0
      %3355 = vmatpush1.bf16.msra.mxu0 %v2982
      %3356 = vmatprep.subr.bf16.mxu0 0
      %3357 = vmatpush1.bf16.msra.mxu0 %v2981
      %3358 = vmatprep.subr.bf16.mxu0 0
      %3359 = vmatpush1.bf16.msra.mxu0 %v2980
      %3360 = vmatprep.subr.bf16.mxu0 0
      %3361 = vmatpush1.bf16.msra.mxu0 %v2979
      %3362 = vmatprep.subr.bf16.mxu0 0
      %3363 = vmatpush1.bf16.msra.mxu0 %v2978
      %3364 = vmatprep.subr.bf16.mxu0 0
      %3365 = vmatpush1.bf16.msra.mxu0 %v2977
      %3366 = vmatprep.subr.bf16.mxu0 0
      %3367 = vmatpush1.bf16.msra.mxu0 %v2976
      %3368 = vmatprep.subr.bf16.mxu0 0
      %3369 = vmatpush2.bf16.msra.mxu0 %v2991
      %3370 = vmatprep.subr.bf16.mxu0 0
      %3371 = vmatpush2.bf16.msra.mxu0 %v2990
      %3372 = vmatprep.subr.bf16.mxu0 0
      %3373 = vmatpush2.bf16.msra.mxu0 %v2989
      %3374 = vmatprep.subr.bf16.mxu0 0
      %3375 = vmatpush2.bf16.msra.mxu0 %v2988
      %3376 = vmatprep.subr.bf16.mxu0 0
      %3377 = vmatpush2.bf16.msra.mxu0 %v2987
      %3378 = vmatprep.subr.bf16.mxu0 0
      %3379 = vmatpush2.bf16.msra.mxu0 %v2986
      %3380 = vmatprep.subr.bf16.mxu0 0
      %3381 = vmatpush2.bf16.msra.mxu0 %v2985
      %3382 = vmatprep.subr.bf16.mxu0 0
      %3383 = vmatpush2.bf16.msra.mxu0 %v2984
      %3384 = vmatprep.mubr.bf16.mxu0 %v2116
      %3385 = vmatmul.mubr.bf16.gmra.mxu0 %v2115
      %v3386 = vpop.f32.mrf.mxu0
      %v3387 = vadd.f32 %v3347, %v3386
      %v3388 = vpop.f32.mrf.mxu0
      %v3389 = vpop.f32.mrf.mxu0
      %v3390 = vpop.f32.mrf.mxu0
      %3391 = vdwg.mxu0
      %3392 = vmatprep.subr.bf16.mxu0 0
      %3393 = vmatpush1.bf16.msra.mxu0 %v2999
      %3394 = vmatprep.subr.bf16.mxu0 0
      %3395 = vmatpush1.bf16.msra.mxu0 %v2998
      %3396 = vmatprep.subr.bf16.mxu0 0
      %3397 = vmatpush1.bf16.msra.mxu0 %v2997
      %3398 = vmatprep.subr.bf16.mxu0 0
      %3399 = vmatpush1.bf16.msra.mxu0 %v2996
      %3400 = vmatprep.subr.bf16.mxu0 0
      %3401 = vmatpush1.bf16.msra.mxu0 %v2995
      %3402 = vmatprep.subr.bf16.mxu0 0
      %3403 = vmatpush1.bf16.msra.mxu0 %v2994
      %3404 = vmatprep.subr.bf16.mxu0 0
      %3405 = vmatpush1.bf16.msra.mxu0 %v2993
      %3406 = vmatprep.subr.bf16.mxu0 0
      %3407 = vmatpush1.bf16.msra.mxu0 %v2992
      %3408 = vmatprep.subr.bf16.mxu0 0
      %3409 = vmatpush2.bf16.msra.mxu0 %v3007
      %3410 = vmatprep.subr.bf16.mxu0 0
      %3411 = vmatpush2.bf16.msra.mxu0 %v3006
      %3412 = vmatprep.subr.bf16.mxu0 0
      %3413 = vmatpush2.bf16.msra.mxu0 %v3005
      %3414 = vmatprep.subr.bf16.mxu0 0
      %3415 = vmatpush2.bf16.msra.mxu0 %v3004
      %3416 = vmatprep.subr.bf16.mxu0 0
      %3417 = vmatpush2.bf16.msra.mxu0 %v3003
      %3418 = vmatprep.subr.bf16.mxu0 0
      %3419 = vmatpush2.bf16.msra.mxu0 %v3002
      %3420 = vmatprep.subr.bf16.mxu0 0
      %3421 = vmatpush2.bf16.msra.mxu0 %v3001
      %3422 = vmatprep.subr.bf16.mxu0 0
      %3423 = vmatpush2.bf16.msra.mxu0 %v3000
      %3424 = vmatprep.mubr.bf16.mxu0 %v2118
      %3425 = vmatmul.mubr.bf16.gmra.mxu0 %v2117
      %v3426 = vpop.f32.mrf.mxu0
      %v3427 = vadd.f32 %v3387, %v3426
      %v3428 = vpop.f32.mrf.mxu0
      %v3429 = vpop.f32.mrf.mxu0
      %v3430 = vpop.f32.mrf.mxu0
      %3431 = vdwg.mxu0
      %3432 = vmatprep.subr.bf16.mxu0 0
      %3433 = vmatpush1.bf16.msra.mxu0 %v3015
      %3434 = vmatprep.subr.bf16.mxu0 0
      %3435 = vmatpush1.bf16.msra.mxu0 %v3014
      %3436 = vmatprep.subr.bf16.mxu0 0
      %3437 = vmatpush1.bf16.msra.mxu0 %v3013
      %3438 = vmatprep.subr.bf16.mxu0 0
      %3439 = vmatpush1.bf16.msra.mxu0 %v3012
      %3440 = vmatprep.subr.bf16.mxu0 0
      %3441 = vmatpush1.bf16.msra.mxu0 %v3011
      %3442 = vmatprep.subr.bf16.mxu0 0
      %3443 = vmatpush1.bf16.msra.mxu0 %v3010
      %3444 = vmatprep.subr.bf16.mxu0 0
      %3445 = vmatpush1.bf16.msra.mxu0 %v3009
      %3446 = vmatprep.subr.bf16.mxu0 0
      %3447 = vmatpush1.bf16.msra.mxu0 %v3008
      %3448 = vmatprep.subr.bf16.mxu0 0
      %3449 = vmatpush2.bf16.msra.mxu0 %v3023
      %3450 = vmatprep.subr.bf16.mxu0 0
      %3451 = vmatpush2.bf16.msra.mxu0 %v3022
      %3452 = vmatprep.subr.bf16.mxu0 0
      %3453 = vmatpush2.bf16.msra.mxu0 %v3021
      %3454 = vmatprep.subr.bf16.mxu0 0
      %3455 = vmatpush2.bf16.msra.mxu0 %v3020
      %3456 = vmatprep.subr.bf16.mxu0 0
      %3457 = vmatpush2.bf16.msra.mxu0 %v3019
      %3458 = vmatprep.subr.bf16.mxu0 0
      %3459 = vmatpush2.bf16.msra.mxu0 %v3018
      %3460 = vmatprep.subr.bf16.mxu0 0
      %3461 = vmatpush2.bf16.msra.mxu0 %v3017
      %3462 = vmatprep.subr.bf16.mxu0 0
      %3463 = vmatpush2.bf16.msra.mxu0 %v3016
      %3464 = vmatprep.mubr.bf16.mxu0 %v2120
      %3465 = vmatmul.mubr.bf16.gmra.mxu0 %v2119
      %v3466 = vpop.f32.mrf.mxu0
      %v3467 = vadd.f32 %v3427, %v3466
      %v3468 = vpop.f32.mrf.mxu0
      %v3469 = vpop.f32.mrf.mxu0
      %v3470 = vpop.f32.mrf.mxu0
      %3471 = vdwg.mxu0
      %v3472 = vadd.f32 %v1480, %v3467
      %v3473 = vld [vmem:[%s18] sm:$0x1]
      %v3474 = vld [vmem:[%s19] sm:$0x1]
      %v3475 = vsel %vm781, %v3472, 0.0
      %3476 = vadd.xlane.f32.xlu0 %v3475
      %v3477 = vpop.xlane.xlu0 %3476
      %v3478 = vmul.f32 %v3477, %v1456
      %v3479 = vsub.f32 %v3472, %v3478
      %v3480 = vmul.f32 %v3479, %v3479
      %v3481 = vsel %vm781, %v3480, 0.0
      %3482 = vadd.xlane.f32.xlu0 %v3481
      %v3483 = vpop.xlane.xlu0 %3482
      %v3484 = vmul.f32 %v3483, %v1456
      %v3485 = vadd.f32 %v3484, 1e-05
      %v3486 = vrsqrt.pop %v3485
      %v3487 = vmul.f32 %v3479, %v3486
      %v3489 = vlaneseq
      %v3490 = vshrl.u32 %v3489, 7
      %v3491 = vsub.s32 0, %v3490
      %v3492 = vrot.slane %v3473, %v3491
      %v3494 = vmul.f32 %v3487, %v3492
      %v3496 = vlaneseq
      %v3497 = vshrl.u32 %v3496, 7
      %v3498 = vsub.s32 0, %v3497
      %v3499 = vrot.slane %v3474, %v3498
      %v3501 = vadd.f32 %v3494, %v3499
      %s3502 = scalar_lea.vmem %s4, 16
      %v3503 = vld [vmem:[%s3502] sm:$0xf]
      %v3504 = vld [vmem:[%s3502 + $0x4] sm:$0xf]
      %v3505 = vld [vmem:[%s3502 + $0x8] sm:$0xf]
      %v3506 = vld [vmem:[%s3502 + $0xc] sm:$0xf]
      %v3507 = vpack.c.bf16 %v3501, %v3501
      %s3508 = scalar_lea.vmem %s5, 1
      %v3509 = vld [vmem:[%s3508] sm:$0x1]
      %v3511 = vlaneseq
      %v3512 = vshrl.u32 %v3511, 7
      %v3513 = vsub.s32 0, %v3512
      %v3514 = vrot.slane %v3509, %v3513
      %v3520 = vunpack.c.l.b16 %v3503
      %v3521 = vunpack.c.l.b16 %v3504
      %v3522 = vunpack.c.l.b16 %v3505
      %v3523 = vunpack.c.l.b16 %v3506
      %v3524 = vpack.c.b16 %v3521, %v3520
      %v3525 = vpack.c.b16 %v3523, %v3522
      %v3529 = vsel %vm781, %v3507, 0
      %3531 = vmatprep.subr.bf16.mxu0 0
      %3532 = vmatpush1.bf16.msra.mxu0 0
      %3533 = vmatprep.subr.bf16.mxu0 0
      %3534 = vmatpush1.bf16.msra.mxu0 0
      %3535 = vmatprep.subr.bf16.mxu0 0
      %3536 = vmatpush1.bf16.msra.mxu0 0
      %3537 = vmatprep.subr.bf16.mxu0 0
      %3538 = vmatpush1.bf16.msra.mxu0 0
      %3539 = vmatprep.subr.bf16.mxu0 0
      %3540 = vmatpush1.bf16.msra.mxu0 0
      %3541 = vmatprep.subr.bf16.mxu0 0
      %3542 = vmatpush1.bf16.msra.mxu0 0
      %3543 = vmatprep.subr.bf16.mxu0 0
      %3544 = vmatpush1.bf16.msra.mxu0 %v3525
      %3545 = vmatprep.subr.bf16.mxu0 0
      %3546 = vmatpush1.bf16.msra.mxu0 %v3524
      %3547 = vmatprep.subr.bf16.mxu0 0
      %3548 = vmatpush2.bf16.msra.mxu0 0
      %3549 = vmatprep.subr.bf16.mxu0 0
      %3550 = vmatpush2.bf16.msra.mxu0 0
      %3551 = vmatprep.subr.bf16.mxu0 0
      %3552 = vmatpush2.bf16.msra.mxu0 0
      %3553 = vmatprep.subr.bf16.mxu0 0
      %3554 = vmatpush2.bf16.msra.mxu0 0
      %3555 = vmatprep.subr.bf16.mxu0 0
      %3556 = vmatpush2.bf16.msra.mxu0 0
      %3557 = vmatprep.subr.bf16.mxu0 0
      %3558 = vmatpush2.bf16.msra.mxu0 0
      %3559 = vmatprep.subr.bf16.mxu0 0
      %3560 = vmatpush2.bf16.msra.mxu0 0
      %3561 = vmatprep.subr.bf16.mxu0 0
      %3562 = vmatpush2.bf16.msra.mxu0 0
      %3563 = vmatprep.mubr.bf16.mxu0 0
      %3564 = vmatmul.mubr.bf16.gmra.mxu0 %v3529
      %v3565 = vpop.f32.mrf.mxu0
      %v3566 = vadd.f32 %v3514, %v3565
      %v3567 = vpop.f32.mrf.mxu0
      %v3568 = vpop.f32.mrf.mxu0
      %v3569 = vpop.f32.mrf.mxu0
      %3570 = vdwg.mxu0
      %s3571 = scalar_lea.vmem %s6, 16
      %v3572 = vld [vmem:[%s3571] sm:$0xf]
      %v3573 = vld [vmem:[%s3571 + $0x4] sm:$0xf]
      %v3574 = vld [vmem:[%s3571 + $0x8] sm:$0xf]
      %v3575 = vld [vmem:[%s3571 + $0xc] sm:$0xf]
      %s3576 = scalar_lea.vmem %s7, 1
      %v3577 = vld [vmem:[%s3576] sm:$0x1]
      %v3579 = vlaneseq
      %v3580 = vshrl.u32 %v3579, 7
      %v3581 = vsub.s32 0, %v3580
      %v3582 = vrot.slane %v3577, %v3581
      %v3588 = vunpack.c.l.b16 %v3572
      %v3589 = vunpack.c.l.b16 %v3573
      %v3590 = vunpack.c.l.b16 %v3574
      %v3591 = vunpack.c.l.b16 %v3575
      %v3592 = vpack.c.b16 %v3589, %v3588
      %v3593 = vpack.c.b16 %v3591, %v3590
      %3596 = vmatprep.subr.bf16.mxu0 0
      %3597 = vmatpush1.bf16.msra.mxu0 0
      %3598 = vmatprep.subr.bf16.mxu0 0
      %3599 = vmatpush1.bf16.msra.mxu0 0
      %3600 = vmatprep.subr.bf16.mxu0 0
      %3601 = vmatpush1.bf16.msra.mxu0 0
      %3602 = vmatprep.subr.bf16.mxu0 0
      %3603 = vmatpush1.bf16.msra.mxu0 0
      %3604 = vmatprep.subr.bf16.mxu0 0
      %3605 = vmatpush1.bf16.msra.mxu0 0
      %3606 = vmatprep.subr.bf16.mxu0 0
      %3607 = vmatpush1.bf16.msra.mxu0 0
      %3608 = vmatprep.subr.bf16.mxu0 0
      %3609 = vmatpush1.bf16.msra.mxu0 %v3593
      %3610 = vmatprep.subr.bf16.mxu0 0
      %3611 = vmatpush1.bf16.msra.mxu0 %v3592
      %3612 = vmatprep.subr.bf16.mxu0 0
      %3613 = vmatpush2.bf16.msra.mxu0 0
      %3614 = vmatprep.subr.bf16.mxu0 0
      %3615 = vmatpush2.bf16.msra.mxu0 0
      %3616 = vmatprep.subr.bf16.mxu0 0
      %3617 = vmatpush2.bf16.msra.mxu0 0
      %3618 = vmatprep.subr.bf16.mxu0 0
      %3619 = vmatpush2.bf16.msra.mxu0 0
      %3620 = vmatprep.subr.bf16.mxu0 0
      %3621 = vmatpush2.bf16.msra.mxu0 0
      %3622 = vmatprep.subr.bf16.mxu0 0
      %3623 = vmatpush2.bf16.msra.mxu0 0
      %3624 = vmatprep.subr.bf16.mxu0 0
      %3625 = vmatpush2.bf16.msra.mxu0 0
      %3626 = vmatprep.subr.bf16.mxu0 0
      %3627 = vmatpush2.bf16.msra.mxu0 0
      %3628 = vmatprep.mubr.bf16.mxu0 0
      %3629 = vmatmul.mubr.bf16.gmra.mxu0 %v3529
      %v3630 = vpop.f32.mrf.mxu0
      %v3631 = vadd.f32 %v3582, %v3630
      %v3632 = vpop.f32.mrf.mxu0
      %v3633 = vpop.f32.mrf.mxu0
      %v3634 = vpop.f32.mrf.mxu0
      %3635 = vdwg.mxu0
      %s3636 = scalar_lea.vmem %s8, 16
      %v3637 = vld [vmem:[%s3636] sm:$0xf]
      %v3638 = vld [vmem:[%s3636 + $0x4] sm:$0xf]
      %v3639 = vld [vmem:[%s3636 + $0x8] sm:$0xf]
      %v3640 = vld [vmem:[%s3636 + $0xc] sm:$0xf]
      %s3641 = scalar_lea.vmem %s9, 1
      %v3642 = vld [vmem:[%s3641] sm:$0x1]
      %v3644 = vlaneseq
      %v3645 = vshrl.u32 %v3644, 7
      %v3646 = vsub.s32 0, %v3645
      %v3647 = vrot.slane %v3642, %v3646
      %v3653 = vunpack.c.l.b16 %v3637
      %v3654 = vunpack.c.l.b16 %v3638
      %v3655 = vunpack.c.l.b16 %v3639
      %v3656 = vunpack.c.l.b16 %v3640
      %v3657 = vpack.c.b16 %v3654, %v3653
      %v3658 = vpack.c.b16 %v3656, %v3655
      %3661 = vmatprep.subr.bf16.mxu0 0
      %3662 = vmatpush1.bf16.msra.mxu0 0
      %3663 = vmatprep.subr.bf16.mxu0 0
      %3664 = vmatpush1.bf16.msra.mxu0 0
      %3665 = vmatprep.subr.bf16.mxu0 0
      %3666 = vmatpush1.bf16.msra.mxu0 0
      %3667 = vmatprep.subr.bf16.mxu0 0
      %3668 = vmatpush1.bf16.msra.mxu0 0
      %3669 = vmatprep.subr.bf16.mxu0 0
      %3670 = vmatpush1.bf16.msra.mxu0 0
      %3671 = vmatprep.subr.bf16.mxu0 0
      %3672 = vmatpush1.bf16.msra.mxu0 0
      %3673 = vmatprep.subr.bf16.mxu0 0
      %3674 = vmatpush1.bf16.msra.mxu0 %v3658
      %3675 = vmatprep.subr.bf16.mxu0 0
      %3676 = vmatpush1.bf16.msra.mxu0 %v3657
      %3677 = vmatprep.subr.bf16.mxu0 0
      %3678 = vmatpush2.bf16.msra.mxu0 0
      %3679 = vmatprep.subr.bf16.mxu0 0
      %3680 = vmatpush2.bf16.msra.mxu0 0
      %3681 = vmatprep.subr.bf16.mxu0 0
      %3682 = vmatpush2.bf16.msra.mxu0 0
      %3683 = vmatprep.subr.bf16.mxu0 0
      %3684 = vmatpush2.bf16.msra.mxu0 0
      %3685 = vmatprep.subr.bf16.mxu0 0
      %3686 = vmatpush2.bf16.msra.mxu0 0
      %3687 = vmatprep.subr.bf16.mxu0 0
      %3688 = vmatpush2.bf16.msra.mxu0 0
      %3689 = vmatprep.subr.bf16.mxu0 0
      %3690 = vmatpush2.bf16.msra.mxu0 0
      %3691 = vmatprep.subr.bf16.mxu0 0
      %3692 = vmatpush2.bf16.msra.mxu0 0
      %3693 = vmatprep.mubr.bf16.mxu0 0
      %3694 = vmatmul.mubr.bf16.gmra.mxu0 %v3529
      %v3695 = vpop.f32.mrf.mxu0
      %v3696 = vadd.f32 %v3647, %v3695
      %v3697 = vpop.f32.mrf.mxu0
      %v3698 = vpop.f32.mrf.mxu0
      %v3699 = vpop.f32.mrf.mxu0
      %3700 = vdwg.mxu0
      %v3701 = vpack.c.bf16 %v3631, %v3631
      %v3702 = vsel %vm684, %v3566, 0.0
      %v3703 = vpack.c.bf16 %v3702, %v3702
      %v3705 = vsel %vm781, %v3703, 0
      %v3708 = vsel %vm781, %v3701, 0
      %3710 = vmatprep.subr.bf16.mxu0 0
      %3711 = vmatpush1.bf16.xpose.msra.mxu0 0
      %3712 = vmatprep.subr.bf16.mxu0 0
      %3713 = vmatpush1.bf16.xpose.msra.mxu0 0
      %3714 = vmatprep.subr.bf16.mxu0 0
      %3715 = vmatpush1.bf16.xpose.msra.mxu0 0
      %3716 = vmatprep.subr.bf16.mxu0 0
      %3717 = vmatpush1.bf16.xpose.msra.mxu0 0
      %3718 = vmatprep.subr.bf16.mxu0 0
      %3719 = vmatpush1.bf16.xpose.msra.mxu0 0
      %3720 = vmatprep.subr.bf16.mxu0 0
      %3721 = vmatpush1.bf16.xpose.msra.mxu0 0
      %3722 = vmatprep.subr.bf16.mxu0 0
      %3723 = vmatpush1.bf16.xpose.msra.mxu0 0
      %3724 = vmatprep.subr.bf16.mxu0 0
      %3725 = vmatpush1.bf16.xpose.msra.mxu0 %v3708
      %3726 = vmatprep.subr.bf16.mxu0 0
      %3727 = vmatpush2.bf16.xpose.msra.mxu0 0
      %3728 = vmatprep.subr.bf16.mxu0 0
      %3729 = vmatpush2.bf16.xpose.msra.mxu0 0
      %3730 = vmatprep.subr.bf16.mxu0 0
      %3731 = vmatpush2.bf16.xpose.msra.mxu0 0
      %3732 = vmatprep.subr.bf16.mxu0 0
      %3733 = vmatpush2.bf16.xpose.msra.mxu0 0
      %3734 = vmatprep.subr.bf16.mxu0 0
      %3735 = vmatpush2.bf16.xpose.msra.mxu0 0
      %3736 = vmatprep.subr.bf16.mxu0 0
      %3737 = vmatpush2.bf16.xpose.msra.mxu0 0
      %3738 = vmatprep.subr.bf16.mxu0 0
      %3739 = vmatpush2.bf16.xpose.msra.mxu0 0
      %3740 = vmatprep.subr.bf16.mxu0 0
      %3741 = vmatpush2.bf16.xpose.msra.mxu0 0
      %3742 = vmatprep.mubr.bf16.mxu0 0
      %3743 = vmatmul.mubr.bf16.gmra.mxu0 %v3705
      %v3744 = vpop.f32.mrf.mxu0
      %v3745 = vadd.f32 0.0, %v3744
      %v3746 = vpop.f32.mrf.mxu0
      %v3747 = vpop.f32.mrf.mxu0
      %v3748 = vpop.f32.mrf.mxu0
      %3749 = vdwg.mxu0
      %v3750 = vmul.f32 %v3745, 0.35355338
      %v3751 = vsel %vm1001, %v3750, -inf
      %3752 = vmax.xlane.f32.xlu0 %v3751
      %v3753 = vpop.xlane.xlu0 %3752
      %v3754 = vsub.f32 %v3750, %v3753
      %v3755 = vmul.f32 %v3754, 1.442695
      %v3756 = vpow.pop %v3755
      %v3757 = vsel %vm1001, %v3756, 0.0
      %3758 = vadd.xlane.f32.xlu0 %v3757
      %v3759 = vpop.xlane.xlu0 %3758
      %v3760 = vrcp.pop %v3759
      %v3761 = vmul.f32 %v3756, %v3760
      %v3762 = vsel %vm684, %v3696, 0.0
      %v3763 = vpack.c.bf16 %v3762, %v3762
      %v3764 = vpack.c.bf16 %v3761, %v3761
      %v3765 = vsel %vm687, %v3566, 0.0
      %v3766 = vpack.c.bf16 %v3765, %v3765
      %v3768 = vsel %vm781, %v3766, 0
      %3770 = vmatprep.subr.bf16.mxu0 0
      %3771 = vmatpush1.bf16.xpose.msra.mxu0 0
      %3772 = vmatprep.subr.bf16.mxu0 0
      %3773 = vmatpush1.bf16.xpose.msra.mxu0 0
      %3774 = vmatprep.subr.bf16.mxu0 0
      %3775 = vmatpush1.bf16.xpose.msra.mxu0 0
      %3776 = vmatprep.subr.bf16.mxu0 0
      %3777 = vmatpush1.bf16.xpose.msra.mxu0 0
      %3778 = vmatprep.subr.bf16.mxu0 0
      %3779 = vmatpush1.bf16.xpose.msra.mxu0 0
      %3780 = vmatprep.subr.bf16.mxu0 0
      %3781 = vmatpush1.bf16.xpose.msra.mxu0 0
      %3782 = vmatprep.subr.bf16.mxu0 0
      %3783 = vmatpush1.bf16.xpose.msra.mxu0 0
      %3784 = vmatprep.subr.bf16.mxu0 0
      %3785 = vmatpush1.bf16.xpose.msra.mxu0 %v3708
      %3786 = vmatprep.subr.bf16.mxu0 0
      %3787 = vmatpush2.bf16.xpose.msra.mxu0 0
      %3788 = vmatprep.subr.bf16.mxu0 0
      %3789 = vmatpush2.bf16.xpose.msra.mxu0 0
      %3790 = vmatprep.subr.bf16.mxu0 0
      %3791 = vmatpush2.bf16.xpose.msra.mxu0 0
      %3792 = vmatprep.subr.bf16.mxu0 0
      %3793 = vmatpush2.bf16.xpose.msra.mxu0 0
      %3794 = vmatprep.subr.bf16.mxu0 0
      %3795 = vmatpush2.bf16.xpose.msra.mxu0 0
      %3796 = vmatprep.subr.bf16.mxu0 0
      %3797 = vmatpush2.bf16.xpose.msra.mxu0 0
      %3798 = vmatprep.subr.bf16.mxu0 0
      %3799 = vmatpush2.bf16.xpose.msra.mxu0 0
      %3800 = vmatprep.subr.bf16.mxu0 0
      %3801 = vmatpush2.bf16.xpose.msra.mxu0 0
      %3802 = vmatprep.mubr.bf16.mxu0 0
      %3803 = vmatmul.mubr.bf16.gmra.mxu0 %v3768
      %v3804 = vpop.f32.mrf.mxu0
      %v3805 = vadd.f32 0.0, %v3804
      %v3806 = vpop.f32.mrf.mxu0
      %v3807 = vpop.f32.mrf.mxu0
      %v3808 = vpop.f32.mrf.mxu0
      %3809 = vdwg.mxu0
      %v3810 = vmul.f32 %v3805, 0.35355338
      %v3811 = vsel %vm1001, %v3810, -inf
      %3812 = vmax.xlane.f32.xlu0 %v3811
      %v3813 = vpop.xlane.xlu0 %3812
      %v3814 = vsub.f32 %v3810, %v3813
      %v3815 = vmul.f32 %v3814, 1.442695
      %v3816 = vpow.pop %v3815
      %v3817 = vsel %vm1001, %v3816, 0.0
      %3818 = vadd.xlane.f32.xlu0 %v3817
      %v3819 = vpop.xlane.xlu0 %3818
      %v3820 = vrcp.pop %v3819
      %v3821 = vmul.f32 %v3816, %v3820
      %v3822 = vsel %vm687, %v3696, 0.0
      %v3823 = vpack.c.bf16 %v3822, %v3822
      %v3824 = vpack.c.bf16 %v3821, %v3821
      %v3826 = vsel %vm1001, %v3824, 0
      %v3829 = vsel %vm1079, %v3823, 0
      %3831 = vmatprep.subr.bf16.mxu0 0
      %3832 = vmatpush1.bf16.msra.mxu0 0
      %3833 = vmatprep.subr.bf16.mxu0 0
      %3834 = vmatpush1.bf16.msra.mxu0 0
      %3835 = vmatprep.subr.bf16.mxu0 0
      %3836 = vmatpush1.bf16.msra.mxu0 0
      %3837 = vmatprep.subr.bf16.mxu0 0
      %3838 = vmatpush1.bf16.msra.mxu0 0
      %3839 = vmatprep.subr.bf16.mxu0 0
      %3840 = vmatpush1.bf16.msra.mxu0 0
      %3841 = vmatprep.subr.bf16.mxu0 0
      %3842 = vmatpush1.bf16.msra.mxu0 0
      %3843 = vmatprep.subr.bf16.mxu0 0
      %3844 = vmatpush1.bf16.msra.mxu0 0
      %3845 = vmatprep.subr.bf16.mxu0 0
      %3846 = vmatpush1.bf16.msra.mxu0 %v3829
      %3847 = vmatprep.subr.bf16.mxu0 0
      %3848 = vmatpush2.bf16.msra.mxu0 0
      %3849 = vmatprep.subr.bf16.mxu0 0
      %3850 = vmatpush2.bf16.msra.mxu0 0
      %3851 = vmatprep.subr.bf16.mxu0 0
      %3852 = vmatpush2.bf16.msra.mxu0 0
      %3853 = vmatprep.subr.bf16.mxu0 0
      %3854 = vmatpush2.bf16.msra.mxu0 0
      %3855 = vmatprep.subr.bf16.mxu0 0
      %3856 = vmatpush2.bf16.msra.mxu0 0
      %3857 = vmatprep.subr.bf16.mxu0 0
      %3858 = vmatpush2.bf16.msra.mxu0 0
      %3859 = vmatprep.subr.bf16.mxu0 0
      %3860 = vmatpush2.bf16.msra.mxu0 0
      %3861 = vmatprep.subr.bf16.mxu0 0
      %3862 = vmatpush2.bf16.msra.mxu0 0
      %3863 = vmatprep.mubr.bf16.mxu0 0
      %3864 = vmatmul.mubr.bf16.gmra.mxu0 %v3826
      %v3865 = vpop.f32.mrf.mxu0
      %v3866 = vadd.f32 0.0, %v3865
      %v3867 = vpop.f32.mrf.mxu0
      %v3868 = vpop.f32.mrf.mxu0
      %v3869 = vpop.f32.mrf.mxu0
      %3870 = vdwg.mxu0
      %v3872 = vsel %vm1001, %v3764, 0
      %v3875 = vsel %vm1079, %v3763, 0
      %3877 = vmatprep.subr.bf16.mxu0 0
      %3878 = vmatpush1.bf16.msra.mxu0 0
      %3879 = vmatprep.subr.bf16.mxu0 0
      %3880 = vmatpush1.bf16.msra.mxu0 0
      %3881 = vmatprep.subr.bf16.mxu0 0
      %3882 = vmatpush1.bf16.msra.mxu0 0
      %3883 = vmatprep.subr.bf16.mxu0 0
      %3884 = vmatpush1.bf16.msra.mxu0 0
      %3885 = vmatprep.subr.bf16.mxu0 0
      %3886 = vmatpush1.bf16.msra.mxu0 0
      %3887 = vmatprep.subr.bf16.mxu0 0
      %3888 = vmatpush1.bf16.msra.mxu0 0
      %3889 = vmatprep.subr.bf16.mxu0 0
      %3890 = vmatpush1.bf16.msra.mxu0 0
      %3891 = vmatprep.subr.bf16.mxu0 0
      %3892 = vmatpush1.bf16.msra.mxu0 %v3875
      %3893 = vmatprep.subr.bf16.mxu0 0
      %3894 = vmatpush2.bf16.msra.mxu0 0
      %3895 = vmatprep.subr.bf16.mxu0 0
      %3896 = vmatpush2.bf16.msra.mxu0 0
      %3897 = vmatprep.subr.bf16.mxu0 0
      %3898 = vmatpush2.bf16.msra.mxu0 0
      %3899 = vmatprep.subr.bf16.mxu0 0
      %3900 = vmatpush2.bf16.msra.mxu0 0
      %3901 = vmatprep.subr.bf16.mxu0 0
      %3902 = vmatpush2.bf16.msra.mxu0 0
      %3903 = vmatprep.subr.bf16.mxu0 0
      %3904 = vmatpush2.bf16.msra.mxu0 0
      %3905 = vmatprep.subr.bf16.mxu0 0
      %3906 = vmatpush2.bf16.msra.mxu0 0
      %3907 = vmatprep.subr.bf16.mxu0 0
      %3908 = vmatpush2.bf16.msra.mxu0 0
      %3909 = vmatprep.mubr.bf16.mxu0 0
      %3910 = vmatmul.mubr.bf16.gmra.mxu0 %v3872
      %v3911 = vpop.f32.mrf.mxu0
      %v3912 = vadd.f32 %v3866, %v3911
      %v3913 = vpop.f32.mrf.mxu0
      %v3914 = vpop.f32.mrf.mxu0
      %v3915 = vpop.f32.mrf.mxu0
      %3916 = vdwg.mxu0
      %v3917 = vsel %vm690, %v3566, 0.0
      %v3918 = vpack.c.bf16 %v3917, %v3917
      %v3920 = vsel %vm781, %v3918, 0
      %3922 = vmatprep.subr.bf16.mxu0 0
      %3923 = vmatpush1.bf16.xpose.msra.mxu0 0
      %3924 = vmatprep.subr.bf16.mxu0 0
      %3925 = vmatpush1.bf16.xpose.msra.mxu0 0
      %3926 = vmatprep.subr.bf16.mxu0 0
      %3927 = vmatpush1.bf16.xpose.msra.mxu0 0
      %3928 = vmatprep.subr.bf16.mxu0 0
      %3929 = vmatpush1.bf16.xpose.msra.mxu0 0
      %3930 = vmatprep.subr.bf16.mxu0 0
      %3931 = vmatpush1.bf16.xpose.msra.mxu0 0
      %3932 = vmatprep.subr.bf16.mxu0 0
      %3933 = vmatpush1.bf16.xpose.msra.mxu0 0
      %3934 = vmatprep.subr.bf16.mxu0 0
      %3935 = vmatpush1.bf16.xpose.msra.mxu0 0
      %3936 = vmatprep.subr.bf16.mxu0 0
      %3937 = vmatpush1.bf16.xpose.msra.mxu0 %v3708
      %3938 = vmatprep.subr.bf16.mxu0 0
      %3939 = vmatpush2.bf16.xpose.msra.mxu0 0
      %3940 = vmatprep.subr.bf16.mxu0 0
      %3941 = vmatpush2.bf16.xpose.msra.mxu0 0
      %3942 = vmatprep.subr.bf16.mxu0 0
      %3943 = vmatpush2.bf16.xpose.msra.mxu0 0
      %3944 = vmatprep.subr.bf16.mxu0 0
      %3945 = vmatpush2.bf16.xpose.msra.mxu0 0
      %3946 = vmatprep.subr.bf16.mxu0 0
      %3947 = vmatpush2.bf16.xpose.msra.mxu0 0
      %3948 = vmatprep.subr.bf16.mxu0 0
      %3949 = vmatpush2.bf16.xpose.msra.mxu0 0
      %3950 = vmatprep.subr.bf16.mxu0 0
      %3951 = vmatpush2.bf16.xpose.msra.mxu0 0
      %3952 = vmatprep.subr.bf16.mxu0 0
      %3953 = vmatpush2.bf16.xpose.msra.mxu0 0
      %3954 = vmatprep.mubr.bf16.mxu0 0
      %3955 = vmatmul.mubr.bf16.gmra.mxu0 %v3920
      %v3956 = vpop.f32.mrf.mxu0
      %v3957 = vadd.f32 0.0, %v3956
      %v3958 = vpop.f32.mrf.mxu0
      %v3959 = vpop.f32.mrf.mxu0
      %v3960 = vpop.f32.mrf.mxu0
      %3961 = vdwg.mxu0
      %v3962 = vmul.f32 %v3957, 0.35355338
      %v3963 = vsel %vm1001, %v3962, -inf
      %3964 = vmax.xlane.f32.xlu0 %v3963
      %v3965 = vpop.xlane.xlu0 %3964
      %v3966 = vsub.f32 %v3962, %v3965
      %v3967 = vmul.f32 %v3966, 1.442695
      %v3968 = vpow.pop %v3967
      %v3969 = vsel %vm1001, %v3968, 0.0
      %3970 = vadd.xlane.f32.xlu0 %v3969
      %v3971 = vpop.xlane.xlu0 %3970
      %v3972 = vrcp.pop %v3971
      %v3973 = vmul.f32 %v3968, %v3972
      %v3974 = vsel %vm690, %v3696, 0.0
      %v3975 = vpack.c.bf16 %v3974, %v3974
      %v3976 = vpack.c.bf16 %v3973, %v3973
      %v3978 = vsel %vm1001, %v3976, 0
      %v3981 = vsel %vm1079, %v3975, 0
      %3983 = vmatprep.subr.bf16.mxu0 0
      %3984 = vmatpush1.bf16.msra.mxu0 0
      %3985 = vmatprep.subr.bf16.mxu0 0
      %3986 = vmatpush1.bf16.msra.mxu0 0
      %3987 = vmatprep.subr.bf16.mxu0 0
      %3988 = vmatpush1.bf16.msra.mxu0 0
      %3989 = vmatprep.subr.bf16.mxu0 0
      %3990 = vmatpush1.bf16.msra.mxu0 0
      %3991 = vmatprep.subr.bf16.mxu0 0
      %3992 = vmatpush1.bf16.msra.mxu0 0
      %3993 = vmatprep.subr.bf16.mxu0 0
      %3994 = vmatpush1.bf16.msra.mxu0 0
      %3995 = vmatprep.subr.bf16.mxu0 0
      %3996 = vmatpush1.bf16.msra.mxu0 0
      %3997 = vmatprep.subr.bf16.mxu0 0
      %3998 = vmatpush1.bf16.msra.mxu0 %v3981
      %3999 = vmatprep.subr.bf16.mxu0 0
      %4000 = vmatpush2.bf16.msra.mxu0 0
      %4001 = vmatprep.subr.bf16.mxu0 0
      %4002 = vmatpush2.bf16.msra.mxu0 0
      %4003 = vmatprep.subr.bf16.mxu0 0
      %4004 = vmatpush2.bf16.msra.mxu0 0
      %4005 = vmatprep.subr.bf16.mxu0 0
      %4006 = vmatpush2.bf16.msra.mxu0 0
      %4007 = vmatprep.subr.bf16.mxu0 0
      %4008 = vmatpush2.bf16.msra.mxu0 0
      %4009 = vmatprep.subr.bf16.mxu0 0
      %4010 = vmatpush2.bf16.msra.mxu0 0
      %4011 = vmatprep.subr.bf16.mxu0 0
      %4012 = vmatpush2.bf16.msra.mxu0 0
      %4013 = vmatprep.subr.bf16.mxu0 0
      %4014 = vmatpush2.bf16.msra.mxu0 0
      %4015 = vmatprep.mubr.bf16.mxu0 0
      %4016 = vmatmul.mubr.bf16.gmra.mxu0 %v3978
      %v4017 = vpop.f32.mrf.mxu0
      %v4018 = vadd.f32 0.0, %v4017
      %v4019 = vpop.f32.mrf.mxu0
      %v4020 = vpop.f32.mrf.mxu0
      %v4021 = vpop.f32.mrf.mxu0
      %4022 = vdwg.mxu0
      %v4023 = vadd.f32 %v3912, %v4018
      %v4024 = vsel %vm693, %v3566, 0.0
      %v4025 = vpack.c.bf16 %v4024, %v4024
      %v4027 = vsel %vm781, %v4025, 0
      %4029 = vmatprep.subr.bf16.mxu0 0
      %4030 = vmatpush1.bf16.xpose.msra.mxu0 0
      %4031 = vmatprep.subr.bf16.mxu0 0
      %4032 = vmatpush1.bf16.xpose.msra.mxu0 0
      %4033 = vmatprep.subr.bf16.mxu0 0
      %4034 = vmatpush1.bf16.xpose.msra.mxu0 0
      %4035 = vmatprep.subr.bf16.mxu0 0
      %4036 = vmatpush1.bf16.xpose.msra.mxu0 0
      %4037 = vmatprep.subr.bf16.mxu0 0
      %4038 = vmatpush1.bf16.xpose.msra.mxu0 0
      %4039 = vmatprep.subr.bf16.mxu0 0
      %4040 = vmatpush1.bf16.xpose.msra.mxu0 0
      %4041 = vmatprep.subr.bf16.mxu0 0
      %4042 = vmatpush1.bf16.xpose.msra.mxu0 0
      %4043 = vmatprep.subr.bf16.mxu0 0
      %4044 = vmatpush1.bf16.xpose.msra.mxu0 %v3708
      %4045 = vmatprep.subr.bf16.mxu0 0
      %4046 = vmatpush2.bf16.xpose.msra.mxu0 0
      %4047 = vmatprep.subr.bf16.mxu0 0
      %4048 = vmatpush2.bf16.xpose.msra.mxu0 0
      %4049 = vmatprep.subr.bf16.mxu0 0
      %4050 = vmatpush2.bf16.xpose.msra.mxu0 0
      %4051 = vmatprep.subr.bf16.mxu0 0
      %4052 = vmatpush2.bf16.xpose.msra.mxu0 0
      %4053 = vmatprep.subr.bf16.mxu0 0
      %4054 = vmatpush2.bf16.xpose.msra.mxu0 0
      %4055 = vmatprep.subr.bf16.mxu0 0
      %4056 = vmatpush2.bf16.xpose.msra.mxu0 0
      %4057 = vmatprep.subr.bf16.mxu0 0
      %4058 = vmatpush2.bf16.xpose.msra.mxu0 0
      %4059 = vmatprep.subr.bf16.mxu0 0
      %4060 = vmatpush2.bf16.xpose.msra.mxu0 0
      %4061 = vmatprep.mubr.bf16.mxu0 0
      %4062 = vmatmul.mubr.bf16.gmra.mxu0 %v4027
      %v4063 = vpop.f32.mrf.mxu0
      %v4064 = vadd.f32 0.0, %v4063
      %v4065 = vpop.f32.mrf.mxu0
      %v4066 = vpop.f32.mrf.mxu0
      %v4067 = vpop.f32.mrf.mxu0
      %4068 = vdwg.mxu0
      %v4069 = vmul.f32 %v4064, 0.35355338
      %v4070 = vsel %vm1001, %v4069, -inf
      %4071 = vmax.xlane.f32.xlu0 %v4070
      %v4072 = vpop.xlane.xlu0 %4071
      %v4073 = vsub.f32 %v4069, %v4072
      %v4074 = vmul.f32 %v4073, 1.442695
      %v4075 = vpow.pop %v4074
      %v4076 = vsel %vm1001, %v4075, 0.0
      %4077 = vadd.xlane.f32.xlu0 %v4076
      %v4078 = vpop.xlane.xlu0 %4077
      %v4079 = vrcp.pop %v4078
      %v4080 = vmul.f32 %v4075, %v4079
      %v4081 = vsel %vm693, %v3696, 0.0
      %v4082 = vpack.c.bf16 %v4081, %v4081
      %v4083 = vpack.c.bf16 %v4080, %v4080
      %v4085 = vsel %vm1001, %v4083, 0
      %v4088 = vsel %vm1079, %v4082, 0
      %4090 = vmatprep.subr.bf16.mxu0 0
      %4091 = vmatpush1.bf16.msra.mxu0 0
      %4092 = vmatprep.subr.bf16.mxu0 0
      %4093 = vmatpush1.bf16.msra.mxu0 0
      %4094 = vmatprep.subr.bf16.mxu0 0
      %4095 = vmatpush1.bf16.msra.mxu0 0
      %4096 = vmatprep.subr.bf16.mxu0 0
      %4097 = vmatpush1.bf16.msra.mxu0 0
      %4098 = vmatprep.subr.bf16.mxu0 0
      %4099 = vmatpush1.bf16.msra.mxu0 0
      %4100 = vmatprep.subr.bf16.mxu0 0
      %4101 = vmatpush1.bf16.msra.mxu0 0
      %4102 = vmatprep.subr.bf16.mxu0 0
      %4103 = vmatpush1.bf16.msra.mxu0 0
      %4104 = vmatprep.subr.bf16.mxu0 0
      %4105 = vmatpush1.bf16.msra.mxu0 %v4088
      %4106 = vmatprep.subr.bf16.mxu0 0
      %4107 = vmatpush2.bf16.msra.mxu0 0
      %4108 = vmatprep.subr.bf16.mxu0 0
      %4109 = vmatpush2.bf16.msra.mxu0 0
      %4110 = vmatprep.subr.bf16.mxu0 0
      %4111 = vmatpush2.bf16.msra.mxu0 0
      %4112 = vmatprep.subr.bf16.mxu0 0
      %4113 = vmatpush2.bf16.msra.mxu0 0
      %4114 = vmatprep.subr.bf16.mxu0 0
      %4115 = vmatpush2.bf16.msra.mxu0 0
      %4116 = vmatprep.subr.bf16.mxu0 0
      %4117 = vmatpush2.bf16.msra.mxu0 0
      %4118 = vmatprep.subr.bf16.mxu0 0
      %4119 = vmatpush2.bf16.msra.mxu0 0
      %4120 = vmatprep.subr.bf16.mxu0 0
      %4121 = vmatpush2.bf16.msra.mxu0 0
      %4122 = vmatprep.mubr.bf16.mxu0 0
      %4123 = vmatmul.mubr.bf16.gmra.mxu0 %v4085
      %v4124 = vpop.f32.mrf.mxu0
      %v4125 = vadd.f32 0.0, %v4124
      %v4126 = vpop.f32.mrf.mxu0
      %v4127 = vpop.f32.mrf.mxu0
      %v4128 = vpop.f32.mrf.mxu0
      %4129 = vdwg.mxu0
      %v4130 = vadd.f32 %v4023, %v4125
      %s4131 = scalar_lea.vmem %s10, 16
      %v4132 = vld [vmem:[%s4131] sm:$0xf]
      %v4133 = vld [vmem:[%s4131 + $0x4] sm:$0xf]
      %v4134 = vld [vmem:[%s4131 + $0x8] sm:$0xf]
      %v4135 = vld [vmem:[%s4131 + $0xc] sm:$0xf]
      %v4136 = vpack.c.bf16 %v4130, %v4130
      %s4137 = scalar_lea.vmem %s11, 1
      %v4138 = vld [vmem:[%s4137] sm:$0x1]
      %v4140 = vlaneseq
      %v4141 = vshrl.u32 %v4140, 7
      %v4142 = vsub.s32 0, %v4141
      %v4143 = vrot.slane %v4138, %v4142
      %v4149 = vunpack.c.l.b16 %v4132
      %v4150 = vunpack.c.l.b16 %v4133
      %v4151 = vunpack.c.l.b16 %v4134
      %v4152 = vunpack.c.l.b16 %v4135
      %v4153 = vpack.c.b16 %v4150, %v4149
      %v4154 = vpack.c.b16 %v4152, %v4151
      %v4158 = vsel %vm781, %v4136, 0
      %4160 = vmatprep.subr.bf16.mxu0 0
      %4161 = vmatpush1.bf16.msra.mxu0 0
      %4162 = vmatprep.subr.bf16.mxu0 0
      %4163 = vmatpush1.bf16.msra.mxu0 0
      %4164 = vmatprep.subr.bf16.mxu0 0
      %4165 = vmatpush1.bf16.msra.mxu0 0
      %4166 = vmatprep.subr.bf16.mxu0 0
      %4167 = vmatpush1.bf16.msra.mxu0 0
      %4168 = vmatprep.subr.bf16.mxu0 0
      %4169 = vmatpush1.bf16.msra.mxu0 0
      %4170 = vmatprep.subr.bf16.mxu0 0
      %4171 = vmatpush1.bf16.msra.mxu0 0
      %4172 = vmatprep.subr.bf16.mxu0 0
      %4173 = vmatpush1.bf16.msra.mxu0 %v4154
      %4174 = vmatprep.subr.bf16.mxu0 0
      %4175 = vmatpush1.bf16.msra.mxu0 %v4153
      %4176 = vmatprep.subr.bf16.mxu0 0
      %4177 = vmatpush2.bf16.msra.mxu0 0
      %4178 = vmatprep.subr.bf16.mxu0 0
      %4179 = vmatpush2.bf16.msra.mxu0 0
      %4180 = vmatprep.subr.bf16.mxu0 0
      %4181 = vmatpush2.bf16.msra.mxu0 0
      %4182 = vmatprep.subr.bf16.mxu0 0
      %4183 = vmatpush2.bf16.msra.mxu0 0
      %4184 = vmatprep.subr.bf16.mxu0 0
      %4185 = vmatpush2.bf16.msra.mxu0 0
      %4186 = vmatprep.subr.bf16.mxu0 0
      %4187 = vmatpush2.bf16.msra.mxu0 0
      %4188 = vmatprep.subr.bf16.mxu0 0
      %4189 = vmatpush2.bf16.msra.mxu0 0
      %4190 = vmatprep.subr.bf16.mxu0 0
      %4191 = vmatpush2.bf16.msra.mxu0 0
      %4192 = vmatprep.mubr.bf16.mxu0 0
      %4193 = vmatmul.mubr.bf16.gmra.mxu0 %v4158
      %v4194 = vpop.f32.mrf.mxu0
      %v4195 = vadd.f32 %v4143, %v4194
      %v4196 = vpop.f32.mrf.mxu0
      %v4197 = vpop.f32.mrf.mxu0
      %v4198 = vpop.f32.mrf.mxu0
      %4199 = vdwg.mxu0
      %v4200 = vadd.f32 %v3501, %v4195
      %s4201 = scalar_lea.vmem %s16, 1
      %v4202 = vld [vmem:[%s4201] sm:$0x1]
      %s4203 = scalar_lea.vmem %s17, 1
      %v4204 = vld [vmem:[%s4203] sm:$0x1]
      %v4205 = vsel %vm781, %v4200, 0.0
      %4206 = vadd.xlane.f32.xlu0 %v4205
      %v4207 = vpop.xlane.xlu0 %4206
      %v4208 = vmul.f32 %v4207, %v1456
      %v4209 = vsub.f32 %v4200, %v4208
      %v4210 = vmul.f32 %v4209, %v4209
      %v4211 = vsel %vm781, %v4210, 0.0
      %4212 = vadd.xlane.f32.xlu0 %v4211
      %v4213 = vpop.xlane.xlu0 %4212
      %v4214 = vmul.f32 %v4213, %v1456
      %v4215 = vadd.f32 %v4214, 1e-05
      %v4216 = vrsqrt.pop %v4215
      %v4217 = vmul.f32 %v4209, %v4216
      %v4219 = vlaneseq
      %v4220 = vshrl.u32 %v4219, 7
      %v4221 = vsub.s32 0, %v4220
      %v4222 = vrot.slane %v4202, %v4221
      %v4224 = vmul.f32 %v4217, %v4222
      %v4226 = vlaneseq
      %v4227 = vshrl.u32 %v4226, 7
      %v4228 = vsub.s32 0, %v4227
      %v4229 = vrot.slane %v4204, %v4228
      %v4231 = vadd.f32 %v4224, %v4229
      %s4232 = scalar_lea.vmem %s12, 256
      %v4233 = vld [vmem:[%s4232] sm:$0xff]
      %v4234 = vld [vmem:[%s4232 + $0x8] sm:$0xff]
      %v4235 = vld [vmem:[%s4232 + $0x10] sm:$0xff]
      %v4236 = vld [vmem:[%s4232 + $0x18] sm:$0xff]
      %v4237 = vld [vmem:[%s4232 + $0x20] sm:$0xff]
      %v4238 = vld [vmem:[%s4232 + $0x28] sm:$0xff]
      %v4239 = vld [vmem:[%s4232 + $0x30] sm:$0xff]
      %v4240 = vld [vmem:[%s4232 + $0x38] sm:$0xff]
      %v4241 = vld [vmem:[%s4232 + $0x40] sm:$0xff]
      %v4242 = vld [vmem:[%s4232 + $0x48] sm:$0xff]
      %v4243 = vld [vmem:[%s4232 + $0x50] sm:$0xff]
      %v4244 = vld [vmem:[%s4232 + $0x58] sm:$0xff]
      %v4245 = vld [vmem:[%s4232 + $0x60] sm:$0xff]
      %v4246 = vld [vmem:[%s4232 + $0x68] sm:$0xff]
      %v4247 = vld [vmem:[%s4232 + $0x70] sm:$0xff]
      %v4248 = vld [vmem:[%s4232 + $0x78] sm:$0xff]
      %v4249 = vld [vmem:[%s4232 + $0x80] sm:$0xff]
      %v4250 = vld [vmem:[%s4232 + $0x88] sm:$0xff]
      %v4251 = vld [vmem:[%s4232 + $0x90] sm:$0xff]
      %v4252 = vld [vmem:[%s4232 + $0x98] sm:$0xff]
      %v4253 = vld [vmem:[%s4232 + $0xa0] sm:$0xff]
      %v4254 = vld [vmem:[%s4232 + $0xa8] sm:$0xff]
      %v4255 = vld [vmem:[%s4232 + $0xb0] sm:$0xff]
      %v4256 = vld [vmem:[%s4232 + $0xb8] sm:$0xff]
      %v4257 = vld [vmem:[%s4232 + $0xc0] sm:$0xff]
      %v4258 = vld [vmem:[%s4232 + $0xc8] sm:$0xff]
      %v4259 = vld [vmem:[%s4232 + $0xd0] sm:$0xff]
      %v4260 = vld [vmem:[%s4232 + $0xd8] sm:$0xff]
      %v4261 = vld [vmem:[%s4232 + $0xe0] sm:$0xff]
      %v4262 = vld [vmem:[%s4232 + $0xe8] sm:$0xff]
      %v4263 = vld [vmem:[%s4232 + $0xf0] sm:$0xff]
      %v4264 = vld [vmem:[%s4232 + $0xf8] sm:$0xff]
      %v4265 = vpack.c.bf16 %v4231, %v4231
      %s4266 = scalar_lea.vmem %s13, 16
      %v4267 = vld [vmem:[%s4266] sm:$0xff]
      %v4268 = vld [vmem:[%s4266 + $0x8] sm:$0xff]
      %v4271 = vlaneseq
      %v4272 = vshrl.u32 %v4271, 7
      %v4273 = vsub.s32 0, %v4272
      %v4274 = vrot.slane %v4267, %v4273
      %v4275 = vlaneseq
      %v4276 = vshrl.u32 %v4275, 7
      %v4277 = vsub.s32 1, %v4276
      %v4278 = vrot.slane %v4267, %v4277
      %v4279 = vlaneseq
      %v4280 = vshrl.u32 %v4279, 7
      %v4281 = vsub.s32 2, %v4280
      %v4282 = vrot.slane %v4267, %v4281
      %v4283 = vlaneseq
      %v4284 = vshrl.u32 %v4283, 7
      %v4285 = vsub.s32 3, %v4284
      %v4286 = vrot.slane %v4267, %v4285
      %v4287 = vlaneseq
      %v4288 = vshrl.u32 %v4287, 7
      %v4289 = vsub.s32 4, %v4288
      %v4290 = vrot.slane %v4267, %v4289
      %v4291 = vlaneseq
      %v4292 = vshrl.u32 %v4291, 7
      %v4293 = vsub.s32 5, %v4292
      %v4294 = vrot.slane %v4267, %v4293
      %v4295 = vlaneseq
      %v4296 = vshrl.u32 %v4295, 7
      %v4297 = vsub.s32 6, %v4296
      %v4298 = vrot.slane %v4267, %v4297
      %v4299 = vlaneseq
      %v4300 = vshrl.u32 %v4299, 7
      %v4301 = vsub.s32 7, %v4300
      %v4302 = vrot.slane %v4267, %v4301
      %v4303 = vlaneseq
      %v4304 = vshrl.u32 %v4303, 7
      %v4305 = vsub.s32 0, %v4304
      %v4306 = vrot.slane %v4268, %v4305
      %v4307 = vlaneseq
      %v4308 = vshrl.u32 %v4307, 7
      %v4309 = vsub.s32 1, %v4308
      %v4310 = vrot.slane %v4268, %v4309
      %v4311 = vlaneseq
      %v4312 = vshrl.u32 %v4311, 7
      %v4313 = vsub.s32 2, %v4312
      %v4314 = vrot.slane %v4268, %v4313
      %v4315 = vlaneseq
      %v4316 = vshrl.u32 %v4315, 7
      %v4317 = vsub.s32 3, %v4316
      %v4318 = vrot.slane %v4268, %v4317
      %v4319 = vlaneseq
      %v4320 = vshrl.u32 %v4319, 7
      %v4321 = vsub.s32 4, %v4320
      %v4322 = vrot.slane %v4268, %v4321
      %v4323 = vlaneseq
      %v4324 = vshrl.u32 %v4323, 7
      %v4325 = vsub.s32 5, %v4324
      %v4326 = vrot.slane %v4268, %v4325
      %v4327 = vlaneseq
      %v4328 = vshrl.u32 %v4327, 7
      %v4329 = vsub.s32 6, %v4328
      %v4330 = vrot.slane %v4268, %v4329
      %v4331 = vlaneseq
      %v4332 = vshrl.u32 %v4331, 7
      %v4333 = vsub.s32 7, %v4332
      %v4334 = vrot.slane %v4268, %v4333
      %v4383 = vunpack.c.l.b16 %v4233
      %v4384 = vunpack.c.h.b16 %v4233
      %v4385 = vunpack.c.l.b16 %v4234
      %v4386 = vunpack.c.h.b16 %v4234
      %v4387 = vunpack.c.l.b16 %v4235
      %v4388 = vunpack.c.h.b16 %v4235
      %v4389 = vunpack.c.l.b16 %v4236
      %v4390 = vunpack.c.h.b16 %v4236
      %v4391 = vunpack.c.l.b16 %v4237
      %v4392 = vunpack.c.h.b16 %v4237
      %v4393 = vunpack.c.l.b16 %v4238
      %v4394 = vunpack.c.h.b16 %v4238
      %v4395 = vunpack.c.l.b16 %v4239
      %v4396 = vunpack.c.h.b16 %v4239
      %v4397 = vunpack.c.l.b16 %v4240
      %v4398 = vunpack.c.h.b16 %v4240
      %v4399 = vunpack.c.l.b16 %v4241
      %v4400 = vunpack.c.h.b16 %v4241
      %v4401 = vunpack.c.l.b16 %v4242
      %v4402 = vunpack.c.h.b16 %v4242
      %v4403 = vunpack.c.l.b16 %v4243
      %v4404 = vunpack.c.h.b16 %v4243
      %v4405 = vunpack.c.l.b16 %v4244
      %v4406 = vunpack.c.h.b16 %v4244
      %v4407 = vunpack.c.l.b16 %v4245
      %v4408 = vunpack.c.h.b16 %v4245
      %v4409 = vunpack.c.l.b16 %v4246
      %v4410 = vunpack.c.h.b16 %v4246
      %v4411 = vunpack.c.l.b16 %v4247
      %v4412 = vunpack.c.h.b16 %v4247
      %v4413 = vunpack.c.l.b16 %v4248
      %v4414 = vunpack.c.h.b16 %v4248
      %v4415 = vunpack.c.l.b16 %v4249
      %v4416 = vunpack.c.h.b16 %v4249
      %v4417 = vunpack.c.l.b16 %v4250
      %v4418 = vunpack.c.h.b16 %v4250
      %v4419 = vunpack.c.l.b16 %v4251
      %v4420 = vunpack.c.h.b16 %v4251
      %v4421 = vunpack.c.l.b16 %v4252
      %v4422 = vunpack.c.h.b16 %v4252
      %v4423 = vunpack.c.l.b16 %v4253
      %v4424 = vunpack.c.h.b16 %v4253
      %v4425 = vunpack.c.l.b16 %v4254
      %v4426 = vunpack.c.h.b16 %v4254
      %v4427 = vunpack.c.l.b16 %v4255
      %v4428 = vunpack.c.h.b16 %v4255
      %v4429 = vunpack.c.l.b16 %v4256
      %v4430 = vunpack.c.h.b16 %v4256
      %v4431 = vunpack.c.l.b16 %v4257
      %v4432 = vunpack.c.h.b16 %v4257
      %v4433 = vunpack.c.l.b16 %v4258
      %v4434 = vunpack.c.h.b16 %v4258
      %v4435 = vunpack.c.l.b16 %v4259
      %v4436 = vunpack.c.h.b16 %v4259
      %v4437 = vunpack.c.l.b16 %v4260
      %v4438 = vunpack.c.h.b16 %v4260
      %v4439 = vunpack.c.l.b16 %v4261
      %v4440 = vunpack.c.h.b16 %v4261
      %v4441 = vunpack.c.l.b16 %v4262
      %v4442 = vunpack.c.h.b16 %v4262
      %v4443 = vunpack.c.l.b16 %v4263
      %v4444 = vunpack.c.h.b16 %v4263
      %v4445 = vunpack.c.l.b16 %v4264
      %v4446 = vunpack.c.h.b16 %v4264
      %v4447 = vpack.c.b16 %v4399, %v4383
      %v4448 = vpack.c.b16 %v4400, %v4384
      %v4449 = vpack.c.b16 %v4401, %v4385
      %v4450 = vpack.c.b16 %v4402, %v4386
      %v4451 = vpack.c.b16 %v4403, %v4387
      %v4452 = vpack.c.b16 %v4404, %v4388
      %v4453 = vpack.c.b16 %v4405, %v4389
      %v4454 = vpack.c.b16 %v4406, %v4390
      %v4455 = vpack.c.b16 %v4407, %v4391
      %v4456 = vpack.c.b16 %v4408, %v4392
      %v4457 = vpack.c.b16 %v4409, %v4393
      %v4458 = vpack.c.b16 %v4410, %v4394
      %v4459 = vpack.c.b16 %v4411, %v4395
      %v4460 = vpack.c.b16 %v4412, %v4396
      %v4461 = vpack.c.b16 %v4413, %v4397
      %v4462 = vpack.c.b16 %v4414, %v4398
      %v4463 = vpack.c.b16 %v4431, %v4415
      %v4464 = vpack.c.b16 %v4432, %v4416
      %v4465 = vpack.c.b16 %v4433, %v4417
      %v4466 = vpack.c.b16 %v4434, %v4418
      %v4467 = vpack.c.b16 %v4435, %v4419
      %v4468 = vpack.c.b16 %v4436, %v4420
      %v4469 = vpack.c.b16 %v4437, %v4421
      %v4470 = vpack.c.b16 %v4438, %v4422
      %v4471 = vpack.c.b16 %v4439, %v4423
      %v4472 = vpack.c.b16 %v4440, %v4424
      %v4473 = vpack.c.b16 %v4441, %v4425
      %v4474 = vpack.c.b16 %v4442, %v4426
      %v4475 = vpack.c.b16 %v4443, %v4427
      %v4476 = vpack.c.b16 %v4444, %v4428
      %v4477 = vpack.c.b16 %v4445, %v4429
      %v4478 = vpack.c.b16 %v4446, %v4430
      %v4512 = vsel %vm781, %v4265, 0
      %4514 = vmatprep.subr.bf16.mxu0 0
      %4515 = vmatpush1.bf16.msra.mxu0 0
      %4516 = vmatprep.subr.bf16.mxu0 0
      %4517 = vmatpush1.bf16.msra.mxu0 0
      %4518 = vmatprep.subr.bf16.mxu0 0
      %4519 = vmatpush1.bf16.msra.mxu0 0
      %4520 = vmatprep.subr.bf16.mxu0 0
      %4521 = vmatpush1.bf16.msra.mxu0 0
      %4522 = vmatprep.subr.bf16.mxu0 0
      %4523 = vmatpush1.bf16.msra.mxu0 0
      %4524 = vmatprep.subr.bf16.mxu0 0
      %4525 = vmatpush1.bf16.msra.mxu0 0
      %4526 = vmatprep.subr.bf16.mxu0 %v4464
      %4527 = vmatpush1.bf16.msra.mxu0 %v4463
      %4528 = vmatprep.subr.bf16.mxu0 %v4448
      %4529 = vmatpush1.bf16.msra.mxu0 %v4447
      %4530 = vmatprep.subr.bf16.mxu0 0
      %4531 = vmatpush2.bf16.msra.mxu0 0
      %4532 = vmatprep.subr.bf16.mxu0 0
      %4533 = vmatpush2.bf16.msra.mxu0 0
      %4534 = vmatprep.subr.bf16.mxu0 0
      %4535 = vmatpush2.bf16.msra.mxu0 0
      %4536 = vmatprep.subr.bf16.mxu0 0
      %4537 = vmatpush2.bf16.msra.mxu0 0
      %4538 = vmatprep.subr.bf16.mxu0 0
      %4539 = vmatpush2.bf16.msra.mxu0 0
      %4540 = vmatprep.subr.bf16.mxu0 0
      %4541 = vmatpush2.bf16.msra.mxu0 0
      %4542 = vmatprep.subr.bf16.mxu0 0
      %4543 = vmatpush2.bf16.msra.mxu0 0
      %4544 = vmatprep.subr.bf16.mxu0 0
      %4545 = vmatpush2.bf16.msra.mxu0 0
      %4546 = vmatprep.mubr.bf16.mxu0 0
      %4547 = vmatmul.mubr.bf16.gmra.mxu0 %v4512
      %v4548 = vpop.f32.mrf.mxu0
      %v4549 = vadd.f32 %v4274, %v4548
      %v4550 = vpop.f32.mrf.mxu0
      %v4551 = vadd.f32 %v4278, %v4550
      %v4552 = vpop.f32.mrf.mxu0
      %v4553 = vpop.f32.mrf.mxu0
      %4554 = vdwg.mxu0
      %4555 = vmatprep.subr.bf16.mxu0 0
      %4556 = vmatpush1.bf16.msra.mxu0 0
      %4557 = vmatprep.subr.bf16.mxu0 0
      %4558 = vmatpush1.bf16.msra.mxu0 0
      %4559 = vmatprep.subr.bf16.mxu0 0
      %4560 = vmatpush1.bf16.msra.mxu0 0
      %4561 = vmatprep.subr.bf16.mxu0 0
      %4562 = vmatpush1.bf16.msra.mxu0 0
      %4563 = vmatprep.subr.bf16.mxu0 0
      %4564 = vmatpush1.bf16.msra.mxu0 0
      %4565 = vmatprep.subr.bf16.mxu0 0
      %4566 = vmatpush1.bf16.msra.mxu0 0
      %4567 = vmatprep.subr.bf16.mxu0 %v4466
      %4568 = vmatpush1.bf16.msra.mxu0 %v4465
      %4569 = vmatprep.subr.bf16.mxu0 %v4450
      %4570 = vmatpush1.bf16.msra.mxu0 %v4449
      %4571 = vmatprep.subr.bf16.mxu0 0
      %4572 = vmatpush2.bf16.msra.mxu0 0
      %4573 = vmatprep.subr.bf16.mxu0 0
      %4574 = vmatpush2.bf16.msra.mxu0 0
      %4575 = vmatprep.subr.bf16.mxu0 0
      %4576 = vmatpush2.bf16.msra.mxu0 0
      %4577 = vmatprep.subr.bf16.mxu0 0
      %4578 = vmatpush2.bf16.msra.mxu0 0
      %4579 = vmatprep.subr.bf16.mxu0 0
      %4580 = vmatpush2.bf16.msra.mxu0 0
      %4581 = vmatprep.subr.bf16.mxu0 0
      %4582 = vmatpush2.bf16.msra.mxu0 0
      %4583 = vmatprep.subr.bf16.mxu0 0
      %4584 = vmatpush2.bf16.msra.mxu0 0
      %4585 = vmatprep.subr.bf16.mxu0 0
      %4586 = vmatpush2.bf16.msra.mxu0 0
      %4587 = vmatprep.mubr.bf16.mxu0 0
      %4588 = vmatmul.mubr.bf16.gmra.mxu0 %v4512
      %v4589 = vpop.f32.mrf.mxu0
      %v4590 = vadd.f32 %v4282, %v4589
      %v4591 = vpop.f32.mrf.mxu0
      %v4592 = vadd.f32 %v4286, %v4591
      %v4593 = vpop.f32.mrf.mxu0
      %v4594 = vpop.f32.mrf.mxu0
      %4595 = vdwg.mxu0
      %4596 = vmatprep.subr.bf16.mxu0 0
      %4597 = vmatpush1.bf16.msra.mxu0 0
      %4598 = vmatprep.subr.bf16.mxu0 0
      %4599 = vmatpush1.bf16.msra.mxu0 0
      %4600 = vmatprep.subr.bf16.mxu0 0
      %4601 = vmatpush1.bf16.msra.mxu0 0
      %4602 = vmatprep.subr.bf16.mxu0 0
      %4603 = vmatpush1.bf16.msra.mxu0 0
      %4604 = vmatprep.subr.bf16.mxu0 0
      %4605 = vmatpush1.bf16.msra.mxu0 0
      %4606 = vmatprep.subr.bf16.mxu0 0
      %4607 = vmatpush1.bf16.msra.mxu0 0
      %4608 = vmatprep.subr.bf16.mxu0 %v4468
      %4609 = vmatpush1.bf16.msra.mxu0 %v4467
      %4610 = vmatprep.subr.bf16.mxu0 %v4452
      %4611 = vmatpush1.bf16.msra.mxu0 %v4451
      %4612 = vmatprep.subr.bf16.mxu0 0
      %4613 = vmatpush2.bf16.msra.mxu0 0
      %4614 = vmatprep.subr.bf16.mxu0 0
      %4615 = vmatpush2.bf16.msra.mxu0 0
      %4616 = vmatprep.subr.bf16.mxu0 0
      %4617 = vmatpush2.bf16.msra.mxu0 0
      %4618 = vmatprep.subr.bf16.mxu0 0
      %4619 = vmatpush2.bf16.msra.mxu0 0
      %4620 = vmatprep.subr.bf16.mxu0 0
      %4621 = vmatpush2.bf16.msra.mxu0 0
      %4622 = vmatprep.subr.bf16.mxu0 0
      %4623 = vmatpush2.bf16.msra.mxu0 0
      %4624 = vmatprep.subr.bf16.mxu0 0
      %4625 = vmatpush2.bf16.msra.mxu0 0
      %4626 = vmatprep.subr.bf16.mxu0 0
      %4627 = vmatpush2.bf16.msra.mxu0 0
      %4628 = vmatprep.mubr.bf16.mxu0 0
      %4629 = vmatmul.mubr.bf16.gmra.mxu0 %v4512
      %v4630 = vpop.f32.mrf.mxu0
      %v4631 = vadd.f32 %v4290, %v4630
      %v4632 = vpop.f32.mrf.mxu0
      %v4633 = vadd.f32 %v4294, %v4632
      %v4634 = vpop.f32.mrf.mxu0
      %v4635 = vpop.f32.mrf.mxu0
      %4636 = vdwg.mxu0
      %4637 = vmatprep.subr.bf16.mxu0 0
      %4638 = vmatpush1.bf16.msra.mxu0 0
      %4639 = vmatprep.subr.bf16.mxu0 0
      %4640 = vmatpush1.bf16.msra.mxu0 0
      %4641 = vmatprep.subr.bf16.mxu0 0
      %4642 = vmatpush1.bf16.msra.mxu0 0
      %4643 = vmatprep.subr.bf16.mxu0 0
      %4644 = vmatpush1.bf16.msra.mxu0 0
      %4645 = vmatprep.subr.bf16.mxu0 0
      %4646 = vmatpush1.bf16.msra.mxu0 0
      %4647 = vmatprep.subr.bf16.mxu0 0
      %4648 = vmatpush1.bf16.msra.mxu0 0
      %4649 = vmatprep.subr.bf16.mxu0 %v4470
      %4650 = vmatpush1.bf16.msra.mxu0 %v4469
      %4651 = vmatprep.subr.bf16.mxu0 %v4454
      %4652 = vmatpush1.bf16.msra.mxu0 %v4453
      %4653 = vmatprep.subr.bf16.mxu0 0
      %4654 = vmatpush2.bf16.msra.mxu0 0
      %4655 = vmatprep.subr.bf16.mxu0 0
      %4656 = vmatpush2.bf16.msra.mxu0 0
      %4657 = vmatprep.subr.bf16.mxu0 0
      %4658 = vmatpush2.bf16.msra.mxu0 0
      %4659 = vmatprep.subr.bf16.mxu0 0
      %4660 = vmatpush2.bf16.msra.mxu0 0
      %4661 = vmatprep.subr.bf16.mxu0 0
      %4662 = vmatpush2.bf16.msra.mxu0 0
      %4663 = vmatprep.subr.bf16.mxu0 0
      %4664 = vmatpush2.bf16.msra.mxu0 0
      %4665 = vmatprep.subr.bf16.mxu0 0
      %4666 = vmatpush2.bf16.msra.mxu0 0
      %4667 = vmatprep.subr.bf16.mxu0 0
      %4668 = vmatpush2.bf16.msra.mxu0 0
      %4669 = vmatprep.mubr.bf16.mxu0 0
      %4670 = vmatmul.mubr.bf16.gmra.mxu0 %v4512
      %v4671 = vpop.f32.mrf.mxu0
      %v4672 = vadd.f32 %v4298, %v4671
      %v4673 = vpop.f32.mrf.mxu0
      %v4674 = vadd.f32 %v4302, %v4673
      %v4675 = vpop.f32.mrf.mxu0
      %v4676 = vpop.f32.mrf.mxu0
      %4677 = vdwg.mxu0
      %4678 = vmatprep.subr.bf16.mxu0 0
      %4679 = vmatpush1.bf16.msra.mxu0 0
      %4680 = vmatprep.subr.bf16.mxu0 0
      %4681 = vmatpush1.bf16.msra.mxu0 0
      %4682 = vmatprep.subr.bf16.mxu0 0
      %4683 = vmatpush1.bf16.msra.mxu0 0
      %4684 = vmatprep.subr.bf16.mxu0 0
      %4685 = vmatpush1.bf16.msra.mxu0 0
      %4686 = vmatprep.subr.bf16.mxu0 0
      %4687 = vmatpush1.bf16.msra.mxu0 0
      %4688 = vmatprep.subr.bf16.mxu0 0
      %4689 = vmatpush1.bf16.msra.mxu0 0
      %4690 = vmatprep.subr.bf16.mxu0 %v4472
      %4691 = vmatpush1.bf16.msra.mxu0 %v4471
      %4692 = vmatprep.subr.bf16.mxu0 %v4456
      %4693 = vmatpush1.bf16.msra.mxu0 %v4455
      %4694 = vmatprep.subr.bf16.mxu0 0
      %4695 = vmatpush2.bf16.msra.mxu0 0
      %4696 = vmatprep.subr.bf16.mxu0 0
      %4697 = vmatpush2.bf16.msra.mxu0 0
      %4698 = vmatprep.subr.bf16.mxu0 0
      %4699 = vmatpush2.bf16.msra.mxu0 0
      %4700 = vmatprep.subr.bf16.mxu0 0
      %4701 = vmatpush2.bf16.msra.mxu0 0
      %4702 = vmatprep.subr.bf16.mxu0 0
      %4703 = vmatpush2.bf16.msra.mxu0 0
      %4704 = vmatprep.subr.bf16.mxu0 0
      %4705 = vmatpush2.bf16.msra.mxu0 0
      %4706 = vmatprep.subr.bf16.mxu0 0
      %4707 = vmatpush2.bf16.msra.mxu0 0
      %4708 = vmatprep.subr.bf16.mxu0 0
      %4709 = vmatpush2.bf16.msra.mxu0 0
      %4710 = vmatprep.mubr.bf16.mxu0 0
      %4711 = vmatmul.mubr.bf16.gmra.mxu0 %v4512
      %v4712 = vpop.f32.mrf.mxu0
      %v4713 = vadd.f32 %v4306, %v4712
      %v4714 = vpop.f32.mrf.mxu0
      %v4715 = vadd.f32 %v4310, %v4714
      %v4716 = vpop.f32.mrf.mxu0
      %v4717 = vpop.f32.mrf.mxu0
      %4718 = vdwg.mxu0
      %4719 = vmatprep.subr.bf16.mxu0 0
      %4720 = vmatpush1.bf16.msra.mxu0 0
      %4721 = vmatprep.subr.bf16.mxu0 0
      %4722 = vmatpush1.bf16.msra.mxu0 0
      %4723 = vmatprep.subr.bf16.mxu0 0
      %4724 = vmatpush1.bf16.msra.mxu0 0
      %4725 = vmatprep.subr.bf16.mxu0 0
      %4726 = vmatpush1.bf16.msra.mxu0 0
      %4727 = vmatprep.subr.bf16.mxu0 0
      %4728 = vmatpush1.bf16.msra.mxu0 0
      %4729 = vmatprep.subr.bf16.mxu0 0
      %4730 = vmatpush1.bf16.msra.mxu0 0
      %4731 = vmatprep.subr.bf16.mxu0 %v4474
      %4732 = vmatpush1.bf16.msra.mxu0 %v4473
      %4733 = vmatprep.subr.bf16.mxu0 %v4458
      %4734 = vmatpush1.bf16.msra.mxu0 %v4457
      %4735 = vmatprep.subr.bf16.mxu0 0
      %4736 = vmatpush2.bf16.msra.mxu0 0
      %4737 = vmatprep.subr.bf16.mxu0 0
      %4738 = vmatpush2.bf16.msra.mxu0 0
      %4739 = vmatprep.subr.bf16.mxu0 0
      %4740 = vmatpush2.bf16.msra.mxu0 0
      %4741 = vmatprep.subr.bf16.mxu0 0
      %4742 = vmatpush2.bf16.msra.mxu0 0
      %4743 = vmatprep.subr.bf16.mxu0 0
      %4744 = vmatpush2.bf16.msra.mxu0 0
      %4745 = vmatprep.subr.bf16.mxu0 0
      %4746 = vmatpush2.bf16.msra.mxu0 0
      %4747 = vmatprep.subr.bf16.mxu0 0
      %4748 = vmatpush2.bf16.msra.mxu0 0
      %4749 = vmatprep.subr.bf16.mxu0 0
      %4750 = vmatpush2.bf16.msra.mxu0 0
      %4751 = vmatprep.mubr.bf16.mxu0 0
      %4752 = vmatmul.mubr.bf16.gmra.mxu0 %v4512
      %v4753 = vpop.f32.mrf.mxu0
      %v4754 = vadd.f32 %v4314, %v4753
      %v4755 = vpop.f32.mrf.mxu0
      %v4756 = vadd.f32 %v4318, %v4755
      %v4757 = vpop.f32.mrf.mxu0
      %v4758 = vpop.f32.mrf.mxu0
      %4759 = vdwg.mxu0
      %4760 = vmatprep.subr.bf16.mxu0 0
      %4761 = vmatpush1.bf16.msra.mxu0 0
      %4762 = vmatprep.subr.bf16.mxu0 0
      %4763 = vmatpush1.bf16.msra.mxu0 0
      %4764 = vmatprep.subr.bf16.mxu0 0
      %4765 = vmatpush1.bf16.msra.mxu0 0
      %4766 = vmatprep.subr.bf16.mxu0 0
      %4767 = vmatpush1.bf16.msra.mxu0 0
      %4768 = vmatprep.subr.bf16.mxu0 0
      %4769 = vmatpush1.bf16.msra.mxu0 0
      %4770 = vmatprep.subr.bf16.mxu0 0
      %4771 = vmatpush1.bf16.msra.mxu0 0
      %4772 = vmatprep.subr.bf16.mxu0 %v4476
      %4773 = vmatpush1.bf16.msra.mxu0 %v4475
      %4774 = vmatprep.subr.bf16.mxu0 %v4460
      %4775 = vmatpush1.bf16.msra.mxu0 %v4459
      %4776 = vmatprep.subr.bf16.mxu0 0
      %4777 = vmatpush2.bf16.msra.mxu0 0
      %4778 = vmatprep.subr.bf16.mxu0 0
      %4779 = vmatpush2.bf16.msra.mxu0 0
      %4780 = vmatprep.subr.bf16.mxu0 0
      %4781 = vmatpush2.bf16.msra.mxu0 0
      %4782 = vmatprep.subr.bf16.mxu0 0
      %4783 = vmatpush2.bf16.msra.mxu0 0
      %4784 = vmatprep.subr.bf16.mxu0 0
      %4785 = vmatpush2.bf16.msra.mxu0 0
      %4786 = vmatprep.subr.bf16.mxu0 0
      %4787 = vmatpush2.bf16.msra.mxu0 0
      %4788 = vmatprep.subr.bf16.mxu0 0
      %4789 = vmatpush2.bf16.msra.mxu0 0
      %4790 = vmatprep.subr.bf16.mxu0 0
      %4791 = vmatpush2.bf16.msra.mxu0 0
      %4792 = vmatprep.mubr.bf16.mxu0 0
      %4793 = vmatmul.mubr.bf16.gmra.mxu0 %v4512
      %v4794 = vpop.f32.mrf.mxu0
      %v4795 = vadd.f32 %v4322, %v4794
      %v4796 = vpop.f32.mrf.mxu0
      %v4797 = vadd.f32 %v4326, %v4796
      %v4798 = vpop.f32.mrf.mxu0
      %v4799 = vpop.f32.mrf.mxu0
      %4800 = vdwg.mxu0
      %4801 = vmatprep.subr.bf16.mxu0 0
      %4802 = vmatpush1.bf16.msra.mxu0 0
      %4803 = vmatprep.subr.bf16.mxu0 0
      %4804 = vmatpush1.bf16.msra.mxu0 0
      %4805 = vmatprep.subr.bf16.mxu0 0
      %4806 = vmatpush1.bf16.msra.mxu0 0
      %4807 = vmatprep.subr.bf16.mxu0 0
      %4808 = vmatpush1.bf16.msra.mxu0 0
      %4809 = vmatprep.subr.bf16.mxu0 0
      %4810 = vmatpush1.bf16.msra.mxu0 0
      %4811 = vmatprep.subr.bf16.mxu0 0
      %4812 = vmatpush1.bf16.msra.mxu0 0
      %4813 = vmatprep.subr.bf16.mxu0 %v4478
      %4814 = vmatpush1.bf16.msra.mxu0 %v4477
      %4815 = vmatprep.subr.bf16.mxu0 %v4462
      %4816 = vmatpush1.bf16.msra.mxu0 %v4461
      %4817 = vmatprep.subr.bf16.mxu0 0
      %4818 = vmatpush2.bf16.msra.mxu0 0
      %4819 = vmatprep.subr.bf16.mxu0 0
      %4820 = vmatpush2.bf16.msra.mxu0 0
      %4821 = vmatprep.subr.bf16.mxu0 0
      %4822 = vmatpush2.bf16.msra.mxu0 0
      %4823 = vmatprep.subr.bf16.mxu0 0
      %4824 = vmatpush2.bf16.msra.mxu0 0
      %4825 = vmatprep.subr.bf16.mxu0 0
      %4826 = vmatpush2.bf16.msra.mxu0 0
      %4827 = vmatprep.subr.bf16.mxu0 0
      %4828 = vmatpush2.bf16.msra.mxu0 0
      %4829 = vmatprep.subr.bf16.mxu0 0
      %4830 = vmatpush2.bf16.msra.mxu0 0
      %4831 = vmatprep.subr.bf16.mxu0 0
      %4832 = vmatpush2.bf16.msra.mxu0 0
      %4833 = vmatprep.mubr.bf16.mxu0 0
      %4834 = vmatmul.mubr.bf16.gmra.mxu0 %v4512
      %v4835 = vpop.f32.mrf.mxu0
      %v4836 = vadd.f32 %v4330, %v4835
      %v4837 = vpop.f32.mrf.mxu0
      %v4838 = vadd.f32 %v4334, %v4837
      %v4839 = vpop.f32.mrf.mxu0
      %v4840 = vpop.f32.mrf.mxu0
      %4841 = vdwg.mxu0
      %v4842 = vmax.f32 %v4549, 0.0
      %v4843 = vmax.f32 %v4551, 0.0
      %v4844 = vmax.f32 %v4590, 0.0
      %v4845 = vmax.f32 %v4592, 0.0
      %v4846 = vmax.f32 %v4631, 0.0
      %v4847 = vmax.f32 %v4633, 0.0
      %v4848 = vmax.f32 %v4672, 0.0
      %v4849 = vmax.f32 %v4674, 0.0
      %v4850 = vmax.f32 %v4713, 0.0
      %v4851 = vmax.f32 %v4715, 0.0
      %v4852 = vmax.f32 %v4754, 0.0
      %v4853 = vmax.f32 %v4756, 0.0
      %v4854 = vmax.f32 %v4795, 0.0
      %v4855 = vmax.f32 %v4797, 0.0
      %v4856 = vmax.f32 %v4836, 0.0
      %v4857 = vmax.f32 %v4838, 0.0
      %v4858 = vpack.c.bf16 %v4842, %v4842
      %v4859 = vpack.c.bf16 %v4843, %v4843
      %v4860 = vpack.c.bf16 %v4844, %v4844
      %v4861 = vpack.c.bf16 %v4845, %v4845
      %v4862 = vpack.c.bf16 %v4846, %v4846
      %v4863 = vpack.c.bf16 %v4847, %v4847
      %v4864 = vpack.c.bf16 %v4848, %v4848
      %v4865 = vpack.c.bf16 %v4849, %v4849
      %v4866 = vpack.c.bf16 %v4850, %v4850
      %v4867 = vpack.c.bf16 %v4851, %v4851
      %v4868 = vpack.c.bf16 %v4852, %v4852
      %v4869 = vpack.c.bf16 %v4853, %v4853
      %v4870 = vpack.c.bf16 %v4854, %v4854
      %v4871 = vpack.c.bf16 %v4855, %v4855
      %v4872 = vpack.c.bf16 %v4856, %v4856
      %v4873 = vpack.c.bf16 %v4857, %v4857
      %s4874 = scalar_lea.vmem %s14, 1024
      %v4875 = vld [vmem:[%s4874] sm:$0xf]
      %v4876 = vld [vmem:[%s4874 + $0x4] sm:$0xf]
      %v4877 = vld [vmem:[%s4874 + $0x8] sm:$0xf]
      %v4878 = vld [vmem:[%s4874 + $0xc] sm:$0xf]
      %v4879 = vld [vmem:[%s4874 + $0x10] sm:$0xf]
      %v4880 = vld [vmem:[%s4874 + $0x14] sm:$0xf]
      %v4881 = vld [vmem:[%s4874 + $0x18] sm:$0xf]
      %v4882 = vld [vmem:[%s4874 + $0x1c] sm:$0xf]
      %v4883 = vld [vmem:[%s4874 + $0x20] sm:$0xf]
      %v4884 = vld [vmem:[%s4874 + $0x24] sm:$0xf]
      %v4885 = vld [vmem:[%s4874 + $0x28] sm:$0xf]
      %v4886 = vld [vmem:[%s4874 + $0x2c] sm:$0xf]
      %v4887 = vld [vmem:[%s4874 + $0x30] sm:$0xf]
      %v4888 = vld [vmem:[%s4874 + $0x34] sm:$0xf]
      %v4889 = vld [vmem:[%s4874 + $0x38] sm:$0xf]
      %v4890 = vld [vmem:[%s4874 + $0x3c] sm:$0xf]
      %v4891 = vld [vmem:[%s4874 + $0x40] sm:$0xf]
      %v4892 = vld [vmem:[%s4874 + $0x44] sm:$0xf]
      %v4893 = vld [vmem:[%s4874 + $0x48] sm:$0xf]
      %v4894 = vld [vmem:[%s4874 + $0x4c] sm:$0xf]
      %v4895 = vld [vmem:[%s4874 + $0x50] sm:$0xf]
      %v4896 = vld [vmem:[%s4874 + $0x54] sm:$0xf]
      %v4897 = vld [vmem:[%s4874 + $0x58] sm:$0xf]
      %v4898 = vld [vmem:[%s4874 + $0x5c] sm:$0xf]
      %v4899 = vld [vmem:[%s4874 + $0x60] sm:$0xf]
      %v4900 = vld [vmem:[%s4874 + $0x64] sm:$0xf]
      %v4901 = vld [vmem:[%s4874 + $0x68] sm:$0xf]
      %v4902 = vld [vmem:[%s4874 + $0x6c] sm:$0xf]
      %v4903 = vld [vmem:[%s4874 + $0x70] sm:$0xf]
      %v4904 = vld [vmem:[%s4874 + $0x74] sm:$0xf]
      %v4905 = vld [vmem:[%s4874 + $0x78] sm:$0xf]
      %v4906 = vld [vmem:[%s4874 + $0x7c] sm:$0xf]
      %v4907 = vld [vmem:[%s4874 + $0x80] sm:$0xf]
      %v4908 = vld [vmem:[%s4874 + $0x84] sm:$0xf]
      %v4909 = vld [vmem:[%s4874 + $0x88] sm:$0xf]
      %v4910 = vld [vmem:[%s4874 + $0x8c] sm:$0xf]
      %v4911 = vld [vmem:[%s4874 + $0x90] sm:$0xf]
      %v4912 = vld [vmem:[%s4874 + $0x94] sm:$0xf]
      %v4913 = vld [vmem:[%s4874 + $0x98] sm:$0xf]
      %v4914 = vld [vmem:[%s4874 + $0x9c] sm:$0xf]
      %v4915 = vld [vmem:[%s4874 + $0xa0] sm:$0xf]
      %v4916 = vld [vmem:[%s4874 + $0xa4] sm:$0xf]
      %v4917 = vld [vmem:[%s4874 + $0xa8] sm:$0xf]
      %v4918 = vld [vmem:[%s4874 + $0xac] sm:$0xf]
      %v4919 = vld [vmem:[%s4874 + $0xb0] sm:$0xf]
      %v4920 = vld [vmem:[%s4874 + $0xb4] sm:$0xf]
      %v4921 = vld [vmem:[%s4874 + $0xb8] sm:$0xf]
      %v4922 = vld [vmem:[%s4874 + $0xbc] sm:$0xf]
      %v4923 = vld [vmem:[%s4874 + $0xc0] sm:$0xf]
      %v4924 = vld [vmem:[%s4874 + $0xc4] sm:$0xf]
      %v4925 = vld [vmem:[%s4874 + $0xc8] sm:$0xf]
      %v4926 = vld [vmem:[%s4874 + $0xcc] sm:$0xf]
      %v4927 = vld [vmem:[%s4874 + $0xd0] sm:$0xf]
      %v4928 = vld [vmem:[%s4874 + $0xd4] sm:$0xf]
      %v4929 = vld [vmem:[%s4874 + $0xd8] sm:$0xf]
      %v4930 = vld [vmem:[%s4874 + $0xdc] sm:$0xf]
      %v4931 = vld [vmem:[%s4874 + $0xe0] sm:$0xf]
      %v4932 = vld [vmem:[%s4874 + $0xe4] sm:$0xf]
      %v4933 = vld [vmem:[%s4874 + $0xe8] sm:$0xf]
      %v4934 = vld [vmem:[%s4874 + $0xec] sm:$0xf]
      %v4935 = vld [vmem:[%s4874 + $0xf0] sm:$0xf]
      %v4936 = vld [vmem:[%s4874 + $0xf4] sm:$0xf]
      %v4937 = vld [vmem:[%s4874 + $0xf8] sm:$0xf]
      %v4938 = vld [vmem:[%s4874 + $0xfc] sm:$0xf]
      %v4939 = vld [vmem:[%s4874 + $0x100] sm:$0xf]
      %v4940 = vld [vmem:[%s4874 + $0x104] sm:$0xf]
      %v4941 = vld [vmem:[%s4874 + $0x108] sm:$0xf]
      %v4942 = vld [vmem:[%s4874 + $0x10c] sm:$0xf]
      %v4943 = vld [vmem:[%s4874 + $0x110] sm:$0xf]
      %v4944 = vld [vmem:[%s4874 + $0x114] sm:$0xf]
      %v4945 = vld [vmem:[%s4874 + $0x118] sm:$0xf]
      %v4946 = vld [vmem:[%s4874 + $0x11c] sm:$0xf]
      %v4947 = vld [vmem:[%s4874 + $0x120] sm:$0xf]
      %v4948 = vld [vmem:[%s4874 + $0x124] sm:$0xf]
      %v4949 = vld [vmem:[%s4874 + $0x128] sm:$0xf]
      %v4950 = vld [vmem:[%s4874 + $0x12c] sm:$0xf]
      %v4951 = vld [vmem:[%s4874 + $0x130] sm:$0xf]
      %v4952 = vld [vmem:[%s4874 + $0x134] sm:$0xf]
      %v4953 = vld [vmem:[%s4874 + $0x138] sm:$0xf]
      %v4954 = vld [vmem:[%s4874 + $0x13c] sm:$0xf]
      %v4955 = vld [vmem:[%s4874 + $0x140] sm:$0xf]
      %v4956 = vld [vmem:[%s4874 + $0x144] sm:$0xf]
      %v4957 = vld [vmem:[%s4874 + $0x148] sm:$0xf]
      %v4958 = vld [vmem:[%s4874 + $0x14c] sm:$0xf]
      %v4959 = vld [vmem:[%s4874 + $0x150] sm:$0xf]
      %v4960 = vld [vmem:[%s4874 + $0x154] sm:$0xf]
      %v4961 = vld [vmem:[%s4874 + $0x158] sm:$0xf]
      %v4962 = vld [vmem:[%s4874 + $0x15c] sm:$0xf]
      %v4963 = vld [vmem:[%s4874 + $0x160] sm:$0xf]
      %v4964 = vld [vmem:[%s4874 + $0x164] sm:$0xf]
      %v4965 = vld [vmem:[%s4874 + $0x168] sm:$0xf]
      %v4966 = vld [vmem:[%s4874 + $0x16c] sm:$0xf]
      %v4967 = vld [vmem:[%s4874 + $0x170] sm:$0xf]
      %v4968 = vld [vmem:[%s4874 + $0x174] sm:$0xf]
      %v4969 = vld [vmem:[%s4874 + $0x178] sm:$0xf]
      %v4970 = vld [vmem:[%s4874 + $0x17c] sm:$0xf]
      %v4971 = vld [vmem:[%s4874 + $0x180] sm:$0xf]
      %v4972 = vld [vmem:[%s4874 + $0x184] sm:$0xf]
      %v4973 = vld [vmem:[%s4874 + $0x188] sm:$0xf]
      %v4974 = vld [vmem:[%s4874 + $0x18c] sm:$0xf]
      %v4975 = vld [vmem:[%s4874 + $0x190] sm:$0xf]
      %v4976 = vld [vmem:[%s4874 + $0x194] sm:$0xf]
      %v4977 = vld [vmem:[%s4874 + $0x198] sm:$0xf]
      %v4978 = vld [vmem:[%s4874 + $0x19c] sm:$0xf]
      %v4979 = vld [vmem:[%s4874 + $0x1a0] sm:$0xf]
      %v4980 = vld [vmem:[%s4874 + $0x1a4] sm:$0xf]
      %v4981 = vld [vmem:[%s4874 + $0x1a8] sm:$0xf]
      %v4982 = vld [vmem:[%s4874 + $0x1ac] sm:$0xf]
      %v4983 = vld [vmem:[%s4874 + $0x1b0] sm:$0xf]
      %v4984 = vld [vmem:[%s4874 + $0x1b4] sm:$0xf]
      %v4985 = vld [vmem:[%s4874 + $0x1b8] sm:$0xf]
      %v4986 = vld [vmem:[%s4874 + $0x1bc] sm:$0xf]
      %v4987 = vld [vmem:[%s4874 + $0x1c0] sm:$0xf]
      %v4988 = vld [vmem:[%s4874 + $0x1c4] sm:$0xf]
      %v4989 = vld [vmem:[%s4874 + $0x1c8] sm:$0xf]
      %v4990 = vld [vmem:[%s4874 + $0x1cc] sm:$0xf]
      %v4991 = vld [vmem:[%s4874 + $0x1d0] sm:$0xf]
      %v4992 = vld [vmem:[%s4874 + $0x1d4] sm:$0xf]
      %v4993 = vld [vmem:[%s4874 + $0x1d8] sm:$0xf]
      %v4994 = vld [vmem:[%s4874 + $0x1dc] sm:$0xf]
      %v4995 = vld [vmem:[%s4874 + $0x1e0] sm:$0xf]
      %v4996 = vld [vmem:[%s4874 + $0x1e4] sm:$0xf]
      %v4997 = vld [vmem:[%s4874 + $0x1e8] sm:$0xf]
      %v4998 = vld [vmem:[%s4874 + $0x1ec] sm:$0xf]
      %v4999 = vld [vmem:[%s4874 + $0x1f0] sm:$0xf]
      %v5000 = vld [vmem:[%s4874 + $0x1f4] sm:$0xf]
      %v5001 = vld [vmem:[%s4874 + $0x1f8] sm:$0xf]
      %v5002 = vld [vmem:[%s4874 + $0x1fc] sm:$0xf]
      %v5003 = vld [vmem:[%s4874 + $0x200] sm:$0xf]
      %v5004 = vld [vmem:[%s4874 + $0x204] sm:$0xf]
      %v5005 = vld [vmem:[%s4874 + $0x208] sm:$0xf]
      %v5006 = vld [vmem:[%s4874 + $0x20c] sm:$0xf]
      %v5007 = vld [vmem:[%s4874 + $0x210] sm:$0xf]
      %v5008 = vld [vmem:[%s4874 + $0x214] sm:$0xf]
      %v5009 = vld [vmem:[%s4874 + $0x218] sm:$0xf]
      %v5010 = vld [vmem:[%s4874 + $0x21c] sm:$0xf]
      %v5011 = vld [vmem:[%s4874 + $0x220] sm:$0xf]
      %v5012 = vld [vmem:[%s4874 + $0x224] sm:$0xf]
      %v5013 = vld [vmem:[%s4874 + $0x228] sm:$0xf]
      %v5014 = vld [vmem:[%s4874 + $0x22c] sm:$0xf]
      %v5015 = vld [vmem:[%s4874 + $0x230] sm:$0xf]
      %v5016 = vld [vmem:[%s4874 + $0x234] sm:$0xf]
      %v5017 = vld [vmem:[%s4874 + $0x238] sm:$0xf]
      %v5018 = vld [vmem:[%s4874 + $0x23c] sm:$0xf]
      %v5019 = vld [vmem:[%s4874 + $0x240] sm:$0xf]
      %v5020 = vld [vmem:[%s4874 + $0x244] sm:$0xf]
      %v5021 = vld [vmem:[%s4874 + $0x248] sm:$0xf]
      %v5022 = vld [vmem:[%s4874 + $0x24c] sm:$0xf]
      %v5023 = vld [vmem:[%s4874 + $0x250] sm:$0xf]
      %v5024 = vld [vmem:[%s4874 + $0x254] sm:$0xf]
      %v5025 = vld [vmem:[%s4874 + $0x258] sm:$0xf]
      %v5026 = vld [vmem:[%s4874 + $0x25c] sm:$0xf]
      %v5027 = vld [vmem:[%s4874 + $0x260] sm:$0xf]
      %v5028 = vld [vmem:[%s4874 + $0x264] sm:$0xf]
      %v5029 = vld [vmem:[%s4874 + $0x268] sm:$0xf]
      %v5030 = vld [vmem:[%s4874 + $0x26c] sm:$0xf]
      %v5031 = vld [vmem:[%s4874 + $0x270] sm:$0xf]
      %v5032 = vld [vmem:[%s4874 + $0x274] sm:$0xf]
      %v5033 = vld [vmem:[%s4874 + $0x278] sm:$0xf]
      %v5034 = vld [vmem:[%s4874 + $0x27c] sm:$0xf]
      %v5035 = vld [vmem:[%s4874 + $0x280] sm:$0xf]
      %v5036 = vld [vmem:[%s4874 + $0x284] sm:$0xf]
      %v5037 = vld [vmem:[%s4874 + $0x288] sm:$0xf]
      %v5038 = vld [vmem:[%s4874 + $0x28c] sm:$0xf]
      %v5039 = vld [vmem:[%s4874 + $0x290] sm:$0xf]
      %v5040 = vld [vmem:[%s4874 + $0x294] sm:$0xf]
      %v5041 = vld [vmem:[%s4874 + $0x298] sm:$0xf]
      %v5042 = vld [vmem:[%s4874 + $0x29c] sm:$0xf]
      %v5043 = vld [vmem:[%s4874 + $0x2a0] sm:$0xf]
      %v5044 = vld [vmem:[%s4874 + $0x2a4] sm:$0xf]
      %v5045 = vld [vmem:[%s4874 + $0x2a8] sm:$0xf]
      %v5046 = vld [vmem:[%s4874 + $0x2ac] sm:$0xf]
      %v5047 = vld [vmem:[%s4874 + $0x2b0] sm:$0xf]
      %v5048 = vld [vmem:[%s4874 + $0x2b4] sm:$0xf]
      %v5049 = vld [vmem:[%s4874 + $0x2b8] sm:$0xf]
      %v5050 = vld [vmem:[%s4874 + $0x2bc] sm:$0xf]
      %v5051 = vld [vmem:[%s4874 + $0x2c0] sm:$0xf]
      %v5052 = vld [vmem:[%s4874 + $0x2c4] sm:$0xf]
      %v5053 = vld [vmem:[%s4874 + $0x2c8] sm:$0xf]
      %v5054 = vld [vmem:[%s4874 + $0x2cc] sm:$0xf]
      %v5055 = vld [vmem:[%s4874 + $0x2d0] sm:$0xf]
      %v5056 = vld [vmem:[%s4874 + $0x2d4] sm:$0xf]
      %v5057 = vld [vmem:[%s4874 + $0x2d8] sm:$0xf]
      %v5058 = vld [vmem:[%s4874 + $0x2dc] sm:$0xf]
      %v5059 = vld [vmem:[%s4874 + $0x2e0] sm:$0xf]
      %v5060 = vld [vmem:[%s4874 + $0x2e4] sm:$0xf]
      %v5061 = vld [vmem:[%s4874 + $0x2e8] sm:$0xf]
      %v5062 = vld [vmem:[%s4874 + $0x2ec] sm:$0xf]
      %v5063 = vld [vmem:[%s4874 + $0x2f0] sm:$0xf]
      %v5064 = vld [vmem:[%s4874 + $0x2f4] sm:$0xf]
      %v5065 = vld [vmem:[%s4874 + $0x2f8] sm:$0xf]
      %v5066 = vld [vmem:[%s4874 + $0x2fc] sm:$0xf]
      %v5067 = vld [vmem:[%s4874 + $0x300] sm:$0xf]
      %v5068 = vld [vmem:[%s4874 + $0x304] sm:$0xf]
      %v5069 = vld [vmem:[%s4874 + $0x308] sm:$0xf]
      %v5070 = vld [vmem:[%s4874 + $0x30c] sm:$0xf]
      %v5071 = vld [vmem:[%s4874 + $0x310] sm:$0xf]
      %v5072 = vld [vmem:[%s4874 + $0x314] sm:$0xf]
      %v5073 = vld [vmem:[%s4874 + $0x318] sm:$0xf]
      %v5074 = vld [vmem:[%s4874 + $0x31c] sm:$0xf]
      %v5075 = vld [vmem:[%s4874 + $0x320] sm:$0xf]
      %v5076 = vld [vmem:[%s4874 + $0x324] sm:$0xf]
      %v5077 = vld [vmem:[%s4874 + $0x328] sm:$0xf]
      %v5078 = vld [vmem:[%s4874 + $0x32c] sm:$0xf]
      %v5079 = vld [vmem:[%s4874 + $0x330] sm:$0xf]
      %v5080 = vld [vmem:[%s4874 + $0x334] sm:$0xf]
      %v5081 = vld [vmem:[%s4874 + $0x338] sm:$0xf]
      %v5082 = vld [vmem:[%s4874 + $0x33c] sm:$0xf]
      %v5083 = vld [vmem:[%s4874 + $0x340] sm:$0xf]
      %v5084 = vld [vmem:[%s4874 + $0x344] sm:$0xf]
      %v5085 = vld [vmem:[%s4874 + $0x348] sm:$0xf]
      %v5086 = vld [vmem:[%s4874 + $0x34c] sm:$0xf]
      %v5087 = vld [vmem:[%s4874 + $0x350] sm:$0xf]
      %v5088 = vld [vmem:[%s4874 + $0x354] sm:$0xf]
      %v5089 = vld [vmem:[%s4874 + $0x358] sm:$0xf]
      %v5090 = vld [vmem:[%s4874 + $0x35c] sm:$0xf]
      %v5091 = vld [vmem:[%s4874 + $0x360] sm:$0xf]
      %v5092 = vld [vmem:[%s4874 + $0x364] sm:$0xf]
      %v5093 = vld [vmem:[%s4874 + $0x368] sm:$0xf]
      %v5094 = vld [vmem:[%s4874 + $0x36c] sm:$0xf]
      %v5095 = vld [vmem:[%s4874 + $0x370] sm:$0xf]
      %v5096 = vld [vmem:[%s4874 + $0x374] sm:$0xf]
      %v5097 = vld [vmem:[%s4874 + $0x378] sm:$0xf]
      %v5098 = vld [vmem:[%s4874 + $0x37c] sm:$0xf]
      %v5099 = vld [vmem:[%s4874 + $0x380] sm:$0xf]
      %v5100 = vld [vmem:[%s4874 + $0x384] sm:$0xf]
      %v5101 = vld [vmem:[%s4874 + $0x388] sm:$0xf]
      %v5102 = vld [vmem:[%s4874 + $0x38c] sm:$0xf]
      %v5103 = vld [vmem:[%s4874 + $0x390] sm:$0xf]
      %v5104 = vld [vmem:[%s4874 + $0x394] sm:$0xf]
      %v5105 = vld [vmem:[%s4874 + $0x398] sm:$0xf]
      %v5106 = vld [vmem:[%s4874 + $0x39c] sm:$0xf]
      %v5107 = vld [vmem:[%s4874 + $0x3a0] sm:$0xf]
      %v5108 = vld [vmem:[%s4874 + $0x3a4] sm:$0xf]
      %v5109 = vld [vmem:[%s4874 + $0x3a8] sm:$0xf]
      %v5110 = vld [vmem:[%s4874 + $0x3ac] sm:$0xf]
      %v5111 = vld [vmem:[%s4874 + $0x3b0] sm:$0xf]
      %v5112 = vld [vmem:[%s4874 + $0x3b4] sm:$0xf]
      %v5113 = vld [vmem:[%s4874 + $0x3b8] sm:$0xf]
      %v5114 = vld [vmem:[%s4874 + $0x3bc] sm:$0xf]
      %v5115 = vld [vmem:[%s4874 + $0x3c0] sm:$0xf]
      %v5116 = vld [vmem:[%s4874 + $0x3c4] sm:$0xf]
      %v5117 = vld [vmem:[%s4874 + $0x3c8] sm:$0xf]
      %v5118 = vld [vmem:[%s4874 + $0x3cc] sm:$0xf]
      %v5119 = vld [vmem:[%s4874 + $0x3d0] sm:$0xf]
      %v5120 = vld [vmem:[%s4874 + $0x3d4] sm:$0xf]
      %v5121 = vld [vmem:[%s4874 + $0x3d8] sm:$0xf]
      %v5122 = vld [vmem:[%s4874 + $0x3dc] sm:$0xf]
      %v5123 = vld [vmem:[%s4874 + $0x3e0] sm:$0xf]
      %v5124 = vld [vmem:[%s4874 + $0x3e4] sm:$0xf]
      %v5125 = vld [vmem:[%s4874 + $0x3e8] sm:$0xf]
      %v5126 = vld [vmem:[%s4874 + $0x3ec] sm:$0xf]
      %v5127 = vld [vmem:[%s4874 + $0x3f0] sm:$0xf]
      %v5128 = vld [vmem:[%s4874 + $0x3f4] sm:$0xf]
      %v5129 = vld [vmem:[%s4874 + $0x3f8] sm:$0xf]
      %v5130 = vld [vmem:[%s4874 + $0x3fc] sm:$0xf]
      %s5131 = scalar_lea.vmem %s15, 1
      %v5132 = vld [vmem:[%s5131] sm:$0x1]
      %v5134 = vlaneseq
      %v5135 = vshrl.u32 %v5134, 7
      %v5136 = vsub.s32 0, %v5135
      %v5137 = vrot.slane %v5132, %v5136
      %v5395 = vunpack.c.l.b16 %v4875
      %v5396 = vunpack.c.l.b16 %v4876
      %v5397 = vunpack.c.l.b16 %v4877
      %v5398 = vunpack.c.l.b16 %v4878
      %v5399 = vunpack.c.l.b16 %v4879
      %v5400 = vunpack.c.l.b16 %v4880
      %v5401 = vunpack.c.l.b16 %v4881
      %v5402 = vunpack.c.l.b16 %v4882
      %v5403 = vunpack.c.l.b16 %v4883
      %v5404 = vunpack.c.l.b16 %v4884
      %v5405 = vunpack.c.l.b16 %v4885
      %v5406 = vunpack.c.l.b16 %v4886
      %v5407 = vunpack.c.l.b16 %v4887
      %v5408 = vunpack.c.l.b16 %v4888
      %v5409 = vunpack.c.l.b16 %v4889
      %v5410 = vunpack.c.l.b16 %v4890
      %v5411 = vunpack.c.l.b16 %v4891
      %v5412 = vunpack.c.l.b16 %v4892
      %v5413 = vunpack.c.l.b16 %v4893
      %v5414 = vunpack.c.l.b16 %v4894
      %v5415 = vunpack.c.l.b16 %v4895
      %v5416 = vunpack.c.l.b16 %v4896
      %v5417 = vunpack.c.l.b16 %v4897
      %v5418 = vunpack.c.l.b16 %v4898
      %v5419 = vunpack.c.l.b16 %v4899
      %v5420 = vunpack.c.l.b16 %v4900
      %v5421 = vunpack.c.l.b16 %v4901
      %v5422 = vunpack.c.l.b16 %v4902
      %v5423 = vunpack.c.l.b16 %v4903
      %v5424 = vunpack.c.l.b16 %v4904
      %v5425 = vunpack.c.l.b16 %v4905
      %v5426 = vunpack.c.l.b16 %v4906
      %v5427 = vunpack.c.l.b16 %v4907
      %v5428 = vunpack.c.l.b16 %v4908
      %v5429 = vunpack.c.l.b16 %v4909
      %v5430 = vunpack.c.l.b16 %v4910
      %v5431 = vunpack.c.l.b16 %v4911
      %v5432 = vunpack.c.l.b16 %v4912
      %v5433 = vunpack.c.l.b16 %v4913
      %v5434 = vunpack.c.l.b16 %v4914
      %v5435 = vunpack.c.l.b16 %v4915
      %v5436 = vunpack.c.l.b16 %v4916
      %v5437 = vunpack.c.l.b16 %v4917
      %v5438 = vunpack.c.l.b16 %v4918
      %v5439 = vunpack.c.l.b16 %v4919
      %v5440 = vunpack.c.l.b16 %v4920
      %v5441 = vunpack.c.l.b16 %v4921
      %v5442 = vunpack.c.l.b16 %v4922
      %v5443 = vunpack.c.l.b16 %v4923
      %v5444 = vunpack.c.l.b16 %v4924
      %v5445 = vunpack.c.l.b16 %v4925
      %v5446 = vunpack.c.l.b16 %v4926
      %v5447 = vunpack.c.l.b16 %v4927
      %v5448 = vunpack.c.l.b16 %v4928
      %v5449 = vunpack.c.l.b16 %v4929
      %v5450 = vunpack.c.l.b16 %v4930
      %v5451 = vunpack.c.l.b16 %v4931
      %v5452 = vunpack.c.l.b16 %v4932
      %v5453 = vunpack.c.l.b16 %v4933
      %v5454 = vunpack.c.l.b16 %v4934
      %v5455 = vunpack.c.l.b16 %v4935
      %v5456 = vunpack.c.l.b16 %v4936
      %v5457 = vunpack.c.l.b16 %v4937
      %v5458 = vunpack.c.l.b16 %v4938
      %v5459 = vunpack.c.l.b16 %v4939
      %v5460 = vunpack.c.l.b16 %v4940
      %v5461 = vunpack.c.l.b16 %v4941
      %v5462 = vunpack.c.l.b16 %v4942
      %v5463 = vunpack.c.l.b16 %v4943
      %v5464 = vunpack.c.l.b16 %v4944
      %v5465 = vunpack.c.l.b16 %v4945
      %v5466 = vunpack.c.l.b16 %v4946
      %v5467 = vunpack.c.l.b16 %v4947
      %v5468 = vunpack.c.l.b16 %v4948
      %v5469 = vunpack.c.l.b16 %v4949
      %v5470 = vunpack.c.l.b16 %v4950
      %v5471 = vunpack.c.l.b16 %v4951
      %v5472 = vunpack.c.l.b16 %v4952
      %v5473 = vunpack.c.l.b16 %v4953
      %v5474 = vunpack.c.l.b16 %v4954
      %v5475 = vunpack.c.l.b16 %v4955
      %v5476 = vunpack.c.l.b16 %v4956
      %v5477 = vunpack.c.l.b16 %v4957
      %v5478 = vunpack.c.l.b16 %v4958
      %v5479 = vunpack.c.l.b16 %v4959
      %v5480 = vunpack.c.l.b16 %v4960
      %v5481 = vunpack.c.l.b16 %v4961
      %v5482 = vunpack.c.l.b16 %v4962
      %v5483 = vunpack.c.l.b16 %v4963
      %v5484 = vunpack.c.l.b16 %v4964
      %v5485 = vunpack.c.l.b16 %v4965
      %v5486 = vunpack.c.l.b16 %v4966
      %v5487 = vunpack.c.l.b16 %v4967
      %v5488 = vunpack.c.l.b16 %v4968
      %v5489 = vunpack.c.l.b16 %v4969
      %v5490 = vunpack.c.l.b16 %v4970
      %v5491 = vunpack.c.l.b16 %v4971
      %v5492 = vunpack.c.l.b16 %v4972
      %v5493 = vunpack.c.l.b16 %v4973
      %v5494 = vunpack.c.l.b16 %v4974
      %v5495 = vunpack.c.l.b16 %v4975
      %v5496 = vunpack.c.l.b16 %v4976
      %v5497 = vunpack.c.l.b16 %v4977
      %v5498 = vunpack.c.l.b16 %v4978
      %v5499 = vunpack.c.l.b16 %v4979
      %v5500 = vunpack.c.l.b16 %v4980
      %v5501 = vunpack.c.l.b16 %v4981
      %v5502 = vunpack.c.l.b16 %v4982
      %v5503 = vunpack.c.l.b16 %v4983
      %v5504 = vunpack.c.l.b16 %v4984
      %v5505 = vunpack.c.l.b16 %v4985
      %v5506 = vunpack.c.l.b16 %v4986
      %v5507 = vunpack.c.l.b16 %v4987
      %v5508 = vunpack.c.l.b16 %v4988
      %v5509 = vunpack.c.l.b16 %v4989
      %v5510 = vunpack.c.l.b16 %v4990
      %v5511 = vunpack.c.l.b16 %v4991
      %v5512 = vunpack.c.l.b16 %v4992
      %v5513 = vunpack.c.l.b16 %v4993
      %v5514 = vunpack.c.l.b16 %v4994
      %v5515 = vunpack.c.l.b16 %v4995
      %v5516 = vunpack.c.l.b16 %v4996
      %v5517 = vunpack.c.l.b16 %v4997
      %v5518 = vunpack.c.l.b16 %v4998
      %v5519 = vunpack.c.l.b16 %v4999
      %v5520 = vunpack.c.l.b16 %v5000
      %v5521 = vunpack.c.l.b16 %v5001
      %v5522 = vunpack.c.l.b16 %v5002
      %v5523 = vunpack.c.l.b16 %v5003
      %v5524 = vunpack.c.l.b16 %v5004
      %v5525 = vunpack.c.l.b16 %v5005
      %v5526 = vunpack.c.l.b16 %v5006
      %v5527 = vunpack.c.l.b16 %v5007
      %v5528 = vunpack.c.l.b16 %v5008
      %v5529 = vunpack.c.l.b16 %v5009
      %v5530 = vunpack.c.l.b16 %v5010
      %v5531 = vunpack.c.l.b16 %v5011
      %v5532 = vunpack.c.l.b16 %v5012
      %v5533 = vunpack.c.l.b16 %v5013
      %v5534 = vunpack.c.l.b16 %v5014
      %v5535 = vunpack.c.l.b16 %v5015
      %v5536 = vunpack.c.l.b16 %v5016
      %v5537 = vunpack.c.l.b16 %v5017
      %v5538 = vunpack.c.l.b16 %v5018
      %v5539 = vunpack.c.l.b16 %v5019
      %v5540 = vunpack.c.l.b16 %v5020
      %v5541 = vunpack.c.l.b16 %v5021
      %v5542 = vunpack.c.l.b16 %v5022
      %v5543 = vunpack.c.l.b16 %v5023
      %v5544 = vunpack.c.l.b16 %v5024
      %v5545 = vunpack.c.l.b16 %v5025
      %v5546 = vunpack.c.l.b16 %v5026
      %v5547 = vunpack.c.l.b16 %v5027
      %v5548 = vunpack.c.l.b16 %v5028
      %v5549 = vunpack.c.l.b16 %v5029
      %v5550 = vunpack.c.l.b16 %v5030
      %v5551 = vunpack.c.l.b16 %v5031
      %v5552 = vunpack.c.l.b16 %v5032
      %v5553 = vunpack.c.l.b16 %v5033
      %v5554 = vunpack.c.l.b16 %v5034
      %v5555 = vunpack.c.l.b16 %v5035
      %v5556 = vunpack.c.l.b16 %v5036
      %v5557 = vunpack.c.l.b16 %v5037
      %v5558 = vunpack.c.l.b16 %v5038
      %v5559 = vunpack.c.l.b16 %v5039
      %v5560 = vunpack.c.l.b16 %v5040
      %v5561 = vunpack.c.l.b16 %v5041
      %v5562 = vunpack.c.l.b16 %v5042
      %v5563 = vunpack.c.l.b16 %v5043
      %v5564 = vunpack.c.l.b16 %v5044
      %v5565 = vunpack.c.l.b16 %v5045
      %v5566 = vunpack.c.l.b16 %v5046
      %v5567 = vunpack.c.l.b16 %v5047
      %v5568 = vunpack.c.l.b16 %v5048
      %v5569 = vunpack.c.l.b16 %v5049
      %v5570 = vunpack.c.l.b16 %v5050
      %v5571 = vunpack.c.l.b16 %v5051
      %v5572 = vunpack.c.l.b16 %v5052
      %v5573 = vunpack.c.l.b16 %v5053
      %v5574 = vunpack.c.l.b16 %v5054
      %v5575 = vunpack.c.l.b16 %v5055
      %v5576 = vunpack.c.l.b16 %v5056
      %v5577 = vunpack.c.l.b16 %v5057
      %v5578 = vunpack.c.l.b16 %v5058
      %v5579 = vunpack.c.l.b16 %v5059
      %v5580 = vunpack.c.l.b16 %v5060
      %v5581 = vunpack.c.l.b16 %v5061
      %v5582 = vunpack.c.l.b16 %v5062
      %v5583 = vunpack.c.l.b16 %v5063
      %v5584 = vunpack.c.l.b16 %v5064
      %v5585 = vunpack.c.l.b16 %v5065
      %v5586 = vunpack.c.l.b16 %v5066
      %v5587 = vunpack.c.l.b16 %v5067
      %v5588 = vunpack.c.l.b16 %v5068
      %v5589 = vunpack.c.l.b16 %v5069
      %v5590 = vunpack.c.l.b16 %v5070
      %v5591 = vunpack.c.l.b16 %v5071
      %v5592 = vunpack.c.l.b16 %v5072
      %v5593 = vunpack.c.l.b16 %v5073
      %v5594 = vunpack.c.l.b16 %v5074
      %v5595 = vunpack.c.l.b16 %v5075
      %v5596 = vunpack.c.l.b16 %v5076
      %v5597 = vunpack.c.l.b16 %v5077
      %v5598 = vunpack.c.l.b16 %v5078
      %v5599 = vunpack.c.l.b16 %v5079
      %v5600 = vunpack.c.l.b16 %v5080
      %v5601 = vunpack.c.l.b16 %v5081
      %v5602 = vunpack.c.l.b16 %v5082
      %v5603 = vunpack.c.l.b16 %v5083
      %v5604 = vunpack.c.l.b16 %v5084
      %v5605 = vunpack.c.l.b16 %v5085
      %v5606 = vunpack.c.l.b16 %v5086
      %v5607 = vunpack.c.l.b16 %v5087
      %v5608 = vunpack.c.l.b16 %v5088
      %v5609 = vunpack.c.l.b16 %v5089
      %v5610 = vunpack.c.l.b16 %v5090
      %v5611 = vunpack.c.l.b16 %v5091
      %v5612 = vunpack.c.l.b16 %v5092
      %v5613 = vunpack.c.l.b16 %v5093
      %v5614 = vunpack.c.l.b16 %v5094
      %v5615 = vunpack.c.l.b16 %v5095
      %v5616 = vunpack.c.l.b16 %v5096
      %v5617 = vunpack.c.l.b16 %v5097
      %v5618 = vunpack.c.l.b16 %v5098
      %v5619 = vunpack.c.l.b16 %v5099
      %v5620 = vunpack.c.l.b16 %v5100
      %v5621 = vunpack.c.l.b16 %v5101
      %v5622 = vunpack.c.l.b16 %v5102
      %v5623 = vunpack.c.l.b16 %v5103
      %v5624 = vunpack.c.l.b16 %v5104
      %v5625 = vunpack.c.l.b16 %v5105
      %v5626 = vunpack.c.l.b16 %v5106
      %v5627 = vunpack.c.l.b16 %v5107
      %v5628 = vunpack.c.l.b16 %v5108
      %v5629 = vunpack.c.l.b16 %v5109
      %v5630 = vunpack.c.l.b16 %v5110
      %v5631 = vunpack.c.l.b16 %v5111
      %v5632 = vunpack.c.l.b16 %v5112
      %v5633 = vunpack.c.l.b16 %v5113
      %v5634 = vunpack.c.l.b16 %v5114
      %v5635 = vunpack.c.l.b16 %v5115
      %v5636 = vunpack.c.l.b16 %v5116
      %v5637 = vunpack.c.l.b16 %v5117
      %v5638 = vunpack.c.l.b16 %v5118
      %v5639 = vunpack.c.l.b16 %v5119
      %v5640 = vunpack.c.l.b16 %v5120
      %v5641 = vunpack.c.l.b16 %v5121
      %v5642 = vunpack.c.l.b16 %v5122
      %v5643 = vunpack.c.l.b16 %v5123
      %v5644 = vunpack.c.l.b16 %v5124
      %v5645 = vunpack.c.l.b16 %v5125
      %v5646 = vunpack.c.l.b16 %v5126
      %v5647 = vunpack.c.l.b16 %v5127
      %v5648 = vunpack.c.l.b16 %v5128
      %v5649 = vunpack.c.l.b16 %v5129
      %v5650 = vunpack.c.l.b16 %v5130
      %v5651 = vpack.c.b16 %v5396, %v5395
      %v5652 = vpack.c.b16 %v5398, %v5397
      %v5653 = vpack.c.b16 %v5400, %v5399
      %v5654 = vpack.c.b16 %v5402, %v5401
      %v5655 = vpack.c.b16 %v5404, %v5403
      %v5656 = vpack.c.b16 %v5406, %v5405
      %v5657 = vpack.c.b16 %v5408, %v5407
      %v5658 = vpack.c.b16 %v5410, %v5409
      %v5659 = vpack.c.b16 %v5412, %v5411
      %v5660 = vpack.c.b16 %v5414, %v5413
      %v5661 = vpack.c.b16 %v5416, %v5415
      %v5662 = vpack.c.b16 %v5418, %v5417
      %v5663 = vpack.c.b16 %v5420, %v5419
      %v5664 = vpack.c.b16 %v5422, %v5421
      %v5665 = vpack.c.b16 %v5424, %v5423
      %v5666 = vpack.c.b16 %v5426, %v5425
      %v5667 = vpack.c.b16 %v5428, %v5427
      %v5668 = vpack.c.b16 %v5430, %v5429
      %v5669 = vpack.c.b16 %v5432, %v5431
      %v5670 = vpack.c.b16 %v5434, %v5433
      %v5671 = vpack.c.b16 %v5436, %v5435
      %v5672 = vpack.c.b16 %v5438, %v5437
      %v5673 = vpack.c.b16 %v5440, %v5439
      %v5674 = vpack.c.b16 %v5442, %v5441
      %v5675 = vpack.c.b16 %v5444, %v5443
      %v5676 = vpack.c.b16 %v5446, %v5445
      %v5677 = vpack.c.b16 %v5448, %v5447
      %v5678 = vpack.c.b16 %v5450, %v5449
      %v5679 = vpack.c.b16 %v5452, %v5451
      %v5680 = vpack.c.b16 %v5454, %v5453
      %v5681 = vpack.c.b16 %v5456, %v5455
      %v5682 = vpack.c.b16 %v5458, %v5457
      %v5683 = vpack.c.b16 %v5460, %v5459
      %v5684 = vpack.c.b16 %v5462, %v5461
      %v5685 = vpack.c.b16 %v5464, %v5463
      %v5686 = vpack.c.b16 %v5466, %v5465
      %v5687 = vpack.c.b16 %v5468, %v5467
      %v5688 = vpack.c.b16 %v5470, %v5469
      %v5689 = vpack.c.b16 %v5472, %v5471
      %v5690 = vpack.c.b16 %v5474, %v5473
      %v5691 = vpack.c.b16 %v5476, %v5475
      %v5692 = vpack.c.b16 %v5478, %v5477
      %v5693 = vpack.c.b16 %v5480, %v5479
      %v5694 = vpack.c.b16 %v5482, %v5481
      %v5695 = vpack.c.b16 %v5484, %v5483
      %v5696 = vpack.c.b16 %v5486, %v5485
      %v5697 = vpack.c.b16 %v5488, %v5487
      %v5698 = vpack.c.b16 %v5490, %v5489
      %v5699 = vpack.c.b16 %v5492, %v5491
      %v5700 = vpack.c.b16 %v5494, %v5493
      %v5701 = vpack.c.b16 %v5496, %v5495
      %v5702 = vpack.c.b16 %v5498, %v5497
      %v5703 = vpack.c.b16 %v5500, %v5499
      %v5704 = vpack.c.b16 %v5502, %v5501
      %v5705 = vpack.c.b16 %v5504, %v5503
      %v5706 = vpack.c.b16 %v5506, %v5505
      %v5707 = vpack.c.b16 %v5508, %v5507
      %v5708 = vpack.c.b16 %v5510, %v5509
      %v5709 = vpack.c.b16 %v5512, %v5511
      %v5710 = vpack.c.b16 %v5514, %v5513
      %v5711 = vpack.c.b16 %v5516, %v5515
      %v5712 = vpack.c.b16 %v5518, %v5517
      %v5713 = vpack.c.b16 %v5520, %v5519
      %v5714 = vpack.c.b16 %v5522, %v5521
      %v5715 = vpack.c.b16 %v5524, %v5523
      %v5716 = vpack.c.b16 %v5526, %v5525
      %v5717 = vpack.c.b16 %v5528, %v5527
      %v5718 = vpack.c.b16 %v5530, %v5529
      %v5719 = vpack.c.b16 %v5532, %v5531
      %v5720 = vpack.c.b16 %v5534, %v5533
      %v5721 = vpack.c.b16 %v5536, %v5535
      %v5722 = vpack.c.b16 %v5538, %v5537
      %v5723 = vpack.c.b16 %v5540, %v5539
      %v5724 = vpack.c.b16 %v5542, %v5541
      %v5725 = vpack.c.b16 %v5544, %v5543
      %v5726 = vpack.c.b16 %v5546, %v5545
      %v5727 = vpack.c.b16 %v5548, %v5547
      %v5728 = vpack.c.b16 %v5550, %v5549
      %v5729 = vpack.c.b16 %v5552, %v5551
      %v5730 = vpack.c.b16 %v5554, %v5553
      %v5731 = vpack.c.b16 %v5556, %v5555
      %v5732 = vpack.c.b16 %v5558, %v5557
      %v5733 = vpack.c.b16 %v5560, %v5559
      %v5734 = vpack.c.b16 %v5562, %v5561
      %v5735 = vpack.c.b16 %v5564, %v5563
      %v5736 = vpack.c.b16 %v5566, %v5565
      %v5737 = vpack.c.b16 %v5568, %v5567
      %v5738 = vpack.c.b16 %v5570, %v5569
      %v5739 = vpack.c.b16 %v5572, %v5571
      %v5740 = vpack.c.b16 %v5574, %v5573
      %v5741 = vpack.c.b16 %v5576, %v5575
      %v5742 = vpack.c.b16 %v5578, %v5577
      %v5743 = vpack.c.b16 %v5580, %v5579
      %v5744 = vpack.c.b16 %v5582, %v5581
      %v5745 = vpack.c.b16 %v5584, %v5583
      %v5746 = vpack.c.b16 %v5586, %v5585
      %v5747 = vpack.c.b16 %v5588, %v5587
      %v5748 = vpack.c.b16 %v5590, %v5589
      %v5749 = vpack.c.b16 %v5592, %v5591
      %v5750 = vpack.c.b16 %v5594, %v5593
      %v5751 = vpack.c.b16 %v5596, %v5595
      %v5752 = vpack.c.b16 %v5598, %v5597
      %v5753 = vpack.c.b16 %v5600, %v5599
      %v5754 = vpack.c.b16 %v5602, %v5601
      %v5755 = vpack.c.b16 %v5604, %v5603
      %v5756 = vpack.c.b16 %v5606, %v5605
      %v5757 = vpack.c.b16 %v5608, %v5607
      %v5758 = vpack.c.b16 %v5610, %v5609
      %v5759 = vpack.c.b16 %v5612, %v5611
      %v5760 = vpack.c.b16 %v5614, %v5613
      %v5761 = vpack.c.b16 %v5616, %v5615
      %v5762 = vpack.c.b16 %v5618, %v5617
      %v5763 = vpack.c.b16 %v5620, %v5619
      %v5764 = vpack.c.b16 %v5622, %v5621
      %v5765 = vpack.c.b16 %v5624, %v5623
      %v5766 = vpack.c.b16 %v5626, %v5625
      %v5767 = vpack.c.b16 %v5628, %v5627
      %v5768 = vpack.c.b16 %v5630, %v5629
      %v5769 = vpack.c.b16 %v5632, %v5631
      %v5770 = vpack.c.b16 %v5634, %v5633
      %v5771 = vpack.c.b16 %v5636, %v5635
      %v5772 = vpack.c.b16 %v5638, %v5637
      %v5773 = vpack.c.b16 %v5640, %v5639
      %v5774 = vpack.c.b16 %v5642, %v5641
      %v5775 = vpack.c.b16 %v5644, %v5643
      %v5776 = vpack.c.b16 %v5646, %v5645
      %v5777 = vpack.c.b16 %v5648, %v5647
      %v5778 = vpack.c.b16 %v5650, %v5649
      %5907 = vmatprep.subr.bf16.mxu0 0
      %5908 = vmatpush1.bf16.msra.mxu0 %v5658
      %5909 = vmatprep.subr.bf16.mxu0 0
      %5910 = vmatpush1.bf16.msra.mxu0 %v5657
      %5911 = vmatprep.subr.bf16.mxu0 0
      %5912 = vmatpush1.bf16.msra.mxu0 %v5656
      %5913 = vmatprep.subr.bf16.mxu0 0
      %5914 = vmatpush1.bf16.msra.mxu0 %v5655
      %5915 = vmatprep.subr.bf16.mxu0 0
      %5916 = vmatpush1.bf16.msra.mxu0 %v5654
      %5917 = vmatprep.subr.bf16.mxu0 0
      %5918 = vmatpush1.bf16.msra.mxu0 %v5653
      %5919 = vmatprep.subr.bf16.mxu0 0
      %5920 = vmatpush1.bf16.msra.mxu0 %v5652
      %5921 = vmatprep.subr.bf16.mxu0 0
      %5922 = vmatpush1.bf16.msra.mxu0 %v5651
      %5923 = vmatprep.subr.bf16.mxu0 0
      %5924 = vmatpush2.bf16.msra.mxu0 %v5666
      %5925 = vmatprep.subr.bf16.mxu0 0
      %5926 = vmatpush2.bf16.msra.mxu0 %v5665
      %5927 = vmatprep.subr.bf16.mxu0 0
      %5928 = vmatpush2.bf16.msra.mxu0 %v5664
      %5929 = vmatprep.subr.bf16.mxu0 0
      %5930 = vmatpush2.bf16.msra.mxu0 %v5663
      %5931 = vmatprep.subr.bf16.mxu0 0
      %5932 = vmatpush2.bf16.msra.mxu0 %v5662
      %5933 = vmatprep.subr.bf16.mxu0 0
      %5934 = vmatpush2.bf16.msra.mxu0 %v5661
      %5935 = vmatprep.subr.bf16.mxu0 0
      %5936 = vmatpush2.bf16.msra.mxu0 %v5660
      %5937 = vmatprep.subr.bf16.mxu0 0
      %5938 = vmatpush2.bf16.msra.mxu0 %v5659
      %5939 = vmatprep.mubr.bf16.mxu0 %v4859
      %5940 = vmatmul.mubr.bf16.gmra.mxu0 %v4858
      %v5941 = vpop.f32.mrf.mxu0
      %v5942 = vadd.f32 %v5137, %v5941
      %v5943 = vpop.f32.mrf.mxu0
      %v5944 = vpop.f32.mrf.mxu0
      %v5945 = vpop.f32.mrf.mxu0
      %5946 = vdwg.mxu0
      %5947 = vmatprep.subr.bf16.mxu0 0
      %5948 = vmatpush1.bf16.msra.mxu0 %v5674
      %5949 = vmatprep.subr.bf16.mxu0 0
      %5950 = vmatpush1.bf16.msra.mxu0 %v5673
      %5951 = vmatprep.subr.bf16.mxu0 0
      %5952 = vmatpush1.bf16.msra.mxu0 %v5672
      %5953 = vmatprep.subr.bf16.mxu0 0
      %5954 = vmatpush1.bf16.msra.mxu0 %v5671
      %5955 = vmatprep.subr.bf16.mxu0 0
      %5956 = vmatpush1.bf16.msra.mxu0 %v5670
      %5957 = vmatprep.subr.bf16.mxu0 0
      %5958 = vmatpush1.bf16.msra.mxu0 %v5669
      %5959 = vmatprep.subr.bf16.mxu0 0
      %5960 = vmatpush1.bf16.msra.mxu0 %v5668
      %5961 = vmatprep.subr.bf16.mxu0 0
      %5962 = vmatpush1.bf16.msra.mxu0 %v5667
      %5963 = vmatprep.subr.bf16.mxu0 0
      %5964 = vmatpush2.bf16.msra.mxu0 %v5682
      %5965 = vmatprep.subr.bf16.mxu0 0
      %5966 = vmatpush2.bf16.msra.mxu0 %v5681
      %5967 = vmatprep.subr.bf16.mxu0 0
      %5968 = vmatpush2.bf16.msra.mxu0 %v5680
      %5969 = vmatprep.subr.bf16.mxu0 0
      %5970 = vmatpush2.bf16.msra.mxu0 %v5679
      %5971 = vmatprep.subr.bf16.mxu0 0
      %5972 = vmatpush2.bf16.msra.mxu0 %v5678
      %5973 = vmatprep.subr.bf16.mxu0 0
      %5974 = vmatpush2.bf16.msra.mxu0 %v5677
      %5975 = vmatprep.subr.bf16.mxu0 0
      %5976 = vmatpush2.bf16.msra.mxu0 %v5676
      %5977 = vmatprep.subr.bf16.mxu0 0
      %5978 = vmatpush2.bf16.msra.mxu0 %v5675
      %5979 = vmatprep.mubr.bf16.mxu0 %v4861
      %5980 = vmatmul.mubr.bf16.gmra.mxu0 %v4860
      %v5981 = vpop.f32.mrf.mxu0
      %v5982 = vadd.f32 %v5942, %v5981
      %v5983 = vpop.f32.mrf.mxu0
      %v5984 = vpop.f32.mrf.mxu0
      %v5985 = vpop.f32.mrf.mxu0
      %5986 = vdwg.mxu0
      %5987 = vmatprep.subr.bf16.mxu0 0
      %5988 = vmatpush1.bf16.msra.mxu0 %v5690
      %5989 = vmatprep.subr.bf16.mxu0 0
      %5990 = vmatpush1.bf16.msra.mxu0 %v5689
      %5991 = vmatprep.subr.bf16.mxu0 0
      %5992 = vmatpush1.bf16.msra.mxu0 %v5688
      %5993 = vmatprep.subr.bf16.mxu0 0
      %5994 = vmatpush1.bf16.msra.mxu0 %v5687
      %5995 = vmatprep.subr.bf16.mxu0 0
      %5996 = vmatpush1.bf16.msra.mxu0 %v5686
      %5997 = vmatprep.subr.bf16.mxu0 0
      %5998 = vmatpush1.bf16.msra.mxu0 %v5685
      %5999 = vmatprep.subr.bf16.mxu0 0
      %6000 = vmatpush1.bf16.msra.mxu0 %v5684
      %6001 = vmatprep.subr.bf16.mxu0 0
      %6002 = vmatpush1.bf16.msra.mxu0 %v5683
      %6003 = vmatprep.subr.bf16.mxu0 0
      %6004 = vmatpush2.bf16.msra.mxu0 %v5698
      %6005 = vmatprep.subr.bf16.mxu0 0
      %6006 = vmatpush2.bf16.msra.mxu0 %v5697
      %6007 = vmatprep.subr.bf16.mxu0 0
      %6008 = vmatpush2.bf16.msra.mxu0 %v5696
      %6009 = vmatprep.subr.bf16.mxu0 0
      %6010 = vmatpush2.bf16.msra.mxu0 %v5695
      %6011 = vmatprep.subr.bf16.mxu0 0
      %6012 = vmatpush2.bf16.msra.mxu0 %v5694
      %6013 = vmatprep.subr.bf16.mxu0 0
      %6014 = vmatpush2.bf16.msra.mxu0 %v5693
      %6015 = vmatprep.subr.bf16.mxu0 0
      %6016 = vmatpush2.bf16.msra.mxu0 %v5692
      %6017 = vmatprep.subr.bf16.mxu0 0
      %6018 = vmatpush2.bf16.msra.mxu0 %v5691
      %6019 = vmatprep.mubr.bf16.mxu0 %v4863
      %6020 = vmatmul.mubr.bf16.gmra.mxu0 %v4862
      %v6021 = vpop.f32.mrf.mxu0
      %v6022 = vadd.f32 %v5982, %v6021
      %v6023 = vpop.f32.mrf.mxu0
      %v6024 = vpop.f32.mrf.mxu0
      %v6025 = vpop.f32.mrf.mxu0
      %6026 = vdwg.mxu0
      %6027 = vmatprep.subr.bf16.mxu0 0
      %6028 = vmatpush1.bf16.msra.mxu0 %v5706
      %6029 = vmatprep.subr.bf16.mxu0 0
      %6030 = vmatpush1.bf16.msra.mxu0 %v5705
      %6031 = vmatprep.subr.bf16.mxu0 0
      %6032 = vmatpush1.bf16.msra.mxu0 %v5704
      %6033 = vmatprep.subr.bf16.mxu0 0
      %6034 = vmatpush1.bf16.msra.mxu0 %v5703
      %6035 = vmatprep.subr.bf16.mxu0 0
      %6036 = vmatpush1.bf16.msra.mxu0 %v5702
      %6037 = vmatprep.subr.bf16.mxu0 0
      %6038 = vmatpush1.bf16.msra.mxu0 %v5701
      %6039 = vmatprep.subr.bf16.mxu0 0
      %6040 = vmatpush1.bf16.msra.mxu0 %v5700
      %6041 = vmatprep.subr.bf16.mxu0 0
      %6042 = vmatpush1.bf16.msra.mxu0 %v5699
      %6043 = vmatprep.subr.bf16.mxu0 0
      %6044 = vmatpush2.bf16.msra.mxu0 %v5714
      %6045 = vmatprep.subr.bf16.mxu0 0
      %6046 = vmatpush2.bf16.msra.mxu0 %v5713
      %6047 = vmatprep.subr.bf16.mxu0 0
      %6048 = vmatpush2.bf16.msra.mxu0 %v5712
      %6049 = vmatprep.subr.bf16.mxu0 0
      %6050 = vmatpush2.bf16.msra.mxu0 %v5711
      %6051 = vmatprep.subr.bf16.mxu0 0
      %6052 = vmatpush2.bf16.msra.mxu0 %v5710
      %6053 = vmatprep.subr.bf16.mxu0 0
      %6054 = vmatpush2.bf16.msra.mxu0 %v5709
      %6055 = vmatprep.subr.bf16.mxu0 0
      %6056 = vmatpush2.bf16.msra.mxu0 %v5708
      %6057 = vmatprep.subr.bf16.mxu0 0
      %6058 = vmatpush2.bf16.msra.mxu0 %v5707
      %6059 = vmatprep.mubr.bf16.mxu0 %v4865
      %6060 = vmatmul.mubr.bf16.gmra.mxu0 %v4864
      %v6061 = vpop.f32.mrf.mxu0
      %v6062 = vadd.f32 %v6022, %v6061
      %v6063 = vpop.f32.mrf.mxu0
      %v6064 = vpop.f32.mrf.mxu0
      %v6065 = vpop.f32.mrf.mxu0
      %6066 = vdwg.mxu0
      %6067 = vmatprep.subr.bf16.mxu0 0
      %6068 = vmatpush1.bf16.msra.mxu0 %v5722
      %6069 = vmatprep.subr.bf16.mxu0 0
      %6070 = vmatpush1.bf16.msra.mxu0 %v5721
      %6071 = vmatprep.subr.bf16.mxu0 0
      %6072 = vmatpush1.bf16.msra.mxu0 %v5720
      %6073 = vmatprep.subr.bf16.mxu0 0
      %6074 = vmatpush1.bf16.msra.mxu0 %v5719
      %6075 = vmatprep.subr.bf16.mxu0 0
      %6076 = vmatpush1.bf16.msra.mxu0 %v5718
      %6077 = vmatprep.subr.bf16.mxu0 0
      %6078 = vmatpush1.bf16.msra.mxu0 %v5717
      %6079 = vmatprep.subr.bf16.mxu0 0
      %6080 = vmatpush1.bf16.msra.mxu0 %v5716
      %6081 = vmatprep.subr.bf16.mxu0 0
      %6082 = vmatpush1.bf16.msra.mxu0 %v5715
      %6083 = vmatprep.subr.bf16.mxu0 0
      %6084 = vmatpush2.bf16.msra.mxu0 %v5730
      %6085 = vmatprep.subr.bf16.mxu0 0
      %6086 = vmatpush2.bf16.msra.mxu0 %v5729
      %6087 = vmatprep.subr.bf16.mxu0 0
      %6088 = vmatpush2.bf16.msra.mxu0 %v5728
      %6089 = vmatprep.subr.bf16.mxu0 0
      %6090 = vmatpush2.bf16.msra.mxu0 %v5727
      %6091 = vmatprep.subr.bf16.mxu0 0
      %6092 = vmatpush2.bf16.msra.mxu0 %v5726
      %6093 = vmatprep.subr.bf16.mxu0 0
      %6094 = vmatpush2.bf16.msra.mxu0 %v5725
      %6095 = vmatprep.subr.bf16.mxu0 0
      %6096 = vmatpush2.bf16.msra.mxu0 %v5724
      %6097 = vmatprep.subr.bf16.mxu0 0
      %6098 = vmatpush2.bf16.msra.mxu0 %v5723
      %6099 = vmatprep.mubr.bf16.mxu0 %v4867
      %6100 = vmatmul.mubr.bf16.gmra.mxu0 %v4866
      %v6101 = vpop.f32.mrf.mxu0
      %v6102 = vadd.f32 %v6062, %v6101
      %v6103 = vpop.f32.mrf.mxu0
      %v6104 = vpop.f32.mrf.mxu0
      %v6105 = vpop.f32.mrf.mxu0
      %6106 = vdwg.mxu0
      %6107 = vmatprep.subr.bf16.mxu0 0
      %6108 = vmatpush1.bf16.msra.mxu0 %v5738
      %6109 = vmatprep.subr.bf16.mxu0 0
      %6110 = vmatpush1.bf16.msra.mxu0 %v5737
      %6111 = vmatprep.subr.bf16.mxu0 0
      %6112 = vmatpush1.bf16.msra.mxu0 %v5736
      %6113 = vmatprep.subr.bf16.mxu0 0
      %6114 = vmatpush1.bf16.msra.mxu0 %v5735
      %6115 = vmatprep.subr.bf16.mxu0 0
      %6116 = vmatpush1.bf16.msra.mxu0 %v5734
      %6117 = vmatprep.subr.bf16.mxu0 0
      %6118 = vmatpush1.bf16.msra.mxu0 %v5733
      %6119 = vmatprep.subr.bf16.mxu0 0
      %6120 = vmatpush1.bf16.msra.mxu0 %v5732
      %6121 = vmatprep.subr.bf16.mxu0 0
      %6122 = vmatpush1.bf16.msra.mxu0 %v5731
      %6123 = vmatprep.subr.bf16.mxu0 0
      %6124 = vmatpush2.bf16.msra.mxu0 %v5746
      %6125 = vmatprep.subr.bf16.mxu0 0
      %6126 = vmatpush2.bf16.msra.mxu0 %v5745
      %6127 = vmatprep.subr.bf16.mxu0 0
      %6128 = vmatpush2.bf16.msra.mxu0 %v5744
      %6129 = vmatprep.subr.bf16.mxu0 0
      %6130 = vmatpush2.bf16.msra.mxu0 %v5743
      %6131 = vmatprep.subr.bf16.mxu0 0
      %6132 = vmatpush2.bf16.msra.mxu0 %v5742
      %6133 = vmatprep.subr.bf16.mxu0 0
      %6134 = vmatpush2.bf16.msra.mxu0 %v5741
      %6135 = vmatprep.subr.bf16.mxu0 0
      %6136 = vmatpush2.bf16.msra.mxu0 %v5740
      %6137 = vmatprep.subr.bf16.mxu0 0
      %6138 = vmatpush2.bf16.msra.mxu0 %v5739
      %6139 = vmatprep.mubr.bf16.mxu0 %v4869
      %6140 = vmatmul.mubr.bf16.gmra.mxu0 %v4868
      %v6141 = vpop.f32.mrf.mxu0
      %v6142 = vadd.f32 %v6102, %v6141
      %v6143 = vpop.f32.mrf.mxu0
      %v6144 = vpop.f32.mrf.mxu0
      %v6145 = vpop.f32.mrf.mxu0
      %6146 = vdwg.mxu0
      %6147 = vmatprep.subr.bf16.mxu0 0
      %6148 = vmatpush1.bf16.msra.mxu0 %v5754
      %6149 = vmatprep.subr.bf16.mxu0 0
      %6150 = vmatpush1.bf16.msra.mxu0 %v5753
      %6151 = vmatprep.subr.bf16.mxu0 0
      %6152 = vmatpush1.bf16.msra.mxu0 %v5752
      %6153 = vmatprep.subr.bf16.mxu0 0
      %6154 = vmatpush1.bf16.msra.mxu0 %v5751
      %6155 = vmatprep.subr.bf16.mxu0 0
      %6156 = vmatpush1.bf16.msra.mxu0 %v5750
      %6157 = vmatprep.subr.bf16.mxu0 0
      %6158 = vmatpush1.bf16.msra.mxu0 %v5749
      %6159 = vmatprep.subr.bf16.mxu0 0
      %6160 = vmatpush1.bf16.msra.mxu0 %v5748
      %6161 = vmatprep.subr.bf16.mxu0 0
      %6162 = vmatpush1.bf16.msra.mxu0 %v5747
      %6163 = vmatprep.subr.bf16.mxu0 0
      %6164 = vmatpush2.bf16.msra.mxu0 %v5762
      %6165 = vmatprep.subr.bf16.mxu0 0
      %6166 = vmatpush2.bf16.msra.mxu0 %v5761
      %6167 = vmatprep.subr.bf16.mxu0 0
      %6168 = vmatpush2.bf16.msra.mxu0 %v5760
      %6169 = vmatprep.subr.bf16.mxu0 0
      %6170 = vmatpush2.bf16.msra.mxu0 %v5759
      %6171 = vmatprep.subr.bf16.mxu0 0
      %6172 = vmatpush2.bf16.msra.mxu0 %v5758
      %6173 = vmatprep.subr.bf16.mxu0 0
      %6174 = vmatpush2.bf16.msra.mxu0 %v5757
      %6175 = vmatprep.subr.bf16.mxu0 0
      %6176 = vmatpush2.bf16.msra.mxu0 %v5756
      %6177 = vmatprep.subr.bf16.mxu0 0
      %6178 = vmatpush2.bf16.msra.mxu0 %v5755
      %6179 = vmatprep.mubr.bf16.mxu0 %v4871
      %6180 = vmatmul.mubr.bf16.gmra.mxu0 %v4870
      %v6181 = vpop.f32.mrf.mxu0
      %v6182 = vadd.f32 %v6142, %v6181
      %v6183 = vpop.f32.mrf.mxu0
      %v6184 = vpop.f32.mrf.mxu0
      %v6185 = vpop.f32.mrf.mxu0
      %6186 = vdwg.mxu0
      %6187 = vmatprep.subr.bf16.mxu0 0
      %6188 = vmatpush1.bf16.msra.mxu0 %v5770
      %6189 = vmatprep.subr.bf16.mxu0 0
      %6190 = vmatpush1.bf16.msra.mxu0 %v5769
      %6191 = vmatprep.subr.bf16.mxu0 0
      %6192 = vmatpush1.bf16.msra.mxu0 %v5768
      %6193 = vmatprep.subr.bf16.mxu0 0
      %6194 = vmatpush1.bf16.msra.mxu0 %v5767
      %6195 = vmatprep.subr.bf16.mxu0 0
      %6196 = vmatpush1.bf16.msra.mxu0 %v5766
      %6197 = vmatprep.subr.bf16.mxu0 0
      %6198 = vmatpush1.bf16.msra.mxu0 %v5765
      %6199 = vmatprep.subr.bf16.mxu0 0
      %6200 = vmatpush1.bf16.msra.mxu0 %v5764
      %6201 = vmatprep.subr.bf16.mxu0 0
      %6202 = vmatpush1.bf16.msra.mxu0 %v5763
      %6203 = vmatprep.subr.bf16.mxu0 0
      %6204 = vmatpush2.bf16.msra.mxu0 %v5778
      %6205 = vmatprep.subr.bf16.mxu0 0
      %6206 = vmatpush2.bf16.msra.mxu0 %v5777
      %6207 = vmatprep.subr.bf16.mxu0 0
      %6208 = vmatpush2.bf16.msra.mxu0 %v5776
      %6209 = vmatprep.subr.bf16.mxu0 0
      %6210 = vmatpush2.bf16.msra.mxu0 %v5775
      %6211 = vmatprep.subr.bf16.mxu0 0
      %6212 = vmatpush2.bf16.msra.mxu0 %v5774
      %6213 = vmatprep.subr.bf16.mxu0 0
      %6214 = vmatpush2.bf16.msra.mxu0 %v5773
      %6215 = vmatprep.subr.bf16.mxu0 0
      %6216 = vmatpush2.bf16.msra.mxu0 %v5772
      %6217 = vmatprep.subr.bf16.mxu0 0
      %6218 = vmatpush2.bf16.msra.mxu0 %v5771
      %6219 = vmatprep.mubr.bf16.mxu0 %v4873
      %6220 = vmatmul.mubr.bf16.gmra.mxu0 %v4872
      %v6221 = vpop.f32.mrf.mxu0
      %v6222 = vadd.f32 %v6182, %v6221
      %v6223 = vpop.f32.mrf.mxu0
      %v6224 = vpop.f32.mrf.mxu0
      %v6225 = vpop.f32.mrf.mxu0
      %6226 = vdwg.mxu0
      %v6227 = vadd.f32 %v4231, %v6222
      %s6228 = scalar_lea.vmem %s18, 1
      %v6229 = vld [vmem:[%s6228] sm:$0x1]
      %s6230 = scalar_lea.vmem %s19, 1
      %v6231 = vld [vmem:[%s6230] sm:$0x1]
      %v6232 = vsel %vm781, %v6227, 0.0
      %6233 = vadd.xlane.f32.xlu0 %v6232
      %v6234 = vpop.xlane.xlu0 %6233
      %v6235 = vmul.f32 %v6234, %v1456
      %v6236 = vsub.f32 %v6227, %v6235
      %v6237 = vmul.f32 %v6236, %v6236
      %v6238 = vsel %vm781, %v6237, 0.0
      %6239 = vadd.xlane.f32.xlu0 %v6238
      %v6240 = vpop.xlane.xlu0 %6239
      %v6241 = vmul.f32 %v6240, %v1456
      %v6242 = vadd.f32 %v6241, 1e-05
      %v6243 = vrsqrt.pop %v6242
      %v6244 = vmul.f32 %v6236, %v6243
      %v6246 = vlaneseq
      %v6247 = vshrl.u32 %v6246, 7
      %v6248 = vsub.s32 0, %v6247
      %v6249 = vrot.slane %v6229, %v6248
      %v6251 = vmul.f32 %v6244, %v6249
      %v6253 = vlaneseq
      %v6254 = vshrl.u32 %v6253, 7
      %v6255 = vsub.s32 0, %v6254
      %v6256 = vrot.slane %v6231, %v6255
      %v6258 = vadd.f32 %v6251, %v6256
      %v6259 = vld [vmem:[%s20] sm:$0xf]
      %v6260 = vld [vmem:[%s20 + $0x4] sm:$0xf]
      %v6261 = vld [vmem:[%s20 + $0x8] sm:$0xf]
      %v6262 = vld [vmem:[%s20 + $0xc] sm:$0xf]
      %v6263 = vpack.c.bf16 %v6258, %v6258
      %v6264 = vld [vmem:[%s21] sm:$0x1]
      %v6266 = vlaneseq
      %v6267 = vshrl.u32 %v6266, 7
      %v6268 = vsub.s32 0, %v6267
      %v6269 = vrot.slane %v6264, %v6268
      %v6275 = vunpack.c.l.b16 %v6259
      %v6276 = vunpack.c.l.b16 %v6260
      %v6277 = vunpack.c.l.b16 %v6261
      %v6278 = vunpack.c.l.b16 %v6262
      %v6279 = vpack.c.b16 %v6276, %v6275
      %v6280 = vpack.c.b16 %v6278, %v6277
      %v6284 = vsel %vm781, %v6263, 0
      %6286 = vmatprep.subr.bf16.mxu0 0
      %6287 = vmatpush1.bf16.msra.mxu0 0
      %6288 = vmatprep.subr.bf16.mxu0 0
      %6289 = vmatpush1.bf16.msra.mxu0 0
      %6290 = vmatprep.subr.bf16.mxu0 0
      %6291 = vmatpush1.bf16.msra.mxu0 0
      %6292 = vmatprep.subr.bf16.mxu0 0
      %6293 = vmatpush1.bf16.msra.mxu0 0
      %6294 = vmatprep.subr.bf16.mxu0 0
      %6295 = vmatpush1.bf16.msra.mxu0 0
      %6296 = vmatprep.subr.bf16.mxu0 0
      %6297 = vmatpush1.bf16.msra.mxu0 0
      %6298 = vmatprep.subr.bf16.mxu0 0
      %6299 = vmatpush1.bf16.msra.mxu0 %v6280
      %6300 = vmatprep.subr.bf16.mxu0 0
      %6301 = vmatpush1.bf16.msra.mxu0 %v6279
      %6302 = vmatprep.subr.bf16.mxu0 0
      %6303 = vmatpush2.bf16.msra.mxu0 0
      %6304 = vmatprep.subr.bf16.mxu0 0
      %6305 = vmatpush2.bf16.msra.mxu0 0
      %6306 = vmatprep.subr.bf16.mxu0 0
      %6307 = vmatpush2.bf16.msra.mxu0 0
      %6308 = vmatprep.subr.bf16.mxu0 0
      %6309 = vmatpush2.bf16.msra.mxu0 0
      %6310 = vmatprep.subr.bf16.mxu0 0
      %6311 = vmatpush2.bf16.msra.mxu0 0
      %6312 = vmatprep.subr.bf16.mxu0 0
      %6313 = vmatpush2.bf16.msra.mxu0 0
      %6314 = vmatprep.subr.bf16.mxu0 0
      %6315 = vmatpush2.bf16.msra.mxu0 0
      %6316 = vmatprep.subr.bf16.mxu0 0
      %6317 = vmatpush2.bf16.msra.mxu0 0
      %6318 = vmatprep.mubr.bf16.mxu0 0
      %6319 = vmatmul.mubr.bf16.gmra.mxu0 %v6284
      %v6320 = vpop.f32.mrf.mxu0
      %v6321 = vadd.f32 %v6269, %v6320
      %v6322 = vpop.f32.mrf.mxu0
      %v6323 = vpop.f32.mrf.mxu0
      %v6324 = vpop.f32.mrf.mxu0
      %6325 = vdwg.mxu0
      %v6326 = vxor.u32 %v6321, 2147483648
      %v6327 = vmul.f32 %v6326, 1.442695
      %v6328 = vpow.pop %v6327
      %v6329 = vadd.f32 %v6328, 1.0
      %v6330 = vrcp.pop %v6329
      %v6331 = vmul.f32 1.0, %v6330
      %vm6332 = vcmp.lt.s32.totalorder %v681, 7
      %vm6333 = vmand %vm682, %vm6332
      %v6334 = vsel %vm6333, %v6321, -inf
      %6335 = vmax.xlane.f32.xlu0 %v6334
      %v6336 = vpop.xlane.xlu0 %6335
      %v6337 = vsub.f32 %v6334, %v6336
      %v6338 = vmul.f32 %v6337, 1.442695
      %v6339 = vpow.pop %v6338
      %6340 = vadd.xlane.f32.xlu0 %v6339
      %v6341 = vpop.xlane.xlu0 %6340
      %v6342 = vrcp.pop %v6341
      %v6343 = vmul.f32 %v6339, %v6342
      %v6344 = vsel %vm6333, %v6343, 0.0
      %vm6345 = vcmp.ge.s32.totalorder %v681, 7
      %vm6346 = vcmp.lt.s32.totalorder %v681, 12
      %vm6347 = vmand %vm6345, %vm6346
      %v6348 = vsel %vm6347, %v6331, %v6344
      %6349 = vst [vmem:[%s678] sm:$0xff] %v6348
      %p6350 = scmp.lt.s32.totalorder %s33, 1
      %s6351 = scalar_select %p6350, %s33, 1
      %s6352 = smul.addr %s6351, 8
      %s6353 = scalar_lea.vmem %s22, %s6352
      // Predicated region
      $region109: #{forward.1} parent=107 // pred_check
        %p6354 = pneg %p518
      $region110: #{forward.1} parent=107 // pred_check_branch
        %6356 = sbr.rel (%p6354) target = $region112
      $region111: #{forward.1} parent=107 // pred_region
        _
      $region112: #{forward.1} parent=107 // pred_fallthru
        _
    $region108: #{forward.1} parent=5 // pred_fallthru
      _
    %p6357 = scmp.le.s32.totalorder 2, %s28
    // Predicated region
    $region113: #{forward.1} parent=5 // pred_check
      %p6358 = pneg %p6357
    $region114: #{forward.1} parent=5 // pred_check_branch
      %6360 = sbr.rel (%p6358) target = $region116
    $region115: #{forward.1} parent=5 // pred_region
      %s6361 = ssub.s32 %s28, 2
      // Predicated region
      $region117: #{forward.1} parent=115 // pred_check
        %p6362 = pneg %p524
      $region118: #{forward.1} parent=115 // pred_check_branch
        %6364 = sbr.rel (%p6362) target = $region120
      $region119: #{forward.1} parent=115 // pred_region
        %p6365 = scmp.lt.s32.totalorder %s34, 1
        %s6366 = scalar_select %p6365, %s34, 1
        %s6367 = smul.addr %s6366, 8
        %s6368 = scalar_lea.vmem %s22, %s6367
      $region120: #{forward.1} parent=115 // pred_fallthru
        _
    $region116: #{forward.1} parent=5 // pred_fallthru
      _
  $region6: #{forward.1} parent=0 // loop_footer
    %s32 = sadd.s32 1, %s28
  $region7: #{forward.1} parent=0 // loop_footer_branch
    %27 = sbr.rel target = $region3
  $region8: #{forward.1} parent=0 // loop_exit
    _

</llo_original>
